<compile_context>
chip_gen: v6e
topology: v6e:2x2x1
jax: 0.10.0
libtpu: 0.0.40
codegen_flags: <defaults>
</compile_context>

<pallas_src>
import jax
import jax.numpy as jnp
from jax.experimental import pallas as pl
from jax.experimental.pallas import tpu as pltpu


def _round_up(n, m):
    return -(-n // m) * m


def _leaky_relu(x, slope=0.02):
    # max(x, slope*x) == LeakyReLU(slope) for slope in (0, 1).
    return jnp.maximum(x, slope * x)


def lbae_encoder_kernel(
    x_ref,
    w0a_ref, b0a_ref,
    w0b_ref, b0b_ref,
    w1a_ref, b1a_ref,
    w1b_ref, b1b_ref,
    w2a_ref, b2a_ref,
    w2b_ref, b2b_ref,
    out_ref,
):
    tb = x_ref.shape[0]

    def layer(h, w_ref, b_ref, residual=None):
        # bf16 MXU matmul, f32 accumulation; f32 epilogue, one cast back to
        # bf16 so only bf16 activations stay live between layers.
        acc = jnp.dot(h, w_ref[...], preferred_element_type=jnp.float32)
        acc = acc + b_ref[...]
        if residual is not None:
            acc = acc + residual          # bf16 residual promotes to f32
        return _leaky_relu(acc).astype(jnp.bfloat16)

    def run_rows(start, rows):
        x = x_ref[start:start + rows, :]             # bf16
        h = layer(x, w0a_ref, b0a_ref, residual=x)   # enc0a + residual
        h = layer(h, w0b_ref, b0b_ref)               # enc0b
        h = layer(h, w1a_ref, b1a_ref, residual=h)   # enc1a + residual
        h = layer(h, w1b_ref, b1b_ref)               # enc1b
        h = layer(h, w2a_ref, b2a_ref, residual=h)   # enc2a + residual
        # enc2b logits; tanh is monotone and sign-preserving (tanh(0)=0), so
        # the quantized output of sign(tanh(l)) equals sign(l) with 0 -> +1.
        logits = jnp.dot(h, w2b_ref[...],
                         preferred_element_type=jnp.float32) + b2b_ref[...]
        out_ref[start:start + rows, :] = jnp.where(
            logits >= 0, 1.0, -1.0).astype(out_ref.dtype)

    if tb >= 32:
        # Two independent row halves (16-row aligned: bf16 sublane tiles are
        # never split) so the MXU work of one half can hide the VPU epilogue
        # of the other.
        half = _round_up(tb // 2, 16)
        run_rows(0, half)
        run_rows(half, tb - half)
    else:
        run_rows(0, tb)


def lbae_encoder(x, params, *, tb=512):
    """x: (B, 1024) float. params: dict name -> (W[in,out] f32, b[1,out] f32)."""
    B, D = x.shape
    assert D == 1024

    # Tile selection: everything is a multiple of 16 rows (bf16 sublane tile).
    # For batches that would otherwise be a single tile, split into two tiles
    # so the "parallel" grid axis can shard across both v7x TensorCores.
    tb = max(32, _round_up(tb, 32))
    B16 = _round_up(B, 16)
    if B16 >= 2 * tb:
        tb_eff = tb
    elif B16 >= 32:
        tb_eff = _round_up(B16 // 2, 16)
    else:
        tb_eff = B16
    Bp = _round_up(B16, tb_eff)
    grid = Bp // tb_eff

    # Input shipped as bf16 (halves the per-tile input DMA). Padded rows are
    # garbage (+/-1 driven by biases) and are sliced off after the call.
    xb = x.astype(jnp.bfloat16)
    if Bp != B:
        xb = jnp.pad(xb, ((0, Bp - B), (0, 0)))

    names = ["enc0a", "enc0b", "enc1a", "enc1b", "enc2a", "enc2b"]
    flat = []
    for n in names:
        w, b = params[n]
        flat.append(w.astype(jnp.bfloat16))   # MXU inputs in bf16
        flat.append(b.astype(jnp.float32))    # biases stay f32 (post-accum add)

    def const_spec(shape):
        # Grid-invariant weights/biases: full block, single-buffered resident.
        return pl.BlockSpec(shape, lambda i: (0,) * len(shape),
                            pipeline_mode=pl.Buffered(1))

    if grid >= 3:
        # Deeper input pipeline hides HBM jitter on long batch grids.
        x_spec = pl.BlockSpec((tb_eff, 1024), lambda i: (i, 0),
                              pipeline_mode=pl.Buffered(3))
    else:
        x_spec = pl.BlockSpec((tb_eff, 1024), lambda i: (i, 0))

    in_specs = [x_spec] + [const_spec(a.shape) for a in flat]
    out_spec = pl.BlockSpec((tb_eff, 128), lambda i: (i, 0))

    out = pl.pallas_call(
        lbae_encoder_kernel,
        out_shape=jax.ShapeDtypeStruct((Bp, 128), jnp.bfloat16),
        grid_spec=pltpu.PrefetchScalarGridSpec(
            num_scalar_prefetch=0,
            grid=(grid,),
            in_specs=in_specs,
            out_specs=out_spec,
        ),
        compiler_params=pltpu.CompilerParams(
            dimension_semantics=("parallel",),
            vmem_limit_bytes=48 << 20,   # under v7x's 64 MiB/TC physical VMEM
        ),
    )(xb, *flat)

    return out[:B]


def init_params(key):
    """Deterministic init matching nn.Linear default (uniform +/- 1/sqrt(fan_in)).

    Weights are stored transposed to (in_features, out_features); biases as (1, out).
    """
    layer_dims = {
        "enc0a": (1024, 1024),
        "enc0b": (1024, 512),
        "enc1a": (512, 512),
        "enc1b": (512, 256),
        "enc2a": (256, 256),
        "enc2b": (256, 128),
    }
    params = {}
    for name, (fan_in, fan_out) in layer_dims.items():
        key, kw, kb = jax.random.split(key, 3)
        bound = 1.0 / jnp.sqrt(fan_in)
        w = jax.random.uniform(kw, (fan_in, fan_out), jnp.float32, -bound, bound)
        b = jax.random.uniform(kb, (1, fan_out), jnp.float32, -bound, bound)
        params[name] = (w, b)
    return params


def lbae_encoder_ref(x, params):
    """Pure-JAX f32 reference. Returns (quantized output, pre-tanh logits)."""
    def lin(h, name):
        w, b = params[name]
        return h @ w + b

    def lrelu(v):
        return jnp.where(v >= 0, v, 0.02 * v)

    h = lrelu(lin(x, "enc0a") + x)
    h = lrelu(lin(h, "enc0b"))
    h = lrelu(lin(h, "enc1a") + h)
    h = lrelu(lin(h, "enc1b"))
    h = lrelu(lin(h, "enc2a") + h)
    logits = lin(h, "enc2b")
    q = jnp.where(jnp.tanh(logits) >= 0, 1.0, -1.0)
    return q, logits


if __name__ == "__main__":
    key = jax.random.PRNGKey(0)
    kx, kp = jax.random.split(key)
    params = init_params(kp)

    def check(B):
        x = jax.random.normal(jax.random.fold_in(kx, B), (B, 1024), jnp.float32)
        out = jax.block_until_ready(lbae_encoder(x, params))
        assert out.shape == (B, 128)
        outf = out.astype(jnp.float32)
        assert bool(jnp.all(jnp.abs(outf) == 1.0))

        ref_q, ref_logits = lbae_encoder_ref(x, params)
        # bf16 matmuls/activations can only flip the sign of logits that are
        # ~0 in f32; require exact sign agreement away from the decision
        # boundary and high agreement overall.
        confident = jnp.abs(ref_logits) > 1e-1
        assert bool(jnp.all(jnp.where(confident, outf == ref_q, True)))
        assert float(jnp.mean((outf == ref_q).astype(jnp.float32))) > 0.95

    check(8)      # tiny batch: single 16-row tile, grid=1, no in-kernel split
    check(1040)   # tb=512, grid=3: exercises split halves + Buffered(3) input

    print("KERNEL_OK")
</pallas_src>

<mosaic_0001>
module attributes {stable_mosaic.version = 11 : i64} {
  func.func @lbae_encoder_kernel(%arg0: i32, %arg1: memref<16x1024xbf16, #tpu.memory_space<vmem>>, %arg2: memref<1024x1024xbf16, #tpu.memory_space<vmem>>, %arg3: memref<1x1024xf32, #tpu.memory_space<vmem>>, %arg4: memref<1024x512xbf16, #tpu.memory_space<vmem>>, %arg5: memref<1x512xf32, #tpu.memory_space<vmem>>, %arg6: memref<512x512xbf16, #tpu.memory_space<vmem>>, %arg7: memref<1x512xf32, #tpu.memory_space<vmem>>, %arg8: memref<512x256xbf16, #tpu.memory_space<vmem>>, %arg9: memref<1x256xf32, #tpu.memory_space<vmem>>, %arg10: memref<256x256xbf16, #tpu.memory_space<vmem>>, %arg11: memref<1x256xf32, #tpu.memory_space<vmem>>, %arg12: memref<256x128xbf16, #tpu.memory_space<vmem>>, %arg13: memref<1x128xf32, #tpu.memory_space<vmem>>, %arg14: memref<16x128xbf16, #tpu.memory_space<vmem>>) attributes {dimension_semantics = [#tpu.dimension_semantics<parallel>], iteration_bounds = array<i64: 1>, scalar_prefetch = 0 : i64, scratch_operands = 0 : i64, tpu.core_type = #tpu.core_type<tc>, window_params = [{transform_indices = @transform_0, window_bounds = array<i64: 16, 1024>}, {pipeline_mode = #tpu.pipeline_mode<synchronous>, transform_indices = @transform_1, window_bounds = array<i64: 1024, 1024>}, {pipeline_mode = #tpu.pipeline_mode<synchronous>, transform_indices = @transform_2, window_bounds = array<i64: 1, 1024>}, {pipeline_mode = #tpu.pipeline_mode<synchronous>, transform_indices = @transform_3, window_bounds = array<i64: 1024, 512>}, {pipeline_mode = #tpu.pipeline_mode<synchronous>, transform_indices = @transform_4, window_bounds = array<i64: 1, 512>}, {pipeline_mode = #tpu.pipeline_mode<synchronous>, transform_indices = @transform_5, window_bounds = array<i64: 512, 512>}, {pipeline_mode = #tpu.pipeline_mode<synchronous>, transform_indices = @transform_6, window_bounds = array<i64: 1, 512>}, {pipeline_mode = #tpu.pipeline_mode<synchronous>, transform_indices = @transform_7, window_bounds = array<i64: 512, 256>}, {pipeline_mode = #tpu.pipeline_mode<synchronous>, transform_indices = @transform_8, window_bounds = array<i64: 1, 256>}, {pipeline_mode = #tpu.pipeline_mode<synchronous>, transform_indices = @transform_9, window_bounds = array<i64: 256, 256>}, {pipeline_mode = #tpu.pipeline_mode<synchronous>, transform_indices = @transform_10, window_bounds = array<i64: 1, 256>}, {pipeline_mode = #tpu.pipeline_mode<synchronous>, transform_indices = @transform_11, window_bounds = array<i64: 256, 128>}, {pipeline_mode = #tpu.pipeline_mode<synchronous>, transform_indices = @transform_12, window_bounds = array<i64: 1, 128>}, {transform_indices = @transform_13, window_bounds = array<i64: 16, 128>}]} {
    %c0 = arith.constant 0 : index
    %c0_0 = arith.constant 0 : index
    %0 = vector.load %arg1[%c0, %c0_0] : memref<16x1024xbf16, #tpu.memory_space<vmem>>, vector<16x1024xbf16>
    %c0_1 = arith.constant 0 : index
    %c0_2 = arith.constant 0 : index
    %1 = vector.load %arg2[%c0_1, %c0_2] : memref<1024x1024xbf16, #tpu.memory_space<vmem>>, vector<1024x1024xbf16>
    %cst = arith.constant dense<0.000000e+00> : vector<16x1024xf32>
    %2 = tpu.matmul %0, %1, %cst {dimension_numbers = #tpu.dot_dimension_numbers<[1], [0], [0], [1], [0, 0, 1, 1], [], []>} : vector<16x1024xbf16>, vector<1024x1024xbf16>, vector<16x1024xf32> -> vector<16x1024xf32>
    %c0_3 = arith.constant 0 : index
    %c0_4 = arith.constant 0 : index
    %3 = vector.load %arg3[%c0_3, %c0_4] : memref<1x1024xf32, #tpu.memory_space<vmem>>, vector<1x1024xf32>
    %4 = vector.broadcast %3 : vector<1x1024xf32> to vector<16x1024xf32>
    %5 = arith.addf %2, %4 : vector<16x1024xf32>
    %6 = arith.extf %0 : vector<16x1024xbf16> to vector<16x1024xf32>
    %7 = arith.addf %5, %6 : vector<16x1024xf32>
    %cst_5 = arith.constant 2.000000e-02 : f32
    %8 = vector.broadcast %cst_5 : f32 to vector<16x1024xf32>
    %9 = arith.mulf %8, %7 : vector<16x1024xf32>
    %10 = arith.maximumf %7, %9 : vector<16x1024xf32>
    %11 = arith.truncf %10 : vector<16x1024xf32> to vector<16x1024xbf16>
    %c0_6 = arith.constant 0 : index
    %c0_7 = arith.constant 0 : index
    %12 = vector.load %arg4[%c0_6, %c0_7] : memref<1024x512xbf16, #tpu.memory_space<vmem>>, vector<1024x512xbf16>
    %cst_8 = arith.constant dense<0.000000e+00> : vector<16x512xf32>
    %13 = tpu.matmul %11, %12, %cst_8 {dimension_numbers = #tpu.dot_dimension_numbers<[1], [0], [0], [1], [0, 0, 1, 1], [], []>} : vector<16x1024xbf16>, vector<1024x512xbf16>, vector<16x512xf32> -> vector<16x512xf32>
    %c0_9 = arith.constant 0 : index
    %c0_10 = arith.constant 0 : index
    %14 = vector.load %arg5[%c0_9, %c0_10] : memref<1x512xf32, #tpu.memory_space<vmem>>, vector<1x512xf32>
    %15 = vector.broadcast %14 : vector<1x512xf32> to vector<16x512xf32>
    %16 = arith.addf %13, %15 : vector<16x512xf32>
    %cst_11 = arith.constant 2.000000e-02 : f32
    %17 = vector.broadcast %cst_11 : f32 to vector<16x512xf32>
    %18 = arith.mulf %17, %16 : vector<16x512xf32>
    %19 = arith.maximumf %16, %18 : vector<16x512xf32>
    %20 = arith.truncf %19 : vector<16x512xf32> to vector<16x512xbf16>
    %c0_12 = arith.constant 0 : index
    %c0_13 = arith.constant 0 : index
    %21 = vector.load %arg6[%c0_12, %c0_13] : memref<512x512xbf16, #tpu.memory_space<vmem>>, vector<512x512xbf16>
    %cst_14 = arith.constant dense<0.000000e+00> : vector<16x512xf32>
    %22 = tpu.matmul %20, %21, %cst_14 {dimension_numbers = #tpu.dot_dimension_numbers<[1], [0], [0], [1], [0, 0, 1, 1], [], []>} : vector<16x512xbf16>, vector<512x512xbf16>, vector<16x512xf32> -> vector<16x512xf32>
    %c0_15 = arith.constant 0 : index
    %c0_16 = arith.constant 0 : index
    %23 = vector.load %arg7[%c0_15, %c0_16] : memref<1x512xf32, #tpu.memory_space<vmem>>, vector<1x512xf32>
    %24 = vector.broadcast %23 : vector<1x512xf32> to vector<16x512xf32>
    %25 = arith.addf %22, %24 : vector<16x512xf32>
    %26 = arith.extf %20 : vector<16x512xbf16> to vector<16x512xf32>
    %27 = arith.addf %25, %26 : vector<16x512xf32>
    %cst_17 = arith.constant 2.000000e-02 : f32
    %28 = vector.broadcast %cst_17 : f32 to vector<16x512xf32>
    %29 = arith.mulf %28, %27 : vector<16x512xf32>
    %30 = arith.maximumf %27, %29 : vector<16x512xf32>
    %31 = arith.truncf %30 : vector<16x512xf32> to vector<16x512xbf16>
    %c0_18 = arith.constant 0 : index
    %c0_19 = arith.constant 0 : index
    %32 = vector.load %arg8[%c0_18, %c0_19] : memref<512x256xbf16, #tpu.memory_space<vmem>>, vector<512x256xbf16>
    %cst_20 = arith.constant dense<0.000000e+00> : vector<16x256xf32>
    %33 = tpu.matmul %31, %32, %cst_20 {dimension_numbers = #tpu.dot_dimension_numbers<[1], [0], [0], [1], [0, 0, 1, 1], [], []>} : vector<16x512xbf16>, vector<512x256xbf16>, vector<16x256xf32> -> vector<16x256xf32>
    %c0_21 = arith.constant 0 : index
    %c0_22 = arith.constant 0 : index
    %34 = vector.load %arg9[%c0_21, %c0_22] : memref<1x256xf32, #tpu.memory_space<vmem>>, vector<1x256xf32>
    %35 = vector.broadcast %34 : vector<1x256xf32> to vector<16x256xf32>
    %36 = arith.addf %33, %35 : vector<16x256xf32>
    %cst_23 = arith.constant 2.000000e-02 : f32
    %37 = vector.broadcast %cst_23 : f32 to vector<16x256xf32>
    %38 = arith.mulf %37, %36 : vector<16x256xf32>
    %39 = arith.maximumf %36, %38 : vector<16x256xf32>
    %40 = arith.truncf %39 : vector<16x256xf32> to vector<16x256xbf16>
    %c0_24 = arith.constant 0 : index
    %c0_25 = arith.constant 0 : index
    %41 = vector.load %arg10[%c0_24, %c0_25] : memref<256x256xbf16, #tpu.memory_space<vmem>>, vector<256x256xbf16>
    %cst_26 = arith.constant dense<0.000000e+00> : vector<16x256xf32>
    %42 = tpu.matmul %40, %41, %cst_26 {dimension_numbers = #tpu.dot_dimension_numbers<[1], [0], [0], [1], [0, 0, 1, 1], [], []>} : vector<16x256xbf16>, vector<256x256xbf16>, vector<16x256xf32> -> vector<16x256xf32>
    %c0_27 = arith.constant 0 : index
    %c0_28 = arith.constant 0 : index
    %43 = vector.load %arg11[%c0_27, %c0_28] : memref<1x256xf32, #tpu.memory_space<vmem>>, vector<1x256xf32>
    %44 = vector.broadcast %43 : vector<1x256xf32> to vector<16x256xf32>
    %45 = arith.addf %42, %44 : vector<16x256xf32>
    %46 = arith.extf %40 : vector<16x256xbf16> to vector<16x256xf32>
    %47 = arith.addf %45, %46 : vector<16x256xf32>
    %cst_29 = arith.constant 2.000000e-02 : f32
    %48 = vector.broadcast %cst_29 : f32 to vector<16x256xf32>
    %49 = arith.mulf %48, %47 : vector<16x256xf32>
    %50 = arith.maximumf %47, %49 : vector<16x256xf32>
    %51 = arith.truncf %50 : vector<16x256xf32> to vector<16x256xbf16>
    %c0_30 = arith.constant 0 : index
    %c0_31 = arith.constant 0 : index
    %52 = vector.load %arg12[%c0_30, %c0_31] : memref<256x128xbf16, #tpu.memory_space<vmem>>, vector<256x128xbf16>
    %cst_32 = arith.constant dense<0.000000e+00> : vector<16x128xf32>
    %53 = tpu.matmul %51, %52, %cst_32 {dimension_numbers = #tpu.dot_dimension_numbers<[1], [0], [0], [1], [0, 0, 1, 1], [], []>} : vector<16x256xbf16>, vector<256x128xbf16>, vector<16x128xf32> -> vector<16x128xf32>
    %c0_33 = arith.constant 0 : index
    %c0_34 = arith.constant 0 : index
    %54 = vector.load %arg13[%c0_33, %c0_34] : memref<1x128xf32, #tpu.memory_space<vmem>>, vector<1x128xf32>
    %55 = vector.broadcast %54 : vector<1x128xf32> to vector<16x128xf32>
    %56 = arith.addf %53, %55 : vector<16x128xf32>
    %cst_35 = arith.constant 0.000000e+00 : f32
    %57 = vector.broadcast %cst_35 : f32 to vector<16x128xf32>
    %58 = arith.cmpf oge, %56, %57 : vector<16x128xf32>
    %cst_36 = arith.constant 1.000000e+00 : f32
    %cst_37 = arith.constant -1.000000e+00 : f32
    %59 = vector.broadcast %cst_36 : f32 to vector<16x128xf32>
    %60 = vector.broadcast %cst_37 : f32 to vector<16x128xf32>
    %61 = arith.select %58, %59, %60 : vector<16x128xi1>, vector<16x128xf32>
    %62 = arith.truncf %61 : vector<16x128xf32> to vector<16x128xbf16>
    %c0_38 = arith.constant 0 : index
    %c0_39 = arith.constant 0 : index
    %63 = vector.load %arg14[%c0_38, %c0_39] : memref<16x128xbf16, #tpu.memory_space<vmem>>, vector<16x128xbf16>
    tpu.vector_store %arg14[%c0_38, %c0_39], %62 {strides = array<i32>} : memref<16x128xbf16, #tpu.memory_space<vmem>>, vector<16x128xbf16>,
    return
  }
  func.func @transform_0(%arg0: i32) -> (i32, i32) {
    %c0_i32 = arith.constant 0 : i32
    %c0_i32_0 = arith.constant 0 : i32
    return %arg0, %c0_i32 : i32, i32
  }
  func.func @transform_1(%arg0: i32) -> (i32, i32) {
    %c0_i32 = arith.constant 0 : i32
    %c0_i32_0 = arith.constant 0 : i32
    %c0_i32_1 = arith.constant 0 : i32
    return %c0_i32, %c0_i32_0 : i32, i32
  }
  func.func @transform_2(%arg0: i32) -> (i32, i32) {
    %c0_i32 = arith.constant 0 : i32
    %c0_i32_0 = arith.constant 0 : i32
    %c0_i32_1 = arith.constant 0 : i32
    return %c0_i32, %c0_i32_0 : i32, i32
  }
  func.func @transform_3(%arg0: i32) -> (i32, i32) {
    %c0_i32 = arith.constant 0 : i32
    %c0_i32_0 = arith.constant 0 : i32
    %c0_i32_1 = arith.constant 0 : i32
    return %c0_i32, %c0_i32_0 : i32, i32
  }
  func.func @transform_4(%arg0: i32) -> (i32, i32) {
    %c0_i32 = arith.constant 0 : i32
    %c0_i32_0 = arith.constant 0 : i32
    %c0_i32_1 = arith.constant 0 : i32
    return %c0_i32, %c0_i32_0 : i32, i32
  }
  func.func @transform_5(%arg0: i32) -> (i32, i32) {
    %c0_i32 = arith.constant 0 : i32
    %c0_i32_0 = arith.constant 0 : i32
    %c0_i32_1 = arith.constant 0 : i32
    return %c0_i32, %c0_i32_0 : i32, i32
  }
  func.func @transform_6(%arg0: i32) -> (i32, i32) {
    %c0_i32 = arith.constant 0 : i32
    %c0_i32_0 = arith.constant 0 : i32
    %c0_i32_1 = arith.constant 0 : i32
    return %c0_i32, %c0_i32_0 : i32, i32
  }
  func.func @transform_7(%arg0: i32) -> (i32, i32) {
    %c0_i32 = arith.constant 0 : i32
    %c0_i32_0 = arith.constant 0 : i32
    %c0_i32_1 = arith.constant 0 : i32
    return %c0_i32, %c0_i32_0 : i32, i32
  }
  func.func @transform_8(%arg0: i32) -> (i32, i32) {
    %c0_i32 = arith.constant 0 : i32
    %c0_i32_0 = arith.constant 0 : i32
    %c0_i32_1 = arith.constant 0 : i32
    return %c0_i32, %c0_i32_0 : i32, i32
  }
  func.func @transform_9(%arg0: i32) -> (i32, i32) {
    %c0_i32 = arith.constant 0 : i32
    %c0_i32_0 = arith.constant 0 : i32
    %c0_i32_1 = arith.constant 0 : i32
    return %c0_i32, %c0_i32_0 : i32, i32
  }
  func.func @transform_10(%arg0: i32) -> (i32, i32) {
    %c0_i32 = arith.constant 0 : i32
    %c0_i32_0 = arith.constant 0 : i32
    %c0_i32_1 = arith.constant 0 : i32
    return %c0_i32, %c0_i32_0 : i32, i32
  }
  func.func @transform_11(%arg0: i32) -> (i32, i32) {
    %c0_i32 = arith.constant 0 : i32
    %c0_i32_0 = arith.constant 0 : i32
    %c0_i32_1 = arith.constant 0 : i32
    return %c0_i32, %c0_i32_0 : i32, i32
  }
  func.func @transform_12(%arg0: i32) -> (i32, i32) {
    %c0_i32 = arith.constant 0 : i32
    %c0_i32_0 = arith.constant 0 : i32
    %c0_i32_1 = arith.constant 0 : i32
    return %c0_i32, %c0_i32_0 : i32, i32
  }
  func.func @transform_13(%arg0: i32) -> (i32, i32) {
    %c0_i32 = arith.constant 0 : i32
    %c0_i32_0 = arith.constant 0 : i32
    return %arg0, %c0_i32 : i32, i32
  }
}

</mosaic_0001>

<llo_original>
// kernel: tpu_custom_call.1
$region0: #{tpu_custom_call.1}
  #allocation0 [shape = 'u32[]', space=smem, size = 0x4, offset = 0x4, fixed_abs, tag = 'smem constant byte address 0x4 - core index']
  #allocation1 [shape = 'u32[144,128]{1,0:T(1,128)}', space=vmem, size = 0x12000, scoped, tag = 'internal scratch']
  %s0 = inlined_call_operand.hbm [shape: bf16[16,1024], index: 0, kind: input, shape index: {}]
  %s1 = inlined_call_operand.hbm [shape: bf16[1024,1024], index: 1, kind: input, shape index: {}]
  %s2 = inlined_call_operand.hbm [shape: f32[1,1024], index: 2, kind: input, shape index: {}]
  %s3 = inlined_call_operand.hbm [shape: bf16[1024,512], index: 3, kind: input, shape index: {}]
  %s4 = inlined_call_operand.hbm [shape: f32[1,512], index: 4, kind: input, shape index: {}]
  %s5 = inlined_call_operand.hbm [shape: bf16[512,512], index: 5, kind: input, shape index: {}]
  %s6 = inlined_call_operand.hbm [shape: f32[1,512], index: 6, kind: input, shape index: {}]
  %s7 = inlined_call_operand.hbm [shape: bf16[512,256], index: 7, kind: input, shape index: {}]
  %s8 = inlined_call_operand.hbm [shape: f32[1,256], index: 8, kind: input, shape index: {}]
  %s9 = inlined_call_operand.hbm [shape: bf16[256,256], index: 9, kind: input, shape index: {}]
  %s10 = inlined_call_operand.hbm [shape: f32[1,256], index: 10, kind: input, shape index: {}]
  %s11 = inlined_call_operand.hbm [shape: bf16[256,128], index: 11, kind: input, shape index: {}]
  %s12 = inlined_call_operand.hbm [shape: f32[1,128], index: 12, kind: input, shape index: {}]
  %s13 = inlined_call_operand.hbm [shape: bf16[16,128], index: 13, kind: output, shape index: {}]
  %s14 = sld [smem:[#allocation0]]
  $region114: #{tpu_custom_call.1} parent=0
    _
  %s16 = ssub.s32 1, %s14
  %s17 = scalar_select 0, %s16, %s14
  $region1: #{tpu_custom_call.1} parent=0
    #allocation2 [shape = 'u8[32768]{0}', space=vmem, size = 0x8000, scoped, tag = 'input window, operand 0, single buffered']
    #allocation3 [shape = 's32[1]{0}', space=sflag, size = 0x4, scoped, tag = 'scoped memory for tpu_custom_call.1']
    #allocation4 [shape = 's32[1]{0}', space=sflag, size = 0x4, scoped, tag = 'scoped memory for tpu_custom_call.1']
    #allocation5 [shape = 'u8[2097152]{0}', space=vmem, size = 0x200000, scoped, tag = 'input window, operand 1, single buffered']
    #allocation6 [shape = 's32[1]{0}', space=sflag, size = 0x4, scoped, tag = 'scoped memory for tpu_custom_call.1']
    #allocation7 [shape = 'u8[4096]{0}', space=vmem, size = 0x1000, scoped, tag = 'input window, operand 2, single buffered']
    #allocation8 [shape = 'u8[1048576]{0}', space=vmem, size = 0x100000, scoped, tag = 'input window, operand 3, single buffered']
    #allocation9 [shape = 's32[1]{0}', space=sflag, size = 0x4, scoped, tag = 'scoped memory for tpu_custom_call.1']
    #allocation10 [shape = 'u8[2048]{0}', space=vmem, size = 0x800, scoped, tag = 'input window, operand 4, single buffered']
    #allocation11 [shape = 'u8[524288]{0}', space=vmem, size = 0x80000, scoped, tag = 'input window, operand 5, single buffered']
    #allocation12 [shape = 's32[1]{0}', space=sflag, size = 0x4, scoped, tag = 'scoped memory for tpu_custom_call.1']
    #allocation13 [shape = 'u8[2048]{0}', space=vmem, size = 0x800, scoped, tag = 'input window, operand 6, single buffered']
    #allocation14 [shape = 'u8[262144]{0}', space=vmem, size = 0x40000, scoped, tag = 'input window, operand 7, single buffered']
    #allocation15 [shape = 's32[1]{0}', space=sflag, size = 0x4, scoped, tag = 'scoped memory for tpu_custom_call.1']
    #allocation16 [shape = 'u8[1024]{0}', space=vmem, size = 0x400, scoped, tag = 'input window, operand 8, single buffered']
    #allocation17 [shape = 'u8[131072]{0}', space=vmem, size = 0x20000, scoped, tag = 'input window, operand 9, single buffered']
    #allocation18 [shape = 's32[1]{0}', space=sflag, size = 0x4, scoped, tag = 'scoped memory for tpu_custom_call.1']
    #allocation19 [shape = 'u8[1024]{0}', space=vmem, size = 0x400, scoped, tag = 'input window, operand 10, single buffered']
    #allocation20 [shape = 'u8[65536]{0}', space=vmem, size = 0x10000, scoped, tag = 'input window, operand 11, single buffered']
    #allocation21 [shape = 's32[1]{0}', space=sflag, size = 0x4, scoped, tag = 'scoped memory for tpu_custom_call.1']
    #allocation22 [shape = 'u8[512]{0}', space=vmem, size = 0x400, scoped, tag = 'input window, operand 12, single buffered']
    #allocation23 [shape = 'u8[4096]{0}', space=vmem, size = 0x1000, scoped, tag = 'output window, operand 0, single buffered']
    %18 = vsyncpa [#allocation3], 0
    %19 = vsyncpa [#allocation6], 0
    %20 = vsyncpa [#allocation9], 0
    %21 = vsyncpa [#allocation12], 0
    %22 = vsyncpa [#allocation15], 0
    %23 = vsyncpa [#allocation18], 0
    %24 = vsyncpa [#allocation21], 0
    %25 = vsyncpa [#allocation4], 0
    // Predicated region
    $region2: #{tpu_custom_call.1} parent=1 // pred_check
      _
    $region3: #{tpu_custom_call.1} parent=1 // pred_check_branch
      %27 = sbr.rel (0) target = $region5
    $region4: #{tpu_custom_call.1} parent=1 // pred_region
      %s29 = ssub.s32 1024, 1024
      %30 = vsyncadd [#allocation3], %s29
      %s31 = sshll.u32 [#allocation2], 4
      %s32 = int_to_ptr.vmem [resolvable:$true] %s31
      %37 = dma.hbm_to_vmem [thread:$0]  %s0, 1024, %s32, [#allocation3], 512, 512, 32
    $region5: #{tpu_custom_call.1} parent=1 // pred_fallthru
      _
    // Predicated region
    $region6: #{tpu_custom_call.1} parent=1 // pred_check
      _
    $region7: #{tpu_custom_call.1} parent=1 // pred_check_branch
      %39 = sbr.rel (0) target = $region9
    $region8: #{tpu_custom_call.1} parent=1 // pred_region
      %s41 = ssub.s32 65536, 65536
      %42 = vsyncadd [#allocation6], %s41
      %s43 = sshll.u32 [#allocation5], 4
      %s44 = int_to_ptr.vmem [resolvable:$true] %s43
      %49 = dma.hbm_to_vmem [thread:$0]  %s1, 65536, %s44, [#allocation6], 512, 512, 32
    $region9: #{tpu_custom_call.1} parent=1 // pred_fallthru
      _
    // Predicated region
    $region10: #{tpu_custom_call.1} parent=1 // pred_check
      _
    $region11: #{tpu_custom_call.1} parent=1 // pred_check_branch
      %51 = sbr.rel (0) target = $region13
    $region12: #{tpu_custom_call.1} parent=1 // pred_region
      %s53 = ssub.s32 128, 128
      %54 = vsyncadd [#allocation6], %s53
      %s56 = sshll.u32 [#allocation7], 4
      %s57 = int_to_ptr.vmem [resolvable:$true] %s56
      %59 = dma.hbm_to_vmem [thread:$0]  %s2, 128, %s57, [#allocation6]
    $region13: #{tpu_custom_call.1} parent=1 // pred_fallthru
      _
    // Predicated region
    $region14: #{tpu_custom_call.1} parent=1 // pred_check
      _
    $region15: #{tpu_custom_call.1} parent=1 // pred_check_branch
      %61 = sbr.rel (0) target = $region17
    $region16: #{tpu_custom_call.1} parent=1 // pred_region
      %s63 = ssub.s32 32768, 32768
      %64 = vsyncadd [#allocation9], %s63
      %s65 = sshll.u32 [#allocation8], 4
      %s66 = int_to_ptr.vmem [resolvable:$true] %s65
      %71 = dma.hbm_to_vmem [thread:$0]  %s3, 32768, %s66, [#allocation9], 256, 256, 16
    $region17: #{tpu_custom_call.1} parent=1 // pred_fallthru
      _
    // Predicated region
    $region18: #{tpu_custom_call.1} parent=1 // pred_check
      _
    $region19: #{tpu_custom_call.1} parent=1 // pred_check_branch
      %73 = sbr.rel (0) target = $region21
    $region20: #{tpu_custom_call.1} parent=1 // pred_region
      %s75 = ssub.s32 64, 64
      %76 = vsyncadd [#allocation9], %s75
      %s78 = sshll.u32 [#allocation10], 4
      %s79 = int_to_ptr.vmem [resolvable:$true] %s78
      %81 = dma.hbm_to_vmem [thread:$0]  %s4, 64, %s79, [#allocation9]
    $region21: #{tpu_custom_call.1} parent=1 // pred_fallthru
      _
    // Predicated region
    $region22: #{tpu_custom_call.1} parent=1 // pred_check
      _
    $region23: #{tpu_custom_call.1} parent=1 // pred_check_branch
      %83 = sbr.rel (0) target = $region25
    $region24: #{tpu_custom_call.1} parent=1 // pred_region
      %s85 = ssub.s32 16384, 16384
      %86 = vsyncadd [#allocation12], %s85
      %s87 = sshll.u32 [#allocation11], 4
      %s88 = int_to_ptr.vmem [resolvable:$true] %s87
      %93 = dma.hbm_to_vmem [thread:$0]  %s5, 16384, %s88, [#allocation12], 256, 256, 16
    $region25: #{tpu_custom_call.1} parent=1 // pred_fallthru
      _
    // Predicated region
    $region26: #{tpu_custom_call.1} parent=1 // pred_check
      _
    $region27: #{tpu_custom_call.1} parent=1 // pred_check_branch
      %95 = sbr.rel (0) target = $region29
    $region28: #{tpu_custom_call.1} parent=1 // pred_region
      %s97 = ssub.s32 64, 64
      %98 = vsyncadd [#allocation12], %s97
      %s100 = sshll.u32 [#allocation13], 4
      %s101 = int_to_ptr.vmem [resolvable:$true] %s100
      %103 = dma.hbm_to_vmem [thread:$0]  %s6, 64, %s101, [#allocation12]
    $region29: #{tpu_custom_call.1} parent=1 // pred_fallthru
      _
    // Predicated region
    $region30: #{tpu_custom_call.1} parent=1 // pred_check
      _
    $region31: #{tpu_custom_call.1} parent=1 // pred_check_branch
      %105 = sbr.rel (0) target = $region33
    $region32: #{tpu_custom_call.1} parent=1 // pred_region
      %s107 = ssub.s32 8192, 8192
      %108 = vsyncadd [#allocation15], %s107
      %s109 = sshll.u32 [#allocation14], 4
      %s110 = int_to_ptr.vmem [resolvable:$true] %s109
      %115 = dma.hbm_to_vmem [thread:$0]  %s7, 8192, %s110, [#allocation15], 128, 128, 8
    $region33: #{tpu_custom_call.1} parent=1 // pred_fallthru
      _
    // Predicated region
    $region34: #{tpu_custom_call.1} parent=1 // pred_check
      _
    $region35: #{tpu_custom_call.1} parent=1 // pred_check_branch
      %117 = sbr.rel (0) target = $region37
    $region36: #{tpu_custom_call.1} parent=1 // pred_region
      %s119 = ssub.s32 32, 32
      %120 = vsyncadd [#allocation15], %s119
      %s122 = sshll.u32 [#allocation16], 4
      %s123 = int_to_ptr.vmem [resolvable:$true] %s122
      %125 = dma.hbm_to_vmem [thread:$0]  %s8, 32, %s123, [#allocation15]
    $region37: #{tpu_custom_call.1} parent=1 // pred_fallthru
      _
    // Predicated region
    $region38: #{tpu_custom_call.1} parent=1 // pred_check
      _
    $region39: #{tpu_custom_call.1} parent=1 // pred_check_branch
      %127 = sbr.rel (0) target = $region41
    $region40: #{tpu_custom_call.1} parent=1 // pred_region
      %s129 = ssub.s32 4096, 4096
      %130 = vsyncadd [#allocation18], %s129
      %s131 = sshll.u32 [#allocation17], 4
      %s132 = int_to_ptr.vmem [resolvable:$true] %s131
      %137 = dma.hbm_to_vmem [thread:$0]  %s9, 4096, %s132, [#allocation18], 128, 128, 8
    $region41: #{tpu_custom_call.1} parent=1 // pred_fallthru
      _
    // Predicated region
    $region42: #{tpu_custom_call.1} parent=1 // pred_check
      _
    $region43: #{tpu_custom_call.1} parent=1 // pred_check_branch
      %139 = sbr.rel (0) target = $region45
    $region44: #{tpu_custom_call.1} parent=1 // pred_region
      %s141 = ssub.s32 32, 32
      %142 = vsyncadd [#allocation18], %s141
      %s144 = sshll.u32 [#allocation19], 4
      %s145 = int_to_ptr.vmem [resolvable:$true] %s144
      %147 = dma.hbm_to_vmem [thread:$0]  %s10, 32, %s145, [#allocation18]
    $region45: #{tpu_custom_call.1} parent=1 // pred_fallthru
      _
    // Predicated region
    $region46: #{tpu_custom_call.1} parent=1 // pred_check
      _
    $region47: #{tpu_custom_call.1} parent=1 // pred_check_branch
      %149 = sbr.rel (0) target = $region49
    $region48: #{tpu_custom_call.1} parent=1 // pred_region
      %s151 = ssub.s32 2048, 2048
      %152 = vsyncadd [#allocation21], %s151
      %s153 = sshll.u32 [#allocation20], 4
      %s154 = int_to_ptr.vmem [resolvable:$true] %s153
      %159 = dma.hbm_to_vmem [thread:$0]  %s11, 2048, %s154, [#allocation21], 64, 64, 4
    $region49: #{tpu_custom_call.1} parent=1 // pred_fallthru
      _
    // Predicated region
    $region50: #{tpu_custom_call.1} parent=1 // pred_check
      _
    $region51: #{tpu_custom_call.1} parent=1 // pred_check_branch
      %161 = sbr.rel (0) target = $region53
    $region52: #{tpu_custom_call.1} parent=1 // pred_region
      %s163 = ssub.s32 16, 16
      %164 = vsyncadd [#allocation21], %s163
      %s166 = sshll.u32 [#allocation22], 4
      %s167 = int_to_ptr.vmem [resolvable:$true] %s166
      %169 = dma.hbm_to_vmem [thread:$0]  %s12, 16, %s167, [#allocation21]
    $region53: #{tpu_custom_call.1} parent=1 // pred_fallthru
      _
    // Predicated region
    $region54: #{tpu_custom_call.1} parent=1 // pred_check
      _
    $region55: #{tpu_custom_call.1} parent=1 // pred_check_branch
      %171 = sbr.rel (0) target = $region57
    $region56: #{tpu_custom_call.1} parent=1 // pred_region
      %172 = dma.done [#allocation3], 1024
    $region57: #{tpu_custom_call.1} parent=1 // pred_fallthru
      _
    // Predicated region
    $region58: #{tpu_custom_call.1} parent=1 // pred_check
      _
    $region59: #{tpu_custom_call.1} parent=1 // pred_check_branch
      %174 = sbr.rel (0) target = $region61
    $region60: #{tpu_custom_call.1} parent=1 // pred_region
      %175 = dma.done [#allocation6], 65536
    $region61: #{tpu_custom_call.1} parent=1 // pred_fallthru
      _
    // Predicated region
    $region62: #{tpu_custom_call.1} parent=1 // pred_check
      _
    $region63: #{tpu_custom_call.1} parent=1 // pred_check_branch
      %177 = sbr.rel (0) target = $region65
    $region64: #{tpu_custom_call.1} parent=1 // pred_region
      %178 = dma.done [#allocation6], 128
    $region65: #{tpu_custom_call.1} parent=1 // pred_fallthru
      _
    // Predicated region
    $region66: #{tpu_custom_call.1} parent=1 // pred_check
      _
    $region67: #{tpu_custom_call.1} parent=1 // pred_check_branch
      %180 = sbr.rel (0) target = $region69
    $region68: #{tpu_custom_call.1} parent=1 // pred_region
      %181 = dma.done [#allocation9], 32768
    $region69: #{tpu_custom_call.1} parent=1 // pred_fallthru
      _
    // Predicated region
    $region70: #{tpu_custom_call.1} parent=1 // pred_check
      _
    $region71: #{tpu_custom_call.1} parent=1 // pred_check_branch
      %183 = sbr.rel (0) target = $region73
    $region72: #{tpu_custom_call.1} parent=1 // pred_region
      %184 = dma.done [#allocation9], 64
    $region73: #{tpu_custom_call.1} parent=1 // pred_fallthru
      _
    // Predicated region
    $region74: #{tpu_custom_call.1} parent=1 // pred_check
      _
    $region75: #{tpu_custom_call.1} parent=1 // pred_check_branch
      %186 = sbr.rel (0) target = $region77
    $region76: #{tpu_custom_call.1} parent=1 // pred_region
      %187 = dma.done [#allocation12], 16384
    $region77: #{tpu_custom_call.1} parent=1 // pred_fallthru
      _
    // Predicated region
    $region78: #{tpu_custom_call.1} parent=1 // pred_check
      _
    $region79: #{tpu_custom_call.1} parent=1 // pred_check_branch
      %189 = sbr.rel (0) target = $region81
    $region80: #{tpu_custom_call.1} parent=1 // pred_region
      %190 = dma.done [#allocation12], 64
    $region81: #{tpu_custom_call.1} parent=1 // pred_fallthru
      _
    // Predicated region
    $region82: #{tpu_custom_call.1} parent=1 // pred_check
      _
    $region83: #{tpu_custom_call.1} parent=1 // pred_check_branch
      %192 = sbr.rel (0) target = $region85
    $region84: #{tpu_custom_call.1} parent=1 // pred_region
      %193 = dma.done [#allocation15], 8192
    $region85: #{tpu_custom_call.1} parent=1 // pred_fallthru
      _
    // Predicated region
    $region86: #{tpu_custom_call.1} parent=1 // pred_check
      _
    $region87: #{tpu_custom_call.1} parent=1 // pred_check_branch
      %195 = sbr.rel (0) target = $region89
    $region88: #{tpu_custom_call.1} parent=1 // pred_region
      %196 = dma.done [#allocation15], 32
    $region89: #{tpu_custom_call.1} parent=1 // pred_fallthru
      _
    // Predicated region
    $region90: #{tpu_custom_call.1} parent=1 // pred_check
      _
    $region91: #{tpu_custom_call.1} parent=1 // pred_check_branch
      %198 = sbr.rel (0) target = $region93
    $region92: #{tpu_custom_call.1} parent=1 // pred_region
      %199 = dma.done [#allocation18], 4096
    $region93: #{tpu_custom_call.1} parent=1 // pred_fallthru
      _
    // Predicated region
    $region94: #{tpu_custom_call.1} parent=1 // pred_check
      _
    $region95: #{tpu_custom_call.1} parent=1 // pred_check_branch
      %201 = sbr.rel (0) target = $region97
    $region96: #{tpu_custom_call.1} parent=1 // pred_region
      %202 = dma.done [#allocation18], 32
    $region97: #{tpu_custom_call.1} parent=1 // pred_fallthru
      _
    // Predicated region
    $region98: #{tpu_custom_call.1} parent=1 // pred_check
      _
    $region99: #{tpu_custom_call.1} parent=1 // pred_check_branch
      %204 = sbr.rel (0) target = $region101
    $region100: #{tpu_custom_call.1} parent=1 // pred_region
      %205 = dma.done [#allocation21], 2048
    $region101: #{tpu_custom_call.1} parent=1 // pred_fallthru
      _
    // Predicated region
    $region102: #{tpu_custom_call.1} parent=1 // pred_check
      _
    $region103: #{tpu_custom_call.1} parent=1 // pred_check_branch
      %207 = sbr.rel (0) target = $region105
    $region104: #{tpu_custom_call.1} parent=1 // pred_region
      %208 = dma.done [#allocation21], 16
    $region105: #{tpu_custom_call.1} parent=1 // pred_fallthru
      _
    %v210 = vld [vmem:[#allocation2] sm:$0xff]
    %v211 = vld [vmem:[#allocation2 + $0x8] sm:$0xff]
    %v212 = vld [vmem:[#allocation2 + $0x10] sm:$0xff]
    %v213 = vld [vmem:[#allocation2 + $0x18] sm:$0xff]
    %v214 = vld [vmem:[#allocation2 + $0x20] sm:$0xff]
    %v215 = vld [vmem:[#allocation2 + $0x28] sm:$0xff]
    %v216 = vld [vmem:[#allocation2 + $0x30] sm:$0xff]
    %v217 = vld [vmem:[#allocation2 + $0x38] sm:$0xff]
    %v218 = vld [vmem:[#allocation5] sm:$0xff]
    %v219 = vld [vmem:[#allocation5 + $0x8] sm:$0xff]
    %v220 = vld [vmem:[#allocation5 + $0x10] sm:$0xff]
    %v221 = vld [vmem:[#allocation5 + $0x18] sm:$0xff]
    %v222 = vld [vmem:[#allocation5 + $0x20] sm:$0xff]
    %v223 = vld [vmem:[#allocation5 + $0x28] sm:$0xff]
    %v224 = vld [vmem:[#allocation5 + $0x30] sm:$0xff]
    %v225 = vld [vmem:[#allocation5 + $0x38] sm:$0xff]
    %v226 = vld [vmem:[#allocation5 + $0x40] sm:$0xff]
    %v227 = vld [vmem:[#allocation5 + $0x48] sm:$0xff]
    %v228 = vld [vmem:[#allocation5 + $0x50] sm:$0xff]
    %v229 = vld [vmem:[#allocation5 + $0x58] sm:$0xff]
    %v230 = vld [vmem:[#allocation5 + $0x60] sm:$0xff]
    %v231 = vld [vmem:[#allocation5 + $0x68] sm:$0xff]
    %v232 = vld [vmem:[#allocation5 + $0x70] sm:$0xff]
    %v233 = vld [vmem:[#allocation5 + $0x78] sm:$0xff]
    %v234 = vld [vmem:[#allocation5 + $0x80] sm:$0xff]
    %v235 = vld [vmem:[#allocation5 + $0x88] sm:$0xff]
    %v236 = vld [vmem:[#allocation5 + $0x90] sm:$0xff]
    %v237 = vld [vmem:[#allocation5 + $0x98] sm:$0xff]
    %v238 = vld [vmem:[#allocation5 + $0xa0] sm:$0xff]
    %v239 = vld [vmem:[#allocation5 + $0xa8] sm:$0xff]
    %v240 = vld [vmem:[#allocation5 + $0xb0] sm:$0xff]
    %v241 = vld [vmem:[#allocation5 + $0xb8] sm:$0xff]
    %v242 = vld [vmem:[#allocation5 + $0xc0] sm:$0xff]
    %v243 = vld [vmem:[#allocation5 + $0xc8] sm:$0xff]
    %v244 = vld [vmem:[#allocation5 + $0xd0] sm:$0xff]
    %v245 = vld [vmem:[#allocation5 + $0xd8] sm:$0xff]
    %v246 = vld [vmem:[#allocation5 + $0xe0] sm:$0xff]
    %v247 = vld [vmem:[#allocation5 + $0xe8] sm:$0xff]
    %v248 = vld [vmem:[#allocation5 + $0xf0] sm:$0xff]
    %v249 = vld [vmem:[#allocation5 + $0xf8] sm:$0xff]
    %v250 = vld [vmem:[#allocation5 + $0x100] sm:$0xff]
    %v251 = vld [vmem:[#allocation5 + $0x108] sm:$0xff]
    %v252 = vld [vmem:[#allocation5 + $0x110] sm:$0xff]
    %v253 = vld [vmem:[#allocation5 + $0x118] sm:$0xff]
    %v254 = vld [vmem:[#allocation5 + $0x120] sm:$0xff]
    %v255 = vld [vmem:[#allocation5 + $0x128] sm:$0xff]
    %v256 = vld [vmem:[#allocation5 + $0x130] sm:$0xff]
    %v257 = vld [vmem:[#allocation5 + $0x138] sm:$0xff]
    %v258 = vld [vmem:[#allocation5 + $0x140] sm:$0xff]
    %v259 = vld [vmem:[#allocation5 + $0x148] sm:$0xff]
    %v260 = vld [vmem:[#allocation5 + $0x150] sm:$0xff]
    %v261 = vld [vmem:[#allocation5 + $0x158] sm:$0xff]
    %v262 = vld [vmem:[#allocation5 + $0x160] sm:$0xff]
    %v263 = vld [vmem:[#allocation5 + $0x168] sm:$0xff]
    %v264 = vld [vmem:[#allocation5 + $0x170] sm:$0xff]
    %v265 = vld [vmem:[#allocation5 + $0x178] sm:$0xff]
    %v266 = vld [vmem:[#allocation5 + $0x180] sm:$0xff]
    %v267 = vld [vmem:[#allocation5 + $0x188] sm:$0xff]
    %v268 = vld [vmem:[#allocation5 + $0x190] sm:$0xff]
    %v269 = vld [vmem:[#allocation5 + $0x198] sm:$0xff]
    %v270 = vld [vmem:[#allocation5 + $0x1a0] sm:$0xff]
    %v271 = vld [vmem:[#allocation5 + $0x1a8] sm:$0xff]
    %v272 = vld [vmem:[#allocation5 + $0x1b0] sm:$0xff]
    %v273 = vld [vmem:[#allocation5 + $0x1b8] sm:$0xff]
    %v274 = vld [vmem:[#allocation5 + $0x1c0] sm:$0xff]
    %v275 = vld [vmem:[#allocation5 + $0x1c8] sm:$0xff]
    %v276 = vld [vmem:[#allocation5 + $0x1d0] sm:$0xff]
    %v277 = vld [vmem:[#allocation5 + $0x1d8] sm:$0xff]
    %v278 = vld [vmem:[#allocation5 + $0x1e0] sm:$0xff]
    %v279 = vld [vmem:[#allocation5 + $0x1e8] sm:$0xff]
    %v280 = vld [vmem:[#allocation5 + $0x1f0] sm:$0xff]
    %v281 = vld [vmem:[#allocation5 + $0x1f8] sm:$0xff]
    %v282 = vld [vmem:[#allocation5 + $0x200] sm:$0xff]
    %v283 = vld [vmem:[#allocation5 + $0x208] sm:$0xff]
    %v284 = vld [vmem:[#allocation5 + $0x210] sm:$0xff]
    %v285 = vld [vmem:[#allocation5 + $0x218] sm:$0xff]
    %v286 = vld [vmem:[#allocation5 + $0x220] sm:$0xff]
    %v287 = vld [vmem:[#allocation5 + $0x228] sm:$0xff]
    %v288 = vld [vmem:[#allocation5 + $0x230] sm:$0xff]
    %v289 = vld [vmem:[#allocation5 + $0x238] sm:$0xff]
    %v290 = vld [vmem:[#allocation5 + $0x240] sm:$0xff]
    %v291 = vld [vmem:[#allocation5 + $0x248] sm:$0xff]
    %v292 = vld [vmem:[#allocation5 + $0x250] sm:$0xff]
    %v293 = vld [vmem:[#allocation5 + $0x258] sm:$0xff]
    %v294 = vld [vmem:[#allocation5 + $0x260] sm:$0xff]
    %v295 = vld [vmem:[#allocation5 + $0x268] sm:$0xff]
    %v296 = vld [vmem:[#allocation5 + $0x270] sm:$0xff]
    %v297 = vld [vmem:[#allocation5 + $0x278] sm:$0xff]
    %v298 = vld [vmem:[#allocation5 + $0x280] sm:$0xff]
    %v299 = vld [vmem:[#allocation5 + $0x288] sm:$0xff]
    %v300 = vld [vmem:[#allocation5 + $0x290] sm:$0xff]
    %v301 = vld [vmem:[#allocation5 + $0x298] sm:$0xff]
    %v302 = vld [vmem:[#allocation5 + $0x2a0] sm:$0xff]
    %v303 = vld [vmem:[#allocation5 + $0x2a8] sm:$0xff]
    %v304 = vld [vmem:[#allocation5 + $0x2b0] sm:$0xff]
    %v305 = vld [vmem:[#allocation5 + $0x2b8] sm:$0xff]
    %v306 = vld [vmem:[#allocation5 + $0x2c0] sm:$0xff]
    %v307 = vld [vmem:[#allocation5 + $0x2c8] sm:$0xff]
    %v308 = vld [vmem:[#allocation5 + $0x2d0] sm:$0xff]
    %v309 = vld [vmem:[#allocation5 + $0x2d8] sm:$0xff]
    %v310 = vld [vmem:[#allocation5 + $0x2e0] sm:$0xff]
    %v311 = vld [vmem:[#allocation5 + $0x2e8] sm:$0xff]
    %v312 = vld [vmem:[#allocation5 + $0x2f0] sm:$0xff]
    %v313 = vld [vmem:[#allocation5 + $0x2f8] sm:$0xff]
    %v314 = vld [vmem:[#allocation5 + $0x300] sm:$0xff]
    %v315 = vld [vmem:[#allocation5 + $0x308] sm:$0xff]
    %v316 = vld [vmem:[#allocation5 + $0x310] sm:$0xff]
    %v317 = vld [vmem:[#allocation5 + $0x318] sm:$0xff]
    %v318 = vld [vmem:[#allocation5 + $0x320] sm:$0xff]
    %v319 = vld [vmem:[#allocation5 + $0x328] sm:$0xff]
    %v320 = vld [vmem:[#allocation5 + $0x330] sm:$0xff]
    %v321 = vld [vmem:[#allocation5 + $0x338] sm:$0xff]
    %v322 = vld [vmem:[#allocation5 + $0x340] sm:$0xff]
    %v323 = vld [vmem:[#allocation5 + $0x348] sm:$0xff]
    %v324 = vld [vmem:[#allocation5 + $0x350] sm:$0xff]
    %v325 = vld [vmem:[#allocation5 + $0x358] sm:$0xff]
    %v326 = vld [vmem:[#allocation5 + $0x360] sm:$0xff]
    %v327 = vld [vmem:[#allocation5 + $0x368] sm:$0xff]
    %v328 = vld [vmem:[#allocation5 + $0x370] sm:$0xff]
    %v329 = vld [vmem:[#allocation5 + $0x378] sm:$0xff]
    %v330 = vld [vmem:[#allocation5 + $0x380] sm:$0xff]
    %v331 = vld [vmem:[#allocation5 + $0x388] sm:$0xff]
    %v332 = vld [vmem:[#allocation5 + $0x390] sm:$0xff]
    %v333 = vld [vmem:[#allocation5 + $0x398] sm:$0xff]
    %v334 = vld [vmem:[#allocation5 + $0x3a0] sm:$0xff]
    %v335 = vld [vmem:[#allocation5 + $0x3a8] sm:$0xff]
    %v336 = vld [vmem:[#allocation5 + $0x3b0] sm:$0xff]
    %v337 = vld [vmem:[#allocation5 + $0x3b8] sm:$0xff]
    %v338 = vld [vmem:[#allocation5 + $0x3c0] sm:$0xff]
    %v339 = vld [vmem:[#allocation5 + $0x3c8] sm:$0xff]
    %v340 = vld [vmem:[#allocation5 + $0x3d0] sm:$0xff]
    %v341 = vld [vmem:[#allocation5 + $0x3d8] sm:$0xff]
    %v342 = vld [vmem:[#allocation5 + $0x3e0] sm:$0xff]
    %v343 = vld [vmem:[#allocation5 + $0x3e8] sm:$0xff]
    %v344 = vld [vmem:[#allocation5 + $0x3f0] sm:$0xff]
    %v345 = vld [vmem:[#allocation5 + $0x3f8] sm:$0xff]
    %v346 = vld [vmem:[#allocation5 + $0x400] sm:$0xff]
    %v347 = vld [vmem:[#allocation5 + $0x408] sm:$0xff]
    %v348 = vld [vmem:[#allocation5 + $0x410] sm:$0xff]
    %v349 = vld [vmem:[#allocation5 + $0x418] sm:$0xff]
    %v350 = vld [vmem:[#allocation5 + $0x420] sm:$0xff]
    %v351 = vld [vmem:[#allocation5 + $0x428] sm:$0xff]
    %v352 = vld [vmem:[#allocation5 + $0x430] sm:$0xff]
    %v353 = vld [vmem:[#allocation5 + $0x438] sm:$0xff]
    %v354 = vld [vmem:[#allocation5 + $0x440] sm:$0xff]
    %v355 = vld [vmem:[#allocation5 + $0x448] sm:$0xff]
    %v356 = vld [vmem:[#allocation5 + $0x450] sm:$0xff]
    %v357 = vld [vmem:[#allocation5 + $0x458] sm:$0xff]
    %v358 = vld [vmem:[#allocation5 + $0x460] sm:$0xff]
    %v359 = vld [vmem:[#allocation5 + $0x468] sm:$0xff]
    %v360 = vld [vmem:[#allocation5 + $0x470] sm:$0xff]
    %v361 = vld [vmem:[#allocation5 + $0x478] sm:$0xff]
    %v362 = vld [vmem:[#allocation5 + $0x480] sm:$0xff]
    %v363 = vld [vmem:[#allocation5 + $0x488] sm:$0xff]
    %v364 = vld [vmem:[#allocation5 + $0x490] sm:$0xff]
    %v365 = vld [vmem:[#allocation5 + $0x498] sm:$0xff]
    %v366 = vld [vmem:[#allocation5 + $0x4a0] sm:$0xff]
    %v367 = vld [vmem:[#allocation5 + $0x4a8] sm:$0xff]
    %v368 = vld [vmem:[#allocation5 + $0x4b0] sm:$0xff]
    %v369 = vld [vmem:[#allocation5 + $0x4b8] sm:$0xff]
    %v370 = vld [vmem:[#allocation5 + $0x4c0] sm:$0xff]
    %v371 = vld [vmem:[#allocation5 + $0x4c8] sm:$0xff]
    %v372 = vld [vmem:[#allocation5 + $0x4d0] sm:$0xff]
    %v373 = vld [vmem:[#allocation5 + $0x4d8] sm:$0xff]
    %v374 = vld [vmem:[#allocation5 + $0x4e0] sm:$0xff]
    %v375 = vld [vmem:[#allocation5 + $0x4e8] sm:$0xff]
    %v376 = vld [vmem:[#allocation5 + $0x4f0] sm:$0xff]
    %v377 = vld [vmem:[#allocation5 + $0x4f8] sm:$0xff]
    %v378 = vld [vmem:[#allocation5 + $0x500] sm:$0xff]
    %v379 = vld [vmem:[#allocation5 + $0x508] sm:$0xff]
    %v380 = vld [vmem:[#allocation5 + $0x510] sm:$0xff]
    %v381 = vld [vmem:[#allocation5 + $0x518] sm:$0xff]
    %v382 = vld [vmem:[#allocation5 + $0x520] sm:$0xff]
    %v383 = vld [vmem:[#allocation5 + $0x528] sm:$0xff]
    %v384 = vld [vmem:[#allocation5 + $0x530] sm:$0xff]
    %v385 = vld [vmem:[#allocation5 + $0x538] sm:$0xff]
    %v386 = vld [vmem:[#allocation5 + $0x540] sm:$0xff]
    %v387 = vld [vmem:[#allocation5 + $0x548] sm:$0xff]
    %v388 = vld [vmem:[#allocation5 + $0x550] sm:$0xff]
    %v389 = vld [vmem:[#allocation5 + $0x558] sm:$0xff]
    %v390 = vld [vmem:[#allocation5 + $0x560] sm:$0xff]
    %v391 = vld [vmem:[#allocation5 + $0x568] sm:$0xff]
    %v392 = vld [vmem:[#allocation5 + $0x570] sm:$0xff]
    %v393 = vld [vmem:[#allocation5 + $0x578] sm:$0xff]
    %v394 = vld [vmem:[#allocation5 + $0x580] sm:$0xff]
    %v395 = vld [vmem:[#allocation5 + $0x588] sm:$0xff]
    %v396 = vld [vmem:[#allocation5 + $0x590] sm:$0xff]
    %v397 = vld [vmem:[#allocation5 + $0x598] sm:$0xff]
    %v398 = vld [vmem:[#allocation5 + $0x5a0] sm:$0xff]
    %v399 = vld [vmem:[#allocation5 + $0x5a8] sm:$0xff]
    %v400 = vld [vmem:[#allocation5 + $0x5b0] sm:$0xff]
    %v401 = vld [vmem:[#allocation5 + $0x5b8] sm:$0xff]
    %v402 = vld [vmem:[#allocation5 + $0x5c0] sm:$0xff]
    %v403 = vld [vmem:[#allocation5 + $0x5c8] sm:$0xff]
    %v404 = vld [vmem:[#allocation5 + $0x5d0] sm:$0xff]
    %v405 = vld [vmem:[#allocation5 + $0x5d8] sm:$0xff]
    %v406 = vld [vmem:[#allocation5 + $0x5e0] sm:$0xff]
    %v407 = vld [vmem:[#allocation5 + $0x5e8] sm:$0xff]
    %v408 = vld [vmem:[#allocation5 + $0x5f0] sm:$0xff]
    %v409 = vld [vmem:[#allocation5 + $0x5f8] sm:$0xff]
    %v410 = vld [vmem:[#allocation5 + $0x600] sm:$0xff]
    %v411 = vld [vmem:[#allocation5 + $0x608] sm:$0xff]
    %v412 = vld [vmem:[#allocation5 + $0x610] sm:$0xff]
    %v413 = vld [vmem:[#allocation5 + $0x618] sm:$0xff]
    %v414 = vld [vmem:[#allocation5 + $0x620] sm:$0xff]
    %v415 = vld [vmem:[#allocation5 + $0x628] sm:$0xff]
    %v416 = vld [vmem:[#allocation5 + $0x630] sm:$0xff]
    %v417 = vld [vmem:[#allocation5 + $0x638] sm:$0xff]
    %v418 = vld [vmem:[#allocation5 + $0x640] sm:$0xff]
    %v419 = vld [vmem:[#allocation5 + $0x648] sm:$0xff]
    %v420 = vld [vmem:[#allocation5 + $0x650] sm:$0xff]
    %v421 = vld [vmem:[#allocation5 + $0x658] sm:$0xff]
    %v422 = vld [vmem:[#allocation5 + $0x660] sm:$0xff]
    %v423 = vld [vmem:[#allocation5 + $0x668] sm:$0xff]
    %v424 = vld [vmem:[#allocation5 + $0x670] sm:$0xff]
    %v425 = vld [vmem:[#allocation5 + $0x678] sm:$0xff]
    %v426 = vld [vmem:[#allocation5 + $0x680] sm:$0xff]
    %v427 = vld [vmem:[#allocation5 + $0x688] sm:$0xff]
    %v428 = vld [vmem:[#allocation5 + $0x690] sm:$0xff]
    %v429 = vld [vmem:[#allocation5 + $0x698] sm:$0xff]
    %v430 = vld [vmem:[#allocation5 + $0x6a0] sm:$0xff]
    %v431 = vld [vmem:[#allocation5 + $0x6a8] sm:$0xff]
    %v432 = vld [vmem:[#allocation5 + $0x6b0] sm:$0xff]
    %v433 = vld [vmem:[#allocation5 + $0x6b8] sm:$0xff]
    %v434 = vld [vmem:[#allocation5 + $0x6c0] sm:$0xff]
    %v435 = vld [vmem:[#allocation5 + $0x6c8] sm:$0xff]
    %v436 = vld [vmem:[#allocation5 + $0x6d0] sm:$0xff]
    %v437 = vld [vmem:[#allocation5 + $0x6d8] sm:$0xff]
    %v438 = vld [vmem:[#allocation5 + $0x6e0] sm:$0xff]
    %v439 = vld [vmem:[#allocation5 + $0x6e8] sm:$0xff]
    %v440 = vld [vmem:[#allocation5 + $0x6f0] sm:$0xff]
    %v441 = vld [vmem:[#allocation5 + $0x6f8] sm:$0xff]
    %v442 = vld [vmem:[#allocation5 + $0x700] sm:$0xff]
    %v443 = vld [vmem:[#allocation5 + $0x708] sm:$0xff]
    %v444 = vld [vmem:[#allocation5 + $0x710] sm:$0xff]
    %v445 = vld [vmem:[#allocation5 + $0x718] sm:$0xff]
    %v446 = vld [vmem:[#allocation5 + $0x720] sm:$0xff]
    %v447 = vld [vmem:[#allocation5 + $0x728] sm:$0xff]
    %v448 = vld [vmem:[#allocation5 + $0x730] sm:$0xff]
    %v449 = vld [vmem:[#allocation5 + $0x738] sm:$0xff]
    %v450 = vld [vmem:[#allocation5 + $0x740] sm:$0xff]
    %v451 = vld [vmem:[#allocation5 + $0x748] sm:$0xff]
    %v452 = vld [vmem:[#allocation5 + $0x750] sm:$0xff]
    %v453 = vld [vmem:[#allocation5 + $0x758] sm:$0xff]
    %v454 = vld [vmem:[#allocation5 + $0x760] sm:$0xff]
    %v455 = vld [vmem:[#allocation5 + $0x768] sm:$0xff]
    %v456 = vld [vmem:[#allocation5 + $0x770] sm:$0xff]
    %v457 = vld [vmem:[#allocation5 + $0x778] sm:$0xff]
    %v458 = vld [vmem:[#allocation5 + $0x780] sm:$0xff]
    %v459 = vld [vmem:[#allocation5 + $0x788] sm:$0xff]
    %v460 = vld [vmem:[#allocation5 + $0x790] sm:$0xff]
    %v461 = vld [vmem:[#allocation5 + $0x798] sm:$0xff]
    %v462 = vld [vmem:[#allocation5 + $0x7a0] sm:$0xff]
    %v463 = vld [vmem:[#allocation5 + $0x7a8] sm:$0xff]
    %v464 = vld [vmem:[#allocation5 + $0x7b0] sm:$0xff]
    %v465 = vld [vmem:[#allocation5 + $0x7b8] sm:$0xff]
    %v466 = vld [vmem:[#allocation5 + $0x7c0] sm:$0xff]
    %v467 = vld [vmem:[#allocation5 + $0x7c8] sm:$0xff]
    %v468 = vld [vmem:[#allocation5 + $0x7d0] sm:$0xff]
    %v469 = vld [vmem:[#allocation5 + $0x7d8] sm:$0xff]
    %v470 = vld [vmem:[#allocation5 + $0x7e0] sm:$0xff]
    %v471 = vld [vmem:[#allocation5 + $0x7e8] sm:$0xff]
    %v472 = vld [vmem:[#allocation5 + $0x7f0] sm:$0xff]
    %v473 = vld [vmem:[#allocation5 + $0x7f8] sm:$0xff]
    %v474 = vld [vmem:[#allocation5 + $0x800] sm:$0xff]
    %v475 = vld [vmem:[#allocation5 + $0x808] sm:$0xff]
    %v476 = vld [vmem:[#allocation5 + $0x810] sm:$0xff]
    %v477 = vld [vmem:[#allocation5 + $0x818] sm:$0xff]
    %v478 = vld [vmem:[#allocation5 + $0x820] sm:$0xff]
    %v479 = vld [vmem:[#allocation5 + $0x828] sm:$0xff]
    %v480 = vld [vmem:[#allocation5 + $0x830] sm:$0xff]
    %v481 = vld [vmem:[#allocation5 + $0x838] sm:$0xff]
    %v482 = vld [vmem:[#allocation5 + $0x840] sm:$0xff]
    %v483 = vld [vmem:[#allocation5 + $0x848] sm:$0xff]
    %v484 = vld [vmem:[#allocation5 + $0x850] sm:$0xff]
    %v485 = vld [vmem:[#allocation5 + $0x858] sm:$0xff]
    %v486 = vld [vmem:[#allocation5 + $0x860] sm:$0xff]
    %v487 = vld [vmem:[#allocation5 + $0x868] sm:$0xff]
    %v488 = vld [vmem:[#allocation5 + $0x870] sm:$0xff]
    %v489 = vld [vmem:[#allocation5 + $0x878] sm:$0xff]
    %v490 = vld [vmem:[#allocation5 + $0x880] sm:$0xff]
    %v491 = vld [vmem:[#allocation5 + $0x888] sm:$0xff]
    %v492 = vld [vmem:[#allocation5 + $0x890] sm:$0xff]
    %v493 = vld [vmem:[#allocation5 + $0x898] sm:$0xff]
    %v494 = vld [vmem:[#allocation5 + $0x8a0] sm:$0xff]
    %v495 = vld [vmem:[#allocation5 + $0x8a8] sm:$0xff]
    %v496 = vld [vmem:[#allocation5 + $0x8b0] sm:$0xff]
    %v497 = vld [vmem:[#allocation5 + $0x8b8] sm:$0xff]
    %v498 = vld [vmem:[#allocation5 + $0x8c0] sm:$0xff]
    %v499 = vld [vmem:[#allocation5 + $0x8c8] sm:$0xff]
    %v500 = vld [vmem:[#allocation5 + $0x8d0] sm:$0xff]
    %v501 = vld [vmem:[#allocation5 + $0x8d8] sm:$0xff]
    %v502 = vld [vmem:[#allocation5 + $0x8e0] sm:$0xff]
    %v503 = vld [vmem:[#allocation5 + $0x8e8] sm:$0xff]
    %v504 = vld [vmem:[#allocation5 + $0x8f0] sm:$0xff]
    %v505 = vld [vmem:[#allocation5 + $0x8f8] sm:$0xff]
    %v506 = vld [vmem:[#allocation5 + $0x900] sm:$0xff]
    %v507 = vld [vmem:[#allocation5 + $0x908] sm:$0xff]
    %v508 = vld [vmem:[#allocation5 + $0x910] sm:$0xff]
    %v509 = vld [vmem:[#allocation5 + $0x918] sm:$0xff]
    %v510 = vld [vmem:[#allocation5 + $0x920] sm:$0xff]
    %v511 = vld [vmem:[#allocation5 + $0x928] sm:$0xff]
    %v512 = vld [vmem:[#allocation5 + $0x930] sm:$0xff]
    %v513 = vld [vmem:[#allocation5 + $0x938] sm:$0xff]
    %v514 = vld [vmem:[#allocation5 + $0x940] sm:$0xff]
    %v515 = vld [vmem:[#allocation5 + $0x948] sm:$0xff]
    %v516 = vld [vmem:[#allocation5 + $0x950] sm:$0xff]
    %v517 = vld [vmem:[#allocation5 + $0x958] sm:$0xff]
    %v518 = vld [vmem:[#allocation5 + $0x960] sm:$0xff]
    %v519 = vld [vmem:[#allocation5 + $0x968] sm:$0xff]
    %v520 = vld [vmem:[#allocation5 + $0x970] sm:$0xff]
    %v521 = vld [vmem:[#allocation5 + $0x978] sm:$0xff]
    %v522 = vld [vmem:[#allocation5 + $0x980] sm:$0xff]
    %v523 = vld [vmem:[#allocation5 + $0x988] sm:$0xff]
    %v524 = vld [vmem:[#allocation5 + $0x990] sm:$0xff]
    %v525 = vld [vmem:[#allocation5 + $0x998] sm:$0xff]
    %v526 = vld [vmem:[#allocation5 + $0x9a0] sm:$0xff]
    %v527 = vld [vmem:[#allocation5 + $0x9a8] sm:$0xff]
    %v528 = vld [vmem:[#allocation5 + $0x9b0] sm:$0xff]
    %v529 = vld [vmem:[#allocation5 + $0x9b8] sm:$0xff]
    %v530 = vld [vmem:[#allocation5 + $0x9c0] sm:$0xff]
    %v531 = vld [vmem:[#allocation5 + $0x9c8] sm:$0xff]
    %v532 = vld [vmem:[#allocation5 + $0x9d0] sm:$0xff]
    %v533 = vld [vmem:[#allocation5 + $0x9d8] sm:$0xff]
    %v534 = vld [vmem:[#allocation5 + $0x9e0] sm:$0xff]
    %v535 = vld [vmem:[#allocation5 + $0x9e8] sm:$0xff]
    %v536 = vld [vmem:[#allocation5 + $0x9f0] sm:$0xff]
    %v537 = vld [vmem:[#allocation5 + $0x9f8] sm:$0xff]
    %v538 = vld [vmem:[#allocation5 + $0xa00] sm:$0xff]
    %v539 = vld [vmem:[#allocation5 + $0xa08] sm:$0xff]
    %v540 = vld [vmem:[#allocation5 + $0xa10] sm:$0xff]
    %v541 = vld [vmem:[#allocation5 + $0xa18] sm:$0xff]
    %v542 = vld [vmem:[#allocation5 + $0xa20] sm:$0xff]
    %v543 = vld [vmem:[#allocation5 + $0xa28] sm:$0xff]
    %v544 = vld [vmem:[#allocation5 + $0xa30] sm:$0xff]
    %v545 = vld [vmem:[#allocation5 + $0xa38] sm:$0xff]
    %v546 = vld [vmem:[#allocation5 + $0xa40] sm:$0xff]
    %v547 = vld [vmem:[#allocation5 + $0xa48] sm:$0xff]
    %v548 = vld [vmem:[#allocation5 + $0xa50] sm:$0xff]
    %v549 = vld [vmem:[#allocation5 + $0xa58] sm:$0xff]
    %v550 = vld [vmem:[#allocation5 + $0xa60] sm:$0xff]
    %v551 = vld [vmem:[#allocation5 + $0xa68] sm:$0xff]
    %v552 = vld [vmem:[#allocation5 + $0xa70] sm:$0xff]
    %v553 = vld [vmem:[#allocation5 + $0xa78] sm:$0xff]
    %v554 = vld [vmem:[#allocation5 + $0xa80] sm:$0xff]
    %v555 = vld [vmem:[#allocation5 + $0xa88] sm:$0xff]
    %v556 = vld [vmem:[#allocation5 + $0xa90] sm:$0xff]
    %v557 = vld [vmem:[#allocation5 + $0xa98] sm:$0xff]
    %v558 = vld [vmem:[#allocation5 + $0xaa0] sm:$0xff]
    %v559 = vld [vmem:[#allocation5 + $0xaa8] sm:$0xff]
    %v560 = vld [vmem:[#allocation5 + $0xab0] sm:$0xff]
    %v561 = vld [vmem:[#allocation5 + $0xab8] sm:$0xff]
    %v562 = vld [vmem:[#allocation5 + $0xac0] sm:$0xff]
    %v563 = vld [vmem:[#allocation5 + $0xac8] sm:$0xff]
    %v564 = vld [vmem:[#allocation5 + $0xad0] sm:$0xff]
    %v565 = vld [vmem:[#allocation5 + $0xad8] sm:$0xff]
    %v566 = vld [vmem:[#allocation5 + $0xae0] sm:$0xff]
    %v567 = vld [vmem:[#allocation5 + $0xae8] sm:$0xff]
    %v568 = vld [vmem:[#allocation5 + $0xaf0] sm:$0xff]
    %v569 = vld [vmem:[#allocation5 + $0xaf8] sm:$0xff]
    %v570 = vld [vmem:[#allocation5 + $0xb00] sm:$0xff]
    %v571 = vld [vmem:[#allocation5 + $0xb08] sm:$0xff]
    %v572 = vld [vmem:[#allocation5 + $0xb10] sm:$0xff]
    %v573 = vld [vmem:[#allocation5 + $0xb18] sm:$0xff]
    %v574 = vld [vmem:[#allocation5 + $0xb20] sm:$0xff]
    %v575 = vld [vmem:[#allocation5 + $0xb28] sm:$0xff]
    %v576 = vld [vmem:[#allocation5 + $0xb30] sm:$0xff]
    %v577 = vld [vmem:[#allocation5 + $0xb38] sm:$0xff]
    %v578 = vld [vmem:[#allocation5 + $0xb40] sm:$0xff]
    %v579 = vld [vmem:[#allocation5 + $0xb48] sm:$0xff]
    %v580 = vld [vmem:[#allocation5 + $0xb50] sm:$0xff]
    %v581 = vld [vmem:[#allocation5 + $0xb58] sm:$0xff]
    %v582 = vld [vmem:[#allocation5 + $0xb60] sm:$0xff]
    %v583 = vld [vmem:[#allocation5 + $0xb68] sm:$0xff]
    %v584 = vld [vmem:[#allocation5 + $0xb70] sm:$0xff]
    %v585 = vld [vmem:[#allocation5 + $0xb78] sm:$0xff]
    %v586 = vld [vmem:[#allocation5 + $0xb80] sm:$0xff]
    %v587 = vld [vmem:[#allocation5 + $0xb88] sm:$0xff]
    %v588 = vld [vmem:[#allocation5 + $0xb90] sm:$0xff]
    %v589 = vld [vmem:[#allocation5 + $0xb98] sm:$0xff]
    %v590 = vld [vmem:[#allocation5 + $0xba0] sm:$0xff]
    %v591 = vld [vmem:[#allocation5 + $0xba8] sm:$0xff]
    %v592 = vld [vmem:[#allocation5 + $0xbb0] sm:$0xff]
    %v593 = vld [vmem:[#allocation5 + $0xbb8] sm:$0xff]
    %v594 = vld [vmem:[#allocation5 + $0xbc0] sm:$0xff]
    %v595 = vld [vmem:[#allocation5 + $0xbc8] sm:$0xff]
    %v596 = vld [vmem:[#allocation5 + $0xbd0] sm:$0xff]
    %v597 = vld [vmem:[#allocation5 + $0xbd8] sm:$0xff]
    %v598 = vld [vmem:[#allocation5 + $0xbe0] sm:$0xff]
    %v599 = vld [vmem:[#allocation5 + $0xbe8] sm:$0xff]
    %v600 = vld [vmem:[#allocation5 + $0xbf0] sm:$0xff]
    %v601 = vld [vmem:[#allocation5 + $0xbf8] sm:$0xff]
    %v602 = vld [vmem:[#allocation5 + $0xc00] sm:$0xff]
    %v603 = vld [vmem:[#allocation5 + $0xc08] sm:$0xff]
    %v604 = vld [vmem:[#allocation5 + $0xc10] sm:$0xff]
    %v605 = vld [vmem:[#allocation5 + $0xc18] sm:$0xff]
    %v606 = vld [vmem:[#allocation5 + $0xc20] sm:$0xff]
    %v607 = vld [vmem:[#allocation5 + $0xc28] sm:$0xff]
    %v608 = vld [vmem:[#allocation5 + $0xc30] sm:$0xff]
    %v609 = vld [vmem:[#allocation5 + $0xc38] sm:$0xff]
    %v610 = vld [vmem:[#allocation5 + $0xc40] sm:$0xff]
    %v611 = vld [vmem:[#allocation5 + $0xc48] sm:$0xff]
    %v612 = vld [vmem:[#allocation5 + $0xc50] sm:$0xff]
    %v613 = vld [vmem:[#allocation5 + $0xc58] sm:$0xff]
    %v614 = vld [vmem:[#allocation5 + $0xc60] sm:$0xff]
    %v615 = vld [vmem:[#allocation5 + $0xc68] sm:$0xff]
    %v616 = vld [vmem:[#allocation5 + $0xc70] sm:$0xff]
    %v617 = vld [vmem:[#allocation5 + $0xc78] sm:$0xff]
    %v618 = vld [vmem:[#allocation5 + $0xc80] sm:$0xff]
    %v619 = vld [vmem:[#allocation5 + $0xc88] sm:$0xff]
    %v620 = vld [vmem:[#allocation5 + $0xc90] sm:$0xff]
    %v621 = vld [vmem:[#allocation5 + $0xc98] sm:$0xff]
    %v622 = vld [vmem:[#allocation5 + $0xca0] sm:$0xff]
    %v623 = vld [vmem:[#allocation5 + $0xca8] sm:$0xff]
    %v624 = vld [vmem:[#allocation5 + $0xcb0] sm:$0xff]
    %v625 = vld [vmem:[#allocation5 + $0xcb8] sm:$0xff]
    %v626 = vld [vmem:[#allocation5 + $0xcc0] sm:$0xff]
    %v627 = vld [vmem:[#allocation5 + $0xcc8] sm:$0xff]
    %v628 = vld [vmem:[#allocation5 + $0xcd0] sm:$0xff]
    %v629 = vld [vmem:[#allocation5 + $0xcd8] sm:$0xff]
    %v630 = vld [vmem:[#allocation5 + $0xce0] sm:$0xff]
    %v631 = vld [vmem:[#allocation5 + $0xce8] sm:$0xff]
    %v632 = vld [vmem:[#allocation5 + $0xcf0] sm:$0xff]
    %v633 = vld [vmem:[#allocation5 + $0xcf8] sm:$0xff]
    %v634 = vld [vmem:[#allocation5 + $0xd00] sm:$0xff]
    %v635 = vld [vmem:[#allocation5 + $0xd08] sm:$0xff]
    %v636 = vld [vmem:[#allocation5 + $0xd10] sm:$0xff]
    %v637 = vld [vmem:[#allocation5 + $0xd18] sm:$0xff]
    %v638 = vld [vmem:[#allocation5 + $0xd20] sm:$0xff]
    %v639 = vld [vmem:[#allocation5 + $0xd28] sm:$0xff]
    %v640 = vld [vmem:[#allocation5 + $0xd30] sm:$0xff]
    %v641 = vld [vmem:[#allocation5 + $0xd38] sm:$0xff]
    %v642 = vld [vmem:[#allocation5 + $0xd40] sm:$0xff]
    %v643 = vld [vmem:[#allocation5 + $0xd48] sm:$0xff]
    %v644 = vld [vmem:[#allocation5 + $0xd50] sm:$0xff]
    %v645 = vld [vmem:[#allocation5 + $0xd58] sm:$0xff]
    %v646 = vld [vmem:[#allocation5 + $0xd60] sm:$0xff]
    %v647 = vld [vmem:[#allocation5 + $0xd68] sm:$0xff]
    %v648 = vld [vmem:[#allocation5 + $0xd70] sm:$0xff]
    %v649 = vld [vmem:[#allocation5 + $0xd78] sm:$0xff]
    %v650 = vld [vmem:[#allocation5 + $0xd80] sm:$0xff]
    %v651 = vld [vmem:[#allocation5 + $0xd88] sm:$0xff]
    %v652 = vld [vmem:[#allocation5 + $0xd90] sm:$0xff]
    %v653 = vld [vmem:[#allocation5 + $0xd98] sm:$0xff]
    %v654 = vld [vmem:[#allocation5 + $0xda0] sm:$0xff]
    %v655 = vld [vmem:[#allocation5 + $0xda8] sm:$0xff]
    %v656 = vld [vmem:[#allocation5 + $0xdb0] sm:$0xff]
    %v657 = vld [vmem:[#allocation5 + $0xdb8] sm:$0xff]
    %v658 = vld [vmem:[#allocation5 + $0xdc0] sm:$0xff]
    %v659 = vld [vmem:[#allocation5 + $0xdc8] sm:$0xff]
    %v660 = vld [vmem:[#allocation5 + $0xdd0] sm:$0xff]
    %v661 = vld [vmem:[#allocation5 + $0xdd8] sm:$0xff]
    %v662 = vld [vmem:[#allocation5 + $0xde0] sm:$0xff]
    %v663 = vld [vmem:[#allocation5 + $0xde8] sm:$0xff]
    %v664 = vld [vmem:[#allocation5 + $0xdf0] sm:$0xff]
    %v665 = vld [vmem:[#allocation5 + $0xdf8] sm:$0xff]
    %v666 = vld [vmem:[#allocation5 + $0xe00] sm:$0xff]
    %v667 = vld [vmem:[#allocation5 + $0xe08] sm:$0xff]
    %v668 = vld [vmem:[#allocation5 + $0xe10] sm:$0xff]
    %v669 = vld [vmem:[#allocation5 + $0xe18] sm:$0xff]
    %v670 = vld [vmem:[#allocation5 + $0xe20] sm:$0xff]
    %v671 = vld [vmem:[#allocation5 + $0xe28] sm:$0xff]
    %v672 = vld [vmem:[#allocation5 + $0xe30] sm:$0xff]
    %v673 = vld [vmem:[#allocation5 + $0xe38] sm:$0xff]
    %v674 = vld [vmem:[#allocation5 + $0xe40] sm:$0xff]
    %v675 = vld [vmem:[#allocation5 + $0xe48] sm:$0xff]
    %v676 = vld [vmem:[#allocation5 + $0xe50] sm:$0xff]
    %v677 = vld [vmem:[#allocation5 + $0xe58] sm:$0xff]
    %v678 = vld [vmem:[#allocation5 + $0xe60] sm:$0xff]
    %v679 = vld [vmem:[#allocation5 + $0xe68] sm:$0xff]
    %v680 = vld [vmem:[#allocation5 + $0xe70] sm:$0xff]
    %v681 = vld [vmem:[#allocation5 + $0xe78] sm:$0xff]
    %v682 = vld [vmem:[#allocation5 + $0xe80] sm:$0xff]
    %v683 = vld [vmem:[#allocation5 + $0xe88] sm:$0xff]
    %v684 = vld [vmem:[#allocation5 + $0xe90] sm:$0xff]
    %v685 = vld [vmem:[#allocation5 + $0xe98] sm:$0xff]
    %v686 = vld [vmem:[#allocation5 + $0xea0] sm:$0xff]
    %v687 = vld [vmem:[#allocation5 + $0xea8] sm:$0xff]
    %v688 = vld [vmem:[#allocation5 + $0xeb0] sm:$0xff]
    %v689 = vld [vmem:[#allocation5 + $0xeb8] sm:$0xff]
    %v690 = vld [vmem:[#allocation5 + $0xec0] sm:$0xff]
    %v691 = vld [vmem:[#allocation5 + $0xec8] sm:$0xff]
    %v692 = vld [vmem:[#allocation5 + $0xed0] sm:$0xff]
    %v693 = vld [vmem:[#allocation5 + $0xed8] sm:$0xff]
    %v694 = vld [vmem:[#allocation5 + $0xee0] sm:$0xff]
    %v695 = vld [vmem:[#allocation5 + $0xee8] sm:$0xff]
    %v696 = vld [vmem:[#allocation5 + $0xef0] sm:$0xff]
    %v697 = vld [vmem:[#allocation5 + $0xef8] sm:$0xff]
    %v698 = vld [vmem:[#allocation5 + $0xf00] sm:$0xff]
    %v699 = vld [vmem:[#allocation5 + $0xf08] sm:$0xff]
    %v700 = vld [vmem:[#allocation5 + $0xf10] sm:$0xff]
    %v701 = vld [vmem:[#allocation5 + $0xf18] sm:$0xff]
    %v702 = vld [vmem:[#allocation5 + $0xf20] sm:$0xff]
    %v703 = vld [vmem:[#allocation5 + $0xf28] sm:$0xff]
    %v704 = vld [vmem:[#allocation5 + $0xf30] sm:$0xff]
    %v705 = vld [vmem:[#allocation5 + $0xf38] sm:$0xff]
    %v706 = vld [vmem:[#allocation5 + $0xf40] sm:$0xff]
    %v707 = vld [vmem:[#allocation5 + $0xf48] sm:$0xff]
    %v708 = vld [vmem:[#allocation5 + $0xf50] sm:$0xff]
    %v709 = vld [vmem:[#allocation5 + $0xf58] sm:$0xff]
    %v710 = vld [vmem:[#allocation5 + $0xf60] sm:$0xff]
    %v711 = vld [vmem:[#allocation5 + $0xf68] sm:$0xff]
    %v712 = vld [vmem:[#allocation5 + $0xf70] sm:$0xff]
    %v713 = vld [vmem:[#allocation5 + $0xf78] sm:$0xff]
    %v714 = vld [vmem:[#allocation5 + $0xf80] sm:$0xff]
    %v715 = vld [vmem:[#allocation5 + $0xf88] sm:$0xff]
    %v716 = vld [vmem:[#allocation5 + $0xf90] sm:$0xff]
    %v717 = vld [vmem:[#allocation5 + $0xf98] sm:$0xff]
    %v718 = vld [vmem:[#allocation5 + $0xfa0] sm:$0xff]
    %v719 = vld [vmem:[#allocation5 + $0xfa8] sm:$0xff]
    %v720 = vld [vmem:[#allocation5 + $0xfb0] sm:$0xff]
    %v721 = vld [vmem:[#allocation5 + $0xfb8] sm:$0xff]
    %v722 = vld [vmem:[#allocation5 + $0xfc0] sm:$0xff]
    %v723 = vld [vmem:[#allocation5 + $0xfc8] sm:$0xff]
    %v724 = vld [vmem:[#allocation5 + $0xfd0] sm:$0xff]
    %v725 = vld [vmem:[#allocation5 + $0xfd8] sm:$0xff]
    %v726 = vld [vmem:[#allocation5 + $0xfe0] sm:$0xff]
    %v727 = vld [vmem:[#allocation5 + $0xfe8] sm:$0xff]
    %v728 = vld [vmem:[#allocation5 + $0xff0] sm:$0xff]
    %v729 = vld [vmem:[#allocation5 + $0xff8] sm:$0xff]
    %v730 = vld [vmem:[#allocation7] sm:$0xff]
    %v732 = vlaneseq
    %v733 = vshrl.u32 %v732, 7
    %v734 = vsub.s32 0, %v733
    %v735 = vrot.slane %v730, %v734
    %v736 = vlaneseq
    %v737 = vshrl.u32 %v736, 7
    %v738 = vsub.s32 1, %v737
    %v739 = vrot.slane %v730, %v738
    %v740 = vlaneseq
    %v741 = vshrl.u32 %v740, 7
    %v742 = vsub.s32 2, %v741
    %v743 = vrot.slane %v730, %v742
    %v744 = vlaneseq
    %v745 = vshrl.u32 %v744, 7
    %v746 = vsub.s32 3, %v745
    %v747 = vrot.slane %v730, %v746
    %v748 = vlaneseq
    %v749 = vshrl.u32 %v748, 7
    %v750 = vsub.s32 4, %v749
    %v751 = vrot.slane %v730, %v750
    %v752 = vlaneseq
    %v753 = vshrl.u32 %v752, 7
    %v754 = vsub.s32 5, %v753
    %v755 = vrot.slane %v730, %v754
    %v756 = vlaneseq
    %v757 = vshrl.u32 %v756, 7
    %v758 = vsub.s32 6, %v757
    %v759 = vrot.slane %v730, %v758
    %v760 = vlaneseq
    %v761 = vshrl.u32 %v760, 7
    %v762 = vsub.s32 7, %v761
    %v763 = vrot.slane %v730, %v762
    %v780 = vunpack.c.l.b16 %v210
    %v781 = vunpack.c.h.b16 %v210
    %v782 = vunpack.c.l.b16 %v211
    %v783 = vunpack.c.h.b16 %v211
    %v784 = vunpack.c.l.b16 %v212
    %v785 = vunpack.c.h.b16 %v212
    %v786 = vunpack.c.l.b16 %v213
    %v787 = vunpack.c.h.b16 %v213
    %v788 = vunpack.c.l.b16 %v214
    %v789 = vunpack.c.h.b16 %v214
    %v790 = vunpack.c.l.b16 %v215
    %v791 = vunpack.c.h.b16 %v215
    %v792 = vunpack.c.l.b16 %v216
    %v793 = vunpack.c.h.b16 %v216
    %v794 = vunpack.c.l.b16 %v217
    %v795 = vunpack.c.h.b16 %v217
    %v796 = vpack.c.b16 %v788, %v780
    %v797 = vpack.c.b16 %v789, %v781
    %v798 = vpack.c.b16 %v790, %v782
    %v799 = vpack.c.b16 %v791, %v783
    %v800 = vpack.c.b16 %v792, %v784
    %v801 = vpack.c.b16 %v793, %v785
    %v802 = vpack.c.b16 %v794, %v786
    %v803 = vpack.c.b16 %v795, %v787
    %v1324 = vunpack.c.l.b16 %v218
    %v1325 = vunpack.c.h.b16 %v218
    %v1326 = vunpack.c.l.b16 %v219
    %v1327 = vunpack.c.h.b16 %v219
    %v1328 = vunpack.c.l.b16 %v220
    %v1329 = vunpack.c.h.b16 %v220
    %v1330 = vunpack.c.l.b16 %v221
    %v1331 = vunpack.c.h.b16 %v221
    %v1332 = vunpack.c.l.b16 %v222
    %v1333 = vunpack.c.h.b16 %v222
    %v1334 = vunpack.c.l.b16 %v223
    %v1335 = vunpack.c.h.b16 %v223
    %v1336 = vunpack.c.l.b16 %v224
    %v1337 = vunpack.c.h.b16 %v224
    %v1338 = vunpack.c.l.b16 %v225
    %v1339 = vunpack.c.h.b16 %v225
    %v1340 = vunpack.c.l.b16 %v226
    %v1341 = vunpack.c.h.b16 %v226
    %v1342 = vunpack.c.l.b16 %v227
    %v1343 = vunpack.c.h.b16 %v227
    %v1344 = vunpack.c.l.b16 %v228
    %v1345 = vunpack.c.h.b16 %v228
    %v1346 = vunpack.c.l.b16 %v229
    %v1347 = vunpack.c.h.b16 %v229
    %v1348 = vunpack.c.l.b16 %v230
    %v1349 = vunpack.c.h.b16 %v230
    %v1350 = vunpack.c.l.b16 %v231
    %v1351 = vunpack.c.h.b16 %v231
    %v1352 = vunpack.c.l.b16 %v232
    %v1353 = vunpack.c.h.b16 %v232
    %v1354 = vunpack.c.l.b16 %v233
    %v1355 = vunpack.c.h.b16 %v233
    %v1356 = vunpack.c.l.b16 %v234
    %v1357 = vunpack.c.h.b16 %v234
    %v1358 = vunpack.c.l.b16 %v235
    %v1359 = vunpack.c.h.b16 %v235
    %v1360 = vunpack.c.l.b16 %v236
    %v1361 = vunpack.c.h.b16 %v236
    %v1362 = vunpack.c.l.b16 %v237
    %v1363 = vunpack.c.h.b16 %v237
    %v1364 = vunpack.c.l.b16 %v238
    %v1365 = vunpack.c.h.b16 %v238
    %v1366 = vunpack.c.l.b16 %v239
    %v1367 = vunpack.c.h.b16 %v239
    %v1368 = vunpack.c.l.b16 %v240
    %v1369 = vunpack.c.h.b16 %v240
    %v1370 = vunpack.c.l.b16 %v241
    %v1371 = vunpack.c.h.b16 %v241
    %v1372 = vunpack.c.l.b16 %v242
    %v1373 = vunpack.c.h.b16 %v242
    %v1374 = vunpack.c.l.b16 %v243
    %v1375 = vunpack.c.h.b16 %v243
    %v1376 = vunpack.c.l.b16 %v244
    %v1377 = vunpack.c.h.b16 %v244
    %v1378 = vunpack.c.l.b16 %v245
    %v1379 = vunpack.c.h.b16 %v245
    %v1380 = vunpack.c.l.b16 %v246
    %v1381 = vunpack.c.h.b16 %v246
    %v1382 = vunpack.c.l.b16 %v247
    %v1383 = vunpack.c.h.b16 %v247
    %v1384 = vunpack.c.l.b16 %v248
    %v1385 = vunpack.c.h.b16 %v248
    %v1386 = vunpack.c.l.b16 %v249
    %v1387 = vunpack.c.h.b16 %v249
    %v1388 = vunpack.c.l.b16 %v250
    %v1389 = vunpack.c.h.b16 %v250
    %v1390 = vunpack.c.l.b16 %v251
    %v1391 = vunpack.c.h.b16 %v251
    %v1392 = vunpack.c.l.b16 %v252
    %v1393 = vunpack.c.h.b16 %v252
    %v1394 = vunpack.c.l.b16 %v253
    %v1395 = vunpack.c.h.b16 %v253
    %v1396 = vunpack.c.l.b16 %v254
    %v1397 = vunpack.c.h.b16 %v254
    %v1398 = vunpack.c.l.b16 %v255
    %v1399 = vunpack.c.h.b16 %v255
    %v1400 = vunpack.c.l.b16 %v256
    %v1401 = vunpack.c.h.b16 %v256
    %v1402 = vunpack.c.l.b16 %v257
    %v1403 = vunpack.c.h.b16 %v257
    %v1404 = vunpack.c.l.b16 %v258
    %v1405 = vunpack.c.h.b16 %v258
    %v1406 = vunpack.c.l.b16 %v259
    %v1407 = vunpack.c.h.b16 %v259
    %v1408 = vunpack.c.l.b16 %v260
    %v1409 = vunpack.c.h.b16 %v260
    %v1410 = vunpack.c.l.b16 %v261
    %v1411 = vunpack.c.h.b16 %v261
    %v1412 = vunpack.c.l.b16 %v262
    %v1413 = vunpack.c.h.b16 %v262
    %v1414 = vunpack.c.l.b16 %v263
    %v1415 = vunpack.c.h.b16 %v263
    %v1416 = vunpack.c.l.b16 %v264
    %v1417 = vunpack.c.h.b16 %v264
    %v1418 = vunpack.c.l.b16 %v265
    %v1419 = vunpack.c.h.b16 %v265
    %v1420 = vunpack.c.l.b16 %v266
    %v1421 = vunpack.c.h.b16 %v266
    %v1422 = vunpack.c.l.b16 %v267
    %v1423 = vunpack.c.h.b16 %v267
    %v1424 = vunpack.c.l.b16 %v268
    %v1425 = vunpack.c.h.b16 %v268
    %v1426 = vunpack.c.l.b16 %v269
    %v1427 = vunpack.c.h.b16 %v269
    %v1428 = vunpack.c.l.b16 %v270
    %v1429 = vunpack.c.h.b16 %v270
    %v1430 = vunpack.c.l.b16 %v271
    %v1431 = vunpack.c.h.b16 %v271
    %v1432 = vunpack.c.l.b16 %v272
    %v1433 = vunpack.c.h.b16 %v272
    %v1434 = vunpack.c.l.b16 %v273
    %v1435 = vunpack.c.h.b16 %v273
    %v1436 = vunpack.c.l.b16 %v274
    %v1437 = vunpack.c.h.b16 %v274
    %v1438 = vunpack.c.l.b16 %v275
    %v1439 = vunpack.c.h.b16 %v275
    %v1440 = vunpack.c.l.b16 %v276
    %v1441 = vunpack.c.h.b16 %v276
    %v1442 = vunpack.c.l.b16 %v277
    %v1443 = vunpack.c.h.b16 %v277
    %v1444 = vunpack.c.l.b16 %v278
    %v1445 = vunpack.c.h.b16 %v278
    %v1446 = vunpack.c.l.b16 %v279
    %v1447 = vunpack.c.h.b16 %v279
    %v1448 = vunpack.c.l.b16 %v280
    %v1449 = vunpack.c.h.b16 %v280
    %v1450 = vunpack.c.l.b16 %v281
    %v1451 = vunpack.c.h.b16 %v281
    %v1452 = vunpack.c.l.b16 %v282
    %v1453 = vunpack.c.h.b16 %v282
    %v1454 = vunpack.c.l.b16 %v283
    %v1455 = vunpack.c.h.b16 %v283
    %v1456 = vunpack.c.l.b16 %v284
    %v1457 = vunpack.c.h.b16 %v284
    %v1458 = vunpack.c.l.b16 %v285
    %v1459 = vunpack.c.h.b16 %v285
    %v1460 = vunpack.c.l.b16 %v286
    %v1461 = vunpack.c.h.b16 %v286
    %v1462 = vunpack.c.l.b16 %v287
    %v1463 = vunpack.c.h.b16 %v287
    %v1464 = vunpack.c.l.b16 %v288
    %v1465 = vunpack.c.h.b16 %v288
    %v1466 = vunpack.c.l.b16 %v289
    %v1467 = vunpack.c.h.b16 %v289
    %v1468 = vunpack.c.l.b16 %v290
    %v1469 = vunpack.c.h.b16 %v290
    %v1470 = vunpack.c.l.b16 %v291
    %v1471 = vunpack.c.h.b16 %v291
    %v1472 = vunpack.c.l.b16 %v292
    %v1473 = vunpack.c.h.b16 %v292
    %v1474 = vunpack.c.l.b16 %v293
    %v1475 = vunpack.c.h.b16 %v293
    %v1476 = vunpack.c.l.b16 %v294
    %v1477 = vunpack.c.h.b16 %v294
    %v1478 = vunpack.c.l.b16 %v295
    %v1479 = vunpack.c.h.b16 %v295
    %v1480 = vunpack.c.l.b16 %v296
    %v1481 = vunpack.c.h.b16 %v296
    %v1482 = vunpack.c.l.b16 %v297
    %v1483 = vunpack.c.h.b16 %v297
    %v1484 = vunpack.c.l.b16 %v298
    %v1485 = vunpack.c.h.b16 %v298
    %v1486 = vunpack.c.l.b16 %v299
    %v1487 = vunpack.c.h.b16 %v299
    %v1488 = vunpack.c.l.b16 %v300
    %v1489 = vunpack.c.h.b16 %v300
    %v1490 = vunpack.c.l.b16 %v301
    %v1491 = vunpack.c.h.b16 %v301
    %v1492 = vunpack.c.l.b16 %v302
    %v1493 = vunpack.c.h.b16 %v302
    %v1494 = vunpack.c.l.b16 %v303
    %v1495 = vunpack.c.h.b16 %v303
    %v1496 = vunpack.c.l.b16 %v304
    %v1497 = vunpack.c.h.b16 %v304
    %v1498 = vunpack.c.l.b16 %v305
    %v1499 = vunpack.c.h.b16 %v305
    %v1500 = vunpack.c.l.b16 %v306
    %v1501 = vunpack.c.h.b16 %v306
    %v1502 = vunpack.c.l.b16 %v307
    %v1503 = vunpack.c.h.b16 %v307
    %v1504 = vunpack.c.l.b16 %v308
    %v1505 = vunpack.c.h.b16 %v308
    %v1506 = vunpack.c.l.b16 %v309
    %v1507 = vunpack.c.h.b16 %v309
    %v1508 = vunpack.c.l.b16 %v310
    %v1509 = vunpack.c.h.b16 %v310
    %v1510 = vunpack.c.l.b16 %v311
    %v1511 = vunpack.c.h.b16 %v311
    %v1512 = vunpack.c.l.b16 %v312
    %v1513 = vunpack.c.h.b16 %v312
    %v1514 = vunpack.c.l.b16 %v313
    %v1515 = vunpack.c.h.b16 %v313
    %v1516 = vunpack.c.l.b16 %v314
    %v1517 = vunpack.c.h.b16 %v314
    %v1518 = vunpack.c.l.b16 %v315
    %v1519 = vunpack.c.h.b16 %v315
    %v1520 = vunpack.c.l.b16 %v316
    %v1521 = vunpack.c.h.b16 %v316
    %v1522 = vunpack.c.l.b16 %v317
    %v1523 = vunpack.c.h.b16 %v317
    %v1524 = vunpack.c.l.b16 %v318
    %v1525 = vunpack.c.h.b16 %v318
    %v1526 = vunpack.c.l.b16 %v319
    %v1527 = vunpack.c.h.b16 %v319
    %v1528 = vunpack.c.l.b16 %v320
    %v1529 = vunpack.c.h.b16 %v320
    %v1530 = vunpack.c.l.b16 %v321
    %v1531 = vunpack.c.h.b16 %v321
    %v1532 = vunpack.c.l.b16 %v322
    %v1533 = vunpack.c.h.b16 %v322
    %v1534 = vunpack.c.l.b16 %v323
    %v1535 = vunpack.c.h.b16 %v323
    %v1536 = vunpack.c.l.b16 %v324
    %v1537 = vunpack.c.h.b16 %v324
    %v1538 = vunpack.c.l.b16 %v325
    %v1539 = vunpack.c.h.b16 %v325
    %v1540 = vunpack.c.l.b16 %v326
    %v1541 = vunpack.c.h.b16 %v326
    %v1542 = vunpack.c.l.b16 %v327
    %v1543 = vunpack.c.h.b16 %v327
    %v1544 = vunpack.c.l.b16 %v328
    %v1545 = vunpack.c.h.b16 %v328
    %v1546 = vunpack.c.l.b16 %v329
    %v1547 = vunpack.c.h.b16 %v329
    %v1548 = vunpack.c.l.b16 %v330
    %v1549 = vunpack.c.h.b16 %v330
    %v1550 = vunpack.c.l.b16 %v331
    %v1551 = vunpack.c.h.b16 %v331
    %v1552 = vunpack.c.l.b16 %v332
    %v1553 = vunpack.c.h.b16 %v332
    %v1554 = vunpack.c.l.b16 %v333
    %v1555 = vunpack.c.h.b16 %v333
    %v1556 = vunpack.c.l.b16 %v334
    %v1557 = vunpack.c.h.b16 %v334
    %v1558 = vunpack.c.l.b16 %v335
    %v1559 = vunpack.c.h.b16 %v335
    %v1560 = vunpack.c.l.b16 %v336
    %v1561 = vunpack.c.h.b16 %v336
    %v1562 = vunpack.c.l.b16 %v337
    %v1563 = vunpack.c.h.b16 %v337
    %v1564 = vunpack.c.l.b16 %v338
    %v1565 = vunpack.c.h.b16 %v338
    %v1566 = vunpack.c.l.b16 %v339
    %v1567 = vunpack.c.h.b16 %v339
    %v1568 = vunpack.c.l.b16 %v340
    %v1569 = vunpack.c.h.b16 %v340
    %v1570 = vunpack.c.l.b16 %v341
    %v1571 = vunpack.c.h.b16 %v341
    %v1572 = vunpack.c.l.b16 %v342
    %v1573 = vunpack.c.h.b16 %v342
    %v1574 = vunpack.c.l.b16 %v343
    %v1575 = vunpack.c.h.b16 %v343
    %v1576 = vunpack.c.l.b16 %v344
    %v1577 = vunpack.c.h.b16 %v344
    %v1578 = vunpack.c.l.b16 %v345
    %v1579 = vunpack.c.h.b16 %v345
    %v1580 = vunpack.c.l.b16 %v346
    %v1581 = vunpack.c.h.b16 %v346
    %v1582 = vunpack.c.l.b16 %v347
    %v1583 = vunpack.c.h.b16 %v347
    %v1584 = vunpack.c.l.b16 %v348
    %v1585 = vunpack.c.h.b16 %v348
    %v1586 = vunpack.c.l.b16 %v349
    %v1587 = vunpack.c.h.b16 %v349
    %v1588 = vunpack.c.l.b16 %v350
    %v1589 = vunpack.c.h.b16 %v350
    %v1590 = vunpack.c.l.b16 %v351
    %v1591 = vunpack.c.h.b16 %v351
    %v1592 = vunpack.c.l.b16 %v352
    %v1593 = vunpack.c.h.b16 %v352
    %v1594 = vunpack.c.l.b16 %v353
    %v1595 = vunpack.c.h.b16 %v353
    %v1596 = vunpack.c.l.b16 %v354
    %v1597 = vunpack.c.h.b16 %v354
    %v1598 = vunpack.c.l.b16 %v355
    %v1599 = vunpack.c.h.b16 %v355
    %v1600 = vunpack.c.l.b16 %v356
    %v1601 = vunpack.c.h.b16 %v356
    %v1602 = vunpack.c.l.b16 %v357
    %v1603 = vunpack.c.h.b16 %v357
    %v1604 = vunpack.c.l.b16 %v358
    %v1605 = vunpack.c.h.b16 %v358
    %v1606 = vunpack.c.l.b16 %v359
    %v1607 = vunpack.c.h.b16 %v359
    %v1608 = vunpack.c.l.b16 %v360
    %v1609 = vunpack.c.h.b16 %v360
    %v1610 = vunpack.c.l.b16 %v361
    %v1611 = vunpack.c.h.b16 %v361
    %v1612 = vunpack.c.l.b16 %v362
    %v1613 = vunpack.c.h.b16 %v362
    %v1614 = vunpack.c.l.b16 %v363
    %v1615 = vunpack.c.h.b16 %v363
    %v1616 = vunpack.c.l.b16 %v364
    %v1617 = vunpack.c.h.b16 %v364
    %v1618 = vunpack.c.l.b16 %v365
    %v1619 = vunpack.c.h.b16 %v365
    %v1620 = vunpack.c.l.b16 %v366
    %v1621 = vunpack.c.h.b16 %v366
    %v1622 = vunpack.c.l.b16 %v367
    %v1623 = vunpack.c.h.b16 %v367
    %v1624 = vunpack.c.l.b16 %v368
    %v1625 = vunpack.c.h.b16 %v368
    %v1626 = vunpack.c.l.b16 %v369
    %v1627 = vunpack.c.h.b16 %v369
    %v1628 = vunpack.c.l.b16 %v370
    %v1629 = vunpack.c.h.b16 %v370
    %v1630 = vunpack.c.l.b16 %v371
    %v1631 = vunpack.c.h.b16 %v371
    %v1632 = vunpack.c.l.b16 %v372
    %v1633 = vunpack.c.h.b16 %v372
    %v1634 = vunpack.c.l.b16 %v373
    %v1635 = vunpack.c.h.b16 %v373
    %v1636 = vunpack.c.l.b16 %v374
    %v1637 = vunpack.c.h.b16 %v374
    %v1638 = vunpack.c.l.b16 %v375
    %v1639 = vunpack.c.h.b16 %v375
    %v1640 = vunpack.c.l.b16 %v376
    %v1641 = vunpack.c.h.b16 %v376
    %v1642 = vunpack.c.l.b16 %v377
    %v1643 = vunpack.c.h.b16 %v377
    %v1644 = vunpack.c.l.b16 %v378
    %v1645 = vunpack.c.h.b16 %v378
    %v1646 = vunpack.c.l.b16 %v379
    %v1647 = vunpack.c.h.b16 %v379
    %v1648 = vunpack.c.l.b16 %v380
    %v1649 = vunpack.c.h.b16 %v380
    %v1650 = vunpack.c.l.b16 %v381
    %v1651 = vunpack.c.h.b16 %v381
    %v1652 = vunpack.c.l.b16 %v382
    %v1653 = vunpack.c.h.b16 %v382
    %v1654 = vunpack.c.l.b16 %v383
    %v1655 = vunpack.c.h.b16 %v383
    %v1656 = vunpack.c.l.b16 %v384
    %v1657 = vunpack.c.h.b16 %v384
    %v1658 = vunpack.c.l.b16 %v385
    %v1659 = vunpack.c.h.b16 %v385
    %v1660 = vunpack.c.l.b16 %v386
    %v1661 = vunpack.c.h.b16 %v386
    %v1662 = vunpack.c.l.b16 %v387
    %v1663 = vunpack.c.h.b16 %v387
    %v1664 = vunpack.c.l.b16 %v388
    %v1665 = vunpack.c.h.b16 %v388
    %v1666 = vunpack.c.l.b16 %v389
    %v1667 = vunpack.c.h.b16 %v389
    %v1668 = vunpack.c.l.b16 %v390
    %v1669 = vunpack.c.h.b16 %v390
    %v1670 = vunpack.c.l.b16 %v391
    %v1671 = vunpack.c.h.b16 %v391
    %v1672 = vunpack.c.l.b16 %v392
    %v1673 = vunpack.c.h.b16 %v392
    %v1674 = vunpack.c.l.b16 %v393
    %v1675 = vunpack.c.h.b16 %v393
    %v1676 = vunpack.c.l.b16 %v394
    %v1677 = vunpack.c.h.b16 %v394
    %v1678 = vunpack.c.l.b16 %v395
    %v1679 = vunpack.c.h.b16 %v395
    %v1680 = vunpack.c.l.b16 %v396
    %v1681 = vunpack.c.h.b16 %v396
    %v1682 = vunpack.c.l.b16 %v397
    %v1683 = vunpack.c.h.b16 %v397
    %v1684 = vunpack.c.l.b16 %v398
    %v1685 = vunpack.c.h.b16 %v398
    %v1686 = vunpack.c.l.b16 %v399
    %v1687 = vunpack.c.h.b16 %v399
    %v1688 = vunpack.c.l.b16 %v400
    %v1689 = vunpack.c.h.b16 %v400
    %v1690 = vunpack.c.l.b16 %v401
    %v1691 = vunpack.c.h.b16 %v401
    %v1692 = vunpack.c.l.b16 %v402
    %v1693 = vunpack.c.h.b16 %v402
    %v1694 = vunpack.c.l.b16 %v403
    %v1695 = vunpack.c.h.b16 %v403
    %v1696 = vunpack.c.l.b16 %v404
    %v1697 = vunpack.c.h.b16 %v404
    %v1698 = vunpack.c.l.b16 %v405
    %v1699 = vunpack.c.h.b16 %v405
    %v1700 = vunpack.c.l.b16 %v406
    %v1701 = vunpack.c.h.b16 %v406
    %v1702 = vunpack.c.l.b16 %v407
    %v1703 = vunpack.c.h.b16 %v407
    %v1704 = vunpack.c.l.b16 %v408
    %v1705 = vunpack.c.h.b16 %v408
    %v1706 = vunpack.c.l.b16 %v409
    %v1707 = vunpack.c.h.b16 %v409
    %v1708 = vunpack.c.l.b16 %v410
    %v1709 = vunpack.c.h.b16 %v410
    %v1710 = vunpack.c.l.b16 %v411
    %v1711 = vunpack.c.h.b16 %v411
    %v1712 = vunpack.c.l.b16 %v412
    %v1713 = vunpack.c.h.b16 %v412
    %v1714 = vunpack.c.l.b16 %v413
    %v1715 = vunpack.c.h.b16 %v413
    %v1716 = vunpack.c.l.b16 %v414
    %v1717 = vunpack.c.h.b16 %v414
    %v1718 = vunpack.c.l.b16 %v415
    %v1719 = vunpack.c.h.b16 %v415
    %v1720 = vunpack.c.l.b16 %v416
    %v1721 = vunpack.c.h.b16 %v416
    %v1722 = vunpack.c.l.b16 %v417
    %v1723 = vunpack.c.h.b16 %v417
    %v1724 = vunpack.c.l.b16 %v418
    %v1725 = vunpack.c.h.b16 %v418
    %v1726 = vunpack.c.l.b16 %v419
    %v1727 = vunpack.c.h.b16 %v419
    %v1728 = vunpack.c.l.b16 %v420
    %v1729 = vunpack.c.h.b16 %v420
    %v1730 = vunpack.c.l.b16 %v421
    %v1731 = vunpack.c.h.b16 %v421
    %v1732 = vunpack.c.l.b16 %v422
    %v1733 = vunpack.c.h.b16 %v422
    %v1734 = vunpack.c.l.b16 %v423
    %v1735 = vunpack.c.h.b16 %v423
    %v1736 = vunpack.c.l.b16 %v424
    %v1737 = vunpack.c.h.b16 %v424
    %v1738 = vunpack.c.l.b16 %v425
    %v1739 = vunpack.c.h.b16 %v425
    %v1740 = vunpack.c.l.b16 %v426
    %v1741 = vunpack.c.h.b16 %v426
    %v1742 = vunpack.c.l.b16 %v427
    %v1743 = vunpack.c.h.b16 %v427
    %v1744 = vunpack.c.l.b16 %v428
    %v1745 = vunpack.c.h.b16 %v428
    %v1746 = vunpack.c.l.b16 %v429
    %v1747 = vunpack.c.h.b16 %v429
    %v1748 = vunpack.c.l.b16 %v430
    %v1749 = vunpack.c.h.b16 %v430
    %v1750 = vunpack.c.l.b16 %v431
    %v1751 = vunpack.c.h.b16 %v431
    %v1752 = vunpack.c.l.b16 %v432
    %v1753 = vunpack.c.h.b16 %v432
    %v1754 = vunpack.c.l.b16 %v433
    %v1755 = vunpack.c.h.b16 %v433
    %v1756 = vunpack.c.l.b16 %v434
    %v1757 = vunpack.c.h.b16 %v434
    %v1758 = vunpack.c.l.b16 %v435
    %v1759 = vunpack.c.h.b16 %v435
    %v1760 = vunpack.c.l.b16 %v436
    %v1761 = vunpack.c.h.b16 %v436
    %v1762 = vunpack.c.l.b16 %v437
    %v1763 = vunpack.c.h.b16 %v437
    %v1764 = vunpack.c.l.b16 %v438
    %v1765 = vunpack.c.h.b16 %v438
    %v1766 = vunpack.c.l.b16 %v439
    %v1767 = vunpack.c.h.b16 %v439
    %v1768 = vunpack.c.l.b16 %v440
    %v1769 = vunpack.c.h.b16 %v440
    %v1770 = vunpack.c.l.b16 %v441
    %v1771 = vunpack.c.h.b16 %v441
    %v1772 = vunpack.c.l.b16 %v442
    %v1773 = vunpack.c.h.b16 %v442
    %v1774 = vunpack.c.l.b16 %v443
    %v1775 = vunpack.c.h.b16 %v443
    %v1776 = vunpack.c.l.b16 %v444
    %v1777 = vunpack.c.h.b16 %v444
    %v1778 = vunpack.c.l.b16 %v445
    %v1779 = vunpack.c.h.b16 %v445
    %v1780 = vunpack.c.l.b16 %v446
    %v1781 = vunpack.c.h.b16 %v446
    %v1782 = vunpack.c.l.b16 %v447
    %v1783 = vunpack.c.h.b16 %v447
    %v1784 = vunpack.c.l.b16 %v448
    %v1785 = vunpack.c.h.b16 %v448
    %v1786 = vunpack.c.l.b16 %v449
    %v1787 = vunpack.c.h.b16 %v449
    %v1788 = vunpack.c.l.b16 %v450
    %v1789 = vunpack.c.h.b16 %v450
    %v1790 = vunpack.c.l.b16 %v451
    %v1791 = vunpack.c.h.b16 %v451
    %v1792 = vunpack.c.l.b16 %v452
    %v1793 = vunpack.c.h.b16 %v452
    %v1794 = vunpack.c.l.b16 %v453
    %v1795 = vunpack.c.h.b16 %v453
    %v1796 = vunpack.c.l.b16 %v454
    %v1797 = vunpack.c.h.b16 %v454
    %v1798 = vunpack.c.l.b16 %v455
    %v1799 = vunpack.c.h.b16 %v455
    %v1800 = vunpack.c.l.b16 %v456
    %v1801 = vunpack.c.h.b16 %v456
    %v1802 = vunpack.c.l.b16 %v457
    %v1803 = vunpack.c.h.b16 %v457
    %v1804 = vunpack.c.l.b16 %v458
    %v1805 = vunpack.c.h.b16 %v458
    %v1806 = vunpack.c.l.b16 %v459
    %v1807 = vunpack.c.h.b16 %v459
    %v1808 = vunpack.c.l.b16 %v460
    %v1809 = vunpack.c.h.b16 %v460
    %v1810 = vunpack.c.l.b16 %v461
    %v1811 = vunpack.c.h.b16 %v461
    %v1812 = vunpack.c.l.b16 %v462
    %v1813 = vunpack.c.h.b16 %v462
    %v1814 = vunpack.c.l.b16 %v463
    %v1815 = vunpack.c.h.b16 %v463
    %v1816 = vunpack.c.l.b16 %v464
    %v1817 = vunpack.c.h.b16 %v464
    %v1818 = vunpack.c.l.b16 %v465
    %v1819 = vunpack.c.h.b16 %v465
    %v1820 = vunpack.c.l.b16 %v466
    %v1821 = vunpack.c.h.b16 %v466
    %v1822 = vunpack.c.l.b16 %v467
    %v1823 = vunpack.c.h.b16 %v467
    %v1824 = vunpack.c.l.b16 %v468
    %v1825 = vunpack.c.h.b16 %v468
    %v1826 = vunpack.c.l.b16 %v469
    %v1827 = vunpack.c.h.b16 %v469
    %v1828 = vunpack.c.l.b16 %v470
    %v1829 = vunpack.c.h.b16 %v470
    %v1830 = vunpack.c.l.b16 %v471
    %v1831 = vunpack.c.h.b16 %v471
    %v1832 = vunpack.c.l.b16 %v472
    %v1833 = vunpack.c.h.b16 %v472
    %v1834 = vunpack.c.l.b16 %v473
    %v1835 = vunpack.c.h.b16 %v473
    %v1836 = vunpack.c.l.b16 %v474
    %v1837 = vunpack.c.h.b16 %v474
    %v1838 = vunpack.c.l.b16 %v475
    %v1839 = vunpack.c.h.b16 %v475
    %v1840 = vunpack.c.l.b16 %v476
    %v1841 = vunpack.c.h.b16 %v476
    %v1842 = vunpack.c.l.b16 %v477
    %v1843 = vunpack.c.h.b16 %v477
    %v1844 = vunpack.c.l.b16 %v478
    %v1845 = vunpack.c.h.b16 %v478
    %v1846 = vunpack.c.l.b16 %v479
    %v1847 = vunpack.c.h.b16 %v479
    %v1848 = vunpack.c.l.b16 %v480
    %v1849 = vunpack.c.h.b16 %v480
    %v1850 = vunpack.c.l.b16 %v481
    %v1851 = vunpack.c.h.b16 %v481
    %v1852 = vunpack.c.l.b16 %v482
    %v1853 = vunpack.c.h.b16 %v482
    %v1854 = vunpack.c.l.b16 %v483
    %v1855 = vunpack.c.h.b16 %v483
    %v1856 = vunpack.c.l.b16 %v484
    %v1857 = vunpack.c.h.b16 %v484
    %v1858 = vunpack.c.l.b16 %v485
    %v1859 = vunpack.c.h.b16 %v485
    %v1860 = vunpack.c.l.b16 %v486
    %v1861 = vunpack.c.h.b16 %v486
    %v1862 = vunpack.c.l.b16 %v487
    %v1863 = vunpack.c.h.b16 %v487
    %v1864 = vunpack.c.l.b16 %v488
    %v1865 = vunpack.c.h.b16 %v488
    %v1866 = vunpack.c.l.b16 %v489
    %v1867 = vunpack.c.h.b16 %v489
    %v1868 = vunpack.c.l.b16 %v490
    %v1869 = vunpack.c.h.b16 %v490
    %v1870 = vunpack.c.l.b16 %v491
    %v1871 = vunpack.c.h.b16 %v491
    %v1872 = vunpack.c.l.b16 %v492
    %v1873 = vunpack.c.h.b16 %v492
    %v1874 = vunpack.c.l.b16 %v493
    %v1875 = vunpack.c.h.b16 %v493
    %v1876 = vunpack.c.l.b16 %v494
    %v1877 = vunpack.c.h.b16 %v494
    %v1878 = vunpack.c.l.b16 %v495
    %v1879 = vunpack.c.h.b16 %v495
    %v1880 = vunpack.c.l.b16 %v496
    %v1881 = vunpack.c.h.b16 %v496
    %v1882 = vunpack.c.l.b16 %v497
    %v1883 = vunpack.c.h.b16 %v497
    %v1884 = vunpack.c.l.b16 %v498
    %v1885 = vunpack.c.h.b16 %v498
    %v1886 = vunpack.c.l.b16 %v499
    %v1887 = vunpack.c.h.b16 %v499
    %v1888 = vunpack.c.l.b16 %v500
    %v1889 = vunpack.c.h.b16 %v500
    %v1890 = vunpack.c.l.b16 %v501
    %v1891 = vunpack.c.h.b16 %v501
    %v1892 = vunpack.c.l.b16 %v502
    %v1893 = vunpack.c.h.b16 %v502
    %v1894 = vunpack.c.l.b16 %v503
    %v1895 = vunpack.c.h.b16 %v503
    %v1896 = vunpack.c.l.b16 %v504
    %v1897 = vunpack.c.h.b16 %v504
    %v1898 = vunpack.c.l.b16 %v505
    %v1899 = vunpack.c.h.b16 %v505
    %v1900 = vunpack.c.l.b16 %v506
    %v1901 = vunpack.c.h.b16 %v506
    %v1902 = vunpack.c.l.b16 %v507
    %v1903 = vunpack.c.h.b16 %v507
    %v1904 = vunpack.c.l.b16 %v508
    %v1905 = vunpack.c.h.b16 %v508
    %v1906 = vunpack.c.l.b16 %v509
    %v1907 = vunpack.c.h.b16 %v509
    %v1908 = vunpack.c.l.b16 %v510
    %v1909 = vunpack.c.h.b16 %v510
    %v1910 = vunpack.c.l.b16 %v511
    %v1911 = vunpack.c.h.b16 %v511
    %v1912 = vunpack.c.l.b16 %v512
    %v1913 = vunpack.c.h.b16 %v512
    %v1914 = vunpack.c.l.b16 %v513
    %v1915 = vunpack.c.h.b16 %v513
    %v1916 = vunpack.c.l.b16 %v514
    %v1917 = vunpack.c.h.b16 %v514
    %v1918 = vunpack.c.l.b16 %v515
    %v1919 = vunpack.c.h.b16 %v515
    %v1920 = vunpack.c.l.b16 %v516
    %v1921 = vunpack.c.h.b16 %v516
    %v1922 = vunpack.c.l.b16 %v517
    %v1923 = vunpack.c.h.b16 %v517
    %v1924 = vunpack.c.l.b16 %v518
    %v1925 = vunpack.c.h.b16 %v518
    %v1926 = vunpack.c.l.b16 %v519
    %v1927 = vunpack.c.h.b16 %v519
    %v1928 = vunpack.c.l.b16 %v520
    %v1929 = vunpack.c.h.b16 %v520
    %v1930 = vunpack.c.l.b16 %v521
    %v1931 = vunpack.c.h.b16 %v521
    %v1932 = vunpack.c.l.b16 %v522
    %v1933 = vunpack.c.h.b16 %v522
    %v1934 = vunpack.c.l.b16 %v523
    %v1935 = vunpack.c.h.b16 %v523
    %v1936 = vunpack.c.l.b16 %v524
    %v1937 = vunpack.c.h.b16 %v524
    %v1938 = vunpack.c.l.b16 %v525
    %v1939 = vunpack.c.h.b16 %v525
    %v1940 = vunpack.c.l.b16 %v526
    %v1941 = vunpack.c.h.b16 %v526
    %v1942 = vunpack.c.l.b16 %v527
    %v1943 = vunpack.c.h.b16 %v527
    %v1944 = vunpack.c.l.b16 %v528
    %v1945 = vunpack.c.h.b16 %v528
    %v1946 = vunpack.c.l.b16 %v529
    %v1947 = vunpack.c.h.b16 %v529
    %v1948 = vunpack.c.l.b16 %v530
    %v1949 = vunpack.c.h.b16 %v530
    %v1950 = vunpack.c.l.b16 %v531
    %v1951 = vunpack.c.h.b16 %v531
    %v1952 = vunpack.c.l.b16 %v532
    %v1953 = vunpack.c.h.b16 %v532
    %v1954 = vunpack.c.l.b16 %v533
    %v1955 = vunpack.c.h.b16 %v533
    %v1956 = vunpack.c.l.b16 %v534
    %v1957 = vunpack.c.h.b16 %v534
    %v1958 = vunpack.c.l.b16 %v535
    %v1959 = vunpack.c.h.b16 %v535
    %v1960 = vunpack.c.l.b16 %v536
    %v1961 = vunpack.c.h.b16 %v536
    %v1962 = vunpack.c.l.b16 %v537
    %v1963 = vunpack.c.h.b16 %v537
    %v1964 = vunpack.c.l.b16 %v538
    %v1965 = vunpack.c.h.b16 %v538
    %v1966 = vunpack.c.l.b16 %v539
    %v1967 = vunpack.c.h.b16 %v539
    %v1968 = vunpack.c.l.b16 %v540
    %v1969 = vunpack.c.h.b16 %v540
    %v1970 = vunpack.c.l.b16 %v541
    %v1971 = vunpack.c.h.b16 %v541
    %v1972 = vunpack.c.l.b16 %v542
    %v1973 = vunpack.c.h.b16 %v542
    %v1974 = vunpack.c.l.b16 %v543
    %v1975 = vunpack.c.h.b16 %v543
    %v1976 = vunpack.c.l.b16 %v544
    %v1977 = vunpack.c.h.b16 %v544
    %v1978 = vunpack.c.l.b16 %v545
    %v1979 = vunpack.c.h.b16 %v545
    %v1980 = vunpack.c.l.b16 %v546
    %v1981 = vunpack.c.h.b16 %v546
    %v1982 = vunpack.c.l.b16 %v547
    %v1983 = vunpack.c.h.b16 %v547
    %v1984 = vunpack.c.l.b16 %v548
    %v1985 = vunpack.c.h.b16 %v548
    %v1986 = vunpack.c.l.b16 %v549
    %v1987 = vunpack.c.h.b16 %v549
    %v1988 = vunpack.c.l.b16 %v550
    %v1989 = vunpack.c.h.b16 %v550
    %v1990 = vunpack.c.l.b16 %v551
    %v1991 = vunpack.c.h.b16 %v551
    %v1992 = vunpack.c.l.b16 %v552
    %v1993 = vunpack.c.h.b16 %v552
    %v1994 = vunpack.c.l.b16 %v553
    %v1995 = vunpack.c.h.b16 %v553
    %v1996 = vunpack.c.l.b16 %v554
    %v1997 = vunpack.c.h.b16 %v554
    %v1998 = vunpack.c.l.b16 %v555
    %v1999 = vunpack.c.h.b16 %v555
    %v2000 = vunpack.c.l.b16 %v556
    %v2001 = vunpack.c.h.b16 %v556
    %v2002 = vunpack.c.l.b16 %v557
    %v2003 = vunpack.c.h.b16 %v557
    %v2004 = vunpack.c.l.b16 %v558
    %v2005 = vunpack.c.h.b16 %v558
    %v2006 = vunpack.c.l.b16 %v559
    %v2007 = vunpack.c.h.b16 %v559
    %v2008 = vunpack.c.l.b16 %v560
    %v2009 = vunpack.c.h.b16 %v560
    %v2010 = vunpack.c.l.b16 %v561
    %v2011 = vunpack.c.h.b16 %v561
    %v2012 = vunpack.c.l.b16 %v562
    %v2013 = vunpack.c.h.b16 %v562
    %v2014 = vunpack.c.l.b16 %v563
    %v2015 = vunpack.c.h.b16 %v563
    %v2016 = vunpack.c.l.b16 %v564
    %v2017 = vunpack.c.h.b16 %v564
    %v2018 = vunpack.c.l.b16 %v565
    %v2019 = vunpack.c.h.b16 %v565
    %v2020 = vunpack.c.l.b16 %v566
    %v2021 = vunpack.c.h.b16 %v566
    %v2022 = vunpack.c.l.b16 %v567
    %v2023 = vunpack.c.h.b16 %v567
    %v2024 = vunpack.c.l.b16 %v568
    %v2025 = vunpack.c.h.b16 %v568
    %v2026 = vunpack.c.l.b16 %v569
    %v2027 = vunpack.c.h.b16 %v569
    %v2028 = vunpack.c.l.b16 %v570
    %v2029 = vunpack.c.h.b16 %v570
    %v2030 = vunpack.c.l.b16 %v571
    %v2031 = vunpack.c.h.b16 %v571
    %v2032 = vunpack.c.l.b16 %v572
    %v2033 = vunpack.c.h.b16 %v572
    %v2034 = vunpack.c.l.b16 %v573
    %v2035 = vunpack.c.h.b16 %v573
    %v2036 = vunpack.c.l.b16 %v574
    %v2037 = vunpack.c.h.b16 %v574
    %v2038 = vunpack.c.l.b16 %v575
    %v2039 = vunpack.c.h.b16 %v575
    %v2040 = vunpack.c.l.b16 %v576
    %v2041 = vunpack.c.h.b16 %v576
    %v2042 = vunpack.c.l.b16 %v577
    %v2043 = vunpack.c.h.b16 %v577
    %v2044 = vunpack.c.l.b16 %v578
    %v2045 = vunpack.c.h.b16 %v578
    %v2046 = vunpack.c.l.b16 %v579
    %v2047 = vunpack.c.h.b16 %v579
    %v2048 = vunpack.c.l.b16 %v580
    %v2049 = vunpack.c.h.b16 %v580
    %v2050 = vunpack.c.l.b16 %v581
    %v2051 = vunpack.c.h.b16 %v581
    %v2052 = vunpack.c.l.b16 %v582
    %v2053 = vunpack.c.h.b16 %v582
    %v2054 = vunpack.c.l.b16 %v583
    %v2055 = vunpack.c.h.b16 %v583
    %v2056 = vunpack.c.l.b16 %v584
    %v2057 = vunpack.c.h.b16 %v584
    %v2058 = vunpack.c.l.b16 %v585
    %v2059 = vunpack.c.h.b16 %v585
    %v2060 = vunpack.c.l.b16 %v586
    %v2061 = vunpack.c.h.b16 %v586
    %v2062 = vunpack.c.l.b16 %v587
    %v2063 = vunpack.c.h.b16 %v587
    %v2064 = vunpack.c.l.b16 %v588
    %v2065 = vunpack.c.h.b16 %v588
    %v2066 = vunpack.c.l.b16 %v589
    %v2067 = vunpack.c.h.b16 %v589
    %v2068 = vunpack.c.l.b16 %v590
    %v2069 = vunpack.c.h.b16 %v590
    %v2070 = vunpack.c.l.b16 %v591
    %v2071 = vunpack.c.h.b16 %v591
    %v2072 = vunpack.c.l.b16 %v592
    %v2073 = vunpack.c.h.b16 %v592
    %v2074 = vunpack.c.l.b16 %v593
    %v2075 = vunpack.c.h.b16 %v593
    %v2076 = vunpack.c.l.b16 %v594
    %v2077 = vunpack.c.h.b16 %v594
    %v2078 = vunpack.c.l.b16 %v595
    %v2079 = vunpack.c.h.b16 %v595
    %v2080 = vunpack.c.l.b16 %v596
    %v2081 = vunpack.c.h.b16 %v596
    %v2082 = vunpack.c.l.b16 %v597
    %v2083 = vunpack.c.h.b16 %v597
    %v2084 = vunpack.c.l.b16 %v598
    %v2085 = vunpack.c.h.b16 %v598
    %v2086 = vunpack.c.l.b16 %v599
    %v2087 = vunpack.c.h.b16 %v599
    %v2088 = vunpack.c.l.b16 %v600
    %v2089 = vunpack.c.h.b16 %v600
    %v2090 = vunpack.c.l.b16 %v601
    %v2091 = vunpack.c.h.b16 %v601
    %v2092 = vunpack.c.l.b16 %v602
    %v2093 = vunpack.c.h.b16 %v602
    %v2094 = vunpack.c.l.b16 %v603
    %v2095 = vunpack.c.h.b16 %v603
    %v2096 = vunpack.c.l.b16 %v604
    %v2097 = vunpack.c.h.b16 %v604
    %v2098 = vunpack.c.l.b16 %v605
    %v2099 = vunpack.c.h.b16 %v605
    %v2100 = vunpack.c.l.b16 %v606
    %v2101 = vunpack.c.h.b16 %v606
    %v2102 = vunpack.c.l.b16 %v607
    %v2103 = vunpack.c.h.b16 %v607
    %v2104 = vunpack.c.l.b16 %v608
    %v2105 = vunpack.c.h.b16 %v608
    %v2106 = vunpack.c.l.b16 %v609
    %v2107 = vunpack.c.h.b16 %v609
    %v2108 = vunpack.c.l.b16 %v610
    %v2109 = vunpack.c.h.b16 %v610
    %v2110 = vunpack.c.l.b16 %v611
    %v2111 = vunpack.c.h.b16 %v611
    %v2112 = vunpack.c.l.b16 %v612
    %v2113 = vunpack.c.h.b16 %v612
    %v2114 = vunpack.c.l.b16 %v613
    %v2115 = vunpack.c.h.b16 %v613
    %v2116 = vunpack.c.l.b16 %v614
    %v2117 = vunpack.c.h.b16 %v614
    %v2118 = vunpack.c.l.b16 %v615
    %v2119 = vunpack.c.h.b16 %v615
    %v2120 = vunpack.c.l.b16 %v616
    %v2121 = vunpack.c.h.b16 %v616
    %v2122 = vunpack.c.l.b16 %v617
    %v2123 = vunpack.c.h.b16 %v617
    %v2124 = vunpack.c.l.b16 %v618
    %v2125 = vunpack.c.h.b16 %v618
    %v2126 = vunpack.c.l.b16 %v619
    %v2127 = vunpack.c.h.b16 %v619
    %v2128 = vunpack.c.l.b16 %v620
    %v2129 = vunpack.c.h.b16 %v620
    %v2130 = vunpack.c.l.b16 %v621
    %v2131 = vunpack.c.h.b16 %v621
    %v2132 = vunpack.c.l.b16 %v622
    %v2133 = vunpack.c.h.b16 %v622
    %v2134 = vunpack.c.l.b16 %v623
    %v2135 = vunpack.c.h.b16 %v623
    %v2136 = vunpack.c.l.b16 %v624
    %v2137 = vunpack.c.h.b16 %v624
    %v2138 = vunpack.c.l.b16 %v625
    %v2139 = vunpack.c.h.b16 %v625
    %v2140 = vunpack.c.l.b16 %v626
    %v2141 = vunpack.c.h.b16 %v626
    %v2142 = vunpack.c.l.b16 %v627
    %v2143 = vunpack.c.h.b16 %v627
    %v2144 = vunpack.c.l.b16 %v628
    %v2145 = vunpack.c.h.b16 %v628
    %v2146 = vunpack.c.l.b16 %v629
    %v2147 = vunpack.c.h.b16 %v629
    %v2148 = vunpack.c.l.b16 %v630
    %v2149 = vunpack.c.h.b16 %v630
    %v2150 = vunpack.c.l.b16 %v631
    %v2151 = vunpack.c.h.b16 %v631
    %v2152 = vunpack.c.l.b16 %v632
    %v2153 = vunpack.c.h.b16 %v632
    %v2154 = vunpack.c.l.b16 %v633
    %v2155 = vunpack.c.h.b16 %v633
    %v2156 = vunpack.c.l.b16 %v634
    %v2157 = vunpack.c.h.b16 %v634
    %v2158 = vunpack.c.l.b16 %v635
    %v2159 = vunpack.c.h.b16 %v635
    %v2160 = vunpack.c.l.b16 %v636
    %v2161 = vunpack.c.h.b16 %v636
    %v2162 = vunpack.c.l.b16 %v637
    %v2163 = vunpack.c.h.b16 %v637
    %v2164 = vunpack.c.l.b16 %v638
    %v2165 = vunpack.c.h.b16 %v638
    %v2166 = vunpack.c.l.b16 %v639
    %v2167 = vunpack.c.h.b16 %v639
    %v2168 = vunpack.c.l.b16 %v640
    %v2169 = vunpack.c.h.b16 %v640
    %v2170 = vunpack.c.l.b16 %v641
    %v2171 = vunpack.c.h.b16 %v641
    %v2172 = vunpack.c.l.b16 %v642
    %v2173 = vunpack.c.h.b16 %v642
    %v2174 = vunpack.c.l.b16 %v643
    %v2175 = vunpack.c.h.b16 %v643
    %v2176 = vunpack.c.l.b16 %v644
    %v2177 = vunpack.c.h.b16 %v644
    %v2178 = vunpack.c.l.b16 %v645
    %v2179 = vunpack.c.h.b16 %v645
    %v2180 = vunpack.c.l.b16 %v646
    %v2181 = vunpack.c.h.b16 %v646
    %v2182 = vunpack.c.l.b16 %v647
    %v2183 = vunpack.c.h.b16 %v647
    %v2184 = vunpack.c.l.b16 %v648
    %v2185 = vunpack.c.h.b16 %v648
    %v2186 = vunpack.c.l.b16 %v649
    %v2187 = vunpack.c.h.b16 %v649
    %v2188 = vunpack.c.l.b16 %v650
    %v2189 = vunpack.c.h.b16 %v650
    %v2190 = vunpack.c.l.b16 %v651
    %v2191 = vunpack.c.h.b16 %v651
    %v2192 = vunpack.c.l.b16 %v652
    %v2193 = vunpack.c.h.b16 %v652
    %v2194 = vunpack.c.l.b16 %v653
    %v2195 = vunpack.c.h.b16 %v653
    %v2196 = vunpack.c.l.b16 %v654
    %v2197 = vunpack.c.h.b16 %v654
    %v2198 = vunpack.c.l.b16 %v655
    %v2199 = vunpack.c.h.b16 %v655
    %v2200 = vunpack.c.l.b16 %v656
    %v2201 = vunpack.c.h.b16 %v656
    %v2202 = vunpack.c.l.b16 %v657
    %v2203 = vunpack.c.h.b16 %v657
    %v2204 = vunpack.c.l.b16 %v658
    %v2205 = vunpack.c.h.b16 %v658
    %v2206 = vunpack.c.l.b16 %v659
    %v2207 = vunpack.c.h.b16 %v659
    %v2208 = vunpack.c.l.b16 %v660
    %v2209 = vunpack.c.h.b16 %v660
    %v2210 = vunpack.c.l.b16 %v661
    %v2211 = vunpack.c.h.b16 %v661
    %v2212 = vunpack.c.l.b16 %v662
    %v2213 = vunpack.c.h.b16 %v662
    %v2214 = vunpack.c.l.b16 %v663
    %v2215 = vunpack.c.h.b16 %v663
    %v2216 = vunpack.c.l.b16 %v664
    %v2217 = vunpack.c.h.b16 %v664
    %v2218 = vunpack.c.l.b16 %v665
    %v2219 = vunpack.c.h.b16 %v665
    %v2220 = vunpack.c.l.b16 %v666
    %v2221 = vunpack.c.h.b16 %v666
    %v2222 = vunpack.c.l.b16 %v667
    %v2223 = vunpack.c.h.b16 %v667
    %v2224 = vunpack.c.l.b16 %v668
    %v2225 = vunpack.c.h.b16 %v668
    %v2226 = vunpack.c.l.b16 %v669
    %v2227 = vunpack.c.h.b16 %v669
    %v2228 = vunpack.c.l.b16 %v670
    %v2229 = vunpack.c.h.b16 %v670
    %v2230 = vunpack.c.l.b16 %v671
    %v2231 = vunpack.c.h.b16 %v671
    %v2232 = vunpack.c.l.b16 %v672
    %v2233 = vunpack.c.h.b16 %v672
    %v2234 = vunpack.c.l.b16 %v673
    %v2235 = vunpack.c.h.b16 %v673
    %v2236 = vunpack.c.l.b16 %v674
    %v2237 = vunpack.c.h.b16 %v674
    %v2238 = vunpack.c.l.b16 %v675
    %v2239 = vunpack.c.h.b16 %v675
    %v2240 = vunpack.c.l.b16 %v676
    %v2241 = vunpack.c.h.b16 %v676
    %v2242 = vunpack.c.l.b16 %v677
    %v2243 = vunpack.c.h.b16 %v677
    %v2244 = vunpack.c.l.b16 %v678
    %v2245 = vunpack.c.h.b16 %v678
    %v2246 = vunpack.c.l.b16 %v679
    %v2247 = vunpack.c.h.b16 %v679
    %v2248 = vunpack.c.l.b16 %v680
    %v2249 = vunpack.c.h.b16 %v680
    %v2250 = vunpack.c.l.b16 %v681
    %v2251 = vunpack.c.h.b16 %v681
    %v2252 = vunpack.c.l.b16 %v682
    %v2253 = vunpack.c.h.b16 %v682
    %v2254 = vunpack.c.l.b16 %v683
    %v2255 = vunpack.c.h.b16 %v683
    %v2256 = vunpack.c.l.b16 %v684
    %v2257 = vunpack.c.h.b16 %v684
    %v2258 = vunpack.c.l.b16 %v685
    %v2259 = vunpack.c.h.b16 %v685
    %v2260 = vunpack.c.l.b16 %v686
    %v2261 = vunpack.c.h.b16 %v686
    %v2262 = vunpack.c.l.b16 %v687
    %v2263 = vunpack.c.h.b16 %v687
    %v2264 = vunpack.c.l.b16 %v688
    %v2265 = vunpack.c.h.b16 %v688
    %v2266 = vunpack.c.l.b16 %v689
    %v2267 = vunpack.c.h.b16 %v689
    %v2268 = vunpack.c.l.b16 %v690
    %v2269 = vunpack.c.h.b16 %v690
    %v2270 = vunpack.c.l.b16 %v691
    %v2271 = vunpack.c.h.b16 %v691
    %v2272 = vunpack.c.l.b16 %v692
    %v2273 = vunpack.c.h.b16 %v692
    %v2274 = vunpack.c.l.b16 %v693
    %v2275 = vunpack.c.h.b16 %v693
    %v2276 = vunpack.c.l.b16 %v694
    %v2277 = vunpack.c.h.b16 %v694
    %v2278 = vunpack.c.l.b16 %v695
    %v2279 = vunpack.c.h.b16 %v695
    %v2280 = vunpack.c.l.b16 %v696
    %v2281 = vunpack.c.h.b16 %v696
    %v2282 = vunpack.c.l.b16 %v697
    %v2283 = vunpack.c.h.b16 %v697
    %v2284 = vunpack.c.l.b16 %v698
    %v2285 = vunpack.c.h.b16 %v698
    %v2286 = vunpack.c.l.b16 %v699
    %v2287 = vunpack.c.h.b16 %v699
    %v2288 = vunpack.c.l.b16 %v700
    %v2289 = vunpack.c.h.b16 %v700
    %v2290 = vunpack.c.l.b16 %v701
    %v2291 = vunpack.c.h.b16 %v701
    %v2292 = vunpack.c.l.b16 %v702
    %v2293 = vunpack.c.h.b16 %v702
    %v2294 = vunpack.c.l.b16 %v703
    %v2295 = vunpack.c.h.b16 %v703
    %v2296 = vunpack.c.l.b16 %v704
    %v2297 = vunpack.c.h.b16 %v704
    %v2298 = vunpack.c.l.b16 %v705
    %v2299 = vunpack.c.h.b16 %v705
    %v2300 = vunpack.c.l.b16 %v706
    %v2301 = vunpack.c.h.b16 %v706
    %v2302 = vunpack.c.l.b16 %v707
    %v2303 = vunpack.c.h.b16 %v707
    %v2304 = vunpack.c.l.b16 %v708
    %v2305 = vunpack.c.h.b16 %v708
    %v2306 = vunpack.c.l.b16 %v709
    %v2307 = vunpack.c.h.b16 %v709
    %v2308 = vunpack.c.l.b16 %v710
    %v2309 = vunpack.c.h.b16 %v710
    %v2310 = vunpack.c.l.b16 %v711
    %v2311 = vunpack.c.h.b16 %v711
    %v2312 = vunpack.c.l.b16 %v712
    %v2313 = vunpack.c.h.b16 %v712
    %v2314 = vunpack.c.l.b16 %v713
    %v2315 = vunpack.c.h.b16 %v713
    %v2316 = vunpack.c.l.b16 %v714
    %v2317 = vunpack.c.h.b16 %v714
    %v2318 = vunpack.c.l.b16 %v715
    %v2319 = vunpack.c.h.b16 %v715
    %v2320 = vunpack.c.l.b16 %v716
    %v2321 = vunpack.c.h.b16 %v716
    %v2322 = vunpack.c.l.b16 %v717
    %v2323 = vunpack.c.h.b16 %v717
    %v2324 = vunpack.c.l.b16 %v718
    %v2325 = vunpack.c.h.b16 %v718
    %v2326 = vunpack.c.l.b16 %v719
    %v2327 = vunpack.c.h.b16 %v719
    %v2328 = vunpack.c.l.b16 %v720
    %v2329 = vunpack.c.h.b16 %v720
    %v2330 = vunpack.c.l.b16 %v721
    %v2331 = vunpack.c.h.b16 %v721
    %v2332 = vunpack.c.l.b16 %v722
    %v2333 = vunpack.c.h.b16 %v722
    %v2334 = vunpack.c.l.b16 %v723
    %v2335 = vunpack.c.h.b16 %v723
    %v2336 = vunpack.c.l.b16 %v724
    %v2337 = vunpack.c.h.b16 %v724
    %v2338 = vunpack.c.l.b16 %v725
    %v2339 = vunpack.c.h.b16 %v725
    %v2340 = vunpack.c.l.b16 %v726
    %v2341 = vunpack.c.h.b16 %v726
    %v2342 = vunpack.c.l.b16 %v727
    %v2343 = vunpack.c.h.b16 %v727
    %v2344 = vunpack.c.l.b16 %v728
    %v2345 = vunpack.c.h.b16 %v728
    %v2346 = vunpack.c.l.b16 %v729
    %v2347 = vunpack.c.h.b16 %v729
    %v2348 = vpack.c.b16 %v1332, %v1324
    %v2349 = vpack.c.b16 %v1333, %v1325
    %v2350 = vpack.c.b16 %v1334, %v1326
    %v2351 = vpack.c.b16 %v1335, %v1327
    %v2352 = vpack.c.b16 %v1336, %v1328
    %v2353 = vpack.c.b16 %v1337, %v1329
    %v2354 = vpack.c.b16 %v1338, %v1330
    %v2355 = vpack.c.b16 %v1339, %v1331
    %v2356 = vpack.c.b16 %v1348, %v1340
    %v2357 = vpack.c.b16 %v1349, %v1341
    %v2358 = vpack.c.b16 %v1350, %v1342
    %v2359 = vpack.c.b16 %v1351, %v1343
    %v2360 = vpack.c.b16 %v1352, %v1344
    %v2361 = vpack.c.b16 %v1353, %v1345
    %v2362 = vpack.c.b16 %v1354, %v1346
    %v2363 = vpack.c.b16 %v1355, %v1347
    %v2364 = vpack.c.b16 %v1364, %v1356
    %v2365 = vpack.c.b16 %v1365, %v1357
    %v2366 = vpack.c.b16 %v1366, %v1358
    %v2367 = vpack.c.b16 %v1367, %v1359
    %v2368 = vpack.c.b16 %v1368, %v1360
    %v2369 = vpack.c.b16 %v1369, %v1361
    %v2370 = vpack.c.b16 %v1370, %v1362
    %v2371 = vpack.c.b16 %v1371, %v1363
    %v2372 = vpack.c.b16 %v1380, %v1372
    %v2373 = vpack.c.b16 %v1381, %v1373
    %v2374 = vpack.c.b16 %v1382, %v1374
    %v2375 = vpack.c.b16 %v1383, %v1375
    %v2376 = vpack.c.b16 %v1384, %v1376
    %v2377 = vpack.c.b16 %v1385, %v1377
    %v2378 = vpack.c.b16 %v1386, %v1378
    %v2379 = vpack.c.b16 %v1387, %v1379
    %v2380 = vpack.c.b16 %v1396, %v1388
    %v2381 = vpack.c.b16 %v1397, %v1389
    %v2382 = vpack.c.b16 %v1398, %v1390
    %v2383 = vpack.c.b16 %v1399, %v1391
    %v2384 = vpack.c.b16 %v1400, %v1392
    %v2385 = vpack.c.b16 %v1401, %v1393
    %v2386 = vpack.c.b16 %v1402, %v1394
    %v2387 = vpack.c.b16 %v1403, %v1395
    %v2388 = vpack.c.b16 %v1412, %v1404
    %v2389 = vpack.c.b16 %v1413, %v1405
    %v2390 = vpack.c.b16 %v1414, %v1406
    %v2391 = vpack.c.b16 %v1415, %v1407
    %v2392 = vpack.c.b16 %v1416, %v1408
    %v2393 = vpack.c.b16 %v1417, %v1409
    %v2394 = vpack.c.b16 %v1418, %v1410
    %v2395 = vpack.c.b16 %v1419, %v1411
    %v2396 = vpack.c.b16 %v1428, %v1420
    %v2397 = vpack.c.b16 %v1429, %v1421
    %v2398 = vpack.c.b16 %v1430, %v1422
    %v2399 = vpack.c.b16 %v1431, %v1423
    %v2400 = vpack.c.b16 %v1432, %v1424
    %v2401 = vpack.c.b16 %v1433, %v1425
    %v2402 = vpack.c.b16 %v1434, %v1426
    %v2403 = vpack.c.b16 %v1435, %v1427
    %v2404 = vpack.c.b16 %v1444, %v1436
    %v2405 = vpack.c.b16 %v1445, %v1437
    %v2406 = vpack.c.b16 %v1446, %v1438
    %v2407 = vpack.c.b16 %v1447, %v1439
    %v2408 = vpack.c.b16 %v1448, %v1440
    %v2409 = vpack.c.b16 %v1449, %v1441
    %v2410 = vpack.c.b16 %v1450, %v1442
    %v2411 = vpack.c.b16 %v1451, %v1443
    %v2412 = vpack.c.b16 %v1460, %v1452
    %v2413 = vpack.c.b16 %v1461, %v1453
    %v2414 = vpack.c.b16 %v1462, %v1454
    %v2415 = vpack.c.b16 %v1463, %v1455
    %v2416 = vpack.c.b16 %v1464, %v1456
    %v2417 = vpack.c.b16 %v1465, %v1457
    %v2418 = vpack.c.b16 %v1466, %v1458
    %v2419 = vpack.c.b16 %v1467, %v1459
    %v2420 = vpack.c.b16 %v1476, %v1468
    %v2421 = vpack.c.b16 %v1477, %v1469
    %v2422 = vpack.c.b16 %v1478, %v1470
    %v2423 = vpack.c.b16 %v1479, %v1471
    %v2424 = vpack.c.b16 %v1480, %v1472
    %v2425 = vpack.c.b16 %v1481, %v1473
    %v2426 = vpack.c.b16 %v1482, %v1474
    %v2427 = vpack.c.b16 %v1483, %v1475
    %v2428 = vpack.c.b16 %v1492, %v1484
    %v2429 = vpack.c.b16 %v1493, %v1485
    %v2430 = vpack.c.b16 %v1494, %v1486
    %v2431 = vpack.c.b16 %v1495, %v1487
    %v2432 = vpack.c.b16 %v1496, %v1488
    %v2433 = vpack.c.b16 %v1497, %v1489
    %v2434 = vpack.c.b16 %v1498, %v1490
    %v2435 = vpack.c.b16 %v1499, %v1491
    %v2436 = vpack.c.b16 %v1508, %v1500
    %v2437 = vpack.c.b16 %v1509, %v1501
    %v2438 = vpack.c.b16 %v1510, %v1502
    %v2439 = vpack.c.b16 %v1511, %v1503
    %v2440 = vpack.c.b16 %v1512, %v1504
    %v2441 = vpack.c.b16 %v1513, %v1505
    %v2442 = vpack.c.b16 %v1514, %v1506
    %v2443 = vpack.c.b16 %v1515, %v1507
    %v2444 = vpack.c.b16 %v1524, %v1516
    %v2445 = vpack.c.b16 %v1525, %v1517
    %v2446 = vpack.c.b16 %v1526, %v1518
    %v2447 = vpack.c.b16 %v1527, %v1519
    %v2448 = vpack.c.b16 %v1528, %v1520
    %v2449 = vpack.c.b16 %v1529, %v1521
    %v2450 = vpack.c.b16 %v1530, %v1522
    %v2451 = vpack.c.b16 %v1531, %v1523
    %v2452 = vpack.c.b16 %v1540, %v1532
    %v2453 = vpack.c.b16 %v1541, %v1533
    %v2454 = vpack.c.b16 %v1542, %v1534
    %v2455 = vpack.c.b16 %v1543, %v1535
    %v2456 = vpack.c.b16 %v1544, %v1536
    %v2457 = vpack.c.b16 %v1545, %v1537
    %v2458 = vpack.c.b16 %v1546, %v1538
    %v2459 = vpack.c.b16 %v1547, %v1539
    %v2460 = vpack.c.b16 %v1556, %v1548
    %v2461 = vpack.c.b16 %v1557, %v1549
    %v2462 = vpack.c.b16 %v1558, %v1550
    %v2463 = vpack.c.b16 %v1559, %v1551
    %v2464 = vpack.c.b16 %v1560, %v1552
    %v2465 = vpack.c.b16 %v1561, %v1553
    %v2466 = vpack.c.b16 %v1562, %v1554
    %v2467 = vpack.c.b16 %v1563, %v1555
    %v2468 = vpack.c.b16 %v1572, %v1564
    %v2469 = vpack.c.b16 %v1573, %v1565
    %v2470 = vpack.c.b16 %v1574, %v1566
    %v2471 = vpack.c.b16 %v1575, %v1567
    %v2472 = vpack.c.b16 %v1576, %v1568
    %v2473 = vpack.c.b16 %v1577, %v1569
    %v2474 = vpack.c.b16 %v1578, %v1570
    %v2475 = vpack.c.b16 %v1579, %v1571
    %v2476 = vpack.c.b16 %v1588, %v1580
    %v2477 = vpack.c.b16 %v1589, %v1581
    %v2478 = vpack.c.b16 %v1590, %v1582
    %v2479 = vpack.c.b16 %v1591, %v1583
    %v2480 = vpack.c.b16 %v1592, %v1584
    %v2481 = vpack.c.b16 %v1593, %v1585
    %v2482 = vpack.c.b16 %v1594, %v1586
    %v2483 = vpack.c.b16 %v1595, %v1587
    %v2484 = vpack.c.b16 %v1604, %v1596
    %v2485 = vpack.c.b16 %v1605, %v1597
    %v2486 = vpack.c.b16 %v1606, %v1598
    %v2487 = vpack.c.b16 %v1607, %v1599
    %v2488 = vpack.c.b16 %v1608, %v1600
    %v2489 = vpack.c.b16 %v1609, %v1601
    %v2490 = vpack.c.b16 %v1610, %v1602
    %v2491 = vpack.c.b16 %v1611, %v1603
    %v2492 = vpack.c.b16 %v1620, %v1612
    %v2493 = vpack.c.b16 %v1621, %v1613
    %v2494 = vpack.c.b16 %v1622, %v1614
    %v2495 = vpack.c.b16 %v1623, %v1615
    %v2496 = vpack.c.b16 %v1624, %v1616
    %v2497 = vpack.c.b16 %v1625, %v1617
    %v2498 = vpack.c.b16 %v1626, %v1618
    %v2499 = vpack.c.b16 %v1627, %v1619
    %v2500 = vpack.c.b16 %v1636, %v1628
    %v2501 = vpack.c.b16 %v1637, %v1629
    %v2502 = vpack.c.b16 %v1638, %v1630
    %v2503 = vpack.c.b16 %v1639, %v1631
    %v2504 = vpack.c.b16 %v1640, %v1632
    %v2505 = vpack.c.b16 %v1641, %v1633
    %v2506 = vpack.c.b16 %v1642, %v1634
    %v2507 = vpack.c.b16 %v1643, %v1635
    %v2508 = vpack.c.b16 %v1652, %v1644
    %v2509 = vpack.c.b16 %v1653, %v1645
    %v2510 = vpack.c.b16 %v1654, %v1646
    %v2511 = vpack.c.b16 %v1655, %v1647
    %v2512 = vpack.c.b16 %v1656, %v1648
    %v2513 = vpack.c.b16 %v1657, %v1649
    %v2514 = vpack.c.b16 %v1658, %v1650
    %v2515 = vpack.c.b16 %v1659, %v1651
    %v2516 = vpack.c.b16 %v1668, %v1660
    %v2517 = vpack.c.b16 %v1669, %v1661
    %v2518 = vpack.c.b16 %v1670, %v1662
    %v2519 = vpack.c.b16 %v1671, %v1663
    %v2520 = vpack.c.b16 %v1672, %v1664
    %v2521 = vpack.c.b16 %v1673, %v1665
    %v2522 = vpack.c.b16 %v1674, %v1666
    %v2523 = vpack.c.b16 %v1675, %v1667
    %v2524 = vpack.c.b16 %v1684, %v1676
    %v2525 = vpack.c.b16 %v1685, %v1677
    %v2526 = vpack.c.b16 %v1686, %v1678
    %v2527 = vpack.c.b16 %v1687, %v1679
    %v2528 = vpack.c.b16 %v1688, %v1680
    %v2529 = vpack.c.b16 %v1689, %v1681
    %v2530 = vpack.c.b16 %v1690, %v1682
    %v2531 = vpack.c.b16 %v1691, %v1683
    %v2532 = vpack.c.b16 %v1700, %v1692
    %v2533 = vpack.c.b16 %v1701, %v1693
    %v2534 = vpack.c.b16 %v1702, %v1694
    %v2535 = vpack.c.b16 %v1703, %v1695
    %v2536 = vpack.c.b16 %v1704, %v1696
    %v2537 = vpack.c.b16 %v1705, %v1697
    %v2538 = vpack.c.b16 %v1706, %v1698
    %v2539 = vpack.c.b16 %v1707, %v1699
    %v2540 = vpack.c.b16 %v1716, %v1708
    %v2541 = vpack.c.b16 %v1717, %v1709
    %v2542 = vpack.c.b16 %v1718, %v1710
    %v2543 = vpack.c.b16 %v1719, %v1711
    %v2544 = vpack.c.b16 %v1720, %v1712
    %v2545 = vpack.c.b16 %v1721, %v1713
    %v2546 = vpack.c.b16 %v1722, %v1714
    %v2547 = vpack.c.b16 %v1723, %v1715
    %v2548 = vpack.c.b16 %v1732, %v1724
    %v2549 = vpack.c.b16 %v1733, %v1725
    %v2550 = vpack.c.b16 %v1734, %v1726
    %v2551 = vpack.c.b16 %v1735, %v1727
    %v2552 = vpack.c.b16 %v1736, %v1728
    %v2553 = vpack.c.b16 %v1737, %v1729
    %v2554 = vpack.c.b16 %v1738, %v1730
    %v2555 = vpack.c.b16 %v1739, %v1731
    %v2556 = vpack.c.b16 %v1748, %v1740
    %v2557 = vpack.c.b16 %v1749, %v1741
    %v2558 = vpack.c.b16 %v1750, %v1742
    %v2559 = vpack.c.b16 %v1751, %v1743
    %v2560 = vpack.c.b16 %v1752, %v1744
    %v2561 = vpack.c.b16 %v1753, %v1745
    %v2562 = vpack.c.b16 %v1754, %v1746
    %v2563 = vpack.c.b16 %v1755, %v1747
    %v2564 = vpack.c.b16 %v1764, %v1756
    %v2565 = vpack.c.b16 %v1765, %v1757
    %v2566 = vpack.c.b16 %v1766, %v1758
    %v2567 = vpack.c.b16 %v1767, %v1759
    %v2568 = vpack.c.b16 %v1768, %v1760
    %v2569 = vpack.c.b16 %v1769, %v1761
    %v2570 = vpack.c.b16 %v1770, %v1762
    %v2571 = vpack.c.b16 %v1771, %v1763
    %v2572 = vpack.c.b16 %v1780, %v1772
    %v2573 = vpack.c.b16 %v1781, %v1773
    %v2574 = vpack.c.b16 %v1782, %v1774
    %v2575 = vpack.c.b16 %v1783, %v1775
    %v2576 = vpack.c.b16 %v1784, %v1776
    %v2577 = vpack.c.b16 %v1785, %v1777
    %v2578 = vpack.c.b16 %v1786, %v1778
    %v2579 = vpack.c.b16 %v1787, %v1779
    %v2580 = vpack.c.b16 %v1796, %v1788
    %v2581 = vpack.c.b16 %v1797, %v1789
    %v2582 = vpack.c.b16 %v1798, %v1790
    %v2583 = vpack.c.b16 %v1799, %v1791
    %v2584 = vpack.c.b16 %v1800, %v1792
    %v2585 = vpack.c.b16 %v1801, %v1793
    %v2586 = vpack.c.b16 %v1802, %v1794
    %v2587 = vpack.c.b16 %v1803, %v1795
    %v2588 = vpack.c.b16 %v1812, %v1804
    %v2589 = vpack.c.b16 %v1813, %v1805
    %v2590 = vpack.c.b16 %v1814, %v1806
    %v2591 = vpack.c.b16 %v1815, %v1807
    %v2592 = vpack.c.b16 %v1816, %v1808
    %v2593 = vpack.c.b16 %v1817, %v1809
    %v2594 = vpack.c.b16 %v1818, %v1810
    %v2595 = vpack.c.b16 %v1819, %v1811
    %v2596 = vpack.c.b16 %v1828, %v1820
    %v2597 = vpack.c.b16 %v1829, %v1821
    %v2598 = vpack.c.b16 %v1830, %v1822
    %v2599 = vpack.c.b16 %v1831, %v1823
    %v2600 = vpack.c.b16 %v1832, %v1824
    %v2601 = vpack.c.b16 %v1833, %v1825
    %v2602 = vpack.c.b16 %v1834, %v1826
    %v2603 = vpack.c.b16 %v1835, %v1827
    %v2604 = vpack.c.b16 %v1844, %v1836
    %v2605 = vpack.c.b16 %v1845, %v1837
    %v2606 = vpack.c.b16 %v1846, %v1838
    %v2607 = vpack.c.b16 %v1847, %v1839
    %v2608 = vpack.c.b16 %v1848, %v1840
    %v2609 = vpack.c.b16 %v1849, %v1841
    %v2610 = vpack.c.b16 %v1850, %v1842
    %v2611 = vpack.c.b16 %v1851, %v1843
    %v2612 = vpack.c.b16 %v1860, %v1852
    %v2613 = vpack.c.b16 %v1861, %v1853
    %v2614 = vpack.c.b16 %v1862, %v1854
    %v2615 = vpack.c.b16 %v1863, %v1855
    %v2616 = vpack.c.b16 %v1864, %v1856
    %v2617 = vpack.c.b16 %v1865, %v1857
    %v2618 = vpack.c.b16 %v1866, %v1858
    %v2619 = vpack.c.b16 %v1867, %v1859
    %v2620 = vpack.c.b16 %v1876, %v1868
    %v2621 = vpack.c.b16 %v1877, %v1869
    %v2622 = vpack.c.b16 %v1878, %v1870
    %v2623 = vpack.c.b16 %v1879, %v1871
    %v2624 = vpack.c.b16 %v1880, %v1872
    %v2625 = vpack.c.b16 %v1881, %v1873
    %v2626 = vpack.c.b16 %v1882, %v1874
    %v2627 = vpack.c.b16 %v1883, %v1875
    %v2628 = vpack.c.b16 %v1892, %v1884
    %v2629 = vpack.c.b16 %v1893, %v1885
    %v2630 = vpack.c.b16 %v1894, %v1886
    %v2631 = vpack.c.b16 %v1895, %v1887
    %v2632 = vpack.c.b16 %v1896, %v1888
    %v2633 = vpack.c.b16 %v1897, %v1889
    %v2634 = vpack.c.b16 %v1898, %v1890
    %v2635 = vpack.c.b16 %v1899, %v1891
    %v2636 = vpack.c.b16 %v1908, %v1900
    %v2637 = vpack.c.b16 %v1909, %v1901
    %v2638 = vpack.c.b16 %v1910, %v1902
    %v2639 = vpack.c.b16 %v1911, %v1903
    %v2640 = vpack.c.b16 %v1912, %v1904
    %v2641 = vpack.c.b16 %v1913, %v1905
    %v2642 = vpack.c.b16 %v1914, %v1906
    %v2643 = vpack.c.b16 %v1915, %v1907
    %v2644 = vpack.c.b16 %v1924, %v1916
    %v2645 = vpack.c.b16 %v1925, %v1917
    %v2646 = vpack.c.b16 %v1926, %v1918
    %v2647 = vpack.c.b16 %v1927, %v1919
    %v2648 = vpack.c.b16 %v1928, %v1920
    %v2649 = vpack.c.b16 %v1929, %v1921
    %v2650 = vpack.c.b16 %v1930, %v1922
    %v2651 = vpack.c.b16 %v1931, %v1923
    %v2652 = vpack.c.b16 %v1940, %v1932
    %v2653 = vpack.c.b16 %v1941, %v1933
    %v2654 = vpack.c.b16 %v1942, %v1934
    %v2655 = vpack.c.b16 %v1943, %v1935
    %v2656 = vpack.c.b16 %v1944, %v1936
    %v2657 = vpack.c.b16 %v1945, %v1937
    %v2658 = vpack.c.b16 %v1946, %v1938
    %v2659 = vpack.c.b16 %v1947, %v1939
    %v2660 = vpack.c.b16 %v1956, %v1948
    %v2661 = vpack.c.b16 %v1957, %v1949
    %v2662 = vpack.c.b16 %v1958, %v1950
    %v2663 = vpack.c.b16 %v1959, %v1951
    %v2664 = vpack.c.b16 %v1960, %v1952
    %v2665 = vpack.c.b16 %v1961, %v1953
    %v2666 = vpack.c.b16 %v1962, %v1954
    %v2667 = vpack.c.b16 %v1963, %v1955
    %v2668 = vpack.c.b16 %v1972, %v1964
    %v2669 = vpack.c.b16 %v1973, %v1965
    %v2670 = vpack.c.b16 %v1974, %v1966
    %v2671 = vpack.c.b16 %v1975, %v1967
    %v2672 = vpack.c.b16 %v1976, %v1968
    %v2673 = vpack.c.b16 %v1977, %v1969
    %v2674 = vpack.c.b16 %v1978, %v1970
    %v2675 = vpack.c.b16 %v1979, %v1971
    %v2676 = vpack.c.b16 %v1988, %v1980
    %v2677 = vpack.c.b16 %v1989, %v1981
    %v2678 = vpack.c.b16 %v1990, %v1982
    %v2679 = vpack.c.b16 %v1991, %v1983
    %v2680 = vpack.c.b16 %v1992, %v1984
    %v2681 = vpack.c.b16 %v1993, %v1985
    %v2682 = vpack.c.b16 %v1994, %v1986
    %v2683 = vpack.c.b16 %v1995, %v1987
    %v2684 = vpack.c.b16 %v2004, %v1996
    %v2685 = vpack.c.b16 %v2005, %v1997
    %v2686 = vpack.c.b16 %v2006, %v1998
    %v2687 = vpack.c.b16 %v2007, %v1999
    %v2688 = vpack.c.b16 %v2008, %v2000
    %v2689 = vpack.c.b16 %v2009, %v2001
    %v2690 = vpack.c.b16 %v2010, %v2002
    %v2691 = vpack.c.b16 %v2011, %v2003
    %v2692 = vpack.c.b16 %v2020, %v2012
    %v2693 = vpack.c.b16 %v2021, %v2013
    %v2694 = vpack.c.b16 %v2022, %v2014
    %v2695 = vpack.c.b16 %v2023, %v2015
    %v2696 = vpack.c.b16 %v2024, %v2016
    %v2697 = vpack.c.b16 %v2025, %v2017
    %v2698 = vpack.c.b16 %v2026, %v2018
    %v2699 = vpack.c.b16 %v2027, %v2019
    %v2700 = vpack.c.b16 %v2036, %v2028
    %v2701 = vpack.c.b16 %v2037, %v2029
    %v2702 = vpack.c.b16 %v2038, %v2030
    %v2703 = vpack.c.b16 %v2039, %v2031
    %v2704 = vpack.c.b16 %v2040, %v2032
    %v2705 = vpack.c.b16 %v2041, %v2033
    %v2706 = vpack.c.b16 %v2042, %v2034
    %v2707 = vpack.c.b16 %v2043, %v2035
    %v2708 = vpack.c.b16 %v2052, %v2044
    %v2709 = vpack.c.b16 %v2053, %v2045
    %v2710 = vpack.c.b16 %v2054, %v2046
    %v2711 = vpack.c.b16 %v2055, %v2047
    %v2712 = vpack.c.b16 %v2056, %v2048
    %v2713 = vpack.c.b16 %v2057, %v2049
    %v2714 = vpack.c.b16 %v2058, %v2050
    %v2715 = vpack.c.b16 %v2059, %v2051
    %v2716 = vpack.c.b16 %v2068, %v2060
    %v2717 = vpack.c.b16 %v2069, %v2061
    %v2718 = vpack.c.b16 %v2070, %v2062
    %v2719 = vpack.c.b16 %v2071, %v2063
    %v2720 = vpack.c.b16 %v2072, %v2064
    %v2721 = vpack.c.b16 %v2073, %v2065
    %v2722 = vpack.c.b16 %v2074, %v2066
    %v2723 = vpack.c.b16 %v2075, %v2067
    %v2724 = vpack.c.b16 %v2084, %v2076
    %v2725 = vpack.c.b16 %v2085, %v2077
    %v2726 = vpack.c.b16 %v2086, %v2078
    %v2727 = vpack.c.b16 %v2087, %v2079
    %v2728 = vpack.c.b16 %v2088, %v2080
    %v2729 = vpack.c.b16 %v2089, %v2081
    %v2730 = vpack.c.b16 %v2090, %v2082
    %v2731 = vpack.c.b16 %v2091, %v2083
    %v2732 = vpack.c.b16 %v2100, %v2092
    %v2733 = vpack.c.b16 %v2101, %v2093
    %v2734 = vpack.c.b16 %v2102, %v2094
    %v2735 = vpack.c.b16 %v2103, %v2095
    %v2736 = vpack.c.b16 %v2104, %v2096
    %v2737 = vpack.c.b16 %v2105, %v2097
    %v2738 = vpack.c.b16 %v2106, %v2098
    %v2739 = vpack.c.b16 %v2107, %v2099
    %v2740 = vpack.c.b16 %v2116, %v2108
    %v2741 = vpack.c.b16 %v2117, %v2109
    %v2742 = vpack.c.b16 %v2118, %v2110
    %v2743 = vpack.c.b16 %v2119, %v2111
    %v2744 = vpack.c.b16 %v2120, %v2112
    %v2745 = vpack.c.b16 %v2121, %v2113
    %v2746 = vpack.c.b16 %v2122, %v2114
    %v2747 = vpack.c.b16 %v2123, %v2115
    %v2748 = vpack.c.b16 %v2132, %v2124
    %v2749 = vpack.c.b16 %v2133, %v2125
    %v2750 = vpack.c.b16 %v2134, %v2126
    %v2751 = vpack.c.b16 %v2135, %v2127
    %v2752 = vpack.c.b16 %v2136, %v2128
    %v2753 = vpack.c.b16 %v2137, %v2129
    %v2754 = vpack.c.b16 %v2138, %v2130
    %v2755 = vpack.c.b16 %v2139, %v2131
    %v2756 = vpack.c.b16 %v2148, %v2140
    %v2757 = vpack.c.b16 %v2149, %v2141
    %v2758 = vpack.c.b16 %v2150, %v2142
    %v2759 = vpack.c.b16 %v2151, %v2143
    %v2760 = vpack.c.b16 %v2152, %v2144
    %v2761 = vpack.c.b16 %v2153, %v2145
    %v2762 = vpack.c.b16 %v2154, %v2146
    %v2763 = vpack.c.b16 %v2155, %v2147
    %v2764 = vpack.c.b16 %v2164, %v2156
    %v2765 = vpack.c.b16 %v2165, %v2157
    %v2766 = vpack.c.b16 %v2166, %v2158
    %v2767 = vpack.c.b16 %v2167, %v2159
    %v2768 = vpack.c.b16 %v2168, %v2160
    %v2769 = vpack.c.b16 %v2169, %v2161
    %v2770 = vpack.c.b16 %v2170, %v2162
    %v2771 = vpack.c.b16 %v2171, %v2163
    %v2772 = vpack.c.b16 %v2180, %v2172
    %v2773 = vpack.c.b16 %v2181, %v2173
    %v2774 = vpack.c.b16 %v2182, %v2174
    %v2775 = vpack.c.b16 %v2183, %v2175
    %v2776 = vpack.c.b16 %v2184, %v2176
    %v2777 = vpack.c.b16 %v2185, %v2177
    %v2778 = vpack.c.b16 %v2186, %v2178
    %v2779 = vpack.c.b16 %v2187, %v2179
    %v2780 = vpack.c.b16 %v2196, %v2188
    %v2781 = vpack.c.b16 %v2197, %v2189
    %v2782 = vpack.c.b16 %v2198, %v2190
    %v2783 = vpack.c.b16 %v2199, %v2191
    %v2784 = vpack.c.b16 %v2200, %v2192
    %v2785 = vpack.c.b16 %v2201, %v2193
    %v2786 = vpack.c.b16 %v2202, %v2194
    %v2787 = vpack.c.b16 %v2203, %v2195
    %v2788 = vpack.c.b16 %v2212, %v2204
    %v2789 = vpack.c.b16 %v2213, %v2205
    %v2790 = vpack.c.b16 %v2214, %v2206
    %v2791 = vpack.c.b16 %v2215, %v2207
    %v2792 = vpack.c.b16 %v2216, %v2208
    %v2793 = vpack.c.b16 %v2217, %v2209
    %v2794 = vpack.c.b16 %v2218, %v2210
    %v2795 = vpack.c.b16 %v2219, %v2211
    %v2796 = vpack.c.b16 %v2228, %v2220
    %v2797 = vpack.c.b16 %v2229, %v2221
    %v2798 = vpack.c.b16 %v2230, %v2222
    %v2799 = vpack.c.b16 %v2231, %v2223
    %v2800 = vpack.c.b16 %v2232, %v2224
    %v2801 = vpack.c.b16 %v2233, %v2225
    %v2802 = vpack.c.b16 %v2234, %v2226
    %v2803 = vpack.c.b16 %v2235, %v2227
    %v2804 = vpack.c.b16 %v2244, %v2236
    %v2805 = vpack.c.b16 %v2245, %v2237
    %v2806 = vpack.c.b16 %v2246, %v2238
    %v2807 = vpack.c.b16 %v2247, %v2239
    %v2808 = vpack.c.b16 %v2248, %v2240
    %v2809 = vpack.c.b16 %v2249, %v2241
    %v2810 = vpack.c.b16 %v2250, %v2242
    %v2811 = vpack.c.b16 %v2251, %v2243
    %v2812 = vpack.c.b16 %v2260, %v2252
    %v2813 = vpack.c.b16 %v2261, %v2253
    %v2814 = vpack.c.b16 %v2262, %v2254
    %v2815 = vpack.c.b16 %v2263, %v2255
    %v2816 = vpack.c.b16 %v2264, %v2256
    %v2817 = vpack.c.b16 %v2265, %v2257
    %v2818 = vpack.c.b16 %v2266, %v2258
    %v2819 = vpack.c.b16 %v2267, %v2259
    %v2820 = vpack.c.b16 %v2276, %v2268
    %v2821 = vpack.c.b16 %v2277, %v2269
    %v2822 = vpack.c.b16 %v2278, %v2270
    %v2823 = vpack.c.b16 %v2279, %v2271
    %v2824 = vpack.c.b16 %v2280, %v2272
    %v2825 = vpack.c.b16 %v2281, %v2273
    %v2826 = vpack.c.b16 %v2282, %v2274
    %v2827 = vpack.c.b16 %v2283, %v2275
    %v2828 = vpack.c.b16 %v2292, %v2284
    %v2829 = vpack.c.b16 %v2293, %v2285
    %v2830 = vpack.c.b16 %v2294, %v2286
    %v2831 = vpack.c.b16 %v2295, %v2287
    %v2832 = vpack.c.b16 %v2296, %v2288
    %v2833 = vpack.c.b16 %v2297, %v2289
    %v2834 = vpack.c.b16 %v2298, %v2290
    %v2835 = vpack.c.b16 %v2299, %v2291
    %v2836 = vpack.c.b16 %v2308, %v2300
    %v2837 = vpack.c.b16 %v2309, %v2301
    %v2838 = vpack.c.b16 %v2310, %v2302
    %v2839 = vpack.c.b16 %v2311, %v2303
    %v2840 = vpack.c.b16 %v2312, %v2304
    %v2841 = vpack.c.b16 %v2313, %v2305
    %v2842 = vpack.c.b16 %v2314, %v2306
    %v2843 = vpack.c.b16 %v2315, %v2307
    %v2844 = vpack.c.b16 %v2324, %v2316
    %v2845 = vpack.c.b16 %v2325, %v2317
    %v2846 = vpack.c.b16 %v2326, %v2318
    %v2847 = vpack.c.b16 %v2327, %v2319
    %v2848 = vpack.c.b16 %v2328, %v2320
    %v2849 = vpack.c.b16 %v2329, %v2321
    %v2850 = vpack.c.b16 %v2330, %v2322
    %v2851 = vpack.c.b16 %v2331, %v2323
    %v2852 = vpack.c.b16 %v2340, %v2332
    %v2853 = vpack.c.b16 %v2341, %v2333
    %v2854 = vpack.c.b16 %v2342, %v2334
    %v2855 = vpack.c.b16 %v2343, %v2335
    %v2856 = vpack.c.b16 %v2344, %v2336
    %v2857 = vpack.c.b16 %v2345, %v2337
    %v2858 = vpack.c.b16 %v2346, %v2338
    %v2859 = vpack.c.b16 %v2347, %v2339
    %3372 = vmatprep.subr.bf16.mxu0 %v2405
    %3373 = vmatpush1.bf16.msra.mxu0 %v2404
    %3374 = vmatprep.subr.bf16.mxu0 %v2397
    %3375 = vmatpush1.bf16.msra.mxu0 %v2396
    %3376 = vmatprep.subr.bf16.mxu0 %v2389
    %3377 = vmatpush1.bf16.msra.mxu0 %v2388
    %3378 = vmatprep.subr.bf16.mxu0 %v2381
    %3379 = vmatpush1.bf16.msra.mxu0 %v2380
    %3380 = vmatprep.subr.bf16.mxu0 %v2373
    %3381 = vmatpush1.bf16.msra.mxu0 %v2372
    %3382 = vmatprep.subr.bf16.mxu0 %v2365
    %3383 = vmatpush1.bf16.msra.mxu0 %v2364
    %3384 = vmatprep.subr.bf16.mxu0 %v2357
    %3385 = vmatpush1.bf16.msra.mxu0 %v2356
    %3386 = vmatprep.subr.bf16.mxu0 %v2349
    %3387 = vmatpush1.bf16.msra.mxu0 %v2348
    %3388 = vmatprep.subr.bf16.mxu0 %v2469
    %3389 = vmatpush2.bf16.msra.mxu0 %v2468
    %3390 = vmatprep.subr.bf16.mxu0 %v2461
    %3391 = vmatpush2.bf16.msra.mxu0 %v2460
    %3392 = vmatprep.subr.bf16.mxu0 %v2453
    %3393 = vmatpush2.bf16.msra.mxu0 %v2452
    %3394 = vmatprep.subr.bf16.mxu0 %v2445
    %3395 = vmatpush2.bf16.msra.mxu0 %v2444
    %3396 = vmatprep.subr.bf16.mxu0 %v2437
    %3397 = vmatpush2.bf16.msra.mxu0 %v2436
    %3398 = vmatprep.subr.bf16.mxu0 %v2429
    %3399 = vmatpush2.bf16.msra.mxu0 %v2428
    %3400 = vmatprep.subr.bf16.mxu0 %v2421
    %3401 = vmatpush2.bf16.msra.mxu0 %v2420
    %3402 = vmatprep.subr.bf16.mxu0 %v2413
    %3403 = vmatpush2.bf16.msra.mxu0 %v2412
    %3404 = vmatprep.mubr.bf16.mxu0 %v797
    %3405 = vmatmul.mubr.bf16.gmra.mxu0 %v796
    %v3406 = vpop.f32.mrf.mxu0
    %v3407 = vadd.f32 %v735, %v3406
    %v3408 = vpop.f32.mrf.mxu0
    %v3409 = vadd.f32 %v739, %v3408
    %v3410 = vpop.f32.mrf.mxu0
    %v3411 = vadd.f32 %v735, %v3410
    %v3412 = vpop.f32.mrf.mxu0
    %v3413 = vadd.f32 %v739, %v3412
    %3414 = vdwg.mxu0
    %3415 = vmatprep.subr.bf16.mxu0 %v2533
    %3416 = vmatpush1.bf16.msra.mxu0 %v2532
    %3417 = vmatprep.subr.bf16.mxu0 %v2525
    %3418 = vmatpush1.bf16.msra.mxu0 %v2524
    %3419 = vmatprep.subr.bf16.mxu0 %v2517
    %3420 = vmatpush1.bf16.msra.mxu0 %v2516
    %3421 = vmatprep.subr.bf16.mxu0 %v2509
    %3422 = vmatpush1.bf16.msra.mxu0 %v2508
    %3423 = vmatprep.subr.bf16.mxu0 %v2501
    %3424 = vmatpush1.bf16.msra.mxu0 %v2500
    %3425 = vmatprep.subr.bf16.mxu0 %v2493
    %3426 = vmatpush1.bf16.msra.mxu0 %v2492
    %3427 = vmatprep.subr.bf16.mxu0 %v2485
    %3428 = vmatpush1.bf16.msra.mxu0 %v2484
    %3429 = vmatprep.subr.bf16.mxu0 %v2477
    %3430 = vmatpush1.bf16.msra.mxu0 %v2476
    %3431 = vmatprep.subr.bf16.mxu0 %v2597
    %3432 = vmatpush2.bf16.msra.mxu0 %v2596
    %3433 = vmatprep.subr.bf16.mxu0 %v2589
    %3434 = vmatpush2.bf16.msra.mxu0 %v2588
    %3435 = vmatprep.subr.bf16.mxu0 %v2581
    %3436 = vmatpush2.bf16.msra.mxu0 %v2580
    %3437 = vmatprep.subr.bf16.mxu0 %v2573
    %3438 = vmatpush2.bf16.msra.mxu0 %v2572
    %3439 = vmatprep.subr.bf16.mxu0 %v2565
    %3440 = vmatpush2.bf16.msra.mxu0 %v2564
    %3441 = vmatprep.subr.bf16.mxu0 %v2557
    %3442 = vmatpush2.bf16.msra.mxu0 %v2556
    %3443 = vmatprep.subr.bf16.mxu0 %v2549
    %3444 = vmatpush2.bf16.msra.mxu0 %v2548
    %3445 = vmatprep.subr.bf16.mxu0 %v2541
    %3446 = vmatpush2.bf16.msra.mxu0 %v2540
    %3447 = vmatprep.mubr.bf16.mxu0 %v799
    %3448 = vmatmul.mubr.bf16.gmra.mxu0 %v798
    %v3449 = vpop.f32.mrf.mxu0
    %v3450 = vadd.f32 %v3407, %v3449
    %v3451 = vpop.f32.mrf.mxu0
    %v3452 = vadd.f32 %v3409, %v3451
    %v3453 = vpop.f32.mrf.mxu0
    %v3454 = vadd.f32 %v3411, %v3453
    %v3455 = vpop.f32.mrf.mxu0
    %v3456 = vadd.f32 %v3413, %v3455
    %3457 = vdwg.mxu0
    %3458 = vmatprep.subr.bf16.mxu0 %v2661
    %3459 = vmatpush1.bf16.msra.mxu0 %v2660
    %3460 = vmatprep.subr.bf16.mxu0 %v2653
    %3461 = vmatpush1.bf16.msra.mxu0 %v2652
    %3462 = vmatprep.subr.bf16.mxu0 %v2645
    %3463 = vmatpush1.bf16.msra.mxu0 %v2644
    %3464 = vmatprep.subr.bf16.mxu0 %v2637
    %3465 = vmatpush1.bf16.msra.mxu0 %v2636
    %3466 = vmatprep.subr.bf16.mxu0 %v2629
    %3467 = vmatpush1.bf16.msra.mxu0 %v2628
    %3468 = vmatprep.subr.bf16.mxu0 %v2621
    %3469 = vmatpush1.bf16.msra.mxu0 %v2620
    %3470 = vmatprep.subr.bf16.mxu0 %v2613
    %3471 = vmatpush1.bf16.msra.mxu0 %v2612
    %3472 = vmatprep.subr.bf16.mxu0 %v2605
    %3473 = vmatpush1.bf16.msra.mxu0 %v2604
    %3474 = vmatprep.subr.bf16.mxu0 %v2725
    %3475 = vmatpush2.bf16.msra.mxu0 %v2724
    %3476 = vmatprep.subr.bf16.mxu0 %v2717
    %3477 = vmatpush2.bf16.msra.mxu0 %v2716
    %3478 = vmatprep.subr.bf16.mxu0 %v2709
    %3479 = vmatpush2.bf16.msra.mxu0 %v2708
    %3480 = vmatprep.subr.bf16.mxu0 %v2701
    %3481 = vmatpush2.bf16.msra.mxu0 %v2700
    %3482 = vmatprep.subr.bf16.mxu0 %v2693
    %3483 = vmatpush2.bf16.msra.mxu0 %v2692
    %3484 = vmatprep.subr.bf16.mxu0 %v2685
    %3485 = vmatpush2.bf16.msra.mxu0 %v2684
    %3486 = vmatprep.subr.bf16.mxu0 %v2677
    %3487 = vmatpush2.bf16.msra.mxu0 %v2676
    %3488 = vmatprep.subr.bf16.mxu0 %v2669
    %3489 = vmatpush2.bf16.msra.mxu0 %v2668
    %3490 = vmatprep.mubr.bf16.mxu0 %v801
    %3491 = vmatmul.mubr.bf16.gmra.mxu0 %v800
    %v3492 = vpop.f32.mrf.mxu0
    %v3493 = vadd.f32 %v3450, %v3492
    %v3494 = vpop.f32.mrf.mxu0
    %v3495 = vadd.f32 %v3452, %v3494
    %v3496 = vpop.f32.mrf.mxu0
    %v3497 = vadd.f32 %v3454, %v3496
    %v3498 = vpop.f32.mrf.mxu0
    %v3499 = vadd.f32 %v3456, %v3498
    %3500 = vdwg.mxu0
    %3501 = vmatprep.subr.bf16.mxu0 %v2789
    %3502 = vmatpush1.bf16.msra.mxu0 %v2788
    %3503 = vmatprep.subr.bf16.mxu0 %v2781
    %3504 = vmatpush1.bf16.msra.mxu0 %v2780
    %3505 = vmatprep.subr.bf16.mxu0 %v2773
    %3506 = vmatpush1.bf16.msra.mxu0 %v2772
    %3507 = vmatprep.subr.bf16.mxu0 %v2765
    %3508 = vmatpush1.bf16.msra.mxu0 %v2764
    %3509 = vmatprep.subr.bf16.mxu0 %v2757
    %3510 = vmatpush1.bf16.msra.mxu0 %v2756
    %3511 = vmatprep.subr.bf16.mxu0 %v2749
    %3512 = vmatpush1.bf16.msra.mxu0 %v2748
    %3513 = vmatprep.subr.bf16.mxu0 %v2741
    %3514 = vmatpush1.bf16.msra.mxu0 %v2740
    %3515 = vmatprep.subr.bf16.mxu0 %v2733
    %3516 = vmatpush1.bf16.msra.mxu0 %v2732
    %3517 = vmatprep.subr.bf16.mxu0 %v2853
    %3518 = vmatpush2.bf16.msra.mxu0 %v2852
    %3519 = vmatprep.subr.bf16.mxu0 %v2845
    %3520 = vmatpush2.bf16.msra.mxu0 %v2844
    %3521 = vmatprep.subr.bf16.mxu0 %v2837
    %3522 = vmatpush2.bf16.msra.mxu0 %v2836
    %3523 = vmatprep.subr.bf16.mxu0 %v2829
    %3524 = vmatpush2.bf16.msra.mxu0 %v2828
    %3525 = vmatprep.subr.bf16.mxu0 %v2821
    %3526 = vmatpush2.bf16.msra.mxu0 %v2820
    %3527 = vmatprep.subr.bf16.mxu0 %v2813
    %3528 = vmatpush2.bf16.msra.mxu0 %v2812
    %3529 = vmatprep.subr.bf16.mxu0 %v2805
    %3530 = vmatpush2.bf16.msra.mxu0 %v2804
    %3531 = vmatprep.subr.bf16.mxu0 %v2797
    %3532 = vmatpush2.bf16.msra.mxu0 %v2796
    %3533 = vmatprep.mubr.bf16.mxu0 %v803
    %3534 = vmatmul.mubr.bf16.gmra.mxu0 %v802
    %v3535 = vpop.f32.mrf.mxu0
    %v3536 = vadd.f32 %v3493, %v3535
    %v3537 = vpop.f32.mrf.mxu0
    %v3538 = vadd.f32 %v3495, %v3537
    %v3539 = vpop.f32.mrf.mxu0
    %v3540 = vadd.f32 %v3497, %v3539
    %v3541 = vpop.f32.mrf.mxu0
    %v3542 = vadd.f32 %v3499, %v3541
    %3543 = vdwg.mxu0
    %3544 = vmatprep.subr.bf16.mxu0 %v2407
    %3545 = vmatpush1.bf16.msra.mxu0 %v2406
    %3546 = vmatprep.subr.bf16.mxu0 %v2399
    %3547 = vmatpush1.bf16.msra.mxu0 %v2398
    %3548 = vmatprep.subr.bf16.mxu0 %v2391
    %3549 = vmatpush1.bf16.msra.mxu0 %v2390
    %3550 = vmatprep.subr.bf16.mxu0 %v2383
    %3551 = vmatpush1.bf16.msra.mxu0 %v2382
    %3552 = vmatprep.subr.bf16.mxu0 %v2375
    %3553 = vmatpush1.bf16.msra.mxu0 %v2374
    %3554 = vmatprep.subr.bf16.mxu0 %v2367
    %3555 = vmatpush1.bf16.msra.mxu0 %v2366
    %3556 = vmatprep.subr.bf16.mxu0 %v2359
    %3557 = vmatpush1.bf16.msra.mxu0 %v2358
    %3558 = vmatprep.subr.bf16.mxu0 %v2351
    %3559 = vmatpush1.bf16.msra.mxu0 %v2350
    %3560 = vmatprep.subr.bf16.mxu0 %v2471
    %3561 = vmatpush2.bf16.msra.mxu0 %v2470
    %3562 = vmatprep.subr.bf16.mxu0 %v2463
    %3563 = vmatpush2.bf16.msra.mxu0 %v2462
    %3564 = vmatprep.subr.bf16.mxu0 %v2455
    %3565 = vmatpush2.bf16.msra.mxu0 %v2454
    %3566 = vmatprep.subr.bf16.mxu0 %v2447
    %3567 = vmatpush2.bf16.msra.mxu0 %v2446
    %3568 = vmatprep.subr.bf16.mxu0 %v2439
    %3569 = vmatpush2.bf16.msra.mxu0 %v2438
    %3570 = vmatprep.subr.bf16.mxu0 %v2431
    %3571 = vmatpush2.bf16.msra.mxu0 %v2430
    %3572 = vmatprep.subr.bf16.mxu0 %v2423
    %3573 = vmatpush2.bf16.msra.mxu0 %v2422
    %3574 = vmatprep.subr.bf16.mxu0 %v2415
    %3575 = vmatpush2.bf16.msra.mxu0 %v2414
    %3576 = vmatprep.mubr.bf16.mxu0 %v797
    %3577 = vmatmul.mubr.bf16.gmra.mxu0 %v796
    %v3578 = vpop.f32.mrf.mxu0
    %v3579 = vadd.f32 %v743, %v3578
    %v3580 = vpop.f32.mrf.mxu0
    %v3581 = vadd.f32 %v747, %v3580
    %v3582 = vpop.f32.mrf.mxu0
    %v3583 = vadd.f32 %v743, %v3582
    %v3584 = vpop.f32.mrf.mxu0
    %v3585 = vadd.f32 %v747, %v3584
    %3586 = vdwg.mxu0
    %3587 = vmatprep.subr.bf16.mxu0 %v2535
    %3588 = vmatpush1.bf16.msra.mxu0 %v2534
    %3589 = vmatprep.subr.bf16.mxu0 %v2527
    %3590 = vmatpush1.bf16.msra.mxu0 %v2526
    %3591 = vmatprep.subr.bf16.mxu0 %v2519
    %3592 = vmatpush1.bf16.msra.mxu0 %v2518
    %3593 = vmatprep.subr.bf16.mxu0 %v2511
    %3594 = vmatpush1.bf16.msra.mxu0 %v2510
    %3595 = vmatprep.subr.bf16.mxu0 %v2503
    %3596 = vmatpush1.bf16.msra.mxu0 %v2502
    %3597 = vmatprep.subr.bf16.mxu0 %v2495
    %3598 = vmatpush1.bf16.msra.mxu0 %v2494
    %3599 = vmatprep.subr.bf16.mxu0 %v2487
    %3600 = vmatpush1.bf16.msra.mxu0 %v2486
    %3601 = vmatprep.subr.bf16.mxu0 %v2479
    %3602 = vmatpush1.bf16.msra.mxu0 %v2478
    %3603 = vmatprep.subr.bf16.mxu0 %v2599
    %3604 = vmatpush2.bf16.msra.mxu0 %v2598
    %3605 = vmatprep.subr.bf16.mxu0 %v2591
    %3606 = vmatpush2.bf16.msra.mxu0 %v2590
    %3607 = vmatprep.subr.bf16.mxu0 %v2583
    %3608 = vmatpush2.bf16.msra.mxu0 %v2582
    %3609 = vmatprep.subr.bf16.mxu0 %v2575
    %3610 = vmatpush2.bf16.msra.mxu0 %v2574
    %3611 = vmatprep.subr.bf16.mxu0 %v2567
    %3612 = vmatpush2.bf16.msra.mxu0 %v2566
    %3613 = vmatprep.subr.bf16.mxu0 %v2559
    %3614 = vmatpush2.bf16.msra.mxu0 %v2558
    %3615 = vmatprep.subr.bf16.mxu0 %v2551
    %3616 = vmatpush2.bf16.msra.mxu0 %v2550
    %3617 = vmatprep.subr.bf16.mxu0 %v2543
    %3618 = vmatpush2.bf16.msra.mxu0 %v2542
    %3619 = vmatprep.mubr.bf16.mxu0 %v799
    %3620 = vmatmul.mubr.bf16.gmra.mxu0 %v798
    %v3621 = vpop.f32.mrf.mxu0
    %v3622 = vadd.f32 %v3579, %v3621
    %v3623 = vpop.f32.mrf.mxu0
    %v3624 = vadd.f32 %v3581, %v3623
    %v3625 = vpop.f32.mrf.mxu0
    %v3626 = vadd.f32 %v3583, %v3625
    %v3627 = vpop.f32.mrf.mxu0
    %v3628 = vadd.f32 %v3585, %v3627
    %3629 = vdwg.mxu0
    %3630 = vmatprep.subr.bf16.mxu0 %v2663
    %3631 = vmatpush1.bf16.msra.mxu0 %v2662
    %3632 = vmatprep.subr.bf16.mxu0 %v2655
    %3633 = vmatpush1.bf16.msra.mxu0 %v2654
    %3634 = vmatprep.subr.bf16.mxu0 %v2647
    %3635 = vmatpush1.bf16.msra.mxu0 %v2646
    %3636 = vmatprep.subr.bf16.mxu0 %v2639
    %3637 = vmatpush1.bf16.msra.mxu0 %v2638
    %3638 = vmatprep.subr.bf16.mxu0 %v2631
    %3639 = vmatpush1.bf16.msra.mxu0 %v2630
    %3640 = vmatprep.subr.bf16.mxu0 %v2623
    %3641 = vmatpush1.bf16.msra.mxu0 %v2622
    %3642 = vmatprep.subr.bf16.mxu0 %v2615
    %3643 = vmatpush1.bf16.msra.mxu0 %v2614
    %3644 = vmatprep.subr.bf16.mxu0 %v2607
    %3645 = vmatpush1.bf16.msra.mxu0 %v2606
    %3646 = vmatprep.subr.bf16.mxu0 %v2727
    %3647 = vmatpush2.bf16.msra.mxu0 %v2726
    %3648 = vmatprep.subr.bf16.mxu0 %v2719
    %3649 = vmatpush2.bf16.msra.mxu0 %v2718
    %3650 = vmatprep.subr.bf16.mxu0 %v2711
    %3651 = vmatpush2.bf16.msra.mxu0 %v2710
    %3652 = vmatprep.subr.bf16.mxu0 %v2703
    %3653 = vmatpush2.bf16.msra.mxu0 %v2702
    %3654 = vmatprep.subr.bf16.mxu0 %v2695
    %3655 = vmatpush2.bf16.msra.mxu0 %v2694
    %3656 = vmatprep.subr.bf16.mxu0 %v2687
    %3657 = vmatpush2.bf16.msra.mxu0 %v2686
    %3658 = vmatprep.subr.bf16.mxu0 %v2679
    %3659 = vmatpush2.bf16.msra.mxu0 %v2678
    %3660 = vmatprep.subr.bf16.mxu0 %v2671
    %3661 = vmatpush2.bf16.msra.mxu0 %v2670
    %3662 = vmatprep.mubr.bf16.mxu0 %v801
    %3663 = vmatmul.mubr.bf16.gmra.mxu0 %v800
    %v3664 = vpop.f32.mrf.mxu0
    %v3665 = vadd.f32 %v3622, %v3664
    %v3666 = vpop.f32.mrf.mxu0
    %v3667 = vadd.f32 %v3624, %v3666
    %v3668 = vpop.f32.mrf.mxu0
    %v3669 = vadd.f32 %v3626, %v3668
    %v3670 = vpop.f32.mrf.mxu0
    %v3671 = vadd.f32 %v3628, %v3670
    %3672 = vdwg.mxu0
    %3673 = vmatprep.subr.bf16.mxu0 %v2791
    %3674 = vmatpush1.bf16.msra.mxu0 %v2790
    %3675 = vmatprep.subr.bf16.mxu0 %v2783
    %3676 = vmatpush1.bf16.msra.mxu0 %v2782
    %3677 = vmatprep.subr.bf16.mxu0 %v2775
    %3678 = vmatpush1.bf16.msra.mxu0 %v2774
    %3679 = vmatprep.subr.bf16.mxu0 %v2767
    %3680 = vmatpush1.bf16.msra.mxu0 %v2766
    %3681 = vmatprep.subr.bf16.mxu0 %v2759
    %3682 = vmatpush1.bf16.msra.mxu0 %v2758
    %3683 = vmatprep.subr.bf16.mxu0 %v2751
    %3684 = vmatpush1.bf16.msra.mxu0 %v2750
    %3685 = vmatprep.subr.bf16.mxu0 %v2743
    %3686 = vmatpush1.bf16.msra.mxu0 %v2742
    %3687 = vmatprep.subr.bf16.mxu0 %v2735
    %3688 = vmatpush1.bf16.msra.mxu0 %v2734
    %3689 = vmatprep.subr.bf16.mxu0 %v2855
    %3690 = vmatpush2.bf16.msra.mxu0 %v2854
    %3691 = vmatprep.subr.bf16.mxu0 %v2847
    %3692 = vmatpush2.bf16.msra.mxu0 %v2846
    %3693 = vmatprep.subr.bf16.mxu0 %v2839
    %3694 = vmatpush2.bf16.msra.mxu0 %v2838
    %3695 = vmatprep.subr.bf16.mxu0 %v2831
    %3696 = vmatpush2.bf16.msra.mxu0 %v2830
    %3697 = vmatprep.subr.bf16.mxu0 %v2823
    %3698 = vmatpush2.bf16.msra.mxu0 %v2822
    %3699 = vmatprep.subr.bf16.mxu0 %v2815
    %3700 = vmatpush2.bf16.msra.mxu0 %v2814
    %3701 = vmatprep.subr.bf16.mxu0 %v2807
    %3702 = vmatpush2.bf16.msra.mxu0 %v2806
    %3703 = vmatprep.subr.bf16.mxu0 %v2799
    %3704 = vmatpush2.bf16.msra.mxu0 %v2798
    %3705 = vmatprep.mubr.bf16.mxu0 %v803
    %3706 = vmatmul.mubr.bf16.gmra.mxu0 %v802
    %v3707 = vpop.f32.mrf.mxu0
    %v3708 = vadd.f32 %v3665, %v3707
    %v3709 = vpop.f32.mrf.mxu0
    %v3710 = vadd.f32 %v3667, %v3709
    %v3711 = vpop.f32.mrf.mxu0
    %v3712 = vadd.f32 %v3669, %v3711
    %v3713 = vpop.f32.mrf.mxu0
    %v3714 = vadd.f32 %v3671, %v3713
    %3715 = vdwg.mxu0
    %3716 = vmatprep.subr.bf16.mxu0 %v2409
    %3717 = vmatpush1.bf16.msra.mxu0 %v2408
    %3718 = vmatprep.subr.bf16.mxu0 %v2401
    %3719 = vmatpush1.bf16.msra.mxu0 %v2400
    %3720 = vmatprep.subr.bf16.mxu0 %v2393
    %3721 = vmatpush1.bf16.msra.mxu0 %v2392
    %3722 = vmatprep.subr.bf16.mxu0 %v2385
    %3723 = vmatpush1.bf16.msra.mxu0 %v2384
    %3724 = vmatprep.subr.bf16.mxu0 %v2377
    %3725 = vmatpush1.bf16.msra.mxu0 %v2376
    %3726 = vmatprep.subr.bf16.mxu0 %v2369
    %3727 = vmatpush1.bf16.msra.mxu0 %v2368
    %3728 = vmatprep.subr.bf16.mxu0 %v2361
    %3729 = vmatpush1.bf16.msra.mxu0 %v2360
    %3730 = vmatprep.subr.bf16.mxu0 %v2353
    %3731 = vmatpush1.bf16.msra.mxu0 %v2352
    %3732 = vmatprep.subr.bf16.mxu0 %v2473
    %3733 = vmatpush2.bf16.msra.mxu0 %v2472
    %3734 = vmatprep.subr.bf16.mxu0 %v2465
    %3735 = vmatpush2.bf16.msra.mxu0 %v2464
    %3736 = vmatprep.subr.bf16.mxu0 %v2457
    %3737 = vmatpush2.bf16.msra.mxu0 %v2456
    %3738 = vmatprep.subr.bf16.mxu0 %v2449
    %3739 = vmatpush2.bf16.msra.mxu0 %v2448
    %3740 = vmatprep.subr.bf16.mxu0 %v2441
    %3741 = vmatpush2.bf16.msra.mxu0 %v2440
    %3742 = vmatprep.subr.bf16.mxu0 %v2433
    %3743 = vmatpush2.bf16.msra.mxu0 %v2432
    %3744 = vmatprep.subr.bf16.mxu0 %v2425
    %3745 = vmatpush2.bf16.msra.mxu0 %v2424
    %3746 = vmatprep.subr.bf16.mxu0 %v2417
    %3747 = vmatpush2.bf16.msra.mxu0 %v2416
    %3748 = vmatprep.mubr.bf16.mxu0 %v797
    %3749 = vmatmul.mubr.bf16.gmra.mxu0 %v796
    %v3750 = vpop.f32.mrf.mxu0
    %v3751 = vadd.f32 %v751, %v3750
    %v3752 = vpop.f32.mrf.mxu0
    %v3753 = vadd.f32 %v755, %v3752
    %v3754 = vpop.f32.mrf.mxu0
    %v3755 = vadd.f32 %v751, %v3754
    %v3756 = vpop.f32.mrf.mxu0
    %v3757 = vadd.f32 %v755, %v3756
    %3758 = vdwg.mxu0
    %3759 = vmatprep.subr.bf16.mxu0 %v2537
    %3760 = vmatpush1.bf16.msra.mxu0 %v2536
    %3761 = vmatprep.subr.bf16.mxu0 %v2529
    %3762 = vmatpush1.bf16.msra.mxu0 %v2528
    %3763 = vmatprep.subr.bf16.mxu0 %v2521
    %3764 = vmatpush1.bf16.msra.mxu0 %v2520
    %3765 = vmatprep.subr.bf16.mxu0 %v2513
    %3766 = vmatpush1.bf16.msra.mxu0 %v2512
    %3767 = vmatprep.subr.bf16.mxu0 %v2505
    %3768 = vmatpush1.bf16.msra.mxu0 %v2504
    %3769 = vmatprep.subr.bf16.mxu0 %v2497
    %3770 = vmatpush1.bf16.msra.mxu0 %v2496
    %3771 = vmatprep.subr.bf16.mxu0 %v2489
    %3772 = vmatpush1.bf16.msra.mxu0 %v2488
    %3773 = vmatprep.subr.bf16.mxu0 %v2481
    %3774 = vmatpush1.bf16.msra.mxu0 %v2480
    %3775 = vmatprep.subr.bf16.mxu0 %v2601
    %3776 = vmatpush2.bf16.msra.mxu0 %v2600
    %3777 = vmatprep.subr.bf16.mxu0 %v2593
    %3778 = vmatpush2.bf16.msra.mxu0 %v2592
    %3779 = vmatprep.subr.bf16.mxu0 %v2585
    %3780 = vmatpush2.bf16.msra.mxu0 %v2584
    %3781 = vmatprep.subr.bf16.mxu0 %v2577
    %3782 = vmatpush2.bf16.msra.mxu0 %v2576
    %3783 = vmatprep.subr.bf16.mxu0 %v2569
    %3784 = vmatpush2.bf16.msra.mxu0 %v2568
    %3785 = vmatprep.subr.bf16.mxu0 %v2561
    %3786 = vmatpush2.bf16.msra.mxu0 %v2560
    %3787 = vmatprep.subr.bf16.mxu0 %v2553
    %3788 = vmatpush2.bf16.msra.mxu0 %v2552
    %3789 = vmatprep.subr.bf16.mxu0 %v2545
    %3790 = vmatpush2.bf16.msra.mxu0 %v2544
    %3791 = vmatprep.mubr.bf16.mxu0 %v799
    %3792 = vmatmul.mubr.bf16.gmra.mxu0 %v798
    %v3793 = vpop.f32.mrf.mxu0
    %v3794 = vadd.f32 %v3751, %v3793
    %v3795 = vpop.f32.mrf.mxu0
    %v3796 = vadd.f32 %v3753, %v3795
    %v3797 = vpop.f32.mrf.mxu0
    %v3798 = vadd.f32 %v3755, %v3797
    %v3799 = vpop.f32.mrf.mxu0
    %v3800 = vadd.f32 %v3757, %v3799
    %3801 = vdwg.mxu0
    %3802 = vmatprep.subr.bf16.mxu0 %v2665
    %3803 = vmatpush1.bf16.msra.mxu0 %v2664
    %3804 = vmatprep.subr.bf16.mxu0 %v2657
    %3805 = vmatpush1.bf16.msra.mxu0 %v2656
    %3806 = vmatprep.subr.bf16.mxu0 %v2649
    %3807 = vmatpush1.bf16.msra.mxu0 %v2648
    %3808 = vmatprep.subr.bf16.mxu0 %v2641
    %3809 = vmatpush1.bf16.msra.mxu0 %v2640
    %3810 = vmatprep.subr.bf16.mxu0 %v2633
    %3811 = vmatpush1.bf16.msra.mxu0 %v2632
    %3812 = vmatprep.subr.bf16.mxu0 %v2625
    %3813 = vmatpush1.bf16.msra.mxu0 %v2624
    %3814 = vmatprep.subr.bf16.mxu0 %v2617
    %3815 = vmatpush1.bf16.msra.mxu0 %v2616
    %3816 = vmatprep.subr.bf16.mxu0 %v2609
    %3817 = vmatpush1.bf16.msra.mxu0 %v2608
    %3818 = vmatprep.subr.bf16.mxu0 %v2729
    %3819 = vmatpush2.bf16.msra.mxu0 %v2728
    %3820 = vmatprep.subr.bf16.mxu0 %v2721
    %3821 = vmatpush2.bf16.msra.mxu0 %v2720
    %3822 = vmatprep.subr.bf16.mxu0 %v2713
    %3823 = vmatpush2.bf16.msra.mxu0 %v2712
    %3824 = vmatprep.subr.bf16.mxu0 %v2705
    %3825 = vmatpush2.bf16.msra.mxu0 %v2704
    %3826 = vmatprep.subr.bf16.mxu0 %v2697
    %3827 = vmatpush2.bf16.msra.mxu0 %v2696
    %3828 = vmatprep.subr.bf16.mxu0 %v2689
    %3829 = vmatpush2.bf16.msra.mxu0 %v2688
    %3830 = vmatprep.subr.bf16.mxu0 %v2681
    %3831 = vmatpush2.bf16.msra.mxu0 %v2680
    %3832 = vmatprep.subr.bf16.mxu0 %v2673
    %3833 = vmatpush2.bf16.msra.mxu0 %v2672
    %3834 = vmatprep.mubr.bf16.mxu0 %v801
    %3835 = vmatmul.mubr.bf16.gmra.mxu0 %v800
    %v3836 = vpop.f32.mrf.mxu0
    %v3837 = vadd.f32 %v3794, %v3836
    %v3838 = vpop.f32.mrf.mxu0
    %v3839 = vadd.f32 %v3796, %v3838
    %v3840 = vpop.f32.mrf.mxu0
    %v3841 = vadd.f32 %v3798, %v3840
    %v3842 = vpop.f32.mrf.mxu0
    %v3843 = vadd.f32 %v3800, %v3842
    %3844 = vdwg.mxu0
    %3845 = vmatprep.subr.bf16.mxu0 %v2793
    %3846 = vmatpush1.bf16.msra.mxu0 %v2792
    %3847 = vmatprep.subr.bf16.mxu0 %v2785
    %3848 = vmatpush1.bf16.msra.mxu0 %v2784
    %3849 = vmatprep.subr.bf16.mxu0 %v2777
    %3850 = vmatpush1.bf16.msra.mxu0 %v2776
    %3851 = vmatprep.subr.bf16.mxu0 %v2769
    %3852 = vmatpush1.bf16.msra.mxu0 %v2768
    %3853 = vmatprep.subr.bf16.mxu0 %v2761
    %3854 = vmatpush1.bf16.msra.mxu0 %v2760
    %3855 = vmatprep.subr.bf16.mxu0 %v2753
    %3856 = vmatpush1.bf16.msra.mxu0 %v2752
    %3857 = vmatprep.subr.bf16.mxu0 %v2745
    %3858 = vmatpush1.bf16.msra.mxu0 %v2744
    %3859 = vmatprep.subr.bf16.mxu0 %v2737
    %3860 = vmatpush1.bf16.msra.mxu0 %v2736
    %3861 = vmatprep.subr.bf16.mxu0 %v2857
    %3862 = vmatpush2.bf16.msra.mxu0 %v2856
    %3863 = vmatprep.subr.bf16.mxu0 %v2849
    %3864 = vmatpush2.bf16.msra.mxu0 %v2848
    %3865 = vmatprep.subr.bf16.mxu0 %v2841
    %3866 = vmatpush2.bf16.msra.mxu0 %v2840
    %3867 = vmatprep.subr.bf16.mxu0 %v2833
    %3868 = vmatpush2.bf16.msra.mxu0 %v2832
    %3869 = vmatprep.subr.bf16.mxu0 %v2825
    %3870 = vmatpush2.bf16.msra.mxu0 %v2824
    %3871 = vmatprep.subr.bf16.mxu0 %v2817
    %3872 = vmatpush2.bf16.msra.mxu0 %v2816
    %3873 = vmatprep.subr.bf16.mxu0 %v2809
    %3874 = vmatpush2.bf16.msra.mxu0 %v2808
    %3875 = vmatprep.subr.bf16.mxu0 %v2801
    %3876 = vmatpush2.bf16.msra.mxu0 %v2800
    %3877 = vmatprep.mubr.bf16.mxu0 %v803
    %3878 = vmatmul.mubr.bf16.gmra.mxu0 %v802
    %v3879 = vpop.f32.mrf.mxu0
    %v3880 = vadd.f32 %v3837, %v3879
    %v3881 = vpop.f32.mrf.mxu0
    %v3882 = vadd.f32 %v3839, %v3881
    %v3883 = vpop.f32.mrf.mxu0
    %v3884 = vadd.f32 %v3841, %v3883
    %v3885 = vpop.f32.mrf.mxu0
    %v3886 = vadd.f32 %v3843, %v3885
    %3887 = vdwg.mxu0
    %3888 = vmatprep.subr.bf16.mxu0 %v2411
    %3889 = vmatpush1.bf16.msra.mxu0 %v2410
    %3890 = vmatprep.subr.bf16.mxu0 %v2403
    %3891 = vmatpush1.bf16.msra.mxu0 %v2402
    %3892 = vmatprep.subr.bf16.mxu0 %v2395
    %3893 = vmatpush1.bf16.msra.mxu0 %v2394
    %3894 = vmatprep.subr.bf16.mxu0 %v2387
    %3895 = vmatpush1.bf16.msra.mxu0 %v2386
    %3896 = vmatprep.subr.bf16.mxu0 %v2379
    %3897 = vmatpush1.bf16.msra.mxu0 %v2378
    %3898 = vmatprep.subr.bf16.mxu0 %v2371
    %3899 = vmatpush1.bf16.msra.mxu0 %v2370
    %3900 = vmatprep.subr.bf16.mxu0 %v2363
    %3901 = vmatpush1.bf16.msra.mxu0 %v2362
    %3902 = vmatprep.subr.bf16.mxu0 %v2355
    %3903 = vmatpush1.bf16.msra.mxu0 %v2354
    %3904 = vmatprep.subr.bf16.mxu0 %v2475
    %3905 = vmatpush2.bf16.msra.mxu0 %v2474
    %3906 = vmatprep.subr.bf16.mxu0 %v2467
    %3907 = vmatpush2.bf16.msra.mxu0 %v2466
    %3908 = vmatprep.subr.bf16.mxu0 %v2459
    %3909 = vmatpush2.bf16.msra.mxu0 %v2458
    %3910 = vmatprep.subr.bf16.mxu0 %v2451
    %3911 = vmatpush2.bf16.msra.mxu0 %v2450
    %3912 = vmatprep.subr.bf16.mxu0 %v2443
    %3913 = vmatpush2.bf16.msra.mxu0 %v2442
    %3914 = vmatprep.subr.bf16.mxu0 %v2435
    %3915 = vmatpush2.bf16.msra.mxu0 %v2434
    %3916 = vmatprep.subr.bf16.mxu0 %v2427
    %3917 = vmatpush2.bf16.msra.mxu0 %v2426
    %3918 = vmatprep.subr.bf16.mxu0 %v2419
    %3919 = vmatpush2.bf16.msra.mxu0 %v2418
    %3920 = vmatprep.mubr.bf16.mxu0 %v797
    %3921 = vmatmul.mubr.bf16.gmra.mxu0 %v796
    %v3922 = vpop.f32.mrf.mxu0
    %v3923 = vadd.f32 %v759, %v3922
    %v3924 = vpop.f32.mrf.mxu0
    %v3925 = vadd.f32 %v763, %v3924
    %v3926 = vpop.f32.mrf.mxu0
    %v3927 = vadd.f32 %v759, %v3926
    %v3928 = vpop.f32.mrf.mxu0
    %v3929 = vadd.f32 %v763, %v3928
    %3930 = vdwg.mxu0
    %3931 = vmatprep.subr.bf16.mxu0 %v2539
    %3932 = vmatpush1.bf16.msra.mxu0 %v2538
    %3933 = vmatprep.subr.bf16.mxu0 %v2531
    %3934 = vmatpush1.bf16.msra.mxu0 %v2530
    %3935 = vmatprep.subr.bf16.mxu0 %v2523
    %3936 = vmatpush1.bf16.msra.mxu0 %v2522
    %3937 = vmatprep.subr.bf16.mxu0 %v2515
    %3938 = vmatpush1.bf16.msra.mxu0 %v2514
    %3939 = vmatprep.subr.bf16.mxu0 %v2507
    %3940 = vmatpush1.bf16.msra.mxu0 %v2506
    %3941 = vmatprep.subr.bf16.mxu0 %v2499
    %3942 = vmatpush1.bf16.msra.mxu0 %v2498
    %3943 = vmatprep.subr.bf16.mxu0 %v2491
    %3944 = vmatpush1.bf16.msra.mxu0 %v2490
    %3945 = vmatprep.subr.bf16.mxu0 %v2483
    %3946 = vmatpush1.bf16.msra.mxu0 %v2482
    %3947 = vmatprep.subr.bf16.mxu0 %v2603
    %3948 = vmatpush2.bf16.msra.mxu0 %v2602
    %3949 = vmatprep.subr.bf16.mxu0 %v2595
    %3950 = vmatpush2.bf16.msra.mxu0 %v2594
    %3951 = vmatprep.subr.bf16.mxu0 %v2587
    %3952 = vmatpush2.bf16.msra.mxu0 %v2586
    %3953 = vmatprep.subr.bf16.mxu0 %v2579
    %3954 = vmatpush2.bf16.msra.mxu0 %v2578
    %3955 = vmatprep.subr.bf16.mxu0 %v2571
    %3956 = vmatpush2.bf16.msra.mxu0 %v2570
    %3957 = vmatprep.subr.bf16.mxu0 %v2563
    %3958 = vmatpush2.bf16.msra.mxu0 %v2562
    %3959 = vmatprep.subr.bf16.mxu0 %v2555
    %3960 = vmatpush2.bf16.msra.mxu0 %v2554
    %3961 = vmatprep.subr.bf16.mxu0 %v2547
    %3962 = vmatpush2.bf16.msra.mxu0 %v2546
    %3963 = vmatprep.mubr.bf16.mxu0 %v799
    %3964 = vmatmul.mubr.bf16.gmra.mxu0 %v798
    %v3965 = vpop.f32.mrf.mxu0
    %v3966 = vadd.f32 %v3923, %v3965
    %v3967 = vpop.f32.mrf.mxu0
    %v3968 = vadd.f32 %v3925, %v3967
    %v3969 = vpop.f32.mrf.mxu0
    %v3970 = vadd.f32 %v3927, %v3969
    %v3971 = vpop.f32.mrf.mxu0
    %v3972 = vadd.f32 %v3929, %v3971
    %3973 = vdwg.mxu0
    %3974 = vmatprep.subr.bf16.mxu0 %v2667
    %3975 = vmatpush1.bf16.msra.mxu0 %v2666
    %3976 = vmatprep.subr.bf16.mxu0 %v2659
    %3977 = vmatpush1.bf16.msra.mxu0 %v2658
    %3978 = vmatprep.subr.bf16.mxu0 %v2651
    %3979 = vmatpush1.bf16.msra.mxu0 %v2650
    %3980 = vmatprep.subr.bf16.mxu0 %v2643
    %3981 = vmatpush1.bf16.msra.mxu0 %v2642
    %3982 = vmatprep.subr.bf16.mxu0 %v2635
    %3983 = vmatpush1.bf16.msra.mxu0 %v2634
    %3984 = vmatprep.subr.bf16.mxu0 %v2627
    %3985 = vmatpush1.bf16.msra.mxu0 %v2626
    %3986 = vmatprep.subr.bf16.mxu0 %v2619
    %3987 = vmatpush1.bf16.msra.mxu0 %v2618
    %3988 = vmatprep.subr.bf16.mxu0 %v2611
    %3989 = vmatpush1.bf16.msra.mxu0 %v2610
    %3990 = vmatprep.subr.bf16.mxu0 %v2731
    %3991 = vmatpush2.bf16.msra.mxu0 %v2730
    %3992 = vmatprep.subr.bf16.mxu0 %v2723
    %3993 = vmatpush2.bf16.msra.mxu0 %v2722
    %3994 = vmatprep.subr.bf16.mxu0 %v2715
    %3995 = vmatpush2.bf16.msra.mxu0 %v2714
    %3996 = vmatprep.subr.bf16.mxu0 %v2707
    %3997 = vmatpush2.bf16.msra.mxu0 %v2706
    %3998 = vmatprep.subr.bf16.mxu0 %v2699
    %3999 = vmatpush2.bf16.msra.mxu0 %v2698
    %4000 = vmatprep.subr.bf16.mxu0 %v2691
    %4001 = vmatpush2.bf16.msra.mxu0 %v2690
    %4002 = vmatprep.subr.bf16.mxu0 %v2683
    %4003 = vmatpush2.bf16.msra.mxu0 %v2682
    %4004 = vmatprep.subr.bf16.mxu0 %v2675
    %4005 = vmatpush2.bf16.msra.mxu0 %v2674
    %4006 = vmatprep.mubr.bf16.mxu0 %v801
    %4007 = vmatmul.mubr.bf16.gmra.mxu0 %v800
    %v4008 = vpop.f32.mrf.mxu0
    %v4009 = vadd.f32 %v3966, %v4008
    %v4010 = vpop.f32.mrf.mxu0
    %v4011 = vadd.f32 %v3968, %v4010
    %v4012 = vpop.f32.mrf.mxu0
    %v4013 = vadd.f32 %v3970, %v4012
    %v4014 = vpop.f32.mrf.mxu0
    %v4015 = vadd.f32 %v3972, %v4014
    %4016 = vdwg.mxu0
    %4017 = vmatprep.subr.bf16.mxu0 %v2795
    %4018 = vmatpush1.bf16.msra.mxu0 %v2794
    %4019 = vmatprep.subr.bf16.mxu0 %v2787
    %4020 = vmatpush1.bf16.msra.mxu0 %v2786
    %4021 = vmatprep.subr.bf16.mxu0 %v2779
    %4022 = vmatpush1.bf16.msra.mxu0 %v2778
    %4023 = vmatprep.subr.bf16.mxu0 %v2771
    %4024 = vmatpush1.bf16.msra.mxu0 %v2770
    %4025 = vmatprep.subr.bf16.mxu0 %v2763
    %4026 = vmatpush1.bf16.msra.mxu0 %v2762
    %4027 = vmatprep.subr.bf16.mxu0 %v2755
    %4028 = vmatpush1.bf16.msra.mxu0 %v2754
    %4029 = vmatprep.subr.bf16.mxu0 %v2747
    %4030 = vmatpush1.bf16.msra.mxu0 %v2746
    %4031 = vmatprep.subr.bf16.mxu0 %v2739
    %4032 = vmatpush1.bf16.msra.mxu0 %v2738
    %4033 = vmatprep.subr.bf16.mxu0 %v2859
    %4034 = vmatpush2.bf16.msra.mxu0 %v2858
    %4035 = vmatprep.subr.bf16.mxu0 %v2851
    %4036 = vmatpush2.bf16.msra.mxu0 %v2850
    %4037 = vmatprep.subr.bf16.mxu0 %v2843
    %4038 = vmatpush2.bf16.msra.mxu0 %v2842
    %4039 = vmatprep.subr.bf16.mxu0 %v2835
    %4040 = vmatpush2.bf16.msra.mxu0 %v2834
    %4041 = vmatprep.subr.bf16.mxu0 %v2827
    %4042 = vmatpush2.bf16.msra.mxu0 %v2826
    %4043 = vmatprep.subr.bf16.mxu0 %v2819
    %4044 = vmatpush2.bf16.msra.mxu0 %v2818
    %4045 = vmatprep.subr.bf16.mxu0 %v2811
    %4046 = vmatpush2.bf16.msra.mxu0 %v2810
    %4047 = vmatprep.subr.bf16.mxu0 %v2803
    %4048 = vmatpush2.bf16.msra.mxu0 %v2802
    %4049 = vmatprep.mubr.bf16.mxu0 %v803
    %4050 = vmatmul.mubr.bf16.gmra.mxu0 %v802
    %v4051 = vpop.f32.mrf.mxu0
    %v4052 = vadd.f32 %v4009, %v4051
    %v4053 = vpop.f32.mrf.mxu0
    %v4054 = vadd.f32 %v4011, %v4053
    %v4055 = vpop.f32.mrf.mxu0
    %v4056 = vadd.f32 %v4013, %v4055
    %v4057 = vpop.f32.mrf.mxu0
    %v4058 = vadd.f32 %v4015, %v4057
    %4059 = vdwg.mxu0
    %v4060 = vunpack.c.l.bf16 %v210
    %v4061 = vunpack.c.h.bf16 %v210
    %v4062 = vunpack.c.l.bf16 %v211
    %v4063 = vunpack.c.h.bf16 %v211
    %v4064 = vunpack.c.l.bf16 %v212
    %v4065 = vunpack.c.h.bf16 %v212
    %v4066 = vunpack.c.l.bf16 %v213
    %v4067 = vunpack.c.h.bf16 %v213
    %v4068 = vunpack.c.l.bf16 %v214
    %v4069 = vunpack.c.h.bf16 %v214
    %v4070 = vunpack.c.l.bf16 %v215
    %v4071 = vunpack.c.h.bf16 %v215
    %v4072 = vunpack.c.l.bf16 %v216
    %v4073 = vunpack.c.h.bf16 %v216
    %v4074 = vunpack.c.l.bf16 %v217
    %v4075 = vunpack.c.h.bf16 %v217
    %v4076 = vadd.f32 %v3536, %v4060
    %v4077 = vadd.f32 %v3538, %v4061
    %v4078 = vadd.f32 %v3708, %v4062
    %v4079 = vadd.f32 %v3710, %v4063
    %v4080 = vadd.f32 %v3880, %v4064
    %v4081 = vadd.f32 %v3882, %v4065
    %v4082 = vadd.f32 %v4052, %v4066
    %v4083 = vadd.f32 %v4054, %v4067
    %v4084 = vadd.f32 %v3540, %v4068
    %v4085 = vadd.f32 %v3542, %v4069
    %v4086 = vadd.f32 %v3712, %v4070
    %v4087 = vadd.f32 %v3714, %v4071
    %v4088 = vadd.f32 %v3884, %v4072
    %v4089 = vadd.f32 %v3886, %v4073
    %v4090 = vadd.f32 %v4056, %v4074
    %v4091 = vadd.f32 %v4058, %v4075
    %v4092 = vmul.f32 %v4076, 0.02
    %v4093 = vmul.f32 %v4077, 0.02
    %v4094 = vmul.f32 %v4078, 0.02
    %v4095 = vmul.f32 %v4079, 0.02
    %v4096 = vmul.f32 %v4080, 0.02
    %v4097 = vmul.f32 %v4081, 0.02
    %v4098 = vmul.f32 %v4082, 0.02
    %v4099 = vmul.f32 %v4083, 0.02
    %v4100 = vmul.f32 %v4084, 0.02
    %v4101 = vmul.f32 %v4085, 0.02
    %v4102 = vmul.f32 %v4086, 0.02
    %v4103 = vmul.f32 %v4087, 0.02
    %v4104 = vmul.f32 %v4088, 0.02
    %v4105 = vmul.f32 %v4089, 0.02
    %v4106 = vmul.f32 %v4090, 0.02
    %v4107 = vmul.f32 %v4091, 0.02
    %v4108 = vmax.f32 %v4076, %v4092
    %v4109 = vmax.f32 %v4077, %v4093
    %v4110 = vmax.f32 %v4078, %v4094
    %v4111 = vmax.f32 %v4079, %v4095
    %v4112 = vmax.f32 %v4080, %v4096
    %v4113 = vmax.f32 %v4081, %v4097
    %v4114 = vmax.f32 %v4082, %v4098
    %v4115 = vmax.f32 %v4083, %v4099
    %v4116 = vmax.f32 %v4084, %v4100
    %v4117 = vmax.f32 %v4085, %v4101
    %v4118 = vmax.f32 %v4086, %v4102
    %v4119 = vmax.f32 %v4087, %v4103
    %v4120 = vmax.f32 %v4088, %v4104
    %v4121 = vmax.f32 %v4089, %v4105
    %v4122 = vmax.f32 %v4090, %v4106
    %v4123 = vmax.f32 %v4091, %v4107
    %v4124 = vpack.c.bf16 %v4116, %v4108
    %v4125 = vpack.c.bf16 %v4117, %v4109
    %v4126 = vpack.c.bf16 %v4118, %v4110
    %v4127 = vpack.c.bf16 %v4119, %v4111
    %v4128 = vpack.c.bf16 %v4120, %v4112
    %v4129 = vpack.c.bf16 %v4121, %v4113
    %v4130 = vpack.c.bf16 %v4122, %v4114
    %v4131 = vpack.c.bf16 %v4123, %v4115
    %v4132 = vld [vmem:[#allocation8] sm:$0xff]
    %v4133 = vld [vmem:[#allocation8 + $0x8] sm:$0xff]
    %v4134 = vld [vmem:[#allocation8 + $0x10] sm:$0xff]
    %v4135 = vld [vmem:[#allocation8 + $0x18] sm:$0xff]
    %v4136 = vld [vmem:[#allocation8 + $0x20] sm:$0xff]
    %v4137 = vld [vmem:[#allocation8 + $0x28] sm:$0xff]
    %v4138 = vld [vmem:[#allocation8 + $0x30] sm:$0xff]
    %v4139 = vld [vmem:[#allocation8 + $0x38] sm:$0xff]
    %v4140 = vld [vmem:[#allocation8 + $0x40] sm:$0xff]
    %v4141 = vld [vmem:[#allocation8 + $0x48] sm:$0xff]
    %v4142 = vld [vmem:[#allocation8 + $0x50] sm:$0xff]
    %v4143 = vld [vmem:[#allocation8 + $0x58] sm:$0xff]
    %v4144 = vld [vmem:[#allocation8 + $0x60] sm:$0xff]
    %v4145 = vld [vmem:[#allocation8 + $0x68] sm:$0xff]
    %v4146 = vld [vmem:[#allocation8 + $0x70] sm:$0xff]
    %v4147 = vld [vmem:[#allocation8 + $0x78] sm:$0xff]
    %v4148 = vld [vmem:[#allocation8 + $0x80] sm:$0xff]
    %v4149 = vld [vmem:[#allocation8 + $0x88] sm:$0xff]
    %v4150 = vld [vmem:[#allocation8 + $0x90] sm:$0xff]
    %v4151 = vld [vmem:[#allocation8 + $0x98] sm:$0xff]
    %v4152 = vld [vmem:[#allocation8 + $0xa0] sm:$0xff]
    %v4153 = vld [vmem:[#allocation8 + $0xa8] sm:$0xff]
    %v4154 = vld [vmem:[#allocation8 + $0xb0] sm:$0xff]
    %v4155 = vld [vmem:[#allocation8 + $0xb8] sm:$0xff]
    %v4156 = vld [vmem:[#allocation8 + $0xc0] sm:$0xff]
    %v4157 = vld [vmem:[#allocation8 + $0xc8] sm:$0xff]
    %v4158 = vld [vmem:[#allocation8 + $0xd0] sm:$0xff]
    %v4159 = vld [vmem:[#allocation8 + $0xd8] sm:$0xff]
    %v4160 = vld [vmem:[#allocation8 + $0xe0] sm:$0xff]
    %v4161 = vld [vmem:[#allocation8 + $0xe8] sm:$0xff]
    %v4162 = vld [vmem:[#allocation8 + $0xf0] sm:$0xff]
    %v4163 = vld [vmem:[#allocation8 + $0xf8] sm:$0xff]
    %v4164 = vld [vmem:[#allocation8 + $0x100] sm:$0xff]
    %v4165 = vld [vmem:[#allocation8 + $0x108] sm:$0xff]
    %v4166 = vld [vmem:[#allocation8 + $0x110] sm:$0xff]
    %v4167 = vld [vmem:[#allocation8 + $0x118] sm:$0xff]
    %v4168 = vld [vmem:[#allocation8 + $0x120] sm:$0xff]
    %v4169 = vld [vmem:[#allocation8 + $0x128] sm:$0xff]
    %v4170 = vld [vmem:[#allocation8 + $0x130] sm:$0xff]
    %v4171 = vld [vmem:[#allocation8 + $0x138] sm:$0xff]
    %v4172 = vld [vmem:[#allocation8 + $0x140] sm:$0xff]
    %v4173 = vld [vmem:[#allocation8 + $0x148] sm:$0xff]
    %v4174 = vld [vmem:[#allocation8 + $0x150] sm:$0xff]
    %v4175 = vld [vmem:[#allocation8 + $0x158] sm:$0xff]
    %v4176 = vld [vmem:[#allocation8 + $0x160] sm:$0xff]
    %v4177 = vld [vmem:[#allocation8 + $0x168] sm:$0xff]
    %v4178 = vld [vmem:[#allocation8 + $0x170] sm:$0xff]
    %v4179 = vld [vmem:[#allocation8 + $0x178] sm:$0xff]
    %v4180 = vld [vmem:[#allocation8 + $0x180] sm:$0xff]
    %v4181 = vld [vmem:[#allocation8 + $0x188] sm:$0xff]
    %v4182 = vld [vmem:[#allocation8 + $0x190] sm:$0xff]
    %v4183 = vld [vmem:[#allocation8 + $0x198] sm:$0xff]
    %v4184 = vld [vmem:[#allocation8 + $0x1a0] sm:$0xff]
    %v4185 = vld [vmem:[#allocation8 + $0x1a8] sm:$0xff]
    %v4186 = vld [vmem:[#allocation8 + $0x1b0] sm:$0xff]
    %v4187 = vld [vmem:[#allocation8 + $0x1b8] sm:$0xff]
    %v4188 = vld [vmem:[#allocation8 + $0x1c0] sm:$0xff]
    %v4189 = vld [vmem:[#allocation8 + $0x1c8] sm:$0xff]
    %v4190 = vld [vmem:[#allocation8 + $0x1d0] sm:$0xff]
    %v4191 = vld [vmem:[#allocation8 + $0x1d8] sm:$0xff]
    %v4192 = vld [vmem:[#allocation8 + $0x1e0] sm:$0xff]
    %v4193 = vld [vmem:[#allocation8 + $0x1e8] sm:$0xff]
    %v4194 = vld [vmem:[#allocation8 + $0x1f0] sm:$0xff]
    %v4195 = vld [vmem:[#allocation8 + $0x1f8] sm:$0xff]
    %v4196 = vld [vmem:[#allocation8 + $0x200] sm:$0xff]
    %v4197 = vld [vmem:[#allocation8 + $0x208] sm:$0xff]
    %v4198 = vld [vmem:[#allocation8 + $0x210] sm:$0xff]
    %v4199 = vld [vmem:[#allocation8 + $0x218] sm:$0xff]
    %v4200 = vld [vmem:[#allocation8 + $0x220] sm:$0xff]
    %v4201 = vld [vmem:[#allocation8 + $0x228] sm:$0xff]
    %v4202 = vld [vmem:[#allocation8 + $0x230] sm:$0xff]
    %v4203 = vld [vmem:[#allocation8 + $0x238] sm:$0xff]
    %v4204 = vld [vmem:[#allocation8 + $0x240] sm:$0xff]
    %v4205 = vld [vmem:[#allocation8 + $0x248] sm:$0xff]
    %v4206 = vld [vmem:[#allocation8 + $0x250] sm:$0xff]
    %v4207 = vld [vmem:[#allocation8 + $0x258] sm:$0xff]
    %v4208 = vld [vmem:[#allocation8 + $0x260] sm:$0xff]
    %v4209 = vld [vmem:[#allocation8 + $0x268] sm:$0xff]
    %v4210 = vld [vmem:[#allocation8 + $0x270] sm:$0xff]
    %v4211 = vld [vmem:[#allocation8 + $0x278] sm:$0xff]
    %v4212 = vld [vmem:[#allocation8 + $0x280] sm:$0xff]
    %v4213 = vld [vmem:[#allocation8 + $0x288] sm:$0xff]
    %v4214 = vld [vmem:[#allocation8 + $0x290] sm:$0xff]
    %v4215 = vld [vmem:[#allocation8 + $0x298] sm:$0xff]
    %v4216 = vld [vmem:[#allocation8 + $0x2a0] sm:$0xff]
    %v4217 = vld [vmem:[#allocation8 + $0x2a8] sm:$0xff]
    %v4218 = vld [vmem:[#allocation8 + $0x2b0] sm:$0xff]
    %v4219 = vld [vmem:[#allocation8 + $0x2b8] sm:$0xff]
    %v4220 = vld [vmem:[#allocation8 + $0x2c0] sm:$0xff]
    %v4221 = vld [vmem:[#allocation8 + $0x2c8] sm:$0xff]
    %v4222 = vld [vmem:[#allocation8 + $0x2d0] sm:$0xff]
    %v4223 = vld [vmem:[#allocation8 + $0x2d8] sm:$0xff]
    %v4224 = vld [vmem:[#allocation8 + $0x2e0] sm:$0xff]
    %v4225 = vld [vmem:[#allocation8 + $0x2e8] sm:$0xff]
    %v4226 = vld [vmem:[#allocation8 + $0x2f0] sm:$0xff]
    %v4227 = vld [vmem:[#allocation8 + $0x2f8] sm:$0xff]
    %v4228 = vld [vmem:[#allocation8 + $0x300] sm:$0xff]
    %v4229 = vld [vmem:[#allocation8 + $0x308] sm:$0xff]
    %v4230 = vld [vmem:[#allocation8 + $0x310] sm:$0xff]
    %v4231 = vld [vmem:[#allocation8 + $0x318] sm:$0xff]
    %v4232 = vld [vmem:[#allocation8 + $0x320] sm:$0xff]
    %v4233 = vld [vmem:[#allocation8 + $0x328] sm:$0xff]
    %v4234 = vld [vmem:[#allocation8 + $0x330] sm:$0xff]
    %v4235 = vld [vmem:[#allocation8 + $0x338] sm:$0xff]
    %v4236 = vld [vmem:[#allocation8 + $0x340] sm:$0xff]
    %v4237 = vld [vmem:[#allocation8 + $0x348] sm:$0xff]
    %v4238 = vld [vmem:[#allocation8 + $0x350] sm:$0xff]
    %v4239 = vld [vmem:[#allocation8 + $0x358] sm:$0xff]
    %v4240 = vld [vmem:[#allocation8 + $0x360] sm:$0xff]
    %v4241 = vld [vmem:[#allocation8 + $0x368] sm:$0xff]
    %v4242 = vld [vmem:[#allocation8 + $0x370] sm:$0xff]
    %v4243 = vld [vmem:[#allocation8 + $0x378] sm:$0xff]
    %v4244 = vld [vmem:[#allocation8 + $0x380] sm:$0xff]
    %v4245 = vld [vmem:[#allocation8 + $0x388] sm:$0xff]
    %v4246 = vld [vmem:[#allocation8 + $0x390] sm:$0xff]
    %v4247 = vld [vmem:[#allocation8 + $0x398] sm:$0xff]
    %v4248 = vld [vmem:[#allocation8 + $0x3a0] sm:$0xff]
    %v4249 = vld [vmem:[#allocation8 + $0x3a8] sm:$0xff]
    %v4250 = vld [vmem:[#allocation8 + $0x3b0] sm:$0xff]
    %v4251 = vld [vmem:[#allocation8 + $0x3b8] sm:$0xff]
    %v4252 = vld [vmem:[#allocation8 + $0x3c0] sm:$0xff]
    %v4253 = vld [vmem:[#allocation8 + $0x3c8] sm:$0xff]
    %v4254 = vld [vmem:[#allocation8 + $0x3d0] sm:$0xff]
    %v4255 = vld [vmem:[#allocation8 + $0x3d8] sm:$0xff]
    %v4256 = vld [vmem:[#allocation8 + $0x3e0] sm:$0xff]
    %v4257 = vld [vmem:[#allocation8 + $0x3e8] sm:$0xff]
    %v4258 = vld [vmem:[#allocation8 + $0x3f0] sm:$0xff]
    %v4259 = vld [vmem:[#allocation8 + $0x3f8] sm:$0xff]
    %v4260 = vld [vmem:[#allocation8 + $0x400] sm:$0xff]
    %v4261 = vld [vmem:[#allocation8 + $0x408] sm:$0xff]
    %v4262 = vld [vmem:[#allocation8 + $0x410] sm:$0xff]
    %v4263 = vld [vmem:[#allocation8 + $0x418] sm:$0xff]
    %v4264 = vld [vmem:[#allocation8 + $0x420] sm:$0xff]
    %v4265 = vld [vmem:[#allocation8 + $0x428] sm:$0xff]
    %v4266 = vld [vmem:[#allocation8 + $0x430] sm:$0xff]
    %v4267 = vld [vmem:[#allocation8 + $0x438] sm:$0xff]
    %v4268 = vld [vmem:[#allocation8 + $0x440] sm:$0xff]
    %v4269 = vld [vmem:[#allocation8 + $0x448] sm:$0xff]
    %v4270 = vld [vmem:[#allocation8 + $0x450] sm:$0xff]
    %v4271 = vld [vmem:[#allocation8 + $0x458] sm:$0xff]
    %v4272 = vld [vmem:[#allocation8 + $0x460] sm:$0xff]
    %v4273 = vld [vmem:[#allocation8 + $0x468] sm:$0xff]
    %v4274 = vld [vmem:[#allocation8 + $0x470] sm:$0xff]
    %v4275 = vld [vmem:[#allocation8 + $0x478] sm:$0xff]
    %v4276 = vld [vmem:[#allocation8 + $0x480] sm:$0xff]
    %v4277 = vld [vmem:[#allocation8 + $0x488] sm:$0xff]
    %v4278 = vld [vmem:[#allocation8 + $0x490] sm:$0xff]
    %v4279 = vld [vmem:[#allocation8 + $0x498] sm:$0xff]
    %v4280 = vld [vmem:[#allocation8 + $0x4a0] sm:$0xff]
    %v4281 = vld [vmem:[#allocation8 + $0x4a8] sm:$0xff]
    %v4282 = vld [vmem:[#allocation8 + $0x4b0] sm:$0xff]
    %v4283 = vld [vmem:[#allocation8 + $0x4b8] sm:$0xff]
    %v4284 = vld [vmem:[#allocation8 + $0x4c0] sm:$0xff]
    %v4285 = vld [vmem:[#allocation8 + $0x4c8] sm:$0xff]
    %v4286 = vld [vmem:[#allocation8 + $0x4d0] sm:$0xff]
    %v4287 = vld [vmem:[#allocation8 + $0x4d8] sm:$0xff]
    %v4288 = vld [vmem:[#allocation8 + $0x4e0] sm:$0xff]
    %v4289 = vld [vmem:[#allocation8 + $0x4e8] sm:$0xff]
    %v4290 = vld [vmem:[#allocation8 + $0x4f0] sm:$0xff]
    %v4291 = vld [vmem:[#allocation8 + $0x4f8] sm:$0xff]
    %v4292 = vld [vmem:[#allocation8 + $0x500] sm:$0xff]
    %v4293 = vld [vmem:[#allocation8 + $0x508] sm:$0xff]
    %v4294 = vld [vmem:[#allocation8 + $0x510] sm:$0xff]
    %v4295 = vld [vmem:[#allocation8 + $0x518] sm:$0xff]
    %v4296 = vld [vmem:[#allocation8 + $0x520] sm:$0xff]
    %v4297 = vld [vmem:[#allocation8 + $0x528] sm:$0xff]
    %v4298 = vld [vmem:[#allocation8 + $0x530] sm:$0xff]
    %v4299 = vld [vmem:[#allocation8 + $0x538] sm:$0xff]
    %v4300 = vld [vmem:[#allocation8 + $0x540] sm:$0xff]
    %v4301 = vld [vmem:[#allocation8 + $0x548] sm:$0xff]
    %v4302 = vld [vmem:[#allocation8 + $0x550] sm:$0xff]
    %v4303 = vld [vmem:[#allocation8 + $0x558] sm:$0xff]
    %v4304 = vld [vmem:[#allocation8 + $0x560] sm:$0xff]
    %v4305 = vld [vmem:[#allocation8 + $0x568] sm:$0xff]
    %v4306 = vld [vmem:[#allocation8 + $0x570] sm:$0xff]
    %v4307 = vld [vmem:[#allocation8 + $0x578] sm:$0xff]
    %v4308 = vld [vmem:[#allocation8 + $0x580] sm:$0xff]
    %v4309 = vld [vmem:[#allocation8 + $0x588] sm:$0xff]
    %v4310 = vld [vmem:[#allocation8 + $0x590] sm:$0xff]
    %v4311 = vld [vmem:[#allocation8 + $0x598] sm:$0xff]
    %v4312 = vld [vmem:[#allocation8 + $0x5a0] sm:$0xff]
    %v4313 = vld [vmem:[#allocation8 + $0x5a8] sm:$0xff]
    %v4314 = vld [vmem:[#allocation8 + $0x5b0] sm:$0xff]
    %v4315 = vld [vmem:[#allocation8 + $0x5b8] sm:$0xff]
    %v4316 = vld [vmem:[#allocation8 + $0x5c0] sm:$0xff]
    %v4317 = vld [vmem:[#allocation8 + $0x5c8] sm:$0xff]
    %v4318 = vld [vmem:[#allocation8 + $0x5d0] sm:$0xff]
    %v4319 = vld [vmem:[#allocation8 + $0x5d8] sm:$0xff]
    %v4320 = vld [vmem:[#allocation8 + $0x5e0] sm:$0xff]
    %v4321 = vld [vmem:[#allocation8 + $0x5e8] sm:$0xff]
    %v4322 = vld [vmem:[#allocation8 + $0x5f0] sm:$0xff]
    %v4323 = vld [vmem:[#allocation8 + $0x5f8] sm:$0xff]
    %v4324 = vld [vmem:[#allocation8 + $0x600] sm:$0xff]
    %v4325 = vld [vmem:[#allocation8 + $0x608] sm:$0xff]
    %v4326 = vld [vmem:[#allocation8 + $0x610] sm:$0xff]
    %v4327 = vld [vmem:[#allocation8 + $0x618] sm:$0xff]
    %v4328 = vld [vmem:[#allocation8 + $0x620] sm:$0xff]
    %v4329 = vld [vmem:[#allocation8 + $0x628] sm:$0xff]
    %v4330 = vld [vmem:[#allocation8 + $0x630] sm:$0xff]
    %v4331 = vld [vmem:[#allocation8 + $0x638] sm:$0xff]
    %v4332 = vld [vmem:[#allocation8 + $0x640] sm:$0xff]
    %v4333 = vld [vmem:[#allocation8 + $0x648] sm:$0xff]
    %v4334 = vld [vmem:[#allocation8 + $0x650] sm:$0xff]
    %v4335 = vld [vmem:[#allocation8 + $0x658] sm:$0xff]
    %v4336 = vld [vmem:[#allocation8 + $0x660] sm:$0xff]
    %v4337 = vld [vmem:[#allocation8 + $0x668] sm:$0xff]
    %v4338 = vld [vmem:[#allocation8 + $0x670] sm:$0xff]
    %v4339 = vld [vmem:[#allocation8 + $0x678] sm:$0xff]
    %v4340 = vld [vmem:[#allocation8 + $0x680] sm:$0xff]
    %v4341 = vld [vmem:[#allocation8 + $0x688] sm:$0xff]
    %v4342 = vld [vmem:[#allocation8 + $0x690] sm:$0xff]
    %v4343 = vld [vmem:[#allocation8 + $0x698] sm:$0xff]
    %v4344 = vld [vmem:[#allocation8 + $0x6a0] sm:$0xff]
    %v4345 = vld [vmem:[#allocation8 + $0x6a8] sm:$0xff]
    %v4346 = vld [vmem:[#allocation8 + $0x6b0] sm:$0xff]
    %v4347 = vld [vmem:[#allocation8 + $0x6b8] sm:$0xff]
    %v4348 = vld [vmem:[#allocation8 + $0x6c0] sm:$0xff]
    %v4349 = vld [vmem:[#allocation8 + $0x6c8] sm:$0xff]
    %v4350 = vld [vmem:[#allocation8 + $0x6d0] sm:$0xff]
    %v4351 = vld [vmem:[#allocation8 + $0x6d8] sm:$0xff]
    %v4352 = vld [vmem:[#allocation8 + $0x6e0] sm:$0xff]
    %v4353 = vld [vmem:[#allocation8 + $0x6e8] sm:$0xff]
    %v4354 = vld [vmem:[#allocation8 + $0x6f0] sm:$0xff]
    %v4355 = vld [vmem:[#allocation8 + $0x6f8] sm:$0xff]
    %v4356 = vld [vmem:[#allocation8 + $0x700] sm:$0xff]
    %v4357 = vld [vmem:[#allocation8 + $0x708] sm:$0xff]
    %v4358 = vld [vmem:[#allocation8 + $0x710] sm:$0xff]
    %v4359 = vld [vmem:[#allocation8 + $0x718] sm:$0xff]
    %v4360 = vld [vmem:[#allocation8 + $0x720] sm:$0xff]
    %v4361 = vld [vmem:[#allocation8 + $0x728] sm:$0xff]
    %v4362 = vld [vmem:[#allocation8 + $0x730] sm:$0xff]
    %v4363 = vld [vmem:[#allocation8 + $0x738] sm:$0xff]
    %v4364 = vld [vmem:[#allocation8 + $0x740] sm:$0xff]
    %v4365 = vld [vmem:[#allocation8 + $0x748] sm:$0xff]
    %v4366 = vld [vmem:[#allocation8 + $0x750] sm:$0xff]
    %v4367 = vld [vmem:[#allocation8 + $0x758] sm:$0xff]
    %v4368 = vld [vmem:[#allocation8 + $0x760] sm:$0xff]
    %v4369 = vld [vmem:[#allocation8 + $0x768] sm:$0xff]
    %v4370 = vld [vmem:[#allocation8 + $0x770] sm:$0xff]
    %v4371 = vld [vmem:[#allocation8 + $0x778] sm:$0xff]
    %v4372 = vld [vmem:[#allocation8 + $0x780] sm:$0xff]
    %v4373 = vld [vmem:[#allocation8 + $0x788] sm:$0xff]
    %v4374 = vld [vmem:[#allocation8 + $0x790] sm:$0xff]
    %v4375 = vld [vmem:[#allocation8 + $0x798] sm:$0xff]
    %v4376 = vld [vmem:[#allocation8 + $0x7a0] sm:$0xff]
    %v4377 = vld [vmem:[#allocation8 + $0x7a8] sm:$0xff]
    %v4378 = vld [vmem:[#allocation8 + $0x7b0] sm:$0xff]
    %v4379 = vld [vmem:[#allocation8 + $0x7b8] sm:$0xff]
    %v4380 = vld [vmem:[#allocation8 + $0x7c0] sm:$0xff]
    %v4381 = vld [vmem:[#allocation8 + $0x7c8] sm:$0xff]
    %v4382 = vld [vmem:[#allocation8 + $0x7d0] sm:$0xff]
    %v4383 = vld [vmem:[#allocation8 + $0x7d8] sm:$0xff]
    %v4384 = vld [vmem:[#allocation8 + $0x7e0] sm:$0xff]
    %v4385 = vld [vmem:[#allocation8 + $0x7e8] sm:$0xff]
    %v4386 = vld [vmem:[#allocation8 + $0x7f0] sm:$0xff]
    %v4387 = vld [vmem:[#allocation8 + $0x7f8] sm:$0xff]
    %v4388 = vld [vmem:[#allocation10] sm:$0xf]
    %v4390 = vlaneseq
    %v4391 = vshrl.u32 %v4390, 7
    %v4392 = vsub.s32 0, %v4391
    %v4393 = vrot.slane %v4388, %v4392
    %v4394 = vlaneseq
    %v4395 = vshrl.u32 %v4394, 7
    %v4396 = vsub.s32 1, %v4395
    %v4397 = vrot.slane %v4388, %v4396
    %v4398 = vlaneseq
    %v4399 = vshrl.u32 %v4398, 7
    %v4400 = vsub.s32 2, %v4399
    %v4401 = vrot.slane %v4388, %v4400
    %v4402 = vlaneseq
    %v4403 = vshrl.u32 %v4402, 7
    %v4404 = vsub.s32 3, %v4403
    %v4405 = vrot.slane %v4388, %v4404
    %v4666 = vunpack.c.l.b16 %v4132
    %v4667 = vunpack.c.h.b16 %v4132
    %v4668 = vunpack.c.l.b16 %v4133
    %v4669 = vunpack.c.h.b16 %v4133
    %v4670 = vunpack.c.l.b16 %v4134
    %v4671 = vunpack.c.h.b16 %v4134
    %v4672 = vunpack.c.l.b16 %v4135
    %v4673 = vunpack.c.h.b16 %v4135
    %v4674 = vunpack.c.l.b16 %v4136
    %v4675 = vunpack.c.h.b16 %v4136
    %v4676 = vunpack.c.l.b16 %v4137
    %v4677 = vunpack.c.h.b16 %v4137
    %v4678 = vunpack.c.l.b16 %v4138
    %v4679 = vunpack.c.h.b16 %v4138
    %v4680 = vunpack.c.l.b16 %v4139
    %v4681 = vunpack.c.h.b16 %v4139
    %v4682 = vunpack.c.l.b16 %v4140
    %v4683 = vunpack.c.h.b16 %v4140
    %v4684 = vunpack.c.l.b16 %v4141
    %v4685 = vunpack.c.h.b16 %v4141
    %v4686 = vunpack.c.l.b16 %v4142
    %v4687 = vunpack.c.h.b16 %v4142
    %v4688 = vunpack.c.l.b16 %v4143
    %v4689 = vunpack.c.h.b16 %v4143
    %v4690 = vunpack.c.l.b16 %v4144
    %v4691 = vunpack.c.h.b16 %v4144
    %v4692 = vunpack.c.l.b16 %v4145
    %v4693 = vunpack.c.h.b16 %v4145
    %v4694 = vunpack.c.l.b16 %v4146
    %v4695 = vunpack.c.h.b16 %v4146
    %v4696 = vunpack.c.l.b16 %v4147
    %v4697 = vunpack.c.h.b16 %v4147
    %v4698 = vunpack.c.l.b16 %v4148
    %v4699 = vunpack.c.h.b16 %v4148
    %v4700 = vunpack.c.l.b16 %v4149
    %v4701 = vunpack.c.h.b16 %v4149
    %v4702 = vunpack.c.l.b16 %v4150
    %v4703 = vunpack.c.h.b16 %v4150
    %v4704 = vunpack.c.l.b16 %v4151
    %v4705 = vunpack.c.h.b16 %v4151
    %v4706 = vunpack.c.l.b16 %v4152
    %v4707 = vunpack.c.h.b16 %v4152
    %v4708 = vunpack.c.l.b16 %v4153
    %v4709 = vunpack.c.h.b16 %v4153
    %v4710 = vunpack.c.l.b16 %v4154
    %v4711 = vunpack.c.h.b16 %v4154
    %v4712 = vunpack.c.l.b16 %v4155
    %v4713 = vunpack.c.h.b16 %v4155
    %v4714 = vunpack.c.l.b16 %v4156
    %v4715 = vunpack.c.h.b16 %v4156
    %v4716 = vunpack.c.l.b16 %v4157
    %v4717 = vunpack.c.h.b16 %v4157
    %v4718 = vunpack.c.l.b16 %v4158
    %v4719 = vunpack.c.h.b16 %v4158
    %v4720 = vunpack.c.l.b16 %v4159
    %v4721 = vunpack.c.h.b16 %v4159
    %v4722 = vunpack.c.l.b16 %v4160
    %v4723 = vunpack.c.h.b16 %v4160
    %v4724 = vunpack.c.l.b16 %v4161
    %v4725 = vunpack.c.h.b16 %v4161
    %v4726 = vunpack.c.l.b16 %v4162
    %v4727 = vunpack.c.h.b16 %v4162
    %v4728 = vunpack.c.l.b16 %v4163
    %v4729 = vunpack.c.h.b16 %v4163
    %v4730 = vunpack.c.l.b16 %v4164
    %v4731 = vunpack.c.h.b16 %v4164
    %v4732 = vunpack.c.l.b16 %v4165
    %v4733 = vunpack.c.h.b16 %v4165
    %v4734 = vunpack.c.l.b16 %v4166
    %v4735 = vunpack.c.h.b16 %v4166
    %v4736 = vunpack.c.l.b16 %v4167
    %v4737 = vunpack.c.h.b16 %v4167
    %v4738 = vunpack.c.l.b16 %v4168
    %v4739 = vunpack.c.h.b16 %v4168
    %v4740 = vunpack.c.l.b16 %v4169
    %v4741 = vunpack.c.h.b16 %v4169
    %v4742 = vunpack.c.l.b16 %v4170
    %v4743 = vunpack.c.h.b16 %v4170
    %v4744 = vunpack.c.l.b16 %v4171
    %v4745 = vunpack.c.h.b16 %v4171
    %v4746 = vunpack.c.l.b16 %v4172
    %v4747 = vunpack.c.h.b16 %v4172
    %v4748 = vunpack.c.l.b16 %v4173
    %v4749 = vunpack.c.h.b16 %v4173
    %v4750 = vunpack.c.l.b16 %v4174
    %v4751 = vunpack.c.h.b16 %v4174
    %v4752 = vunpack.c.l.b16 %v4175
    %v4753 = vunpack.c.h.b16 %v4175
    %v4754 = vunpack.c.l.b16 %v4176
    %v4755 = vunpack.c.h.b16 %v4176
    %v4756 = vunpack.c.l.b16 %v4177
    %v4757 = vunpack.c.h.b16 %v4177
    %v4758 = vunpack.c.l.b16 %v4178
    %v4759 = vunpack.c.h.b16 %v4178
    %v4760 = vunpack.c.l.b16 %v4179
    %v4761 = vunpack.c.h.b16 %v4179
    %v4762 = vunpack.c.l.b16 %v4180
    %v4763 = vunpack.c.h.b16 %v4180
    %v4764 = vunpack.c.l.b16 %v4181
    %v4765 = vunpack.c.h.b16 %v4181
    %v4766 = vunpack.c.l.b16 %v4182
    %v4767 = vunpack.c.h.b16 %v4182
    %v4768 = vunpack.c.l.b16 %v4183
    %v4769 = vunpack.c.h.b16 %v4183
    %v4770 = vunpack.c.l.b16 %v4184
    %v4771 = vunpack.c.h.b16 %v4184
    %v4772 = vunpack.c.l.b16 %v4185
    %v4773 = vunpack.c.h.b16 %v4185
    %v4774 = vunpack.c.l.b16 %v4186
    %v4775 = vunpack.c.h.b16 %v4186
    %v4776 = vunpack.c.l.b16 %v4187
    %v4777 = vunpack.c.h.b16 %v4187
    %v4778 = vunpack.c.l.b16 %v4188
    %v4779 = vunpack.c.h.b16 %v4188
    %v4780 = vunpack.c.l.b16 %v4189
    %v4781 = vunpack.c.h.b16 %v4189
    %v4782 = vunpack.c.l.b16 %v4190
    %v4783 = vunpack.c.h.b16 %v4190
    %v4784 = vunpack.c.l.b16 %v4191
    %v4785 = vunpack.c.h.b16 %v4191
    %v4786 = vunpack.c.l.b16 %v4192
    %v4787 = vunpack.c.h.b16 %v4192
    %v4788 = vunpack.c.l.b16 %v4193
    %v4789 = vunpack.c.h.b16 %v4193
    %v4790 = vunpack.c.l.b16 %v4194
    %v4791 = vunpack.c.h.b16 %v4194
    %v4792 = vunpack.c.l.b16 %v4195
    %v4793 = vunpack.c.h.b16 %v4195
    %v4794 = vunpack.c.l.b16 %v4196
    %v4795 = vunpack.c.h.b16 %v4196
    %v4796 = vunpack.c.l.b16 %v4197
    %v4797 = vunpack.c.h.b16 %v4197
    %v4798 = vunpack.c.l.b16 %v4198
    %v4799 = vunpack.c.h.b16 %v4198
    %v4800 = vunpack.c.l.b16 %v4199
    %v4801 = vunpack.c.h.b16 %v4199
    %v4802 = vunpack.c.l.b16 %v4200
    %v4803 = vunpack.c.h.b16 %v4200
    %v4804 = vunpack.c.l.b16 %v4201
    %v4805 = vunpack.c.h.b16 %v4201
    %v4806 = vunpack.c.l.b16 %v4202
    %v4807 = vunpack.c.h.b16 %v4202
    %v4808 = vunpack.c.l.b16 %v4203
    %v4809 = vunpack.c.h.b16 %v4203
    %v4810 = vunpack.c.l.b16 %v4204
    %v4811 = vunpack.c.h.b16 %v4204
    %v4812 = vunpack.c.l.b16 %v4205
    %v4813 = vunpack.c.h.b16 %v4205
    %v4814 = vunpack.c.l.b16 %v4206
    %v4815 = vunpack.c.h.b16 %v4206
    %v4816 = vunpack.c.l.b16 %v4207
    %v4817 = vunpack.c.h.b16 %v4207
    %v4818 = vunpack.c.l.b16 %v4208
    %v4819 = vunpack.c.h.b16 %v4208
    %v4820 = vunpack.c.l.b16 %v4209
    %v4821 = vunpack.c.h.b16 %v4209
    %v4822 = vunpack.c.l.b16 %v4210
    %v4823 = vunpack.c.h.b16 %v4210
    %v4824 = vunpack.c.l.b16 %v4211
    %v4825 = vunpack.c.h.b16 %v4211
    %v4826 = vunpack.c.l.b16 %v4212
    %v4827 = vunpack.c.h.b16 %v4212
    %v4828 = vunpack.c.l.b16 %v4213
    %v4829 = vunpack.c.h.b16 %v4213
    %v4830 = vunpack.c.l.b16 %v4214
    %v4831 = vunpack.c.h.b16 %v4214
    %v4832 = vunpack.c.l.b16 %v4215
    %v4833 = vunpack.c.h.b16 %v4215
    %v4834 = vunpack.c.l.b16 %v4216
    %v4835 = vunpack.c.h.b16 %v4216
    %v4836 = vunpack.c.l.b16 %v4217
    %v4837 = vunpack.c.h.b16 %v4217
    %v4838 = vunpack.c.l.b16 %v4218
    %v4839 = vunpack.c.h.b16 %v4218
    %v4840 = vunpack.c.l.b16 %v4219
    %v4841 = vunpack.c.h.b16 %v4219
    %v4842 = vunpack.c.l.b16 %v4220
    %v4843 = vunpack.c.h.b16 %v4220
    %v4844 = vunpack.c.l.b16 %v4221
    %v4845 = vunpack.c.h.b16 %v4221
    %v4846 = vunpack.c.l.b16 %v4222
    %v4847 = vunpack.c.h.b16 %v4222
    %v4848 = vunpack.c.l.b16 %v4223
    %v4849 = vunpack.c.h.b16 %v4223
    %v4850 = vunpack.c.l.b16 %v4224
    %v4851 = vunpack.c.h.b16 %v4224
    %v4852 = vunpack.c.l.b16 %v4225
    %v4853 = vunpack.c.h.b16 %v4225
    %v4854 = vunpack.c.l.b16 %v4226
    %v4855 = vunpack.c.h.b16 %v4226
    %v4856 = vunpack.c.l.b16 %v4227
    %v4857 = vunpack.c.h.b16 %v4227
    %v4858 = vunpack.c.l.b16 %v4228
    %v4859 = vunpack.c.h.b16 %v4228
    %v4860 = vunpack.c.l.b16 %v4229
    %v4861 = vunpack.c.h.b16 %v4229
    %v4862 = vunpack.c.l.b16 %v4230
    %v4863 = vunpack.c.h.b16 %v4230
    %v4864 = vunpack.c.l.b16 %v4231
    %v4865 = vunpack.c.h.b16 %v4231
    %v4866 = vunpack.c.l.b16 %v4232
    %v4867 = vunpack.c.h.b16 %v4232
    %v4868 = vunpack.c.l.b16 %v4233
    %v4869 = vunpack.c.h.b16 %v4233
    %v4870 = vunpack.c.l.b16 %v4234
    %v4871 = vunpack.c.h.b16 %v4234
    %v4872 = vunpack.c.l.b16 %v4235
    %v4873 = vunpack.c.h.b16 %v4235
    %v4874 = vunpack.c.l.b16 %v4236
    %v4875 = vunpack.c.h.b16 %v4236
    %v4876 = vunpack.c.l.b16 %v4237
    %v4877 = vunpack.c.h.b16 %v4237
    %v4878 = vunpack.c.l.b16 %v4238
    %v4879 = vunpack.c.h.b16 %v4238
    %v4880 = vunpack.c.l.b16 %v4239
    %v4881 = vunpack.c.h.b16 %v4239
    %v4882 = vunpack.c.l.b16 %v4240
    %v4883 = vunpack.c.h.b16 %v4240
    %v4884 = vunpack.c.l.b16 %v4241
    %v4885 = vunpack.c.h.b16 %v4241
    %v4886 = vunpack.c.l.b16 %v4242
    %v4887 = vunpack.c.h.b16 %v4242
    %v4888 = vunpack.c.l.b16 %v4243
    %v4889 = vunpack.c.h.b16 %v4243
    %v4890 = vunpack.c.l.b16 %v4244
    %v4891 = vunpack.c.h.b16 %v4244
    %v4892 = vunpack.c.l.b16 %v4245
    %v4893 = vunpack.c.h.b16 %v4245
    %v4894 = vunpack.c.l.b16 %v4246
    %v4895 = vunpack.c.h.b16 %v4246
    %v4896 = vunpack.c.l.b16 %v4247
    %v4897 = vunpack.c.h.b16 %v4247
    %v4898 = vunpack.c.l.b16 %v4248
    %v4899 = vunpack.c.h.b16 %v4248
    %v4900 = vunpack.c.l.b16 %v4249
    %v4901 = vunpack.c.h.b16 %v4249
    %v4902 = vunpack.c.l.b16 %v4250
    %v4903 = vunpack.c.h.b16 %v4250
    %v4904 = vunpack.c.l.b16 %v4251
    %v4905 = vunpack.c.h.b16 %v4251
    %v4906 = vunpack.c.l.b16 %v4252
    %v4907 = vunpack.c.h.b16 %v4252
    %v4908 = vunpack.c.l.b16 %v4253
    %v4909 = vunpack.c.h.b16 %v4253
    %v4910 = vunpack.c.l.b16 %v4254
    %v4911 = vunpack.c.h.b16 %v4254
    %v4912 = vunpack.c.l.b16 %v4255
    %v4913 = vunpack.c.h.b16 %v4255
    %v4914 = vunpack.c.l.b16 %v4256
    %v4915 = vunpack.c.h.b16 %v4256
    %v4916 = vunpack.c.l.b16 %v4257
    %v4917 = vunpack.c.h.b16 %v4257
    %v4918 = vunpack.c.l.b16 %v4258
    %v4919 = vunpack.c.h.b16 %v4258
    %v4920 = vunpack.c.l.b16 %v4259
    %v4921 = vunpack.c.h.b16 %v4259
    %v4922 = vunpack.c.l.b16 %v4260
    %v4923 = vunpack.c.h.b16 %v4260
    %v4924 = vunpack.c.l.b16 %v4261
    %v4925 = vunpack.c.h.b16 %v4261
    %v4926 = vunpack.c.l.b16 %v4262
    %v4927 = vunpack.c.h.b16 %v4262
    %v4928 = vunpack.c.l.b16 %v4263
    %v4929 = vunpack.c.h.b16 %v4263
    %v4930 = vunpack.c.l.b16 %v4264
    %v4931 = vunpack.c.h.b16 %v4264
    %v4932 = vunpack.c.l.b16 %v4265
    %v4933 = vunpack.c.h.b16 %v4265
    %v4934 = vunpack.c.l.b16 %v4266
    %v4935 = vunpack.c.h.b16 %v4266
    %v4936 = vunpack.c.l.b16 %v4267
    %v4937 = vunpack.c.h.b16 %v4267
    %v4938 = vunpack.c.l.b16 %v4268
    %v4939 = vunpack.c.h.b16 %v4268
    %v4940 = vunpack.c.l.b16 %v4269
    %v4941 = vunpack.c.h.b16 %v4269
    %v4942 = vunpack.c.l.b16 %v4270
    %v4943 = vunpack.c.h.b16 %v4270
    %v4944 = vunpack.c.l.b16 %v4271
    %v4945 = vunpack.c.h.b16 %v4271
    %v4946 = vunpack.c.l.b16 %v4272
    %v4947 = vunpack.c.h.b16 %v4272
    %v4948 = vunpack.c.l.b16 %v4273
    %v4949 = vunpack.c.h.b16 %v4273
    %v4950 = vunpack.c.l.b16 %v4274
    %v4951 = vunpack.c.h.b16 %v4274
    %v4952 = vunpack.c.l.b16 %v4275
    %v4953 = vunpack.c.h.b16 %v4275
    %v4954 = vunpack.c.l.b16 %v4276
    %v4955 = vunpack.c.h.b16 %v4276
    %v4956 = vunpack.c.l.b16 %v4277
    %v4957 = vunpack.c.h.b16 %v4277
    %v4958 = vunpack.c.l.b16 %v4278
    %v4959 = vunpack.c.h.b16 %v4278
    %v4960 = vunpack.c.l.b16 %v4279
    %v4961 = vunpack.c.h.b16 %v4279
    %v4962 = vunpack.c.l.b16 %v4280
    %v4963 = vunpack.c.h.b16 %v4280
    %v4964 = vunpack.c.l.b16 %v4281
    %v4965 = vunpack.c.h.b16 %v4281
    %v4966 = vunpack.c.l.b16 %v4282
    %v4967 = vunpack.c.h.b16 %v4282
    %v4968 = vunpack.c.l.b16 %v4283
    %v4969 = vunpack.c.h.b16 %v4283
    %v4970 = vunpack.c.l.b16 %v4284
    %v4971 = vunpack.c.h.b16 %v4284
    %v4972 = vunpack.c.l.b16 %v4285
    %v4973 = vunpack.c.h.b16 %v4285
    %v4974 = vunpack.c.l.b16 %v4286
    %v4975 = vunpack.c.h.b16 %v4286
    %v4976 = vunpack.c.l.b16 %v4287
    %v4977 = vunpack.c.h.b16 %v4287
    %v4978 = vunpack.c.l.b16 %v4288
    %v4979 = vunpack.c.h.b16 %v4288
    %v4980 = vunpack.c.l.b16 %v4289
    %v4981 = vunpack.c.h.b16 %v4289
    %v4982 = vunpack.c.l.b16 %v4290
    %v4983 = vunpack.c.h.b16 %v4290
    %v4984 = vunpack.c.l.b16 %v4291
    %v4985 = vunpack.c.h.b16 %v4291
    %v4986 = vunpack.c.l.b16 %v4292
    %v4987 = vunpack.c.h.b16 %v4292
    %v4988 = vunpack.c.l.b16 %v4293
    %v4989 = vunpack.c.h.b16 %v4293
    %v4990 = vunpack.c.l.b16 %v4294
    %v4991 = vunpack.c.h.b16 %v4294
    %v4992 = vunpack.c.l.b16 %v4295
    %v4993 = vunpack.c.h.b16 %v4295
    %v4994 = vunpack.c.l.b16 %v4296
    %v4995 = vunpack.c.h.b16 %v4296
    %v4996 = vunpack.c.l.b16 %v4297
    %v4997 = vunpack.c.h.b16 %v4297
    %v4998 = vunpack.c.l.b16 %v4298
    %v4999 = vunpack.c.h.b16 %v4298
    %v5000 = vunpack.c.l.b16 %v4299
    %v5001 = vunpack.c.h.b16 %v4299
    %v5002 = vunpack.c.l.b16 %v4300
    %v5003 = vunpack.c.h.b16 %v4300
    %v5004 = vunpack.c.l.b16 %v4301
    %v5005 = vunpack.c.h.b16 %v4301
    %v5006 = vunpack.c.l.b16 %v4302
    %v5007 = vunpack.c.h.b16 %v4302
    %v5008 = vunpack.c.l.b16 %v4303
    %v5009 = vunpack.c.h.b16 %v4303
    %v5010 = vunpack.c.l.b16 %v4304
    %v5011 = vunpack.c.h.b16 %v4304
    %v5012 = vunpack.c.l.b16 %v4305
    %v5013 = vunpack.c.h.b16 %v4305
    %v5014 = vunpack.c.l.b16 %v4306
    %v5015 = vunpack.c.h.b16 %v4306
    %v5016 = vunpack.c.l.b16 %v4307
    %v5017 = vunpack.c.h.b16 %v4307
    %v5018 = vunpack.c.l.b16 %v4308
    %v5019 = vunpack.c.h.b16 %v4308
    %v5020 = vunpack.c.l.b16 %v4309
    %v5021 = vunpack.c.h.b16 %v4309
    %v5022 = vunpack.c.l.b16 %v4310
    %v5023 = vunpack.c.h.b16 %v4310
    %v5024 = vunpack.c.l.b16 %v4311
    %v5025 = vunpack.c.h.b16 %v4311
    %v5026 = vunpack.c.l.b16 %v4312
    %v5027 = vunpack.c.h.b16 %v4312
    %v5028 = vunpack.c.l.b16 %v4313
    %v5029 = vunpack.c.h.b16 %v4313
    %v5030 = vunpack.c.l.b16 %v4314
    %v5031 = vunpack.c.h.b16 %v4314
    %v5032 = vunpack.c.l.b16 %v4315
    %v5033 = vunpack.c.h.b16 %v4315
    %v5034 = vunpack.c.l.b16 %v4316
    %v5035 = vunpack.c.h.b16 %v4316
    %v5036 = vunpack.c.l.b16 %v4317
    %v5037 = vunpack.c.h.b16 %v4317
    %v5038 = vunpack.c.l.b16 %v4318
    %v5039 = vunpack.c.h.b16 %v4318
    %v5040 = vunpack.c.l.b16 %v4319
    %v5041 = vunpack.c.h.b16 %v4319
    %v5042 = vunpack.c.l.b16 %v4320
    %v5043 = vunpack.c.h.b16 %v4320
    %v5044 = vunpack.c.l.b16 %v4321
    %v5045 = vunpack.c.h.b16 %v4321
    %v5046 = vunpack.c.l.b16 %v4322
    %v5047 = vunpack.c.h.b16 %v4322
    %v5048 = vunpack.c.l.b16 %v4323
    %v5049 = vunpack.c.h.b16 %v4323
    %v5050 = vunpack.c.l.b16 %v4324
    %v5051 = vunpack.c.h.b16 %v4324
    %v5052 = vunpack.c.l.b16 %v4325
    %v5053 = vunpack.c.h.b16 %v4325
    %v5054 = vunpack.c.l.b16 %v4326
    %v5055 = vunpack.c.h.b16 %v4326
    %v5056 = vunpack.c.l.b16 %v4327
    %v5057 = vunpack.c.h.b16 %v4327
    %v5058 = vunpack.c.l.b16 %v4328
    %v5059 = vunpack.c.h.b16 %v4328
    %v5060 = vunpack.c.l.b16 %v4329
    %v5061 = vunpack.c.h.b16 %v4329
    %v5062 = vunpack.c.l.b16 %v4330
    %v5063 = vunpack.c.h.b16 %v4330
    %v5064 = vunpack.c.l.b16 %v4331
    %v5065 = vunpack.c.h.b16 %v4331
    %v5066 = vunpack.c.l.b16 %v4332
    %v5067 = vunpack.c.h.b16 %v4332
    %v5068 = vunpack.c.l.b16 %v4333
    %v5069 = vunpack.c.h.b16 %v4333
    %v5070 = vunpack.c.l.b16 %v4334
    %v5071 = vunpack.c.h.b16 %v4334
    %v5072 = vunpack.c.l.b16 %v4335
    %v5073 = vunpack.c.h.b16 %v4335
    %v5074 = vunpack.c.l.b16 %v4336
    %v5075 = vunpack.c.h.b16 %v4336
    %v5076 = vunpack.c.l.b16 %v4337
    %v5077 = vunpack.c.h.b16 %v4337
    %v5078 = vunpack.c.l.b16 %v4338
    %v5079 = vunpack.c.h.b16 %v4338
    %v5080 = vunpack.c.l.b16 %v4339
    %v5081 = vunpack.c.h.b16 %v4339
    %v5082 = vunpack.c.l.b16 %v4340
    %v5083 = vunpack.c.h.b16 %v4340
    %v5084 = vunpack.c.l.b16 %v4341
    %v5085 = vunpack.c.h.b16 %v4341
    %v5086 = vunpack.c.l.b16 %v4342
    %v5087 = vunpack.c.h.b16 %v4342
    %v5088 = vunpack.c.l.b16 %v4343
    %v5089 = vunpack.c.h.b16 %v4343
    %v5090 = vunpack.c.l.b16 %v4344
    %v5091 = vunpack.c.h.b16 %v4344
    %v5092 = vunpack.c.l.b16 %v4345
    %v5093 = vunpack.c.h.b16 %v4345
    %v5094 = vunpack.c.l.b16 %v4346
    %v5095 = vunpack.c.h.b16 %v4346
    %v5096 = vunpack.c.l.b16 %v4347
    %v5097 = vunpack.c.h.b16 %v4347
    %v5098 = vunpack.c.l.b16 %v4348
    %v5099 = vunpack.c.h.b16 %v4348
    %v5100 = vunpack.c.l.b16 %v4349
    %v5101 = vunpack.c.h.b16 %v4349
    %v5102 = vunpack.c.l.b16 %v4350
    %v5103 = vunpack.c.h.b16 %v4350
    %v5104 = vunpack.c.l.b16 %v4351
    %v5105 = vunpack.c.h.b16 %v4351
    %v5106 = vunpack.c.l.b16 %v4352
    %v5107 = vunpack.c.h.b16 %v4352
    %v5108 = vunpack.c.l.b16 %v4353
    %v5109 = vunpack.c.h.b16 %v4353
    %v5110 = vunpack.c.l.b16 %v4354
    %v5111 = vunpack.c.h.b16 %v4354
    %v5112 = vunpack.c.l.b16 %v4355
    %v5113 = vunpack.c.h.b16 %v4355
    %v5114 = vunpack.c.l.b16 %v4356
    %v5115 = vunpack.c.h.b16 %v4356
    %v5116 = vunpack.c.l.b16 %v4357
    %v5117 = vunpack.c.h.b16 %v4357
    %v5118 = vunpack.c.l.b16 %v4358
    %v5119 = vunpack.c.h.b16 %v4358
    %v5120 = vunpack.c.l.b16 %v4359
    %v5121 = vunpack.c.h.b16 %v4359
    %v5122 = vunpack.c.l.b16 %v4360
    %v5123 = vunpack.c.h.b16 %v4360
    %v5124 = vunpack.c.l.b16 %v4361
    %v5125 = vunpack.c.h.b16 %v4361
    %v5126 = vunpack.c.l.b16 %v4362
    %v5127 = vunpack.c.h.b16 %v4362
    %v5128 = vunpack.c.l.b16 %v4363
    %v5129 = vunpack.c.h.b16 %v4363
    %v5130 = vunpack.c.l.b16 %v4364
    %v5131 = vunpack.c.h.b16 %v4364
    %v5132 = vunpack.c.l.b16 %v4365
    %v5133 = vunpack.c.h.b16 %v4365
    %v5134 = vunpack.c.l.b16 %v4366
    %v5135 = vunpack.c.h.b16 %v4366
    %v5136 = vunpack.c.l.b16 %v4367
    %v5137 = vunpack.c.h.b16 %v4367
    %v5138 = vunpack.c.l.b16 %v4368
    %v5139 = vunpack.c.h.b16 %v4368
    %v5140 = vunpack.c.l.b16 %v4369
    %v5141 = vunpack.c.h.b16 %v4369
    %v5142 = vunpack.c.l.b16 %v4370
    %v5143 = vunpack.c.h.b16 %v4370
    %v5144 = vunpack.c.l.b16 %v4371
    %v5145 = vunpack.c.h.b16 %v4371
    %v5146 = vunpack.c.l.b16 %v4372
    %v5147 = vunpack.c.h.b16 %v4372
    %v5148 = vunpack.c.l.b16 %v4373
    %v5149 = vunpack.c.h.b16 %v4373
    %v5150 = vunpack.c.l.b16 %v4374
    %v5151 = vunpack.c.h.b16 %v4374
    %v5152 = vunpack.c.l.b16 %v4375
    %v5153 = vunpack.c.h.b16 %v4375
    %v5154 = vunpack.c.l.b16 %v4376
    %v5155 = vunpack.c.h.b16 %v4376
    %v5156 = vunpack.c.l.b16 %v4377
    %v5157 = vunpack.c.h.b16 %v4377
    %v5158 = vunpack.c.l.b16 %v4378
    %v5159 = vunpack.c.h.b16 %v4378
    %v5160 = vunpack.c.l.b16 %v4379
    %v5161 = vunpack.c.h.b16 %v4379
    %v5162 = vunpack.c.l.b16 %v4380
    %v5163 = vunpack.c.h.b16 %v4380
    %v5164 = vunpack.c.l.b16 %v4381
    %v5165 = vunpack.c.h.b16 %v4381
    %v5166 = vunpack.c.l.b16 %v4382
    %v5167 = vunpack.c.h.b16 %v4382
    %v5168 = vunpack.c.l.b16 %v4383
    %v5169 = vunpack.c.h.b16 %v4383
    %v5170 = vunpack.c.l.b16 %v4384
    %v5171 = vunpack.c.h.b16 %v4384
    %v5172 = vunpack.c.l.b16 %v4385
    %v5173 = vunpack.c.h.b16 %v4385
    %v5174 = vunpack.c.l.b16 %v4386
    %v5175 = vunpack.c.h.b16 %v4386
    %v5176 = vunpack.c.l.b16 %v4387
    %v5177 = vunpack.c.h.b16 %v4387
    %v5178 = vpack.c.b16 %v4670, %v4666
    %v5179 = vpack.c.b16 %v4671, %v4667
    %v5180 = vpack.c.b16 %v4672, %v4668
    %v5181 = vpack.c.b16 %v4673, %v4669
    %v5182 = vpack.c.b16 %v4678, %v4674
    %v5183 = vpack.c.b16 %v4679, %v4675
    %v5184 = vpack.c.b16 %v4680, %v4676
    %v5185 = vpack.c.b16 %v4681, %v4677
    %v5186 = vpack.c.b16 %v4686, %v4682
    %v5187 = vpack.c.b16 %v4687, %v4683
    %v5188 = vpack.c.b16 %v4688, %v4684
    %v5189 = vpack.c.b16 %v4689, %v4685
    %v5190 = vpack.c.b16 %v4694, %v4690
    %v5191 = vpack.c.b16 %v4695, %v4691
    %v5192 = vpack.c.b16 %v4696, %v4692
    %v5193 = vpack.c.b16 %v4697, %v4693
    %v5194 = vpack.c.b16 %v4702, %v4698
    %v5195 = vpack.c.b16 %v4703, %v4699
    %v5196 = vpack.c.b16 %v4704, %v4700
    %v5197 = vpack.c.b16 %v4705, %v4701
    %v5198 = vpack.c.b16 %v4710, %v4706
    %v5199 = vpack.c.b16 %v4711, %v4707
    %v5200 = vpack.c.b16 %v4712, %v4708
    %v5201 = vpack.c.b16 %v4713, %v4709
    %v5202 = vpack.c.b16 %v4718, %v4714
    %v5203 = vpack.c.b16 %v4719, %v4715
    %v5204 = vpack.c.b16 %v4720, %v4716
    %v5205 = vpack.c.b16 %v4721, %v4717
    %v5206 = vpack.c.b16 %v4726, %v4722
    %v5207 = vpack.c.b16 %v4727, %v4723
    %v5208 = vpack.c.b16 %v4728, %v4724
    %v5209 = vpack.c.b16 %v4729, %v4725
    %v5210 = vpack.c.b16 %v4734, %v4730
    %v5211 = vpack.c.b16 %v4735, %v4731
    %v5212 = vpack.c.b16 %v4736, %v4732
    %v5213 = vpack.c.b16 %v4737, %v4733
    %v5214 = vpack.c.b16 %v4742, %v4738
    %v5215 = vpack.c.b16 %v4743, %v4739
    %v5216 = vpack.c.b16 %v4744, %v4740
    %v5217 = vpack.c.b16 %v4745, %v4741
    %v5218 = vpack.c.b16 %v4750, %v4746
    %v5219 = vpack.c.b16 %v4751, %v4747
    %v5220 = vpack.c.b16 %v4752, %v4748
    %v5221 = vpack.c.b16 %v4753, %v4749
    %v5222 = vpack.c.b16 %v4758, %v4754
    %v5223 = vpack.c.b16 %v4759, %v4755
    %v5224 = vpack.c.b16 %v4760, %v4756
    %v5225 = vpack.c.b16 %v4761, %v4757
    %v5226 = vpack.c.b16 %v4766, %v4762
    %v5227 = vpack.c.b16 %v4767, %v4763
    %v5228 = vpack.c.b16 %v4768, %v4764
    %v5229 = vpack.c.b16 %v4769, %v4765
    %v5230 = vpack.c.b16 %v4774, %v4770
    %v5231 = vpack.c.b16 %v4775, %v4771
    %v5232 = vpack.c.b16 %v4776, %v4772
    %v5233 = vpack.c.b16 %v4777, %v4773
    %v5234 = vpack.c.b16 %v4782, %v4778
    %v5235 = vpack.c.b16 %v4783, %v4779
    %v5236 = vpack.c.b16 %v4784, %v4780
    %v5237 = vpack.c.b16 %v4785, %v4781
    %v5238 = vpack.c.b16 %v4790, %v4786
    %v5239 = vpack.c.b16 %v4791, %v4787
    %v5240 = vpack.c.b16 %v4792, %v4788
    %v5241 = vpack.c.b16 %v4793, %v4789
    %v5242 = vpack.c.b16 %v4798, %v4794
    %v5243 = vpack.c.b16 %v4799, %v4795
    %v5244 = vpack.c.b16 %v4800, %v4796
    %v5245 = vpack.c.b16 %v4801, %v4797
    %v5246 = vpack.c.b16 %v4806, %v4802
    %v5247 = vpack.c.b16 %v4807, %v4803
    %v5248 = vpack.c.b16 %v4808, %v4804
    %v5249 = vpack.c.b16 %v4809, %v4805
    %v5250 = vpack.c.b16 %v4814, %v4810
    %v5251 = vpack.c.b16 %v4815, %v4811
    %v5252 = vpack.c.b16 %v4816, %v4812
    %v5253 = vpack.c.b16 %v4817, %v4813
    %v5254 = vpack.c.b16 %v4822, %v4818
    %v5255 = vpack.c.b16 %v4823, %v4819
    %v5256 = vpack.c.b16 %v4824, %v4820
    %v5257 = vpack.c.b16 %v4825, %v4821
    %v5258 = vpack.c.b16 %v4830, %v4826
    %v5259 = vpack.c.b16 %v4831, %v4827
    %v5260 = vpack.c.b16 %v4832, %v4828
    %v5261 = vpack.c.b16 %v4833, %v4829
    %v5262 = vpack.c.b16 %v4838, %v4834
    %v5263 = vpack.c.b16 %v4839, %v4835
    %v5264 = vpack.c.b16 %v4840, %v4836
    %v5265 = vpack.c.b16 %v4841, %v4837
    %v5266 = vpack.c.b16 %v4846, %v4842
    %v5267 = vpack.c.b16 %v4847, %v4843
    %v5268 = vpack.c.b16 %v4848, %v4844
    %v5269 = vpack.c.b16 %v4849, %v4845
    %v5270 = vpack.c.b16 %v4854, %v4850
    %v5271 = vpack.c.b16 %v4855, %v4851
    %v5272 = vpack.c.b16 %v4856, %v4852
    %v5273 = vpack.c.b16 %v4857, %v4853
    %v5274 = vpack.c.b16 %v4862, %v4858
    %v5275 = vpack.c.b16 %v4863, %v4859
    %v5276 = vpack.c.b16 %v4864, %v4860
    %v5277 = vpack.c.b16 %v4865, %v4861
    %v5278 = vpack.c.b16 %v4870, %v4866
    %v5279 = vpack.c.b16 %v4871, %v4867
    %v5280 = vpack.c.b16 %v4872, %v4868
    %v5281 = vpack.c.b16 %v4873, %v4869
    %v5282 = vpack.c.b16 %v4878, %v4874
    %v5283 = vpack.c.b16 %v4879, %v4875
    %v5284 = vpack.c.b16 %v4880, %v4876
    %v5285 = vpack.c.b16 %v4881, %v4877
    %v5286 = vpack.c.b16 %v4886, %v4882
    %v5287 = vpack.c.b16 %v4887, %v4883
    %v5288 = vpack.c.b16 %v4888, %v4884
    %v5289 = vpack.c.b16 %v4889, %v4885
    %v5290 = vpack.c.b16 %v4894, %v4890
    %v5291 = vpack.c.b16 %v4895, %v4891
    %v5292 = vpack.c.b16 %v4896, %v4892
    %v5293 = vpack.c.b16 %v4897, %v4893
    %v5294 = vpack.c.b16 %v4902, %v4898
    %v5295 = vpack.c.b16 %v4903, %v4899
    %v5296 = vpack.c.b16 %v4904, %v4900
    %v5297 = vpack.c.b16 %v4905, %v4901
    %v5298 = vpack.c.b16 %v4910, %v4906
    %v5299 = vpack.c.b16 %v4911, %v4907
    %v5300 = vpack.c.b16 %v4912, %v4908
    %v5301 = vpack.c.b16 %v4913, %v4909
    %v5302 = vpack.c.b16 %v4918, %v4914
    %v5303 = vpack.c.b16 %v4919, %v4915
    %v5304 = vpack.c.b16 %v4920, %v4916
    %v5305 = vpack.c.b16 %v4921, %v4917
    %v5306 = vpack.c.b16 %v4926, %v4922
    %v5307 = vpack.c.b16 %v4927, %v4923
    %v5308 = vpack.c.b16 %v4928, %v4924
    %v5309 = vpack.c.b16 %v4929, %v4925
    %v5310 = vpack.c.b16 %v4934, %v4930
    %v5311 = vpack.c.b16 %v4935, %v4931
    %v5312 = vpack.c.b16 %v4936, %v4932
    %v5313 = vpack.c.b16 %v4937, %v4933
    %v5314 = vpack.c.b16 %v4942, %v4938
    %v5315 = vpack.c.b16 %v4943, %v4939
    %v5316 = vpack.c.b16 %v4944, %v4940
    %v5317 = vpack.c.b16 %v4945, %v4941
    %v5318 = vpack.c.b16 %v4950, %v4946
    %v5319 = vpack.c.b16 %v4951, %v4947
    %v5320 = vpack.c.b16 %v4952, %v4948
    %v5321 = vpack.c.b16 %v4953, %v4949
    %v5322 = vpack.c.b16 %v4958, %v4954
    %v5323 = vpack.c.b16 %v4959, %v4955
    %v5324 = vpack.c.b16 %v4960, %v4956
    %v5325 = vpack.c.b16 %v4961, %v4957
    %v5326 = vpack.c.b16 %v4966, %v4962
    %v5327 = vpack.c.b16 %v4967, %v4963
    %v5328 = vpack.c.b16 %v4968, %v4964
    %v5329 = vpack.c.b16 %v4969, %v4965
    %v5330 = vpack.c.b16 %v4974, %v4970
    %v5331 = vpack.c.b16 %v4975, %v4971
    %v5332 = vpack.c.b16 %v4976, %v4972
    %v5333 = vpack.c.b16 %v4977, %v4973
    %v5334 = vpack.c.b16 %v4982, %v4978
    %v5335 = vpack.c.b16 %v4983, %v4979
    %v5336 = vpack.c.b16 %v4984, %v4980
    %v5337 = vpack.c.b16 %v4985, %v4981
    %v5338 = vpack.c.b16 %v4990, %v4986
    %v5339 = vpack.c.b16 %v4991, %v4987
    %v5340 = vpack.c.b16 %v4992, %v4988
    %v5341 = vpack.c.b16 %v4993, %v4989
    %v5342 = vpack.c.b16 %v4998, %v4994
    %v5343 = vpack.c.b16 %v4999, %v4995
    %v5344 = vpack.c.b16 %v5000, %v4996
    %v5345 = vpack.c.b16 %v5001, %v4997
    %v5346 = vpack.c.b16 %v5006, %v5002
    %v5347 = vpack.c.b16 %v5007, %v5003
    %v5348 = vpack.c.b16 %v5008, %v5004
    %v5349 = vpack.c.b16 %v5009, %v5005
    %v5350 = vpack.c.b16 %v5014, %v5010
    %v5351 = vpack.c.b16 %v5015, %v5011
    %v5352 = vpack.c.b16 %v5016, %v5012
    %v5353 = vpack.c.b16 %v5017, %v5013
    %v5354 = vpack.c.b16 %v5022, %v5018
    %v5355 = vpack.c.b16 %v5023, %v5019
    %v5356 = vpack.c.b16 %v5024, %v5020
    %v5357 = vpack.c.b16 %v5025, %v5021
    %v5358 = vpack.c.b16 %v5030, %v5026
    %v5359 = vpack.c.b16 %v5031, %v5027
    %v5360 = vpack.c.b16 %v5032, %v5028
    %v5361 = vpack.c.b16 %v5033, %v5029
    %v5362 = vpack.c.b16 %v5038, %v5034
    %v5363 = vpack.c.b16 %v5039, %v5035
    %v5364 = vpack.c.b16 %v5040, %v5036
    %v5365 = vpack.c.b16 %v5041, %v5037
    %v5366 = vpack.c.b16 %v5046, %v5042
    %v5367 = vpack.c.b16 %v5047, %v5043
    %v5368 = vpack.c.b16 %v5048, %v5044
    %v5369 = vpack.c.b16 %v5049, %v5045
    %v5370 = vpack.c.b16 %v5054, %v5050
    %v5371 = vpack.c.b16 %v5055, %v5051
    %v5372 = vpack.c.b16 %v5056, %v5052
    %v5373 = vpack.c.b16 %v5057, %v5053
    %v5374 = vpack.c.b16 %v5062, %v5058
    %v5375 = vpack.c.b16 %v5063, %v5059
    %v5376 = vpack.c.b16 %v5064, %v5060
    %v5377 = vpack.c.b16 %v5065, %v5061
    %v5378 = vpack.c.b16 %v5070, %v5066
    %v5379 = vpack.c.b16 %v5071, %v5067
    %v5380 = vpack.c.b16 %v5072, %v5068
    %v5381 = vpack.c.b16 %v5073, %v5069
    %v5382 = vpack.c.b16 %v5078, %v5074
    %v5383 = vpack.c.b16 %v5079, %v5075
    %v5384 = vpack.c.b16 %v5080, %v5076
    %v5385 = vpack.c.b16 %v5081, %v5077
    %v5386 = vpack.c.b16 %v5086, %v5082
    %v5387 = vpack.c.b16 %v5087, %v5083
    %v5388 = vpack.c.b16 %v5088, %v5084
    %v5389 = vpack.c.b16 %v5089, %v5085
    %v5390 = vpack.c.b16 %v5094, %v5090
    %v5391 = vpack.c.b16 %v5095, %v5091
    %v5392 = vpack.c.b16 %v5096, %v5092
    %v5393 = vpack.c.b16 %v5097, %v5093
    %v5394 = vpack.c.b16 %v5102, %v5098
    %v5395 = vpack.c.b16 %v5103, %v5099
    %v5396 = vpack.c.b16 %v5104, %v5100
    %v5397 = vpack.c.b16 %v5105, %v5101
    %v5398 = vpack.c.b16 %v5110, %v5106
    %v5399 = vpack.c.b16 %v5111, %v5107
    %v5400 = vpack.c.b16 %v5112, %v5108
    %v5401 = vpack.c.b16 %v5113, %v5109
    %v5402 = vpack.c.b16 %v5118, %v5114
    %v5403 = vpack.c.b16 %v5119, %v5115
    %v5404 = vpack.c.b16 %v5120, %v5116
    %v5405 = vpack.c.b16 %v5121, %v5117
    %v5406 = vpack.c.b16 %v5126, %v5122
    %v5407 = vpack.c.b16 %v5127, %v5123
    %v5408 = vpack.c.b16 %v5128, %v5124
    %v5409 = vpack.c.b16 %v5129, %v5125
    %v5410 = vpack.c.b16 %v5134, %v5130
    %v5411 = vpack.c.b16 %v5135, %v5131
    %v5412 = vpack.c.b16 %v5136, %v5132
    %v5413 = vpack.c.b16 %v5137, %v5133
    %v5414 = vpack.c.b16 %v5142, %v5138
    %v5415 = vpack.c.b16 %v5143, %v5139
    %v5416 = vpack.c.b16 %v5144, %v5140
    %v5417 = vpack.c.b16 %v5145, %v5141
    %v5418 = vpack.c.b16 %v5150, %v5146
    %v5419 = vpack.c.b16 %v5151, %v5147
    %v5420 = vpack.c.b16 %v5152, %v5148
    %v5421 = vpack.c.b16 %v5153, %v5149
    %v5422 = vpack.c.b16 %v5158, %v5154
    %v5423 = vpack.c.b16 %v5159, %v5155
    %v5424 = vpack.c.b16 %v5160, %v5156
    %v5425 = vpack.c.b16 %v5161, %v5157
    %v5426 = vpack.c.b16 %v5166, %v5162
    %v5427 = vpack.c.b16 %v5167, %v5163
    %v5428 = vpack.c.b16 %v5168, %v5164
    %v5429 = vpack.c.b16 %v5169, %v5165
    %v5430 = vpack.c.b16 %v5174, %v5170
    %v5431 = vpack.c.b16 %v5175, %v5171
    %v5432 = vpack.c.b16 %v5176, %v5172
    %v5433 = vpack.c.b16 %v5177, %v5173
    %5690 = vmatprep.subr.bf16.mxu0 %v5207
    %5691 = vmatpush1.bf16.msra.mxu0 %v5206
    %5692 = vmatprep.subr.bf16.mxu0 %v5203
    %5693 = vmatpush1.bf16.msra.mxu0 %v5202
    %5694 = vmatprep.subr.bf16.mxu0 %v5199
    %5695 = vmatpush1.bf16.msra.mxu0 %v5198
    %5696 = vmatprep.subr.bf16.mxu0 %v5195
    %5697 = vmatpush1.bf16.msra.mxu0 %v5194
    %5698 = vmatprep.subr.bf16.mxu0 %v5191
    %5699 = vmatpush1.bf16.msra.mxu0 %v5190
    %5700 = vmatprep.subr.bf16.mxu0 %v5187
    %5701 = vmatpush1.bf16.msra.mxu0 %v5186
    %5702 = vmatprep.subr.bf16.mxu0 %v5183
    %5703 = vmatpush1.bf16.msra.mxu0 %v5182
    %5704 = vmatprep.subr.bf16.mxu0 %v5179
    %5705 = vmatpush1.bf16.msra.mxu0 %v5178
    %5706 = vmatprep.subr.bf16.mxu0 %v5239
    %5707 = vmatpush2.bf16.msra.mxu0 %v5238
    %5708 = vmatprep.subr.bf16.mxu0 %v5235
    %5709 = vmatpush2.bf16.msra.mxu0 %v5234
    %5710 = vmatprep.subr.bf16.mxu0 %v5231
    %5711 = vmatpush2.bf16.msra.mxu0 %v5230
    %5712 = vmatprep.subr.bf16.mxu0 %v5227
    %5713 = vmatpush2.bf16.msra.mxu0 %v5226
    %5714 = vmatprep.subr.bf16.mxu0 %v5223
    %5715 = vmatpush2.bf16.msra.mxu0 %v5222
    %5716 = vmatprep.subr.bf16.mxu0 %v5219
    %5717 = vmatpush2.bf16.msra.mxu0 %v5218
    %5718 = vmatprep.subr.bf16.mxu0 %v5215
    %5719 = vmatpush2.bf16.msra.mxu0 %v5214
    %5720 = vmatprep.subr.bf16.mxu0 %v5211
    %5721 = vmatpush2.bf16.msra.mxu0 %v5210
    %5722 = vmatprep.mubr.bf16.mxu0 %v4125
    %5723 = vmatmul.mubr.bf16.gmra.mxu0 %v4124
    %v5724 = vpop.f32.mrf.mxu0
    %v5725 = vadd.f32 %v4393, %v5724
    %v5726 = vpop.f32.mrf.mxu0
    %v5727 = vadd.f32 %v4397, %v5726
    %v5728 = vpop.f32.mrf.mxu0
    %v5729 = vadd.f32 %v4393, %v5728
    %v5730 = vpop.f32.mrf.mxu0
    %v5731 = vadd.f32 %v4397, %v5730
    %5732 = vdwg.mxu0
    %5733 = vmatprep.subr.bf16.mxu0 %v5271
    %5734 = vmatpush1.bf16.msra.mxu0 %v5270
    %5735 = vmatprep.subr.bf16.mxu0 %v5267
    %5736 = vmatpush1.bf16.msra.mxu0 %v5266
    %5737 = vmatprep.subr.bf16.mxu0 %v5263
    %5738 = vmatpush1.bf16.msra.mxu0 %v5262
    %5739 = vmatprep.subr.bf16.mxu0 %v5259
    %5740 = vmatpush1.bf16.msra.mxu0 %v5258
    %5741 = vmatprep.subr.bf16.mxu0 %v5255
    %5742 = vmatpush1.bf16.msra.mxu0 %v5254
    %5743 = vmatprep.subr.bf16.mxu0 %v5251
    %5744 = vmatpush1.bf16.msra.mxu0 %v5250
    %5745 = vmatprep.subr.bf16.mxu0 %v5247
    %5746 = vmatpush1.bf16.msra.mxu0 %v5246
    %5747 = vmatprep.subr.bf16.mxu0 %v5243
    %5748 = vmatpush1.bf16.msra.mxu0 %v5242
    %5749 = vmatprep.subr.bf16.mxu0 %v5303
    %5750 = vmatpush2.bf16.msra.mxu0 %v5302
    %5751 = vmatprep.subr.bf16.mxu0 %v5299
    %5752 = vmatpush2.bf16.msra.mxu0 %v5298
    %5753 = vmatprep.subr.bf16.mxu0 %v5295
    %5754 = vmatpush2.bf16.msra.mxu0 %v5294
    %5755 = vmatprep.subr.bf16.mxu0 %v5291
    %5756 = vmatpush2.bf16.msra.mxu0 %v5290
    %5757 = vmatprep.subr.bf16.mxu0 %v5287
    %5758 = vmatpush2.bf16.msra.mxu0 %v5286
    %5759 = vmatprep.subr.bf16.mxu0 %v5283
    %5760 = vmatpush2.bf16.msra.mxu0 %v5282
    %5761 = vmatprep.subr.bf16.mxu0 %v5279
    %5762 = vmatpush2.bf16.msra.mxu0 %v5278
    %5763 = vmatprep.subr.bf16.mxu0 %v5275
    %5764 = vmatpush2.bf16.msra.mxu0 %v5274
    %5765 = vmatprep.mubr.bf16.mxu0 %v4127
    %5766 = vmatmul.mubr.bf16.gmra.mxu0 %v4126
    %v5767 = vpop.f32.mrf.mxu0
    %v5768 = vadd.f32 %v5725, %v5767
    %v5769 = vpop.f32.mrf.mxu0
    %v5770 = vadd.f32 %v5727, %v5769
    %v5771 = vpop.f32.mrf.mxu0
    %v5772 = vadd.f32 %v5729, %v5771
    %v5773 = vpop.f32.mrf.mxu0
    %v5774 = vadd.f32 %v5731, %v5773
    %5775 = vdwg.mxu0
    %5776 = vmatprep.subr.bf16.mxu0 %v5335
    %5777 = vmatpush1.bf16.msra.mxu0 %v5334
    %5778 = vmatprep.subr.bf16.mxu0 %v5331
    %5779 = vmatpush1.bf16.msra.mxu0 %v5330
    %5780 = vmatprep.subr.bf16.mxu0 %v5327
    %5781 = vmatpush1.bf16.msra.mxu0 %v5326
    %5782 = vmatprep.subr.bf16.mxu0 %v5323
    %5783 = vmatpush1.bf16.msra.mxu0 %v5322
    %5784 = vmatprep.subr.bf16.mxu0 %v5319
    %5785 = vmatpush1.bf16.msra.mxu0 %v5318
    %5786 = vmatprep.subr.bf16.mxu0 %v5315
    %5787 = vmatpush1.bf16.msra.mxu0 %v5314
    %5788 = vmatprep.subr.bf16.mxu0 %v5311
    %5789 = vmatpush1.bf16.msra.mxu0 %v5310
    %5790 = vmatprep.subr.bf16.mxu0 %v5307
    %5791 = vmatpush1.bf16.msra.mxu0 %v5306
    %5792 = vmatprep.subr.bf16.mxu0 %v5367
    %5793 = vmatpush2.bf16.msra.mxu0 %v5366
    %5794 = vmatprep.subr.bf16.mxu0 %v5363
    %5795 = vmatpush2.bf16.msra.mxu0 %v5362
    %5796 = vmatprep.subr.bf16.mxu0 %v5359
    %5797 = vmatpush2.bf16.msra.mxu0 %v5358
    %5798 = vmatprep.subr.bf16.mxu0 %v5355
    %5799 = vmatpush2.bf16.msra.mxu0 %v5354
    %5800 = vmatprep.subr.bf16.mxu0 %v5351
    %5801 = vmatpush2.bf16.msra.mxu0 %v5350
    %5802 = vmatprep.subr.bf16.mxu0 %v5347
    %5803 = vmatpush2.bf16.msra.mxu0 %v5346
    %5804 = vmatprep.subr.bf16.mxu0 %v5343
    %5805 = vmatpush2.bf16.msra.mxu0 %v5342
    %5806 = vmatprep.subr.bf16.mxu0 %v5339
    %5807 = vmatpush2.bf16.msra.mxu0 %v5338
    %5808 = vmatprep.mubr.bf16.mxu0 %v4129
    %5809 = vmatmul.mubr.bf16.gmra.mxu0 %v4128
    %v5810 = vpop.f32.mrf.mxu0
    %v5811 = vadd.f32 %v5768, %v5810
    %v5812 = vpop.f32.mrf.mxu0
    %v5813 = vadd.f32 %v5770, %v5812
    %v5814 = vpop.f32.mrf.mxu0
    %v5815 = vadd.f32 %v5772, %v5814
    %v5816 = vpop.f32.mrf.mxu0
    %v5817 = vadd.f32 %v5774, %v5816
    %5818 = vdwg.mxu0
    %5819 = vmatprep.subr.bf16.mxu0 %v5399
    %5820 = vmatpush1.bf16.msra.mxu0 %v5398
    %5821 = vmatprep.subr.bf16.mxu0 %v5395
    %5822 = vmatpush1.bf16.msra.mxu0 %v5394
    %5823 = vmatprep.subr.bf16.mxu0 %v5391
    %5824 = vmatpush1.bf16.msra.mxu0 %v5390
    %5825 = vmatprep.subr.bf16.mxu0 %v5387
    %5826 = vmatpush1.bf16.msra.mxu0 %v5386
    %5827 = vmatprep.subr.bf16.mxu0 %v5383
    %5828 = vmatpush1.bf16.msra.mxu0 %v5382
    %5829 = vmatprep.subr.bf16.mxu0 %v5379
    %5830 = vmatpush1.bf16.msra.mxu0 %v5378
    %5831 = vmatprep.subr.bf16.mxu0 %v5375
    %5832 = vmatpush1.bf16.msra.mxu0 %v5374
    %5833 = vmatprep.subr.bf16.mxu0 %v5371
    %5834 = vmatpush1.bf16.msra.mxu0 %v5370
    %5835 = vmatprep.subr.bf16.mxu0 %v5431
    %5836 = vmatpush2.bf16.msra.mxu0 %v5430
    %5837 = vmatprep.subr.bf16.mxu0 %v5427
    %5838 = vmatpush2.bf16.msra.mxu0 %v5426
    %5839 = vmatprep.subr.bf16.mxu0 %v5423
    %5840 = vmatpush2.bf16.msra.mxu0 %v5422
    %5841 = vmatprep.subr.bf16.mxu0 %v5419
    %5842 = vmatpush2.bf16.msra.mxu0 %v5418
    %5843 = vmatprep.subr.bf16.mxu0 %v5415
    %5844 = vmatpush2.bf16.msra.mxu0 %v5414
    %5845 = vmatprep.subr.bf16.mxu0 %v5411
    %5846 = vmatpush2.bf16.msra.mxu0 %v5410
    %5847 = vmatprep.subr.bf16.mxu0 %v5407
    %5848 = vmatpush2.bf16.msra.mxu0 %v5406
    %5849 = vmatprep.subr.bf16.mxu0 %v5403
    %5850 = vmatpush2.bf16.msra.mxu0 %v5402
    %5851 = vmatprep.mubr.bf16.mxu0 %v4131
    %5852 = vmatmul.mubr.bf16.gmra.mxu0 %v4130
    %v5853 = vpop.f32.mrf.mxu0
    %v5854 = vadd.f32 %v5811, %v5853
    %v5855 = vpop.f32.mrf.mxu0
    %v5856 = vadd.f32 %v5813, %v5855
    %v5857 = vpop.f32.mrf.mxu0
    %v5858 = vadd.f32 %v5815, %v5857
    %v5859 = vpop.f32.mrf.mxu0
    %v5860 = vadd.f32 %v5817, %v5859
    %5861 = vdwg.mxu0
    %5862 = vmatprep.subr.bf16.mxu0 %v5209
    %5863 = vmatpush1.bf16.msra.mxu0 %v5208
    %5864 = vmatprep.subr.bf16.mxu0 %v5205
    %5865 = vmatpush1.bf16.msra.mxu0 %v5204
    %5866 = vmatprep.subr.bf16.mxu0 %v5201
    %5867 = vmatpush1.bf16.msra.mxu0 %v5200
    %5868 = vmatprep.subr.bf16.mxu0 %v5197
    %5869 = vmatpush1.bf16.msra.mxu0 %v5196
    %5870 = vmatprep.subr.bf16.mxu0 %v5193
    %5871 = vmatpush1.bf16.msra.mxu0 %v5192
    %5872 = vmatprep.subr.bf16.mxu0 %v5189
    %5873 = vmatpush1.bf16.msra.mxu0 %v5188
    %5874 = vmatprep.subr.bf16.mxu0 %v5185
    %5875 = vmatpush1.bf16.msra.mxu0 %v5184
    %5876 = vmatprep.subr.bf16.mxu0 %v5181
    %5877 = vmatpush1.bf16.msra.mxu0 %v5180
    %5878 = vmatprep.subr.bf16.mxu0 %v5241
    %5879 = vmatpush2.bf16.msra.mxu0 %v5240
    %5880 = vmatprep.subr.bf16.mxu0 %v5237
    %5881 = vmatpush2.bf16.msra.mxu0 %v5236
    %5882 = vmatprep.subr.bf16.mxu0 %v5233
    %5883 = vmatpush2.bf16.msra.mxu0 %v5232
    %5884 = vmatprep.subr.bf16.mxu0 %v5229
    %5885 = vmatpush2.bf16.msra.mxu0 %v5228
    %5886 = vmatprep.subr.bf16.mxu0 %v5225
    %5887 = vmatpush2.bf16.msra.mxu0 %v5224
    %5888 = vmatprep.subr.bf16.mxu0 %v5221
    %5889 = vmatpush2.bf16.msra.mxu0 %v5220
    %5890 = vmatprep.subr.bf16.mxu0 %v5217
    %5891 = vmatpush2.bf16.msra.mxu0 %v5216
    %5892 = vmatprep.subr.bf16.mxu0 %v5213
    %5893 = vmatpush2.bf16.msra.mxu0 %v5212
    %5894 = vmatprep.mubr.bf16.mxu0 %v4125
    %5895 = vmatmul.mubr.bf16.gmra.mxu0 %v4124
    %v5896 = vpop.f32.mrf.mxu0
    %v5897 = vadd.f32 %v4401, %v5896
    %v5898 = vpop.f32.mrf.mxu0
    %v5899 = vadd.f32 %v4405, %v5898
    %v5900 = vpop.f32.mrf.mxu0
    %v5901 = vadd.f32 %v4401, %v5900
    %v5902 = vpop.f32.mrf.mxu0
    %v5903 = vadd.f32 %v4405, %v5902
    %5904 = vdwg.mxu0
    %5905 = vmatprep.subr.bf16.mxu0 %v5273
    %5906 = vmatpush1.bf16.msra.mxu0 %v5272
    %5907 = vmatprep.subr.bf16.mxu0 %v5269
    %5908 = vmatpush1.bf16.msra.mxu0 %v5268
    %5909 = vmatprep.subr.bf16.mxu0 %v5265
    %5910 = vmatpush1.bf16.msra.mxu0 %v5264
    %5911 = vmatprep.subr.bf16.mxu0 %v5261
    %5912 = vmatpush1.bf16.msra.mxu0 %v5260
    %5913 = vmatprep.subr.bf16.mxu0 %v5257
    %5914 = vmatpush1.bf16.msra.mxu0 %v5256
    %5915 = vmatprep.subr.bf16.mxu0 %v5253
    %5916 = vmatpush1.bf16.msra.mxu0 %v5252
    %5917 = vmatprep.subr.bf16.mxu0 %v5249
    %5918 = vmatpush1.bf16.msra.mxu0 %v5248
    %5919 = vmatprep.subr.bf16.mxu0 %v5245
    %5920 = vmatpush1.bf16.msra.mxu0 %v5244
    %5921 = vmatprep.subr.bf16.mxu0 %v5305
    %5922 = vmatpush2.bf16.msra.mxu0 %v5304
    %5923 = vmatprep.subr.bf16.mxu0 %v5301
    %5924 = vmatpush2.bf16.msra.mxu0 %v5300
    %5925 = vmatprep.subr.bf16.mxu0 %v5297
    %5926 = vmatpush2.bf16.msra.mxu0 %v5296
    %5927 = vmatprep.subr.bf16.mxu0 %v5293
    %5928 = vmatpush2.bf16.msra.mxu0 %v5292
    %5929 = vmatprep.subr.bf16.mxu0 %v5289
    %5930 = vmatpush2.bf16.msra.mxu0 %v5288
    %5931 = vmatprep.subr.bf16.mxu0 %v5285
    %5932 = vmatpush2.bf16.msra.mxu0 %v5284
    %5933 = vmatprep.subr.bf16.mxu0 %v5281
    %5934 = vmatpush2.bf16.msra.mxu0 %v5280
    %5935 = vmatprep.subr.bf16.mxu0 %v5277
    %5936 = vmatpush2.bf16.msra.mxu0 %v5276
    %5937 = vmatprep.mubr.bf16.mxu0 %v4127
    %5938 = vmatmul.mubr.bf16.gmra.mxu0 %v4126
    %v5939 = vpop.f32.mrf.mxu0
    %v5940 = vadd.f32 %v5897, %v5939
    %v5941 = vpop.f32.mrf.mxu0
    %v5942 = vadd.f32 %v5899, %v5941
    %v5943 = vpop.f32.mrf.mxu0
    %v5944 = vadd.f32 %v5901, %v5943
    %v5945 = vpop.f32.mrf.mxu0
    %v5946 = vadd.f32 %v5903, %v5945
    %5947 = vdwg.mxu0
    %5948 = vmatprep.subr.bf16.mxu0 %v5337
    %5949 = vmatpush1.bf16.msra.mxu0 %v5336
    %5950 = vmatprep.subr.bf16.mxu0 %v5333
    %5951 = vmatpush1.bf16.msra.mxu0 %v5332
    %5952 = vmatprep.subr.bf16.mxu0 %v5329
    %5953 = vmatpush1.bf16.msra.mxu0 %v5328
    %5954 = vmatprep.subr.bf16.mxu0 %v5325
    %5955 = vmatpush1.bf16.msra.mxu0 %v5324
    %5956 = vmatprep.subr.bf16.mxu0 %v5321
    %5957 = vmatpush1.bf16.msra.mxu0 %v5320
    %5958 = vmatprep.subr.bf16.mxu0 %v5317
    %5959 = vmatpush1.bf16.msra.mxu0 %v5316
    %5960 = vmatprep.subr.bf16.mxu0 %v5313
    %5961 = vmatpush1.bf16.msra.mxu0 %v5312
    %5962 = vmatprep.subr.bf16.mxu0 %v5309
    %5963 = vmatpush1.bf16.msra.mxu0 %v5308
    %5964 = vmatprep.subr.bf16.mxu0 %v5369
    %5965 = vmatpush2.bf16.msra.mxu0 %v5368
    %5966 = vmatprep.subr.bf16.mxu0 %v5365
    %5967 = vmatpush2.bf16.msra.mxu0 %v5364
    %5968 = vmatprep.subr.bf16.mxu0 %v5361
    %5969 = vmatpush2.bf16.msra.mxu0 %v5360
    %5970 = vmatprep.subr.bf16.mxu0 %v5357
    %5971 = vmatpush2.bf16.msra.mxu0 %v5356
    %5972 = vmatprep.subr.bf16.mxu0 %v5353
    %5973 = vmatpush2.bf16.msra.mxu0 %v5352
    %5974 = vmatprep.subr.bf16.mxu0 %v5349
    %5975 = vmatpush2.bf16.msra.mxu0 %v5348
    %5976 = vmatprep.subr.bf16.mxu0 %v5345
    %5977 = vmatpush2.bf16.msra.mxu0 %v5344
    %5978 = vmatprep.subr.bf16.mxu0 %v5341
    %5979 = vmatpush2.bf16.msra.mxu0 %v5340
    %5980 = vmatprep.mubr.bf16.mxu0 %v4129
    %5981 = vmatmul.mubr.bf16.gmra.mxu0 %v4128
    %v5982 = vpop.f32.mrf.mxu0
    %v5983 = vadd.f32 %v5940, %v5982
    %v5984 = vpop.f32.mrf.mxu0
    %v5985 = vadd.f32 %v5942, %v5984
    %v5986 = vpop.f32.mrf.mxu0
    %v5987 = vadd.f32 %v5944, %v5986
    %v5988 = vpop.f32.mrf.mxu0
    %v5989 = vadd.f32 %v5946, %v5988
    %5990 = vdwg.mxu0
    %5991 = vmatprep.subr.bf16.mxu0 %v5401
    %5992 = vmatpush1.bf16.msra.mxu0 %v5400
    %5993 = vmatprep.subr.bf16.mxu0 %v5397
    %5994 = vmatpush1.bf16.msra.mxu0 %v5396
    %5995 = vmatprep.subr.bf16.mxu0 %v5393
    %5996 = vmatpush1.bf16.msra.mxu0 %v5392
    %5997 = vmatprep.subr.bf16.mxu0 %v5389
    %5998 = vmatpush1.bf16.msra.mxu0 %v5388
    %5999 = vmatprep.subr.bf16.mxu0 %v5385
    %6000 = vmatpush1.bf16.msra.mxu0 %v5384
    %6001 = vmatprep.subr.bf16.mxu0 %v5381
    %6002 = vmatpush1.bf16.msra.mxu0 %v5380
    %6003 = vmatprep.subr.bf16.mxu0 %v5377
    %6004 = vmatpush1.bf16.msra.mxu0 %v5376
    %6005 = vmatprep.subr.bf16.mxu0 %v5373
    %6006 = vmatpush1.bf16.msra.mxu0 %v5372
    %6007 = vmatprep.subr.bf16.mxu0 %v5433
    %6008 = vmatpush2.bf16.msra.mxu0 %v5432
    %6009 = vmatprep.subr.bf16.mxu0 %v5429
    %6010 = vmatpush2.bf16.msra.mxu0 %v5428
    %6011 = vmatprep.subr.bf16.mxu0 %v5425
    %6012 = vmatpush2.bf16.msra.mxu0 %v5424
    %6013 = vmatprep.subr.bf16.mxu0 %v5421
    %6014 = vmatpush2.bf16.msra.mxu0 %v5420
    %6015 = vmatprep.subr.bf16.mxu0 %v5417
    %6016 = vmatpush2.bf16.msra.mxu0 %v5416
    %6017 = vmatprep.subr.bf16.mxu0 %v5413
    %6018 = vmatpush2.bf16.msra.mxu0 %v5412
    %6019 = vmatprep.subr.bf16.mxu0 %v5409
    %6020 = vmatpush2.bf16.msra.mxu0 %v5408
    %6021 = vmatprep.subr.bf16.mxu0 %v5405
    %6022 = vmatpush2.bf16.msra.mxu0 %v5404
    %6023 = vmatprep.mubr.bf16.mxu0 %v4131
    %6024 = vmatmul.mubr.bf16.gmra.mxu0 %v4130
    %v6025 = vpop.f32.mrf.mxu0
    %v6026 = vadd.f32 %v5983, %v6025
    %v6027 = vpop.f32.mrf.mxu0
    %v6028 = vadd.f32 %v5985, %v6027
    %v6029 = vpop.f32.mrf.mxu0
    %v6030 = vadd.f32 %v5987, %v6029
    %v6031 = vpop.f32.mrf.mxu0
    %v6032 = vadd.f32 %v5989, %v6031
    %6033 = vdwg.mxu0
    %v6034 = vmul.f32 %v5854, 0.02
    %v6035 = vmul.f32 %v5856, 0.02
    %v6036 = vmul.f32 %v6026, 0.02
    %v6037 = vmul.f32 %v6028, 0.02
    %v6038 = vmul.f32 %v5858, 0.02
    %v6039 = vmul.f32 %v5860, 0.02
    %v6040 = vmul.f32 %v6030, 0.02
    %v6041 = vmul.f32 %v6032, 0.02
    %v6042 = vmax.f32 %v5854, %v6034
    %v6043 = vmax.f32 %v5856, %v6035
    %v6044 = vmax.f32 %v6026, %v6036
    %v6045 = vmax.f32 %v6028, %v6037
    %v6046 = vmax.f32 %v5858, %v6038
    %v6047 = vmax.f32 %v5860, %v6039
    %v6048 = vmax.f32 %v6030, %v6040
    %v6049 = vmax.f32 %v6032, %v6041
    %v6050 = vpack.c.bf16 %v6046, %v6042
    %v6051 = vpack.c.bf16 %v6047, %v6043
    %v6052 = vpack.c.bf16 %v6048, %v6044
    %v6053 = vpack.c.bf16 %v6049, %v6045
    %v6054 = vld [vmem:[#allocation11] sm:$0xff]
    %v6055 = vld [vmem:[#allocation11 + $0x8] sm:$0xff]
    %v6056 = vld [vmem:[#allocation11 + $0x10] sm:$0xff]
    %v6057 = vld [vmem:[#allocation11 + $0x18] sm:$0xff]
    %v6058 = vld [vmem:[#allocation11 + $0x20] sm:$0xff]
    %v6059 = vld [vmem:[#allocation11 + $0x28] sm:$0xff]
    %v6060 = vld [vmem:[#allocation11 + $0x30] sm:$0xff]
    %v6061 = vld [vmem:[#allocation11 + $0x38] sm:$0xff]
    %v6062 = vld [vmem:[#allocation11 + $0x40] sm:$0xff]
    %v6063 = vld [vmem:[#allocation11 + $0x48] sm:$0xff]
    %v6064 = vld [vmem:[#allocation11 + $0x50] sm:$0xff]
    %v6065 = vld [vmem:[#allocation11 + $0x58] sm:$0xff]
    %v6066 = vld [vmem:[#allocation11 + $0x60] sm:$0xff]
    %v6067 = vld [vmem:[#allocation11 + $0x68] sm:$0xff]
    %v6068 = vld [vmem:[#allocation11 + $0x70] sm:$0xff]
    %v6069 = vld [vmem:[#allocation11 + $0x78] sm:$0xff]
    %v6070 = vld [vmem:[#allocation11 + $0x80] sm:$0xff]
    %v6071 = vld [vmem:[#allocation11 + $0x88] sm:$0xff]
    %v6072 = vld [vmem:[#allocation11 + $0x90] sm:$0xff]
    %v6073 = vld [vmem:[#allocation11 + $0x98] sm:$0xff]
    %v6074 = vld [vmem:[#allocation11 + $0xa0] sm:$0xff]
    %v6075 = vld [vmem:[#allocation11 + $0xa8] sm:$0xff]
    %v6076 = vld [vmem:[#allocation11 + $0xb0] sm:$0xff]
    %v6077 = vld [vmem:[#allocation11 + $0xb8] sm:$0xff]
    %v6078 = vld [vmem:[#allocation11 + $0xc0] sm:$0xff]
    %v6079 = vld [vmem:[#allocation11 + $0xc8] sm:$0xff]
    %v6080 = vld [vmem:[#allocation11 + $0xd0] sm:$0xff]
    %v6081 = vld [vmem:[#allocation11 + $0xd8] sm:$0xff]
    %v6082 = vld [vmem:[#allocation11 + $0xe0] sm:$0xff]
    %v6083 = vld [vmem:[#allocation11 + $0xe8] sm:$0xff]
    %v6084 = vld [vmem:[#allocation11 + $0xf0] sm:$0xff]
    %v6085 = vld [vmem:[#allocation11 + $0xf8] sm:$0xff]
    %v6086 = vld [vmem:[#allocation11 + $0x100] sm:$0xff]
    %v6087 = vld [vmem:[#allocation11 + $0x108] sm:$0xff]
    %v6088 = vld [vmem:[#allocation11 + $0x110] sm:$0xff]
    %v6089 = vld [vmem:[#allocation11 + $0x118] sm:$0xff]
    %v6090 = vld [vmem:[#allocation11 + $0x120] sm:$0xff]
    %v6091 = vld [vmem:[#allocation11 + $0x128] sm:$0xff]
    %v6092 = vld [vmem:[#allocation11 + $0x130] sm:$0xff]
    %v6093 = vld [vmem:[#allocation11 + $0x138] sm:$0xff]
    %v6094 = vld [vmem:[#allocation11 + $0x140] sm:$0xff]
    %v6095 = vld [vmem:[#allocation11 + $0x148] sm:$0xff]
    %v6096 = vld [vmem:[#allocation11 + $0x150] sm:$0xff]
    %v6097 = vld [vmem:[#allocation11 + $0x158] sm:$0xff]
    %v6098 = vld [vmem:[#allocation11 + $0x160] sm:$0xff]
    %v6099 = vld [vmem:[#allocation11 + $0x168] sm:$0xff]
    %v6100 = vld [vmem:[#allocation11 + $0x170] sm:$0xff]
    %v6101 = vld [vmem:[#allocation11 + $0x178] sm:$0xff]
    %v6102 = vld [vmem:[#allocation11 + $0x180] sm:$0xff]
    %v6103 = vld [vmem:[#allocation11 + $0x188] sm:$0xff]
    %v6104 = vld [vmem:[#allocation11 + $0x190] sm:$0xff]
    %v6105 = vld [vmem:[#allocation11 + $0x198] sm:$0xff]
    %v6106 = vld [vmem:[#allocation11 + $0x1a0] sm:$0xff]
    %v6107 = vld [vmem:[#allocation11 + $0x1a8] sm:$0xff]
    %v6108 = vld [vmem:[#allocation11 + $0x1b0] sm:$0xff]
    %v6109 = vld [vmem:[#allocation11 + $0x1b8] sm:$0xff]
    %v6110 = vld [vmem:[#allocation11 + $0x1c0] sm:$0xff]
    %v6111 = vld [vmem:[#allocation11 + $0x1c8] sm:$0xff]
    %v6112 = vld [vmem:[#allocation11 + $0x1d0] sm:$0xff]
    %v6113 = vld [vmem:[#allocation11 + $0x1d8] sm:$0xff]
    %v6114 = vld [vmem:[#allocation11 + $0x1e0] sm:$0xff]
    %v6115 = vld [vmem:[#allocation11 + $0x1e8] sm:$0xff]
    %v6116 = vld [vmem:[#allocation11 + $0x1f0] sm:$0xff]
    %v6117 = vld [vmem:[#allocation11 + $0x1f8] sm:$0xff]
    %v6118 = vld [vmem:[#allocation11 + $0x200] sm:$0xff]
    %v6119 = vld [vmem:[#allocation11 + $0x208] sm:$0xff]
    %v6120 = vld [vmem:[#allocation11 + $0x210] sm:$0xff]
    %v6121 = vld [vmem:[#allocation11 + $0x218] sm:$0xff]
    %v6122 = vld [vmem:[#allocation11 + $0x220] sm:$0xff]
    %v6123 = vld [vmem:[#allocation11 + $0x228] sm:$0xff]
    %v6124 = vld [vmem:[#allocation11 + $0x230] sm:$0xff]
    %v6125 = vld [vmem:[#allocation11 + $0x238] sm:$0xff]
    %v6126 = vld [vmem:[#allocation11 + $0x240] sm:$0xff]
    %v6127 = vld [vmem:[#allocation11 + $0x248] sm:$0xff]
    %v6128 = vld [vmem:[#allocation11 + $0x250] sm:$0xff]
    %v6129 = vld [vmem:[#allocation11 + $0x258] sm:$0xff]
    %v6130 = vld [vmem:[#allocation11 + $0x260] sm:$0xff]
    %v6131 = vld [vmem:[#allocation11 + $0x268] sm:$0xff]
    %v6132 = vld [vmem:[#allocation11 + $0x270] sm:$0xff]
    %v6133 = vld [vmem:[#allocation11 + $0x278] sm:$0xff]
    %v6134 = vld [vmem:[#allocation11 + $0x280] sm:$0xff]
    %v6135 = vld [vmem:[#allocation11 + $0x288] sm:$0xff]
    %v6136 = vld [vmem:[#allocation11 + $0x290] sm:$0xff]
    %v6137 = vld [vmem:[#allocation11 + $0x298] sm:$0xff]
    %v6138 = vld [vmem:[#allocation11 + $0x2a0] sm:$0xff]
    %v6139 = vld [vmem:[#allocation11 + $0x2a8] sm:$0xff]
    %v6140 = vld [vmem:[#allocation11 + $0x2b0] sm:$0xff]
    %v6141 = vld [vmem:[#allocation11 + $0x2b8] sm:$0xff]
    %v6142 = vld [vmem:[#allocation11 + $0x2c0] sm:$0xff]
    %v6143 = vld [vmem:[#allocation11 + $0x2c8] sm:$0xff]
    %v6144 = vld [vmem:[#allocation11 + $0x2d0] sm:$0xff]
    %v6145 = vld [vmem:[#allocation11 + $0x2d8] sm:$0xff]
    %v6146 = vld [vmem:[#allocation11 + $0x2e0] sm:$0xff]
    %v6147 = vld [vmem:[#allocation11 + $0x2e8] sm:$0xff]
    %v6148 = vld [vmem:[#allocation11 + $0x2f0] sm:$0xff]
    %v6149 = vld [vmem:[#allocation11 + $0x2f8] sm:$0xff]
    %v6150 = vld [vmem:[#allocation11 + $0x300] sm:$0xff]
    %v6151 = vld [vmem:[#allocation11 + $0x308] sm:$0xff]
    %v6152 = vld [vmem:[#allocation11 + $0x310] sm:$0xff]
    %v6153 = vld [vmem:[#allocation11 + $0x318] sm:$0xff]
    %v6154 = vld [vmem:[#allocation11 + $0x320] sm:$0xff]
    %v6155 = vld [vmem:[#allocation11 + $0x328] sm:$0xff]
    %v6156 = vld [vmem:[#allocation11 + $0x330] sm:$0xff]
    %v6157 = vld [vmem:[#allocation11 + $0x338] sm:$0xff]
    %v6158 = vld [vmem:[#allocation11 + $0x340] sm:$0xff]
    %v6159 = vld [vmem:[#allocation11 + $0x348] sm:$0xff]
    %v6160 = vld [vmem:[#allocation11 + $0x350] sm:$0xff]
    %v6161 = vld [vmem:[#allocation11 + $0x358] sm:$0xff]
    %v6162 = vld [vmem:[#allocation11 + $0x360] sm:$0xff]
    %v6163 = vld [vmem:[#allocation11 + $0x368] sm:$0xff]
    %v6164 = vld [vmem:[#allocation11 + $0x370] sm:$0xff]
    %v6165 = vld [vmem:[#allocation11 + $0x378] sm:$0xff]
    %v6166 = vld [vmem:[#allocation11 + $0x380] sm:$0xff]
    %v6167 = vld [vmem:[#allocation11 + $0x388] sm:$0xff]
    %v6168 = vld [vmem:[#allocation11 + $0x390] sm:$0xff]
    %v6169 = vld [vmem:[#allocation11 + $0x398] sm:$0xff]
    %v6170 = vld [vmem:[#allocation11 + $0x3a0] sm:$0xff]
    %v6171 = vld [vmem:[#allocation11 + $0x3a8] sm:$0xff]
    %v6172 = vld [vmem:[#allocation11 + $0x3b0] sm:$0xff]
    %v6173 = vld [vmem:[#allocation11 + $0x3b8] sm:$0xff]
    %v6174 = vld [vmem:[#allocation11 + $0x3c0] sm:$0xff]
    %v6175 = vld [vmem:[#allocation11 + $0x3c8] sm:$0xff]
    %v6176 = vld [vmem:[#allocation11 + $0x3d0] sm:$0xff]
    %v6177 = vld [vmem:[#allocation11 + $0x3d8] sm:$0xff]
    %v6178 = vld [vmem:[#allocation11 + $0x3e0] sm:$0xff]
    %v6179 = vld [vmem:[#allocation11 + $0x3e8] sm:$0xff]
    %v6180 = vld [vmem:[#allocation11 + $0x3f0] sm:$0xff]
    %v6181 = vld [vmem:[#allocation11 + $0x3f8] sm:$0xff]
    %v6182 = vld [vmem:[#allocation13] sm:$0xf]
    %v6184 = vlaneseq
    %v6185 = vshrl.u32 %v6184, 7
    %v6186 = vsub.s32 0, %v6185
    %v6187 = vrot.slane %v6182, %v6186
    %v6188 = vlaneseq
    %v6189 = vshrl.u32 %v6188, 7
    %v6190 = vsub.s32 1, %v6189
    %v6191 = vrot.slane %v6182, %v6190
    %v6192 = vlaneseq
    %v6193 = vshrl.u32 %v6192, 7
    %v6194 = vsub.s32 2, %v6193
    %v6195 = vrot.slane %v6182, %v6194
    %v6196 = vlaneseq
    %v6197 = vshrl.u32 %v6196, 7
    %v6198 = vsub.s32 3, %v6197
    %v6199 = vrot.slane %v6182, %v6198
    %v6332 = vunpack.c.l.b16 %v6054
    %v6333 = vunpack.c.h.b16 %v6054
    %v6334 = vunpack.c.l.b16 %v6055
    %v6335 = vunpack.c.h.b16 %v6055
    %v6336 = vunpack.c.l.b16 %v6056
    %v6337 = vunpack.c.h.b16 %v6056
    %v6338 = vunpack.c.l.b16 %v6057
    %v6339 = vunpack.c.h.b16 %v6057
    %v6340 = vunpack.c.l.b16 %v6058
    %v6341 = vunpack.c.h.b16 %v6058
    %v6342 = vunpack.c.l.b16 %v6059
    %v6343 = vunpack.c.h.b16 %v6059
    %v6344 = vunpack.c.l.b16 %v6060
    %v6345 = vunpack.c.h.b16 %v6060
    %v6346 = vunpack.c.l.b16 %v6061
    %v6347 = vunpack.c.h.b16 %v6061
    %v6348 = vunpack.c.l.b16 %v6062
    %v6349 = vunpack.c.h.b16 %v6062
    %v6350 = vunpack.c.l.b16 %v6063
    %v6351 = vunpack.c.h.b16 %v6063
    %v6352 = vunpack.c.l.b16 %v6064
    %v6353 = vunpack.c.h.b16 %v6064
    %v6354 = vunpack.c.l.b16 %v6065
    %v6355 = vunpack.c.h.b16 %v6065
    %v6356 = vunpack.c.l.b16 %v6066
    %v6357 = vunpack.c.h.b16 %v6066
    %v6358 = vunpack.c.l.b16 %v6067
    %v6359 = vunpack.c.h.b16 %v6067
    %v6360 = vunpack.c.l.b16 %v6068
    %v6361 = vunpack.c.h.b16 %v6068
    %v6362 = vunpack.c.l.b16 %v6069
    %v6363 = vunpack.c.h.b16 %v6069
    %v6364 = vunpack.c.l.b16 %v6070
    %v6365 = vunpack.c.h.b16 %v6070
    %v6366 = vunpack.c.l.b16 %v6071
    %v6367 = vunpack.c.h.b16 %v6071
    %v6368 = vunpack.c.l.b16 %v6072
    %v6369 = vunpack.c.h.b16 %v6072
    %v6370 = vunpack.c.l.b16 %v6073
    %v6371 = vunpack.c.h.b16 %v6073
    %v6372 = vunpack.c.l.b16 %v6074
    %v6373 = vunpack.c.h.b16 %v6074
    %v6374 = vunpack.c.l.b16 %v6075
    %v6375 = vunpack.c.h.b16 %v6075
    %v6376 = vunpack.c.l.b16 %v6076
    %v6377 = vunpack.c.h.b16 %v6076
    %v6378 = vunpack.c.l.b16 %v6077
    %v6379 = vunpack.c.h.b16 %v6077
    %v6380 = vunpack.c.l.b16 %v6078
    %v6381 = vunpack.c.h.b16 %v6078
    %v6382 = vunpack.c.l.b16 %v6079
    %v6383 = vunpack.c.h.b16 %v6079
    %v6384 = vunpack.c.l.b16 %v6080
    %v6385 = vunpack.c.h.b16 %v6080
    %v6386 = vunpack.c.l.b16 %v6081
    %v6387 = vunpack.c.h.b16 %v6081
    %v6388 = vunpack.c.l.b16 %v6082
    %v6389 = vunpack.c.h.b16 %v6082
    %v6390 = vunpack.c.l.b16 %v6083
    %v6391 = vunpack.c.h.b16 %v6083
    %v6392 = vunpack.c.l.b16 %v6084
    %v6393 = vunpack.c.h.b16 %v6084
    %v6394 = vunpack.c.l.b16 %v6085
    %v6395 = vunpack.c.h.b16 %v6085
    %v6396 = vunpack.c.l.b16 %v6086
    %v6397 = vunpack.c.h.b16 %v6086
    %v6398 = vunpack.c.l.b16 %v6087
    %v6399 = vunpack.c.h.b16 %v6087
    %v6400 = vunpack.c.l.b16 %v6088
    %v6401 = vunpack.c.h.b16 %v6088
    %v6402 = vunpack.c.l.b16 %v6089
    %v6403 = vunpack.c.h.b16 %v6089
    %v6404 = vunpack.c.l.b16 %v6090
    %v6405 = vunpack.c.h.b16 %v6090
    %v6406 = vunpack.c.l.b16 %v6091
    %v6407 = vunpack.c.h.b16 %v6091
    %v6408 = vunpack.c.l.b16 %v6092
    %v6409 = vunpack.c.h.b16 %v6092
    %v6410 = vunpack.c.l.b16 %v6093
    %v6411 = vunpack.c.h.b16 %v6093
    %v6412 = vunpack.c.l.b16 %v6094
    %v6413 = vunpack.c.h.b16 %v6094
    %v6414 = vunpack.c.l.b16 %v6095
    %v6415 = vunpack.c.h.b16 %v6095
    %v6416 = vunpack.c.l.b16 %v6096
    %v6417 = vunpack.c.h.b16 %v6096
    %v6418 = vunpack.c.l.b16 %v6097
    %v6419 = vunpack.c.h.b16 %v6097
    %v6420 = vunpack.c.l.b16 %v6098
    %v6421 = vunpack.c.h.b16 %v6098
    %v6422 = vunpack.c.l.b16 %v6099
    %v6423 = vunpack.c.h.b16 %v6099
    %v6424 = vunpack.c.l.b16 %v6100
    %v6425 = vunpack.c.h.b16 %v6100
    %v6426 = vunpack.c.l.b16 %v6101
    %v6427 = vunpack.c.h.b16 %v6101
    %v6428 = vunpack.c.l.b16 %v6102
    %v6429 = vunpack.c.h.b16 %v6102
    %v6430 = vunpack.c.l.b16 %v6103
    %v6431 = vunpack.c.h.b16 %v6103
    %v6432 = vunpack.c.l.b16 %v6104
    %v6433 = vunpack.c.h.b16 %v6104
    %v6434 = vunpack.c.l.b16 %v6105
    %v6435 = vunpack.c.h.b16 %v6105
    %v6436 = vunpack.c.l.b16 %v6106
    %v6437 = vunpack.c.h.b16 %v6106
    %v6438 = vunpack.c.l.b16 %v6107
    %v6439 = vunpack.c.h.b16 %v6107
    %v6440 = vunpack.c.l.b16 %v6108
    %v6441 = vunpack.c.h.b16 %v6108
    %v6442 = vunpack.c.l.b16 %v6109
    %v6443 = vunpack.c.h.b16 %v6109
    %v6444 = vunpack.c.l.b16 %v6110
    %v6445 = vunpack.c.h.b16 %v6110
    %v6446 = vunpack.c.l.b16 %v6111
    %v6447 = vunpack.c.h.b16 %v6111
    %v6448 = vunpack.c.l.b16 %v6112
    %v6449 = vunpack.c.h.b16 %v6112
    %v6450 = vunpack.c.l.b16 %v6113
    %v6451 = vunpack.c.h.b16 %v6113
    %v6452 = vunpack.c.l.b16 %v6114
    %v6453 = vunpack.c.h.b16 %v6114
    %v6454 = vunpack.c.l.b16 %v6115
    %v6455 = vunpack.c.h.b16 %v6115
    %v6456 = vunpack.c.l.b16 %v6116
    %v6457 = vunpack.c.h.b16 %v6116
    %v6458 = vunpack.c.l.b16 %v6117
    %v6459 = vunpack.c.h.b16 %v6117
    %v6460 = vunpack.c.l.b16 %v6118
    %v6461 = vunpack.c.h.b16 %v6118
    %v6462 = vunpack.c.l.b16 %v6119
    %v6463 = vunpack.c.h.b16 %v6119
    %v6464 = vunpack.c.l.b16 %v6120
    %v6465 = vunpack.c.h.b16 %v6120
    %v6466 = vunpack.c.l.b16 %v6121
    %v6467 = vunpack.c.h.b16 %v6121
    %v6468 = vunpack.c.l.b16 %v6122
    %v6469 = vunpack.c.h.b16 %v6122
    %v6470 = vunpack.c.l.b16 %v6123
    %v6471 = vunpack.c.h.b16 %v6123
    %v6472 = vunpack.c.l.b16 %v6124
    %v6473 = vunpack.c.h.b16 %v6124
    %v6474 = vunpack.c.l.b16 %v6125
    %v6475 = vunpack.c.h.b16 %v6125
    %v6476 = vunpack.c.l.b16 %v6126
    %v6477 = vunpack.c.h.b16 %v6126
    %v6478 = vunpack.c.l.b16 %v6127
    %v6479 = vunpack.c.h.b16 %v6127
    %v6480 = vunpack.c.l.b16 %v6128
    %v6481 = vunpack.c.h.b16 %v6128
    %v6482 = vunpack.c.l.b16 %v6129
    %v6483 = vunpack.c.h.b16 %v6129
    %v6484 = vunpack.c.l.b16 %v6130
    %v6485 = vunpack.c.h.b16 %v6130
    %v6486 = vunpack.c.l.b16 %v6131
    %v6487 = vunpack.c.h.b16 %v6131
    %v6488 = vunpack.c.l.b16 %v6132
    %v6489 = vunpack.c.h.b16 %v6132
    %v6490 = vunpack.c.l.b16 %v6133
    %v6491 = vunpack.c.h.b16 %v6133
    %v6492 = vunpack.c.l.b16 %v6134
    %v6493 = vunpack.c.h.b16 %v6134
    %v6494 = vunpack.c.l.b16 %v6135
    %v6495 = vunpack.c.h.b16 %v6135
    %v6496 = vunpack.c.l.b16 %v6136
    %v6497 = vunpack.c.h.b16 %v6136
    %v6498 = vunpack.c.l.b16 %v6137
    %v6499 = vunpack.c.h.b16 %v6137
    %v6500 = vunpack.c.l.b16 %v6138
    %v6501 = vunpack.c.h.b16 %v6138
    %v6502 = vunpack.c.l.b16 %v6139
    %v6503 = vunpack.c.h.b16 %v6139
    %v6504 = vunpack.c.l.b16 %v6140
    %v6505 = vunpack.c.h.b16 %v6140
    %v6506 = vunpack.c.l.b16 %v6141
    %v6507 = vunpack.c.h.b16 %v6141
    %v6508 = vunpack.c.l.b16 %v6142
    %v6509 = vunpack.c.h.b16 %v6142
    %v6510 = vunpack.c.l.b16 %v6143
    %v6511 = vunpack.c.h.b16 %v6143
    %v6512 = vunpack.c.l.b16 %v6144
    %v6513 = vunpack.c.h.b16 %v6144
    %v6514 = vunpack.c.l.b16 %v6145
    %v6515 = vunpack.c.h.b16 %v6145
    %v6516 = vunpack.c.l.b16 %v6146
    %v6517 = vunpack.c.h.b16 %v6146
    %v6518 = vunpack.c.l.b16 %v6147
    %v6519 = vunpack.c.h.b16 %v6147
    %v6520 = vunpack.c.l.b16 %v6148
    %v6521 = vunpack.c.h.b16 %v6148
    %v6522 = vunpack.c.l.b16 %v6149
    %v6523 = vunpack.c.h.b16 %v6149
    %v6524 = vunpack.c.l.b16 %v6150
    %v6525 = vunpack.c.h.b16 %v6150
    %v6526 = vunpack.c.l.b16 %v6151
    %v6527 = vunpack.c.h.b16 %v6151
    %v6528 = vunpack.c.l.b16 %v6152
    %v6529 = vunpack.c.h.b16 %v6152
    %v6530 = vunpack.c.l.b16 %v6153
    %v6531 = vunpack.c.h.b16 %v6153
    %v6532 = vunpack.c.l.b16 %v6154
    %v6533 = vunpack.c.h.b16 %v6154
    %v6534 = vunpack.c.l.b16 %v6155
    %v6535 = vunpack.c.h.b16 %v6155
    %v6536 = vunpack.c.l.b16 %v6156
    %v6537 = vunpack.c.h.b16 %v6156
    %v6538 = vunpack.c.l.b16 %v6157
    %v6539 = vunpack.c.h.b16 %v6157
    %v6540 = vunpack.c.l.b16 %v6158
    %v6541 = vunpack.c.h.b16 %v6158
    %v6542 = vunpack.c.l.b16 %v6159
    %v6543 = vunpack.c.h.b16 %v6159
    %v6544 = vunpack.c.l.b16 %v6160
    %v6545 = vunpack.c.h.b16 %v6160
    %v6546 = vunpack.c.l.b16 %v6161
    %v6547 = vunpack.c.h.b16 %v6161
    %v6548 = vunpack.c.l.b16 %v6162
    %v6549 = vunpack.c.h.b16 %v6162
    %v6550 = vunpack.c.l.b16 %v6163
    %v6551 = vunpack.c.h.b16 %v6163
    %v6552 = vunpack.c.l.b16 %v6164
    %v6553 = vunpack.c.h.b16 %v6164
    %v6554 = vunpack.c.l.b16 %v6165
    %v6555 = vunpack.c.h.b16 %v6165
    %v6556 = vunpack.c.l.b16 %v6166
    %v6557 = vunpack.c.h.b16 %v6166
    %v6558 = vunpack.c.l.b16 %v6167
    %v6559 = vunpack.c.h.b16 %v6167
    %v6560 = vunpack.c.l.b16 %v6168
    %v6561 = vunpack.c.h.b16 %v6168
    %v6562 = vunpack.c.l.b16 %v6169
    %v6563 = vunpack.c.h.b16 %v6169
    %v6564 = vunpack.c.l.b16 %v6170
    %v6565 = vunpack.c.h.b16 %v6170
    %v6566 = vunpack.c.l.b16 %v6171
    %v6567 = vunpack.c.h.b16 %v6171
    %v6568 = vunpack.c.l.b16 %v6172
    %v6569 = vunpack.c.h.b16 %v6172
    %v6570 = vunpack.c.l.b16 %v6173
    %v6571 = vunpack.c.h.b16 %v6173
    %v6572 = vunpack.c.l.b16 %v6174
    %v6573 = vunpack.c.h.b16 %v6174
    %v6574 = vunpack.c.l.b16 %v6175
    %v6575 = vunpack.c.h.b16 %v6175
    %v6576 = vunpack.c.l.b16 %v6176
    %v6577 = vunpack.c.h.b16 %v6176
    %v6578 = vunpack.c.l.b16 %v6177
    %v6579 = vunpack.c.h.b16 %v6177
    %v6580 = vunpack.c.l.b16 %v6178
    %v6581 = vunpack.c.h.b16 %v6178
    %v6582 = vunpack.c.l.b16 %v6179
    %v6583 = vunpack.c.h.b16 %v6179
    %v6584 = vunpack.c.l.b16 %v6180
    %v6585 = vunpack.c.h.b16 %v6180
    %v6586 = vunpack.c.l.b16 %v6181
    %v6587 = vunpack.c.h.b16 %v6181
    %v6588 = vpack.c.b16 %v6336, %v6332
    %v6589 = vpack.c.b16 %v6337, %v6333
    %v6590 = vpack.c.b16 %v6338, %v6334
    %v6591 = vpack.c.b16 %v6339, %v6335
    %v6592 = vpack.c.b16 %v6344, %v6340
    %v6593 = vpack.c.b16 %v6345, %v6341
    %v6594 = vpack.c.b16 %v6346, %v6342
    %v6595 = vpack.c.b16 %v6347, %v6343
    %v6596 = vpack.c.b16 %v6352, %v6348
    %v6597 = vpack.c.b16 %v6353, %v6349
    %v6598 = vpack.c.b16 %v6354, %v6350
    %v6599 = vpack.c.b16 %v6355, %v6351
    %v6600 = vpack.c.b16 %v6360, %v6356
    %v6601 = vpack.c.b16 %v6361, %v6357
    %v6602 = vpack.c.b16 %v6362, %v6358
    %v6603 = vpack.c.b16 %v6363, %v6359
    %v6604 = vpack.c.b16 %v6368, %v6364
    %v6605 = vpack.c.b16 %v6369, %v6365
    %v6606 = vpack.c.b16 %v6370, %v6366
    %v6607 = vpack.c.b16 %v6371, %v6367
    %v6608 = vpack.c.b16 %v6376, %v6372
    %v6609 = vpack.c.b16 %v6377, %v6373
    %v6610 = vpack.c.b16 %v6378, %v6374
    %v6611 = vpack.c.b16 %v6379, %v6375
    %v6612 = vpack.c.b16 %v6384, %v6380
    %v6613 = vpack.c.b16 %v6385, %v6381
    %v6614 = vpack.c.b16 %v6386, %v6382
    %v6615 = vpack.c.b16 %v6387, %v6383
    %v6616 = vpack.c.b16 %v6392, %v6388
    %v6617 = vpack.c.b16 %v6393, %v6389
    %v6618 = vpack.c.b16 %v6394, %v6390
    %v6619 = vpack.c.b16 %v6395, %v6391
    %v6620 = vpack.c.b16 %v6400, %v6396
    %v6621 = vpack.c.b16 %v6401, %v6397
    %v6622 = vpack.c.b16 %v6402, %v6398
    %v6623 = vpack.c.b16 %v6403, %v6399
    %v6624 = vpack.c.b16 %v6408, %v6404
    %v6625 = vpack.c.b16 %v6409, %v6405
    %v6626 = vpack.c.b16 %v6410, %v6406
    %v6627 = vpack.c.b16 %v6411, %v6407
    %v6628 = vpack.c.b16 %v6416, %v6412
    %v6629 = vpack.c.b16 %v6417, %v6413
    %v6630 = vpack.c.b16 %v6418, %v6414
    %v6631 = vpack.c.b16 %v6419, %v6415
    %v6632 = vpack.c.b16 %v6424, %v6420
    %v6633 = vpack.c.b16 %v6425, %v6421
    %v6634 = vpack.c.b16 %v6426, %v6422
    %v6635 = vpack.c.b16 %v6427, %v6423
    %v6636 = vpack.c.b16 %v6432, %v6428
    %v6637 = vpack.c.b16 %v6433, %v6429
    %v6638 = vpack.c.b16 %v6434, %v6430
    %v6639 = vpack.c.b16 %v6435, %v6431
    %v6640 = vpack.c.b16 %v6440, %v6436
    %v6641 = vpack.c.b16 %v6441, %v6437
    %v6642 = vpack.c.b16 %v6442, %v6438
    %v6643 = vpack.c.b16 %v6443, %v6439
    %v6644 = vpack.c.b16 %v6448, %v6444
    %v6645 = vpack.c.b16 %v6449, %v6445
    %v6646 = vpack.c.b16 %v6450, %v6446
    %v6647 = vpack.c.b16 %v6451, %v6447
    %v6648 = vpack.c.b16 %v6456, %v6452
    %v6649 = vpack.c.b16 %v6457, %v6453
    %v6650 = vpack.c.b16 %v6458, %v6454
    %v6651 = vpack.c.b16 %v6459, %v6455
    %v6652 = vpack.c.b16 %v6464, %v6460
    %v6653 = vpack.c.b16 %v6465, %v6461
    %v6654 = vpack.c.b16 %v6466, %v6462
    %v6655 = vpack.c.b16 %v6467, %v6463
    %v6656 = vpack.c.b16 %v6472, %v6468
    %v6657 = vpack.c.b16 %v6473, %v6469
    %v6658 = vpack.c.b16 %v6474, %v6470
    %v6659 = vpack.c.b16 %v6475, %v6471
    %v6660 = vpack.c.b16 %v6480, %v6476
    %v6661 = vpack.c.b16 %v6481, %v6477
    %v6662 = vpack.c.b16 %v6482, %v6478
    %v6663 = vpack.c.b16 %v6483, %v6479
    %v6664 = vpack.c.b16 %v6488, %v6484
    %v6665 = vpack.c.b16 %v6489, %v6485
    %v6666 = vpack.c.b16 %v6490, %v6486
    %v6667 = vpack.c.b16 %v6491, %v6487
    %v6668 = vpack.c.b16 %v6496, %v6492
    %v6669 = vpack.c.b16 %v6497, %v6493
    %v6670 = vpack.c.b16 %v6498, %v6494
    %v6671 = vpack.c.b16 %v6499, %v6495
    %v6672 = vpack.c.b16 %v6504, %v6500
    %v6673 = vpack.c.b16 %v6505, %v6501
    %v6674 = vpack.c.b16 %v6506, %v6502
    %v6675 = vpack.c.b16 %v6507, %v6503
    %v6676 = vpack.c.b16 %v6512, %v6508
    %v6677 = vpack.c.b16 %v6513, %v6509
    %v6678 = vpack.c.b16 %v6514, %v6510
    %v6679 = vpack.c.b16 %v6515, %v6511
    %v6680 = vpack.c.b16 %v6520, %v6516
    %v6681 = vpack.c.b16 %v6521, %v6517
    %v6682 = vpack.c.b16 %v6522, %v6518
    %v6683 = vpack.c.b16 %v6523, %v6519
    %v6684 = vpack.c.b16 %v6528, %v6524
    %v6685 = vpack.c.b16 %v6529, %v6525
    %v6686 = vpack.c.b16 %v6530, %v6526
    %v6687 = vpack.c.b16 %v6531, %v6527
    %v6688 = vpack.c.b16 %v6536, %v6532
    %v6689 = vpack.c.b16 %v6537, %v6533
    %v6690 = vpack.c.b16 %v6538, %v6534
    %v6691 = vpack.c.b16 %v6539, %v6535
    %v6692 = vpack.c.b16 %v6544, %v6540
    %v6693 = vpack.c.b16 %v6545, %v6541
    %v6694 = vpack.c.b16 %v6546, %v6542
    %v6695 = vpack.c.b16 %v6547, %v6543
    %v6696 = vpack.c.b16 %v6552, %v6548
    %v6697 = vpack.c.b16 %v6553, %v6549
    %v6698 = vpack.c.b16 %v6554, %v6550
    %v6699 = vpack.c.b16 %v6555, %v6551
    %v6700 = vpack.c.b16 %v6560, %v6556
    %v6701 = vpack.c.b16 %v6561, %v6557
    %v6702 = vpack.c.b16 %v6562, %v6558
    %v6703 = vpack.c.b16 %v6563, %v6559
    %v6704 = vpack.c.b16 %v6568, %v6564
    %v6705 = vpack.c.b16 %v6569, %v6565
    %v6706 = vpack.c.b16 %v6570, %v6566
    %v6707 = vpack.c.b16 %v6571, %v6567
    %v6708 = vpack.c.b16 %v6576, %v6572
    %v6709 = vpack.c.b16 %v6577, %v6573
    %v6710 = vpack.c.b16 %v6578, %v6574
    %v6711 = vpack.c.b16 %v6579, %v6575
    %v6712 = vpack.c.b16 %v6584, %v6580
    %v6713 = vpack.c.b16 %v6585, %v6581
    %v6714 = vpack.c.b16 %v6586, %v6582
    %v6715 = vpack.c.b16 %v6587, %v6583
    %6844 = vmatprep.subr.bf16.mxu0 %v6617
    %6845 = vmatpush1.bf16.msra.mxu0 %v6616
    %6846 = vmatprep.subr.bf16.mxu0 %v6613
    %6847 = vmatpush1.bf16.msra.mxu0 %v6612
    %6848 = vmatprep.subr.bf16.mxu0 %v6609
    %6849 = vmatpush1.bf16.msra.mxu0 %v6608
    %6850 = vmatprep.subr.bf16.mxu0 %v6605
    %6851 = vmatpush1.bf16.msra.mxu0 %v6604
    %6852 = vmatprep.subr.bf16.mxu0 %v6601
    %6853 = vmatpush1.bf16.msra.mxu0 %v6600
    %6854 = vmatprep.subr.bf16.mxu0 %v6597
    %6855 = vmatpush1.bf16.msra.mxu0 %v6596
    %6856 = vmatprep.subr.bf16.mxu0 %v6593
    %6857 = vmatpush1.bf16.msra.mxu0 %v6592
    %6858 = vmatprep.subr.bf16.mxu0 %v6589
    %6859 = vmatpush1.bf16.msra.mxu0 %v6588
    %6860 = vmatprep.subr.bf16.mxu0 %v6649
    %6861 = vmatpush2.bf16.msra.mxu0 %v6648
    %6862 = vmatprep.subr.bf16.mxu0 %v6645
    %6863 = vmatpush2.bf16.msra.mxu0 %v6644
    %6864 = vmatprep.subr.bf16.mxu0 %v6641
    %6865 = vmatpush2.bf16.msra.mxu0 %v6640
    %6866 = vmatprep.subr.bf16.mxu0 %v6637
    %6867 = vmatpush2.bf16.msra.mxu0 %v6636
    %6868 = vmatprep.subr.bf16.mxu0 %v6633
    %6869 = vmatpush2.bf16.msra.mxu0 %v6632
    %6870 = vmatprep.subr.bf16.mxu0 %v6629
    %6871 = vmatpush2.bf16.msra.mxu0 %v6628
    %6872 = vmatprep.subr.bf16.mxu0 %v6625
    %6873 = vmatpush2.bf16.msra.mxu0 %v6624
    %6874 = vmatprep.subr.bf16.mxu0 %v6621
    %6875 = vmatpush2.bf16.msra.mxu0 %v6620
    %6876 = vmatprep.mubr.bf16.mxu0 %v6051
    %6877 = vmatmul.mubr.bf16.gmra.mxu0 %v6050
    %v6878 = vpop.f32.mrf.mxu0
    %v6879 = vadd.f32 %v6187, %v6878
    %v6880 = vpop.f32.mrf.mxu0
    %v6881 = vadd.f32 %v6191, %v6880
    %v6882 = vpop.f32.mrf.mxu0
    %v6883 = vadd.f32 %v6187, %v6882
    %v6884 = vpop.f32.mrf.mxu0
    %v6885 = vadd.f32 %v6191, %v6884
    %6886 = vdwg.mxu0
    %6887 = vmatprep.subr.bf16.mxu0 %v6681
    %6888 = vmatpush1.bf16.msra.mxu0 %v6680
    %6889 = vmatprep.subr.bf16.mxu0 %v6677
    %6890 = vmatpush1.bf16.msra.mxu0 %v6676
    %6891 = vmatprep.subr.bf16.mxu0 %v6673
    %6892 = vmatpush1.bf16.msra.mxu0 %v6672
    %6893 = vmatprep.subr.bf16.mxu0 %v6669
    %6894 = vmatpush1.bf16.msra.mxu0 %v6668
    %6895 = vmatprep.subr.bf16.mxu0 %v6665
    %6896 = vmatpush1.bf16.msra.mxu0 %v6664
    %6897 = vmatprep.subr.bf16.mxu0 %v6661
    %6898 = vmatpush1.bf16.msra.mxu0 %v6660
    %6899 = vmatprep.subr.bf16.mxu0 %v6657
    %6900 = vmatpush1.bf16.msra.mxu0 %v6656
    %6901 = vmatprep.subr.bf16.mxu0 %v6653
    %6902 = vmatpush1.bf16.msra.mxu0 %v6652
    %6903 = vmatprep.subr.bf16.mxu0 %v6713
    %6904 = vmatpush2.bf16.msra.mxu0 %v6712
    %6905 = vmatprep.subr.bf16.mxu0 %v6709
    %6906 = vmatpush2.bf16.msra.mxu0 %v6708
    %6907 = vmatprep.subr.bf16.mxu0 %v6705
    %6908 = vmatpush2.bf16.msra.mxu0 %v6704
    %6909 = vmatprep.subr.bf16.mxu0 %v6701
    %6910 = vmatpush2.bf16.msra.mxu0 %v6700
    %6911 = vmatprep.subr.bf16.mxu0 %v6697
    %6912 = vmatpush2.bf16.msra.mxu0 %v6696
    %6913 = vmatprep.subr.bf16.mxu0 %v6693
    %6914 = vmatpush2.bf16.msra.mxu0 %v6692
    %6915 = vmatprep.subr.bf16.mxu0 %v6689
    %6916 = vmatpush2.bf16.msra.mxu0 %v6688
    %6917 = vmatprep.subr.bf16.mxu0 %v6685
    %6918 = vmatpush2.bf16.msra.mxu0 %v6684
    %6919 = vmatprep.mubr.bf16.mxu0 %v6053
    %6920 = vmatmul.mubr.bf16.gmra.mxu0 %v6052
    %v6921 = vpop.f32.mrf.mxu0
    %v6922 = vadd.f32 %v6879, %v6921
    %v6923 = vpop.f32.mrf.mxu0
    %v6924 = vadd.f32 %v6881, %v6923
    %v6925 = vpop.f32.mrf.mxu0
    %v6926 = vadd.f32 %v6883, %v6925
    %v6927 = vpop.f32.mrf.mxu0
    %v6928 = vadd.f32 %v6885, %v6927
    %6929 = vdwg.mxu0
    %6930 = vmatprep.subr.bf16.mxu0 %v6619
    %6931 = vmatpush1.bf16.msra.mxu0 %v6618
    %6932 = vmatprep.subr.bf16.mxu0 %v6615
    %6933 = vmatpush1.bf16.msra.mxu0 %v6614
    %6934 = vmatprep.subr.bf16.mxu0 %v6611
    %6935 = vmatpush1.bf16.msra.mxu0 %v6610
    %6936 = vmatprep.subr.bf16.mxu0 %v6607
    %6937 = vmatpush1.bf16.msra.mxu0 %v6606
    %6938 = vmatprep.subr.bf16.mxu0 %v6603
    %6939 = vmatpush1.bf16.msra.mxu0 %v6602
    %6940 = vmatprep.subr.bf16.mxu0 %v6599
    %6941 = vmatpush1.bf16.msra.mxu0 %v6598
    %6942 = vmatprep.subr.bf16.mxu0 %v6595
    %6943 = vmatpush1.bf16.msra.mxu0 %v6594
    %6944 = vmatprep.subr.bf16.mxu0 %v6591
    %6945 = vmatpush1.bf16.msra.mxu0 %v6590
    %6946 = vmatprep.subr.bf16.mxu0 %v6651
    %6947 = vmatpush2.bf16.msra.mxu0 %v6650
    %6948 = vmatprep.subr.bf16.mxu0 %v6647
    %6949 = vmatpush2.bf16.msra.mxu0 %v6646
    %6950 = vmatprep.subr.bf16.mxu0 %v6643
    %6951 = vmatpush2.bf16.msra.mxu0 %v6642
    %6952 = vmatprep.subr.bf16.mxu0 %v6639
    %6953 = vmatpush2.bf16.msra.mxu0 %v6638
    %6954 = vmatprep.subr.bf16.mxu0 %v6635
    %6955 = vmatpush2.bf16.msra.mxu0 %v6634
    %6956 = vmatprep.subr.bf16.mxu0 %v6631
    %6957 = vmatpush2.bf16.msra.mxu0 %v6630
    %6958 = vmatprep.subr.bf16.mxu0 %v6627
    %6959 = vmatpush2.bf16.msra.mxu0 %v6626
    %6960 = vmatprep.subr.bf16.mxu0 %v6623
    %6961 = vmatpush2.bf16.msra.mxu0 %v6622
    %6962 = vmatprep.mubr.bf16.mxu0 %v6051
    %6963 = vmatmul.mubr.bf16.gmra.mxu0 %v6050
    %v6964 = vpop.f32.mrf.mxu0
    %v6965 = vadd.f32 %v6195, %v6964
    %v6966 = vpop.f32.mrf.mxu0
    %v6967 = vadd.f32 %v6199, %v6966
    %v6968 = vpop.f32.mrf.mxu0
    %v6969 = vadd.f32 %v6195, %v6968
    %v6970 = vpop.f32.mrf.mxu0
    %v6971 = vadd.f32 %v6199, %v6970
    %6972 = vdwg.mxu0
    %6973 = vmatprep.subr.bf16.mxu0 %v6683
    %6974 = vmatpush1.bf16.msra.mxu0 %v6682
    %6975 = vmatprep.subr.bf16.mxu0 %v6679
    %6976 = vmatpush1.bf16.msra.mxu0 %v6678
    %6977 = vmatprep.subr.bf16.mxu0 %v6675
    %6978 = vmatpush1.bf16.msra.mxu0 %v6674
    %6979 = vmatprep.subr.bf16.mxu0 %v6671
    %6980 = vmatpush1.bf16.msra.mxu0 %v6670
    %6981 = vmatprep.subr.bf16.mxu0 %v6667
    %6982 = vmatpush1.bf16.msra.mxu0 %v6666
    %6983 = vmatprep.subr.bf16.mxu0 %v6663
    %6984 = vmatpush1.bf16.msra.mxu0 %v6662
    %6985 = vmatprep.subr.bf16.mxu0 %v6659
    %6986 = vmatpush1.bf16.msra.mxu0 %v6658
    %6987 = vmatprep.subr.bf16.mxu0 %v6655
    %6988 = vmatpush1.bf16.msra.mxu0 %v6654
    %6989 = vmatprep.subr.bf16.mxu0 %v6715
    %6990 = vmatpush2.bf16.msra.mxu0 %v6714
    %6991 = vmatprep.subr.bf16.mxu0 %v6711
    %6992 = vmatpush2.bf16.msra.mxu0 %v6710
    %6993 = vmatprep.subr.bf16.mxu0 %v6707
    %6994 = vmatpush2.bf16.msra.mxu0 %v6706
    %6995 = vmatprep.subr.bf16.mxu0 %v6703
    %6996 = vmatpush2.bf16.msra.mxu0 %v6702
    %6997 = vmatprep.subr.bf16.mxu0 %v6699
    %6998 = vmatpush2.bf16.msra.mxu0 %v6698
    %6999 = vmatprep.subr.bf16.mxu0 %v6695
    %7000 = vmatpush2.bf16.msra.mxu0 %v6694
    %7001 = vmatprep.subr.bf16.mxu0 %v6691
    %7002 = vmatpush2.bf16.msra.mxu0 %v6690
    %7003 = vmatprep.subr.bf16.mxu0 %v6687
    %7004 = vmatpush2.bf16.msra.mxu0 %v6686
    %7005 = vmatprep.mubr.bf16.mxu0 %v6053
    %7006 = vmatmul.mubr.bf16.gmra.mxu0 %v6052
    %v7007 = vpop.f32.mrf.mxu0
    %v7008 = vadd.f32 %v6965, %v7007
    %v7009 = vpop.f32.mrf.mxu0
    %v7010 = vadd.f32 %v6967, %v7009
    %v7011 = vpop.f32.mrf.mxu0
    %v7012 = vadd.f32 %v6969, %v7011
    %v7013 = vpop.f32.mrf.mxu0
    %v7014 = vadd.f32 %v6971, %v7013
    %7015 = vdwg.mxu0
    %v7016 = vunpack.c.l.bf16 %v6050
    %v7017 = vunpack.c.l.bf16 %v6051
    %v7018 = vunpack.c.l.bf16 %v6052
    %v7019 = vunpack.c.l.bf16 %v6053
    %v7020 = vunpack.c.h.bf16 %v6050
    %v7021 = vunpack.c.h.bf16 %v6051
    %v7022 = vunpack.c.h.bf16 %v6052
    %v7023 = vunpack.c.h.bf16 %v6053
    %v7024 = vadd.f32 %v6922, %v7016
    %v7025 = vadd.f32 %v6924, %v7017
    %v7026 = vadd.f32 %v7008, %v7018
    %v7027 = vadd.f32 %v7010, %v7019
    %v7028 = vadd.f32 %v6926, %v7020
    %v7029 = vadd.f32 %v6928, %v7021
    %v7030 = vadd.f32 %v7012, %v7022
    %v7031 = vadd.f32 %v7014, %v7023
    %v7032 = vmul.f32 %v7024, 0.02
    %v7033 = vmul.f32 %v7025, 0.02
    %v7034 = vmul.f32 %v7026, 0.02
    %v7035 = vmul.f32 %v7027, 0.02
    %v7036 = vmul.f32 %v7028, 0.02
    %v7037 = vmul.f32 %v7029, 0.02
    %v7038 = vmul.f32 %v7030, 0.02
    %v7039 = vmul.f32 %v7031, 0.02
    %v7040 = vmax.f32 %v7024, %v7032
    %v7041 = vmax.f32 %v7025, %v7033
    %v7042 = vmax.f32 %v7026, %v7034
    %v7043 = vmax.f32 %v7027, %v7035
    %v7044 = vmax.f32 %v7028, %v7036
    %v7045 = vmax.f32 %v7029, %v7037
    %v7046 = vmax.f32 %v7030, %v7038
    %v7047 = vmax.f32 %v7031, %v7039
    %v7048 = vpack.c.bf16 %v7044, %v7040
    %v7049 = vpack.c.bf16 %v7045, %v7041
    %v7050 = vpack.c.bf16 %v7046, %v7042
    %v7051 = vpack.c.bf16 %v7047, %v7043
    %v7052 = vld [vmem:[#allocation14] sm:$0xff]
    %v7053 = vld [vmem:[#allocation14 + $0x8] sm:$0xff]
    %v7054 = vld [vmem:[#allocation14 + $0x10] sm:$0xff]
    %v7055 = vld [vmem:[#allocation14 + $0x18] sm:$0xff]
    %v7056 = vld [vmem:[#allocation14 + $0x20] sm:$0xff]
    %v7057 = vld [vmem:[#allocation14 + $0x28] sm:$0xff]
    %v7058 = vld [vmem:[#allocation14 + $0x30] sm:$0xff]
    %v7059 = vld [vmem:[#allocation14 + $0x38] sm:$0xff]
    %v7060 = vld [vmem:[#allocation14 + $0x40] sm:$0xff]
    %v7061 = vld [vmem:[#allocation14 + $0x48] sm:$0xff]
    %v7062 = vld [vmem:[#allocation14 + $0x50] sm:$0xff]
    %v7063 = vld [vmem:[#allocation14 + $0x58] sm:$0xff]
    %v7064 = vld [vmem:[#allocation14 + $0x60] sm:$0xff]
    %v7065 = vld [vmem:[#allocation14 + $0x68] sm:$0xff]
    %v7066 = vld [vmem:[#allocation14 + $0x70] sm:$0xff]
    %v7067 = vld [vmem:[#allocation14 + $0x78] sm:$0xff]
    %v7068 = vld [vmem:[#allocation14 + $0x80] sm:$0xff]
    %v7069 = vld [vmem:[#allocation14 + $0x88] sm:$0xff]
    %v7070 = vld [vmem:[#allocation14 + $0x90] sm:$0xff]
    %v7071 = vld [vmem:[#allocation14 + $0x98] sm:$0xff]
    %v7072 = vld [vmem:[#allocation14 + $0xa0] sm:$0xff]
    %v7073 = vld [vmem:[#allocation14 + $0xa8] sm:$0xff]
    %v7074 = vld [vmem:[#allocation14 + $0xb0] sm:$0xff]
    %v7075 = vld [vmem:[#allocation14 + $0xb8] sm:$0xff]
    %v7076 = vld [vmem:[#allocation14 + $0xc0] sm:$0xff]
    %v7077 = vld [vmem:[#allocation14 + $0xc8] sm:$0xff]
    %v7078 = vld [vmem:[#allocation14 + $0xd0] sm:$0xff]
    %v7079 = vld [vmem:[#allocation14 + $0xd8] sm:$0xff]
    %v7080 = vld [vmem:[#allocation14 + $0xe0] sm:$0xff]
    %v7081 = vld [vmem:[#allocation14 + $0xe8] sm:$0xff]
    %v7082 = vld [vmem:[#allocation14 + $0xf0] sm:$0xff]
    %v7083 = vld [vmem:[#allocation14 + $0xf8] sm:$0xff]
    %v7084 = vld [vmem:[#allocation14 + $0x100] sm:$0xff]
    %v7085 = vld [vmem:[#allocation14 + $0x108] sm:$0xff]
    %v7086 = vld [vmem:[#allocation14 + $0x110] sm:$0xff]
    %v7087 = vld [vmem:[#allocation14 + $0x118] sm:$0xff]
    %v7088 = vld [vmem:[#allocation14 + $0x120] sm:$0xff]
    %v7089 = vld [vmem:[#allocation14 + $0x128] sm:$0xff]
    %v7090 = vld [vmem:[#allocation14 + $0x130] sm:$0xff]
    %v7091 = vld [vmem:[#allocation14 + $0x138] sm:$0xff]
    %v7092 = vld [vmem:[#allocation14 + $0x140] sm:$0xff]
    %v7093 = vld [vmem:[#allocation14 + $0x148] sm:$0xff]
    %v7094 = vld [vmem:[#allocation14 + $0x150] sm:$0xff]
    %v7095 = vld [vmem:[#allocation14 + $0x158] sm:$0xff]
    %v7096 = vld [vmem:[#allocation14 + $0x160] sm:$0xff]
    %v7097 = vld [vmem:[#allocation14 + $0x168] sm:$0xff]
    %v7098 = vld [vmem:[#allocation14 + $0x170] sm:$0xff]
    %v7099 = vld [vmem:[#allocation14 + $0x178] sm:$0xff]
    %v7100 = vld [vmem:[#allocation14 + $0x180] sm:$0xff]
    %v7101 = vld [vmem:[#allocation14 + $0x188] sm:$0xff]
    %v7102 = vld [vmem:[#allocation14 + $0x190] sm:$0xff]
    %v7103 = vld [vmem:[#allocation14 + $0x198] sm:$0xff]
    %v7104 = vld [vmem:[#allocation14 + $0x1a0] sm:$0xff]
    %v7105 = vld [vmem:[#allocation14 + $0x1a8] sm:$0xff]
    %v7106 = vld [vmem:[#allocation14 + $0x1b0] sm:$0xff]
    %v7107 = vld [vmem:[#allocation14 + $0x1b8] sm:$0xff]
    %v7108 = vld [vmem:[#allocation14 + $0x1c0] sm:$0xff]
    %v7109 = vld [vmem:[#allocation14 + $0x1c8] sm:$0xff]
    %v7110 = vld [vmem:[#allocation14 + $0x1d0] sm:$0xff]
    %v7111 = vld [vmem:[#allocation14 + $0x1d8] sm:$0xff]
    %v7112 = vld [vmem:[#allocation14 + $0x1e0] sm:$0xff]
    %v7113 = vld [vmem:[#allocation14 + $0x1e8] sm:$0xff]
    %v7114 = vld [vmem:[#allocation14 + $0x1f0] sm:$0xff]
    %v7115 = vld [vmem:[#allocation14 + $0x1f8] sm:$0xff]
    %v7116 = vld [vmem:[#allocation16] sm:$0x3]
    %v7118 = vlaneseq
    %v7119 = vshrl.u32 %v7118, 7
    %v7120 = vsub.s32 0, %v7119
    %v7121 = vrot.slane %v7116, %v7120
    %v7122 = vlaneseq
    %v7123 = vshrl.u32 %v7122, 7
    %v7124 = vsub.s32 1, %v7123
    %v7125 = vrot.slane %v7116, %v7124
    %v7192 = vunpack.c.l.b16 %v7052
    %v7193 = vunpack.c.h.b16 %v7052
    %v7194 = vunpack.c.l.b16 %v7053
    %v7195 = vunpack.c.h.b16 %v7053
    %v7196 = vunpack.c.l.b16 %v7054
    %v7197 = vunpack.c.h.b16 %v7054
    %v7198 = vunpack.c.l.b16 %v7055
    %v7199 = vunpack.c.h.b16 %v7055
    %v7200 = vunpack.c.l.b16 %v7056
    %v7201 = vunpack.c.h.b16 %v7056
    %v7202 = vunpack.c.l.b16 %v7057
    %v7203 = vunpack.c.h.b16 %v7057
    %v7204 = vunpack.c.l.b16 %v7058
    %v7205 = vunpack.c.h.b16 %v7058
    %v7206 = vunpack.c.l.b16 %v7059
    %v7207 = vunpack.c.h.b16 %v7059
    %v7208 = vunpack.c.l.b16 %v7060
    %v7209 = vunpack.c.h.b16 %v7060
    %v7210 = vunpack.c.l.b16 %v7061
    %v7211 = vunpack.c.h.b16 %v7061
    %v7212 = vunpack.c.l.b16 %v7062
    %v7213 = vunpack.c.h.b16 %v7062
    %v7214 = vunpack.c.l.b16 %v7063
    %v7215 = vunpack.c.h.b16 %v7063
    %v7216 = vunpack.c.l.b16 %v7064
    %v7217 = vunpack.c.h.b16 %v7064
    %v7218 = vunpack.c.l.b16 %v7065
    %v7219 = vunpack.c.h.b16 %v7065
    %v7220 = vunpack.c.l.b16 %v7066
    %v7221 = vunpack.c.h.b16 %v7066
    %v7222 = vunpack.c.l.b16 %v7067
    %v7223 = vunpack.c.h.b16 %v7067
    %v7224 = vunpack.c.l.b16 %v7068
    %v7225 = vunpack.c.h.b16 %v7068
    %v7226 = vunpack.c.l.b16 %v7069
    %v7227 = vunpack.c.h.b16 %v7069
    %v7228 = vunpack.c.l.b16 %v7070
    %v7229 = vunpack.c.h.b16 %v7070
    %v7230 = vunpack.c.l.b16 %v7071
    %v7231 = vunpack.c.h.b16 %v7071
    %v7232 = vunpack.c.l.b16 %v7072
    %v7233 = vunpack.c.h.b16 %v7072
    %v7234 = vunpack.c.l.b16 %v7073
    %v7235 = vunpack.c.h.b16 %v7073
    %v7236 = vunpack.c.l.b16 %v7074
    %v7237 = vunpack.c.h.b16 %v7074
    %v7238 = vunpack.c.l.b16 %v7075
    %v7239 = vunpack.c.h.b16 %v7075
    %v7240 = vunpack.c.l.b16 %v7076
    %v7241 = vunpack.c.h.b16 %v7076
    %v7242 = vunpack.c.l.b16 %v7077
    %v7243 = vunpack.c.h.b16 %v7077
    %v7244 = vunpack.c.l.b16 %v7078
    %v7245 = vunpack.c.h.b16 %v7078
    %v7246 = vunpack.c.l.b16 %v7079
    %v7247 = vunpack.c.h.b16 %v7079
    %v7248 = vunpack.c.l.b16 %v7080
    %v7249 = vunpack.c.h.b16 %v7080
    %v7250 = vunpack.c.l.b16 %v7081
    %v7251 = vunpack.c.h.b16 %v7081
    %v7252 = vunpack.c.l.b16 %v7082
    %v7253 = vunpack.c.h.b16 %v7082
    %v7254 = vunpack.c.l.b16 %v7083
    %v7255 = vunpack.c.h.b16 %v7083
    %v7256 = vunpack.c.l.b16 %v7084
    %v7257 = vunpack.c.h.b16 %v7084
    %v7258 = vunpack.c.l.b16 %v7085
    %v7259 = vunpack.c.h.b16 %v7085
    %v7260 = vunpack.c.l.b16 %v7086
    %v7261 = vunpack.c.h.b16 %v7086
    %v7262 = vunpack.c.l.b16 %v7087
    %v7263 = vunpack.c.h.b16 %v7087
    %v7264 = vunpack.c.l.b16 %v7088
    %v7265 = vunpack.c.h.b16 %v7088
    %v7266 = vunpack.c.l.b16 %v7089
    %v7267 = vunpack.c.h.b16 %v7089
    %v7268 = vunpack.c.l.b16 %v7090
    %v7269 = vunpack.c.h.b16 %v7090
    %v7270 = vunpack.c.l.b16 %v7091
    %v7271 = vunpack.c.h.b16 %v7091
    %v7272 = vunpack.c.l.b16 %v7092
    %v7273 = vunpack.c.h.b16 %v7092
    %v7274 = vunpack.c.l.b16 %v7093
    %v7275 = vunpack.c.h.b16 %v7093
    %v7276 = vunpack.c.l.b16 %v7094
    %v7277 = vunpack.c.h.b16 %v7094
    %v7278 = vunpack.c.l.b16 %v7095
    %v7279 = vunpack.c.h.b16 %v7095
    %v7280 = vunpack.c.l.b16 %v7096
    %v7281 = vunpack.c.h.b16 %v7096
    %v7282 = vunpack.c.l.b16 %v7097
    %v7283 = vunpack.c.h.b16 %v7097
    %v7284 = vunpack.c.l.b16 %v7098
    %v7285 = vunpack.c.h.b16 %v7098
    %v7286 = vunpack.c.l.b16 %v7099
    %v7287 = vunpack.c.h.b16 %v7099
    %v7288 = vunpack.c.l.b16 %v7100
    %v7289 = vunpack.c.h.b16 %v7100
    %v7290 = vunpack.c.l.b16 %v7101
    %v7291 = vunpack.c.h.b16 %v7101
    %v7292 = vunpack.c.l.b16 %v7102
    %v7293 = vunpack.c.h.b16 %v7102
    %v7294 = vunpack.c.l.b16 %v7103
    %v7295 = vunpack.c.h.b16 %v7103
    %v7296 = vunpack.c.l.b16 %v7104
    %v7297 = vunpack.c.h.b16 %v7104
    %v7298 = vunpack.c.l.b16 %v7105
    %v7299 = vunpack.c.h.b16 %v7105
    %v7300 = vunpack.c.l.b16 %v7106
    %v7301 = vunpack.c.h.b16 %v7106
    %v7302 = vunpack.c.l.b16 %v7107
    %v7303 = vunpack.c.h.b16 %v7107
    %v7304 = vunpack.c.l.b16 %v7108
    %v7305 = vunpack.c.h.b16 %v7108
    %v7306 = vunpack.c.l.b16 %v7109
    %v7307 = vunpack.c.h.b16 %v7109
    %v7308 = vunpack.c.l.b16 %v7110
    %v7309 = vunpack.c.h.b16 %v7110
    %v7310 = vunpack.c.l.b16 %v7111
    %v7311 = vunpack.c.h.b16 %v7111
    %v7312 = vunpack.c.l.b16 %v7112
    %v7313 = vunpack.c.h.b16 %v7112
    %v7314 = vunpack.c.l.b16 %v7113
    %v7315 = vunpack.c.h.b16 %v7113
    %v7316 = vunpack.c.l.b16 %v7114
    %v7317 = vunpack.c.h.b16 %v7114
    %v7318 = vunpack.c.l.b16 %v7115
    %v7319 = vunpack.c.h.b16 %v7115
    %v7320 = vpack.c.b16 %v7194, %v7192
    %v7321 = vpack.c.b16 %v7195, %v7193
    %v7322 = vpack.c.b16 %v7198, %v7196
    %v7323 = vpack.c.b16 %v7199, %v7197
    %v7324 = vpack.c.b16 %v7202, %v7200
    %v7325 = vpack.c.b16 %v7203, %v7201
    %v7326 = vpack.c.b16 %v7206, %v7204
    %v7327 = vpack.c.b16 %v7207, %v7205
    %v7328 = vpack.c.b16 %v7210, %v7208
    %v7329 = vpack.c.b16 %v7211, %v7209
    %v7330 = vpack.c.b16 %v7214, %v7212
    %v7331 = vpack.c.b16 %v7215, %v7213
    %v7332 = vpack.c.b16 %v7218, %v7216
    %v7333 = vpack.c.b16 %v7219, %v7217
    %v7334 = vpack.c.b16 %v7222, %v7220
    %v7335 = vpack.c.b16 %v7223, %v7221
    %v7336 = vpack.c.b16 %v7226, %v7224
    %v7337 = vpack.c.b16 %v7227, %v7225
    %v7338 = vpack.c.b16 %v7230, %v7228
    %v7339 = vpack.c.b16 %v7231, %v7229
    %v7340 = vpack.c.b16 %v7234, %v7232
    %v7341 = vpack.c.b16 %v7235, %v7233
    %v7342 = vpack.c.b16 %v7238, %v7236
    %v7343 = vpack.c.b16 %v7239, %v7237
    %v7344 = vpack.c.b16 %v7242, %v7240
    %v7345 = vpack.c.b16 %v7243, %v7241
    %v7346 = vpack.c.b16 %v7246, %v7244
    %v7347 = vpack.c.b16 %v7247, %v7245
    %v7348 = vpack.c.b16 %v7250, %v7248
    %v7349 = vpack.c.b16 %v7251, %v7249
    %v7350 = vpack.c.b16 %v7254, %v7252
    %v7351 = vpack.c.b16 %v7255, %v7253
    %v7352 = vpack.c.b16 %v7258, %v7256
    %v7353 = vpack.c.b16 %v7259, %v7257
    %v7354 = vpack.c.b16 %v7262, %v7260
    %v7355 = vpack.c.b16 %v7263, %v7261
    %v7356 = vpack.c.b16 %v7266, %v7264
    %v7357 = vpack.c.b16 %v7267, %v7265
    %v7358 = vpack.c.b16 %v7270, %v7268
    %v7359 = vpack.c.b16 %v7271, %v7269
    %v7360 = vpack.c.b16 %v7274, %v7272
    %v7361 = vpack.c.b16 %v7275, %v7273
    %v7362 = vpack.c.b16 %v7278, %v7276
    %v7363 = vpack.c.b16 %v7279, %v7277
    %v7364 = vpack.c.b16 %v7282, %v7280
    %v7365 = vpack.c.b16 %v7283, %v7281
    %v7366 = vpack.c.b16 %v7286, %v7284
    %v7367 = vpack.c.b16 %v7287, %v7285
    %v7368 = vpack.c.b16 %v7290, %v7288
    %v7369 = vpack.c.b16 %v7291, %v7289
    %v7370 = vpack.c.b16 %v7294, %v7292
    %v7371 = vpack.c.b16 %v7295, %v7293
    %v7372 = vpack.c.b16 %v7298, %v7296
    %v7373 = vpack.c.b16 %v7299, %v7297
    %v7374 = vpack.c.b16 %v7302, %v7300
    %v7375 = vpack.c.b16 %v7303, %v7301
    %v7376 = vpack.c.b16 %v7306, %v7304
    %v7377 = vpack.c.b16 %v7307, %v7305
    %v7378 = vpack.c.b16 %v7310, %v7308
    %v7379 = vpack.c.b16 %v7311, %v7309
    %v7380 = vpack.c.b16 %v7314, %v7312
    %v7381 = vpack.c.b16 %v7315, %v7313
    %v7382 = vpack.c.b16 %v7318, %v7316
    %v7383 = vpack.c.b16 %v7319, %v7317
    %7448 = vmatprep.subr.bf16.mxu0 %v7335
    %7449 = vmatpush1.bf16.msra.mxu0 %v7334
    %7450 = vmatprep.subr.bf16.mxu0 %v7333
    %7451 = vmatpush1.bf16.msra.mxu0 %v7332
    %7452 = vmatprep.subr.bf16.mxu0 %v7331
    %7453 = vmatpush1.bf16.msra.mxu0 %v7330
    %7454 = vmatprep.subr.bf16.mxu0 %v7329
    %7455 = vmatpush1.bf16.msra.mxu0 %v7328
    %7456 = vmatprep.subr.bf16.mxu0 %v7327
    %7457 = vmatpush1.bf16.msra.mxu0 %v7326
    %7458 = vmatprep.subr.bf16.mxu0 %v7325
    %7459 = vmatpush1.bf16.msra.mxu0 %v7324
    %7460 = vmatprep.subr.bf16.mxu0 %v7323
    %7461 = vmatpush1.bf16.msra.mxu0 %v7322
    %7462 = vmatprep.subr.bf16.mxu0 %v7321
    %7463 = vmatpush1.bf16.msra.mxu0 %v7320
    %7464 = vmatprep.subr.bf16.mxu0 %v7351
    %7465 = vmatpush2.bf16.msra.mxu0 %v7350
    %7466 = vmatprep.subr.bf16.mxu0 %v7349
    %7467 = vmatpush2.bf16.msra.mxu0 %v7348
    %7468 = vmatprep.subr.bf16.mxu0 %v7347
    %7469 = vmatpush2.bf16.msra.mxu0 %v7346
    %7470 = vmatprep.subr.bf16.mxu0 %v7345
    %7471 = vmatpush2.bf16.msra.mxu0 %v7344
    %7472 = vmatprep.subr.bf16.mxu0 %v7343
    %7473 = vmatpush2.bf16.msra.mxu0 %v7342
    %7474 = vmatprep.subr.bf16.mxu0 %v7341
    %7475 = vmatpush2.bf16.msra.mxu0 %v7340
    %7476 = vmatprep.subr.bf16.mxu0 %v7339
    %7477 = vmatpush2.bf16.msra.mxu0 %v7338
    %7478 = vmatprep.subr.bf16.mxu0 %v7337
    %7479 = vmatpush2.bf16.msra.mxu0 %v7336
    %7480 = vmatprep.mubr.bf16.mxu0 %v7049
    %7481 = vmatmul.mubr.bf16.gmra.mxu0 %v7048
    %v7482 = vpop.f32.mrf.mxu0
    %v7483 = vadd.f32 %v7121, %v7482
    %v7484 = vpop.f32.mrf.mxu0
    %v7485 = vadd.f32 %v7125, %v7484
    %v7486 = vpop.f32.mrf.mxu0
    %v7487 = vadd.f32 %v7121, %v7486
    %v7488 = vpop.f32.mrf.mxu0
    %v7489 = vadd.f32 %v7125, %v7488
    %7490 = vdwg.mxu0
    %7491 = vmatprep.subr.bf16.mxu0 %v7367
    %7492 = vmatpush1.bf16.msra.mxu0 %v7366
    %7493 = vmatprep.subr.bf16.mxu0 %v7365
    %7494 = vmatpush1.bf16.msra.mxu0 %v7364
    %7495 = vmatprep.subr.bf16.mxu0 %v7363
    %7496 = vmatpush1.bf16.msra.mxu0 %v7362
    %7497 = vmatprep.subr.bf16.mxu0 %v7361
    %7498 = vmatpush1.bf16.msra.mxu0 %v7360
    %7499 = vmatprep.subr.bf16.mxu0 %v7359
    %7500 = vmatpush1.bf16.msra.mxu0 %v7358
    %7501 = vmatprep.subr.bf16.mxu0 %v7357
    %7502 = vmatpush1.bf16.msra.mxu0 %v7356
    %7503 = vmatprep.subr.bf16.mxu0 %v7355
    %7504 = vmatpush1.bf16.msra.mxu0 %v7354
    %7505 = vmatprep.subr.bf16.mxu0 %v7353
    %7506 = vmatpush1.bf16.msra.mxu0 %v7352
    %7507 = vmatprep.subr.bf16.mxu0 %v7383
    %7508 = vmatpush2.bf16.msra.mxu0 %v7382
    %7509 = vmatprep.subr.bf16.mxu0 %v7381
    %7510 = vmatpush2.bf16.msra.mxu0 %v7380
    %7511 = vmatprep.subr.bf16.mxu0 %v7379
    %7512 = vmatpush2.bf16.msra.mxu0 %v7378
    %7513 = vmatprep.subr.bf16.mxu0 %v7377
    %7514 = vmatpush2.bf16.msra.mxu0 %v7376
    %7515 = vmatprep.subr.bf16.mxu0 %v7375
    %7516 = vmatpush2.bf16.msra.mxu0 %v7374
    %7517 = vmatprep.subr.bf16.mxu0 %v7373
    %7518 = vmatpush2.bf16.msra.mxu0 %v7372
    %7519 = vmatprep.subr.bf16.mxu0 %v7371
    %7520 = vmatpush2.bf16.msra.mxu0 %v7370
    %7521 = vmatprep.subr.bf16.mxu0 %v7369
    %7522 = vmatpush2.bf16.msra.mxu0 %v7368
    %7523 = vmatprep.mubr.bf16.mxu0 %v7051
    %7524 = vmatmul.mubr.bf16.gmra.mxu0 %v7050
    %v7525 = vpop.f32.mrf.mxu0
    %v7526 = vadd.f32 %v7483, %v7525
    %v7527 = vpop.f32.mrf.mxu0
    %v7528 = vadd.f32 %v7485, %v7527
    %v7529 = vpop.f32.mrf.mxu0
    %v7530 = vadd.f32 %v7487, %v7529
    %v7531 = vpop.f32.mrf.mxu0
    %v7532 = vadd.f32 %v7489, %v7531
    %7533 = vdwg.mxu0
    %v7534 = vmul.f32 %v7526, 0.02
    %v7535 = vmul.f32 %v7528, 0.02
    %v7536 = vmul.f32 %v7530, 0.02
    %v7537 = vmul.f32 %v7532, 0.02
    %v7538 = vmax.f32 %v7526, %v7534
    %v7539 = vmax.f32 %v7528, %v7535
    %v7540 = vmax.f32 %v7530, %v7536
    %v7541 = vmax.f32 %v7532, %v7537
    %v7542 = vpack.c.bf16 %v7540, %v7538
    %v7543 = vpack.c.bf16 %v7541, %v7539
    %v7544 = vld [vmem:[#allocation17] sm:$0xff]
    %v7545 = vld [vmem:[#allocation17 + $0x8] sm:$0xff]
    %v7546 = vld [vmem:[#allocation17 + $0x10] sm:$0xff]
    %v7547 = vld [vmem:[#allocation17 + $0x18] sm:$0xff]
    %v7548 = vld [vmem:[#allocation17 + $0x20] sm:$0xff]
    %v7549 = vld [vmem:[#allocation17 + $0x28] sm:$0xff]
    %v7550 = vld [vmem:[#allocation17 + $0x30] sm:$0xff]
    %v7551 = vld [vmem:[#allocation17 + $0x38] sm:$0xff]
    %v7552 = vld [vmem:[#allocation17 + $0x40] sm:$0xff]
    %v7553 = vld [vmem:[#allocation17 + $0x48] sm:$0xff]
    %v7554 = vld [vmem:[#allocation17 + $0x50] sm:$0xff]
    %v7555 = vld [vmem:[#allocation17 + $0x58] sm:$0xff]
    %v7556 = vld [vmem:[#allocation17 + $0x60] sm:$0xff]
    %v7557 = vld [vmem:[#allocation17 + $0x68] sm:$0xff]
    %v7558 = vld [vmem:[#allocation17 + $0x70] sm:$0xff]
    %v7559 = vld [vmem:[#allocation17 + $0x78] sm:$0xff]
    %v7560 = vld [vmem:[#allocation17 + $0x80] sm:$0xff]
    %v7561 = vld [vmem:[#allocation17 + $0x88] sm:$0xff]
    %v7562 = vld [vmem:[#allocation17 + $0x90] sm:$0xff]
    %v7563 = vld [vmem:[#allocation17 + $0x98] sm:$0xff]
    %v7564 = vld [vmem:[#allocation17 + $0xa0] sm:$0xff]
    %v7565 = vld [vmem:[#allocation17 + $0xa8] sm:$0xff]
    %v7566 = vld [vmem:[#allocation17 + $0xb0] sm:$0xff]
    %v7567 = vld [vmem:[#allocation17 + $0xb8] sm:$0xff]
    %v7568 = vld [vmem:[#allocation17 + $0xc0] sm:$0xff]
    %v7569 = vld [vmem:[#allocation17 + $0xc8] sm:$0xff]
    %v7570 = vld [vmem:[#allocation17 + $0xd0] sm:$0xff]
    %v7571 = vld [vmem:[#allocation17 + $0xd8] sm:$0xff]
    %v7572 = vld [vmem:[#allocation17 + $0xe0] sm:$0xff]
    %v7573 = vld [vmem:[#allocation17 + $0xe8] sm:$0xff]
    %v7574 = vld [vmem:[#allocation17 + $0xf0] sm:$0xff]
    %v7575 = vld [vmem:[#allocation17 + $0xf8] sm:$0xff]
    %v7576 = vld [vmem:[#allocation19] sm:$0x3]
    %v7578 = vlaneseq
    %v7579 = vshrl.u32 %v7578, 7
    %v7580 = vsub.s32 0, %v7579
    %v7581 = vrot.slane %v7576, %v7580
    %v7582 = vlaneseq
    %v7583 = vshrl.u32 %v7582, 7
    %v7584 = vsub.s32 1, %v7583
    %v7585 = vrot.slane %v7576, %v7584
    %v7620 = vunpack.c.l.b16 %v7544
    %v7621 = vunpack.c.h.b16 %v7544
    %v7622 = vunpack.c.l.b16 %v7545
    %v7623 = vunpack.c.h.b16 %v7545
    %v7624 = vunpack.c.l.b16 %v7546
    %v7625 = vunpack.c.h.b16 %v7546
    %v7626 = vunpack.c.l.b16 %v7547
    %v7627 = vunpack.c.h.b16 %v7547
    %v7628 = vunpack.c.l.b16 %v7548
    %v7629 = vunpack.c.h.b16 %v7548
    %v7630 = vunpack.c.l.b16 %v7549
    %v7631 = vunpack.c.h.b16 %v7549
    %v7632 = vunpack.c.l.b16 %v7550
    %v7633 = vunpack.c.h.b16 %v7550
    %v7634 = vunpack.c.l.b16 %v7551
    %v7635 = vunpack.c.h.b16 %v7551
    %v7636 = vunpack.c.l.b16 %v7552
    %v7637 = vunpack.c.h.b16 %v7552
    %v7638 = vunpack.c.l.b16 %v7553
    %v7639 = vunpack.c.h.b16 %v7553
    %v7640 = vunpack.c.l.b16 %v7554
    %v7641 = vunpack.c.h.b16 %v7554
    %v7642 = vunpack.c.l.b16 %v7555
    %v7643 = vunpack.c.h.b16 %v7555
    %v7644 = vunpack.c.l.b16 %v7556
    %v7645 = vunpack.c.h.b16 %v7556
    %v7646 = vunpack.c.l.b16 %v7557
    %v7647 = vunpack.c.h.b16 %v7557
    %v7648 = vunpack.c.l.b16 %v7558
    %v7649 = vunpack.c.h.b16 %v7558
    %v7650 = vunpack.c.l.b16 %v7559
    %v7651 = vunpack.c.h.b16 %v7559
    %v7652 = vunpack.c.l.b16 %v7560
    %v7653 = vunpack.c.h.b16 %v7560
    %v7654 = vunpack.c.l.b16 %v7561
    %v7655 = vunpack.c.h.b16 %v7561
    %v7656 = vunpack.c.l.b16 %v7562
    %v7657 = vunpack.c.h.b16 %v7562
    %v7658 = vunpack.c.l.b16 %v7563
    %v7659 = vunpack.c.h.b16 %v7563
    %v7660 = vunpack.c.l.b16 %v7564
    %v7661 = vunpack.c.h.b16 %v7564
    %v7662 = vunpack.c.l.b16 %v7565
    %v7663 = vunpack.c.h.b16 %v7565
    %v7664 = vunpack.c.l.b16 %v7566
    %v7665 = vunpack.c.h.b16 %v7566
    %v7666 = vunpack.c.l.b16 %v7567
    %v7667 = vunpack.c.h.b16 %v7567
    %v7668 = vunpack.c.l.b16 %v7568
    %v7669 = vunpack.c.h.b16 %v7568
    %v7670 = vunpack.c.l.b16 %v7569
    %v7671 = vunpack.c.h.b16 %v7569
    %v7672 = vunpack.c.l.b16 %v7570
    %v7673 = vunpack.c.h.b16 %v7570
    %v7674 = vunpack.c.l.b16 %v7571
    %v7675 = vunpack.c.h.b16 %v7571
    %v7676 = vunpack.c.l.b16 %v7572
    %v7677 = vunpack.c.h.b16 %v7572
    %v7678 = vunpack.c.l.b16 %v7573
    %v7679 = vunpack.c.h.b16 %v7573
    %v7680 = vunpack.c.l.b16 %v7574
    %v7681 = vunpack.c.h.b16 %v7574
    %v7682 = vunpack.c.l.b16 %v7575
    %v7683 = vunpack.c.h.b16 %v7575
    %v7684 = vpack.c.b16 %v7622, %v7620
    %v7685 = vpack.c.b16 %v7623, %v7621
    %v7686 = vpack.c.b16 %v7626, %v7624
    %v7687 = vpack.c.b16 %v7627, %v7625
    %v7688 = vpack.c.b16 %v7630, %v7628
    %v7689 = vpack.c.b16 %v7631, %v7629
    %v7690 = vpack.c.b16 %v7634, %v7632
    %v7691 = vpack.c.b16 %v7635, %v7633
    %v7692 = vpack.c.b16 %v7638, %v7636
    %v7693 = vpack.c.b16 %v7639, %v7637
    %v7694 = vpack.c.b16 %v7642, %v7640
    %v7695 = vpack.c.b16 %v7643, %v7641
    %v7696 = vpack.c.b16 %v7646, %v7644
    %v7697 = vpack.c.b16 %v7647, %v7645
    %v7698 = vpack.c.b16 %v7650, %v7648
    %v7699 = vpack.c.b16 %v7651, %v7649
    %v7700 = vpack.c.b16 %v7654, %v7652
    %v7701 = vpack.c.b16 %v7655, %v7653
    %v7702 = vpack.c.b16 %v7658, %v7656
    %v7703 = vpack.c.b16 %v7659, %v7657
    %v7704 = vpack.c.b16 %v7662, %v7660
    %v7705 = vpack.c.b16 %v7663, %v7661
    %v7706 = vpack.c.b16 %v7666, %v7664
    %v7707 = vpack.c.b16 %v7667, %v7665
    %v7708 = vpack.c.b16 %v7670, %v7668
    %v7709 = vpack.c.b16 %v7671, %v7669
    %v7710 = vpack.c.b16 %v7674, %v7672
    %v7711 = vpack.c.b16 %v7675, %v7673
    %v7712 = vpack.c.b16 %v7678, %v7676
    %v7713 = vpack.c.b16 %v7679, %v7677
    %v7714 = vpack.c.b16 %v7682, %v7680
    %v7715 = vpack.c.b16 %v7683, %v7681
    %7748 = vmatprep.subr.bf16.mxu0 %v7699
    %7749 = vmatpush1.bf16.msra.mxu0 %v7698
    %7750 = vmatprep.subr.bf16.mxu0 %v7697
    %7751 = vmatpush1.bf16.msra.mxu0 %v7696
    %7752 = vmatprep.subr.bf16.mxu0 %v7695
    %7753 = vmatpush1.bf16.msra.mxu0 %v7694
    %7754 = vmatprep.subr.bf16.mxu0 %v7693
    %7755 = vmatpush1.bf16.msra.mxu0 %v7692
    %7756 = vmatprep.subr.bf16.mxu0 %v7691
    %7757 = vmatpush1.bf16.msra.mxu0 %v7690
    %7758 = vmatprep.subr.bf16.mxu0 %v7689
    %7759 = vmatpush1.bf16.msra.mxu0 %v7688
    %7760 = vmatprep.subr.bf16.mxu0 %v7687
    %7761 = vmatpush1.bf16.msra.mxu0 %v7686
    %7762 = vmatprep.subr.bf16.mxu0 %v7685
    %7763 = vmatpush1.bf16.msra.mxu0 %v7684
    %7764 = vmatprep.subr.bf16.mxu0 %v7715
    %7765 = vmatpush2.bf16.msra.mxu0 %v7714
    %7766 = vmatprep.subr.bf16.mxu0 %v7713
    %7767 = vmatpush2.bf16.msra.mxu0 %v7712
    %7768 = vmatprep.subr.bf16.mxu0 %v7711
    %7769 = vmatpush2.bf16.msra.mxu0 %v7710
    %7770 = vmatprep.subr.bf16.mxu0 %v7709
    %7771 = vmatpush2.bf16.msra.mxu0 %v7708
    %7772 = vmatprep.subr.bf16.mxu0 %v7707
    %7773 = vmatpush2.bf16.msra.mxu0 %v7706
    %7774 = vmatprep.subr.bf16.mxu0 %v7705
    %7775 = vmatpush2.bf16.msra.mxu0 %v7704
    %7776 = vmatprep.subr.bf16.mxu0 %v7703
    %7777 = vmatpush2.bf16.msra.mxu0 %v7702
    %7778 = vmatprep.subr.bf16.mxu0 %v7701
    %7779 = vmatpush2.bf16.msra.mxu0 %v7700
    %7780 = vmatprep.mubr.bf16.mxu0 %v7543
    %7781 = vmatmul.mubr.bf16.gmra.mxu0 %v7542
    %v7782 = vpop.f32.mrf.mxu0
    %v7783 = vadd.f32 %v7581, %v7782
    %v7784 = vpop.f32.mrf.mxu0
    %v7785 = vadd.f32 %v7585, %v7784
    %v7786 = vpop.f32.mrf.mxu0
    %v7787 = vadd.f32 %v7581, %v7786
    %v7788 = vpop.f32.mrf.mxu0
    %v7789 = vadd.f32 %v7585, %v7788
    %7790 = vdwg.mxu0
    %v7791 = vunpack.c.l.bf16 %v7542
    %v7792 = vunpack.c.l.bf16 %v7543
    %v7793 = vunpack.c.h.bf16 %v7542
    %v7794 = vunpack.c.h.bf16 %v7543
    %v7795 = vadd.f32 %v7783, %v7791
    %v7796 = vadd.f32 %v7785, %v7792
    %v7797 = vadd.f32 %v7787, %v7793
    %v7798 = vadd.f32 %v7789, %v7794
    %v7799 = vmul.f32 %v7795, 0.02
    %v7800 = vmul.f32 %v7796, 0.02
    %v7801 = vmul.f32 %v7797, 0.02
    %v7802 = vmul.f32 %v7798, 0.02
    %v7803 = vmax.f32 %v7795, %v7799
    %v7804 = vmax.f32 %v7796, %v7800
    %v7805 = vmax.f32 %v7797, %v7801
    %v7806 = vmax.f32 %v7798, %v7802
    %v7807 = vpack.c.bf16 %v7805, %v7803
    %v7808 = vpack.c.bf16 %v7806, %v7804
    %v7809 = vld [vmem:[#allocation20] sm:$0xf]
    %v7810 = vld [vmem:[#allocation20 + $0x4] sm:$0xf]
    %v7811 = vld [vmem:[#allocation20 + $0x8] sm:$0xf]
    %v7812 = vld [vmem:[#allocation20 + $0xc] sm:$0xf]
    %v7813 = vld [vmem:[#allocation20 + $0x10] sm:$0xf]
    %v7814 = vld [vmem:[#allocation20 + $0x14] sm:$0xf]
    %v7815 = vld [vmem:[#allocation20 + $0x18] sm:$0xf]
    %v7816 = vld [vmem:[#allocation20 + $0x1c] sm:$0xf]
    %v7817 = vld [vmem:[#allocation20 + $0x20] sm:$0xf]
    %v7818 = vld [vmem:[#allocation20 + $0x24] sm:$0xf]
    %v7819 = vld [vmem:[#allocation20 + $0x28] sm:$0xf]
    %v7820 = vld [vmem:[#allocation20 + $0x2c] sm:$0xf]
    %v7821 = vld [vmem:[#allocation20 + $0x30] sm:$0xf]
    %v7822 = vld [vmem:[#allocation20 + $0x34] sm:$0xf]
    %v7823 = vld [vmem:[#allocation20 + $0x38] sm:$0xf]
    %v7824 = vld [vmem:[#allocation20 + $0x3c] sm:$0xf]
    %v7825 = vld [vmem:[#allocation20 + $0x40] sm:$0xf]
    %v7826 = vld [vmem:[#allocation20 + $0x44] sm:$0xf]
    %v7827 = vld [vmem:[#allocation20 + $0x48] sm:$0xf]
    %v7828 = vld [vmem:[#allocation20 + $0x4c] sm:$0xf]
    %v7829 = vld [vmem:[#allocation20 + $0x50] sm:$0xf]
    %v7830 = vld [vmem:[#allocation20 + $0x54] sm:$0xf]
    %v7831 = vld [vmem:[#allocation20 + $0x58] sm:$0xf]
    %v7832 = vld [vmem:[#allocation20 + $0x5c] sm:$0xf]
    %v7833 = vld [vmem:[#allocation20 + $0x60] sm:$0xf]
    %v7834 = vld [vmem:[#allocation20 + $0x64] sm:$0xf]
    %v7835 = vld [vmem:[#allocation20 + $0x68] sm:$0xf]
    %v7836 = vld [vmem:[#allocation20 + $0x6c] sm:$0xf]
    %v7837 = vld [vmem:[#allocation20 + $0x70] sm:$0xf]
    %v7838 = vld [vmem:[#allocation20 + $0x74] sm:$0xf]
    %v7839 = vld [vmem:[#allocation20 + $0x78] sm:$0xf]
    %v7840 = vld [vmem:[#allocation20 + $0x7c] sm:$0xf]
    %v7841 = vld [vmem:[#allocation22] sm:$0x1]
    %v7843 = vlaneseq
    %v7844 = vshrl.u32 %v7843, 7
    %v7845 = vsub.s32 0, %v7844
    %v7846 = vrot.slane %v7841, %v7845
    %v7880 = vunpack.c.l.b16 %v7809
    %v7881 = vunpack.c.l.b16 %v7810
    %v7882 = vunpack.c.l.b16 %v7811
    %v7883 = vunpack.c.l.b16 %v7812
    %v7884 = vunpack.c.l.b16 %v7813
    %v7885 = vunpack.c.l.b16 %v7814
    %v7886 = vunpack.c.l.b16 %v7815
    %v7887 = vunpack.c.l.b16 %v7816
    %v7888 = vunpack.c.l.b16 %v7817
    %v7889 = vunpack.c.l.b16 %v7818
    %v7890 = vunpack.c.l.b16 %v7819
    %v7891 = vunpack.c.l.b16 %v7820
    %v7892 = vunpack.c.l.b16 %v7821
    %v7893 = vunpack.c.l.b16 %v7822
    %v7894 = vunpack.c.l.b16 %v7823
    %v7895 = vunpack.c.l.b16 %v7824
    %v7896 = vunpack.c.l.b16 %v7825
    %v7897 = vunpack.c.l.b16 %v7826
    %v7898 = vunpack.c.l.b16 %v7827
    %v7899 = vunpack.c.l.b16 %v7828
    %v7900 = vunpack.c.l.b16 %v7829
    %v7901 = vunpack.c.l.b16 %v7830
    %v7902 = vunpack.c.l.b16 %v7831
    %v7903 = vunpack.c.l.b16 %v7832
    %v7904 = vunpack.c.l.b16 %v7833
    %v7905 = vunpack.c.l.b16 %v7834
    %v7906 = vunpack.c.l.b16 %v7835
    %v7907 = vunpack.c.l.b16 %v7836
    %v7908 = vunpack.c.l.b16 %v7837
    %v7909 = vunpack.c.l.b16 %v7838
    %v7910 = vunpack.c.l.b16 %v7839
    %v7911 = vunpack.c.l.b16 %v7840
    %v7912 = vpack.c.b16 %v7881, %v7880
    %v7913 = vpack.c.b16 %v7883, %v7882
    %v7914 = vpack.c.b16 %v7885, %v7884
    %v7915 = vpack.c.b16 %v7887, %v7886
    %v7916 = vpack.c.b16 %v7889, %v7888
    %v7917 = vpack.c.b16 %v7891, %v7890
    %v7918 = vpack.c.b16 %v7893, %v7892
    %v7919 = vpack.c.b16 %v7895, %v7894
    %v7920 = vpack.c.b16 %v7897, %v7896
    %v7921 = vpack.c.b16 %v7899, %v7898
    %v7922 = vpack.c.b16 %v7901, %v7900
    %v7923 = vpack.c.b16 %v7903, %v7902
    %v7924 = vpack.c.b16 %v7905, %v7904
    %v7925 = vpack.c.b16 %v7907, %v7906
    %v7926 = vpack.c.b16 %v7909, %v7908
    %v7927 = vpack.c.b16 %v7911, %v7910
    %7944 = vmatprep.subr.bf16.mxu0 0
    %7945 = vmatpush1.bf16.msra.mxu0 %v7919
    %7946 = vmatprep.subr.bf16.mxu0 0
    %7947 = vmatpush1.bf16.msra.mxu0 %v7918
    %7948 = vmatprep.subr.bf16.mxu0 0
    %7949 = vmatpush1.bf16.msra.mxu0 %v7917
    %7950 = vmatprep.subr.bf16.mxu0 0
    %7951 = vmatpush1.bf16.msra.mxu0 %v7916
    %7952 = vmatprep.subr.bf16.mxu0 0
    %7953 = vmatpush1.bf16.msra.mxu0 %v7915
    %7954 = vmatprep.subr.bf16.mxu0 0
    %7955 = vmatpush1.bf16.msra.mxu0 %v7914
    %7956 = vmatprep.subr.bf16.mxu0 0
    %7957 = vmatpush1.bf16.msra.mxu0 %v7913
    %7958 = vmatprep.subr.bf16.mxu0 0
    %7959 = vmatpush1.bf16.msra.mxu0 %v7912
    %7960 = vmatprep.subr.bf16.mxu0 0
    %7961 = vmatpush2.bf16.msra.mxu0 %v7927
    %7962 = vmatprep.subr.bf16.mxu0 0
    %7963 = vmatpush2.bf16.msra.mxu0 %v7926
    %7964 = vmatprep.subr.bf16.mxu0 0
    %7965 = vmatpush2.bf16.msra.mxu0 %v7925
    %7966 = vmatprep.subr.bf16.mxu0 0
    %7967 = vmatpush2.bf16.msra.mxu0 %v7924
    %7968 = vmatprep.subr.bf16.mxu0 0
    %7969 = vmatpush2.bf16.msra.mxu0 %v7923
    %7970 = vmatprep.subr.bf16.mxu0 0
    %7971 = vmatpush2.bf16.msra.mxu0 %v7922
    %7972 = vmatprep.subr.bf16.mxu0 0
    %7973 = vmatpush2.bf16.msra.mxu0 %v7921
    %7974 = vmatprep.subr.bf16.mxu0 0
    %7975 = vmatpush2.bf16.msra.mxu0 %v7920
    %7976 = vmatprep.mubr.bf16.mxu0 %v7808
    %7977 = vmatmul.mubr.bf16.gmra.mxu0 %v7807
    %v7978 = vpop.f32.mrf.mxu0
    %v7979 = vadd.f32 %v7846, %v7978
    %v7980 = vpop.f32.mrf.mxu0
    %v7981 = vpop.f32.mrf.mxu0
    %v7982 = vadd.f32 %v7846, %v7981
    %v7983 = vpop.f32.mrf.mxu0
    %7984 = vdwg.mxu0
    %vm7985 = vcmp.ge.f32.partialorder %v7979, 0.0
    %vm7986 = vcmp.ge.f32.partialorder %v7982, 0.0
    %v7987 = vsel %vm7985, 1.0, -1.0
    %v7988 = vsel %vm7986, 1.0, -1.0
    %v7989 = vpack.c.bf16 %v7988, %v7987
    %v7991 = vunpack.c.l.b16 %v7989
    %v7992 = vunpack.c.h.b16 %v7989
    %v7993 = vpack.c.b16 %v7991, %v7991
    %v7994 = vpack.c.b16 %v7992, %v7992
    %7997 = vst [vmem:[#allocation23] sm:$0xf] %v7993
    %7998 = vst [vmem:[#allocation23 + $0x4] sm:$0xf] %v7994
    // Predicated region
    $region106: #{tpu_custom_call.1} parent=1 // pred_check
      _
    $region107: #{tpu_custom_call.1} parent=1 // pred_check_branch
      %8000 = sbr.rel (0) target = $region109
    $region108: #{tpu_custom_call.1} parent=1 // pred_region
      %s8002 = ssub.s32 128, 128
      %8003 = vsyncadd [#allocation4], %s8002
      %s8004 = sshll.u32 [#allocation23], 4
      %s8005 = int_to_ptr.vmem [resolvable:$true] %s8004
      %8010 = dma.vmem_to_hbm [thread:$0]  %s8005, 128, %s13, [#allocation4], 64, 64, 4
    $region109: #{tpu_custom_call.1} parent=1 // pred_fallthru
      _
    // Predicated region
    $region110: #{tpu_custom_call.1} parent=1 // pred_check
      _
    $region111: #{tpu_custom_call.1} parent=1 // pred_check_branch
      %8012 = sbr.rel (0) target = $region113
    $region112: #{tpu_custom_call.1} parent=1 // pred_region
      %8013 = dma.done [#allocation4], 128
    $region113: #{tpu_custom_call.1} parent=1 // pred_fallthru
      _
    %8014 = vsyncpa [#allocation3], 1
    %8015 = vsyncpa [#allocation6], 1
    %8016 = vsyncpa [#allocation9], 1
    %8017 = vsyncpa [#allocation12], 1
    %8018 = vsyncpa [#allocation15], 1
    %8019 = vsyncpa [#allocation18], 1
    %8020 = vsyncpa [#allocation21], 1
    %8021 = vsyncpa [#allocation4], 1

</llo_original>
